<compile_context>
chip_gen: v7x
topology: tpu7x:2x2x1
jax: 0.10.0
libtpu: 0.0.40
codegen_flags: <defaults>
</compile_context>

<pallas_src>
import jax
import jax.numpy as jnp
from jax.experimental import pallas as pl
from jax.experimental.pallas import tpu as pltpu


_VMEM_LIMIT = 48 * 1024 * 1024          # <= v7x 64 MiB physical VMEM; plenty here
_VMEM_SPEC = pl.BlockSpec(memory_space=pltpu.MemorySpace.VMEM)


def _round_up(x, m):
    return (x + m - 1) // m * m


# ----------------------------------------------------------------------------
# Pallas kernels
# ----------------------------------------------------------------------------
def _matmul_bias_relu_kernel(a_ref, w_ref, b_ref, o_ref):
    """o = relu(a @ w + b); bf16 MXU matmul, f32 accumulation, bf16 output."""
    a = a_ref[...].astype(jnp.bfloat16)
    out = jnp.dot(a, w_ref[...], preferred_element_type=jnp.float32) + b_ref[...]
    o_ref[...] = jnp.maximum(out, 0.0).astype(o_ref.dtype)


def matmul_bias_relu(a, w, b):
    """relu(a @ w + b), tiled over M so both v7x TensorCores get a block."""
    M, K = a.shape
    K2, N = w.shape
    assert K == K2
    tile_m = _round_up((M + 1) // 2, 16)          # 2 sublane-aligned blocks
    grid_m = pl.cdiv(M, tile_m)                   # ragged last block handled by Pallas
    return pl.pallas_call(
        _matmul_bias_relu_kernel,
        out_shape=jax.ShapeDtypeStruct((M, N), jnp.bfloat16),
        grid=(grid_m,),
        in_specs=[
            pl.BlockSpec((tile_m, K), lambda i: (i, 0)),
            pl.BlockSpec((K, N), lambda i: (0, 0)),
            pl.BlockSpec((1, N), lambda i: (0, 0)),
        ],
        out_specs=pl.BlockSpec((tile_m, N), lambda i: (i, 0)),
        compiler_params=pltpu.CompilerParams(
            dimension_semantics=("parallel",),
            vmem_limit_bytes=_VMEM_LIMIT),
    )(a, w, b)


def _dueling_head_kernel(x_ref, wfc_ref, bfc_ref, wva_ref, bva_ref,
                         wv2_ref, bv2_ref, wa2_ref, ba2_ref, q_ref):
    """fc4 -> fused (value|advantage) hidden layer -> heads -> dueling combine."""
    nh = wv2_ref.shape[0]                                   # 512
    x = x_ref[...].astype(jnp.bfloat16)

    h = jnp.maximum(
        jnp.dot(x, wfc_ref[...], preferred_element_type=jnp.float32)
        + bfc_ref[...], 0.0).astype(jnp.bfloat16)

    # fused value/advantage hidden layer: single (512, 1024) matmul
    va = jnp.maximum(
        jnp.dot(h, wva_ref[...], preferred_element_type=jnp.float32)
        + bva_ref[...], 0.0)
    vh = va[:, :nh].astype(jnp.bfloat16)
    ah = va[:, nh:].astype(jnp.bfloat16)

    v = jnp.dot(vh, wv2_ref[...], preferred_element_type=jnp.float32) + bv2_ref[...]
    a = jnp.dot(ah, wa2_ref[...], preferred_element_type=jnp.float32) + ba2_ref[...]

    q_ref[...] = v + a - jnp.mean(a, axis=1, keepdims=True)


def dueling_head(flat, kp):
    B = flat.shape[0]
    n_actions = kp["wa2"].shape[1]
    return pl.pallas_call(
        _dueling_head_kernel,
        out_shape=jax.ShapeDtypeStruct((B, n_actions), jnp.float32),
        in_specs=[_VMEM_SPEC] * 9,
        out_specs=_VMEM_SPEC,
        compiler_params=pltpu.CompilerParams(vmem_limit_bytes=_VMEM_LIMIT),
    )(flat, kp["wfc"], kp["bfc"], kp["wva1"], kp["bva1"],
      kp["wv2"], kp["bv2"], kp["wa2"], kp["ba2"])


# ----------------------------------------------------------------------------
# Plain-JAX glue: NHWC im2col (static slices only, no transposes)
# ----------------------------------------------------------------------------
def _im2col_nhwc(x, k, s):
    """x: (B, H, W, C) -> (B*OH*OW, k*k*C), feature order (kh, kw, Cin)."""
    B, H, W, C = x.shape
    OH = (H - k) // s + 1
    OW = (W - k) // s + 1
    cols = []
    for i in range(k):
        for j in range(k):
            cols.append(x[:, i:i + s * (OH - 1) + 1:s, j:j + s * (OW - 1) + 1:s, :])
    p = jnp.stack(cols, axis=3)                       # (B, OH, OW, k*k, C)
    return p.reshape(B * OH * OW, k * k * C), OH, OW


def conv2d_relu_nhwc(x, wm, b, *, stride, ksize):
    """x: NHWC; wm: (k*k*Cin, Cout) bf16; returns NHWC bf16 activations."""
    B = x.shape[0]
    Cout = wm.shape[1]
    patches, OH, OW = _im2col_nhwc(x, ksize, stride)
    y = matmul_bias_relu(patches, wm, b)              # (B*OH*OW, Cout)
    return y.reshape(B, OH, OW, Cout)                 # metadata-only reshape


# ----------------------------------------------------------------------------
# Parameters: PyTorch-layout init + one-time kernel-friendly preparation
# ----------------------------------------------------------------------------
def init_params(key, in_channels=4, n_actions=14):
    ks = jax.random.split(key, 16)
    u = lambda k, shape, fan: jax.random.uniform(
        k, shape, jnp.float32, -1.0, 1.0) / jnp.sqrt(jnp.float32(fan))
    return {
        "w1": u(ks[0], (32, in_channels, 8, 8), in_channels * 64),
        "b1": u(ks[1], (32,), in_channels * 64),
        "w2": u(ks[2], (64, 32, 4, 4), 32 * 16),
        "b2": u(ks[3], (64,), 32 * 16),
        "w3": u(ks[4], (64, 64, 3, 3), 64 * 9),
        "b3": u(ks[5], (64,), 64 * 9),
        "wfc": u(ks[6], (7 * 7 * 64, 512), 7 * 7 * 64),
        "bfc": u(ks[7], (512,), 7 * 7 * 64),
        "wv1": u(ks[8], (512, 512), 512),
        "bv1": u(ks[9], (512,), 512),
        "wv2": u(ks[10], (512, 1), 512),
        "bv2": u(ks[11], (1,), 512),
        "wa1": u(ks[12], (512, 512), 512),
        "ba1": u(ks[13], (512,), 512),
        "wa2": u(ks[14], (512, n_actions), 512),
        "ba2": u(ks[15], (n_actions,), 512),
    }


def _conv_w_to_matrix(w):
    # (Cout, Cin, kh, kw) -> (kh*kw*Cin, Cout) to match NHWC im2col feature order
    Cout, Cin, kh, kw = w.shape
    return w.transpose(2, 3, 1, 0).reshape(kh * kw * Cin, Cout)


def prepare_params(p):
    """One-time transform of PyTorch-layout f32 params:
       NHWC im2col weight matrices, /255 folded into conv1, fc4 rows permuted to
       HWC-major flatten order, value|advantage hidden layers concatenated,
       weights cast to bf16 (biases kept f32 as (1, N) rows)."""
    bf = lambda a: a.astype(jnp.bfloat16)
    row = lambda b: b.reshape(1, -1).astype(jnp.float32)
    # PyTorch flatten of (B,64,7,7) is (C,H,W)-major; NHWC flatten is (H,W,C)-major.
    wfc_hwc = (p["wfc"].reshape(64, 7, 7, 512)
               .transpose(1, 2, 0, 3).reshape(7 * 7 * 64, 512))
    return {
        "w1m": bf(_conv_w_to_matrix(p["w1"]) * (1.0 / 255.0)),  # x/255 folded in
        "b1": row(p["b1"]),
        "w2m": bf(_conv_w_to_matrix(p["w2"])), "b2": row(p["b2"]),
        "w3m": bf(_conv_w_to_matrix(p["w3"])), "b3": row(p["b3"]),
        "wfc": bf(wfc_hwc), "bfc": row(p["bfc"]),
        "wva1": bf(jnp.concatenate([p["wv1"], p["wa1"]], axis=1)),   # (512, 1024)
        "bva1": row(jnp.concatenate([p["bv1"], p["ba1"]], axis=0)),  # (1, 1024)
        "wv2": bf(p["wv2"]), "bv2": row(p["bv2"]),
        "wa2": bf(p["wa2"]), "ba2": row(p["ba2"]),
    }


# ----------------------------------------------------------------------------
# Forward pass
# ----------------------------------------------------------------------------
def dueling_forward(kp, x):
    # Input follows PyTorch NCHW; single cheap transpose to NHWC, then NHWC-only.
    x = jnp.transpose(x, (0, 2, 3, 1))
    x = conv2d_relu_nhwc(x, kp["w1m"], kp["b1"], stride=4, ksize=8)   # (B,20,20,32)
    x = conv2d_relu_nhwc(x, kp["w2m"], kp["b2"], stride=2, ksize=4)   # (B, 9, 9,64)
    x = conv2d_relu_nhwc(x, kp["w3m"], kp["b3"], stride=1, ksize=3)   # (B, 7, 7,64)
    B = x.shape[0]
    flat = x.reshape(B, -1)            # (B, 3136) HWC-major; wfc rows pre-permuted
    return dueling_head(flat, kp)


if __name__ == "__main__":
    key = jax.random.PRNGKey(0)
    pkey, xkey = jax.random.split(key)
    params = init_params(pkey, in_channels=4, n_actions=14)
    kparams = prepare_params(params)

    # Atari frame stack: fc4 (7*7*64) fixes the spatial size to 84x84.
    B = 2
    x = jax.random.uniform(xkey, (B, 4, 84, 84), jnp.float32, 0.0, 255.0)

    fwd = jax.jit(dueling_forward)
    q = jax.block_until_ready(fwd(kparams, x))
    assert q.shape == (B, 14) and q.dtype == jnp.float32
    print("KERNEL_OK")
</pallas_src>

<mosaic_0001>
module attributes {stable_mosaic.version = 11 : i64} {
  func.func @_matmul_bias_relu_kernel(%arg0: i32, %arg1: memref<400x256xf32, #tpu.memory_space<vmem>>, %arg2: memref<256x32xbf16, #tpu.memory_space<vmem>>, %arg3: memref<1x32xf32, #tpu.memory_space<vmem>>, %arg4: memref<400x32xbf16, #tpu.memory_space<vmem>>) attributes {dimension_semantics = [#tpu.dimension_semantics<parallel>], iteration_bounds = array<i64: 2>, scalar_prefetch = 0 : i64, scratch_operands = 0 : i64, tpu.core_type = #tpu.core_type<tc>, window_params = [{transform_indices = @transform_0, window_bounds = array<i64: 400, 256>}, {pipeline_mode = #tpu.pipeline_mode<synchronous>, transform_indices = @transform_1, window_bounds = array<i64: 256, 32>}, {pipeline_mode = #tpu.pipeline_mode<synchronous>, transform_indices = @transform_2, window_bounds = array<i64: 1, 32>}, {transform_indices = @transform_3, window_bounds = array<i64: 400, 32>}]} {
    %c0 = arith.constant 0 : index
    %c0_0 = arith.constant 0 : index
    %0 = vector.load %arg1[%c0, %c0_0] : memref<400x256xf32, #tpu.memory_space<vmem>>, vector<400x256xf32>
    %1 = arith.truncf %0 : vector<400x256xf32> to vector<400x256xbf16>
    %c0_1 = arith.constant 0 : index
    %c0_2 = arith.constant 0 : index
    %2 = vector.load %arg2[%c0_1, %c0_2] : memref<256x32xbf16, #tpu.memory_space<vmem>>, vector<256x32xbf16>
    %cst = arith.constant dense<0.000000e+00> : vector<400x32xf32>
    %3 = tpu.matmul %1, %2, %cst {dimension_numbers = #tpu.dot_dimension_numbers<[1], [0], [0], [1], [0, 0, 1, 1], [], []>} : vector<400x256xbf16>, vector<256x32xbf16>, vector<400x32xf32> -> vector<400x32xf32>
    %c0_3 = arith.constant 0 : index
    %c0_4 = arith.constant 0 : index
    %4 = vector.load %arg3[%c0_3, %c0_4] : memref<1x32xf32, #tpu.memory_space<vmem>>, vector<1x32xf32>
    %5 = vector.broadcast %4 : vector<1x32xf32> to vector<400x32xf32>
    %6 = arith.addf %3, %5 : vector<400x32xf32>
    %cst_5 = arith.constant 0.000000e+00 : f32
    %7 = vector.broadcast %cst_5 : f32 to vector<400x32xf32>
    %8 = arith.maximumf %6, %7 : vector<400x32xf32>
    %9 = arith.truncf %8 : vector<400x32xf32> to vector<400x32xbf16>
    %c0_6 = arith.constant 0 : index
    %c0_7 = arith.constant 0 : index
    %10 = vector.load %arg4[%c0_6, %c0_7] : memref<400x32xbf16, #tpu.memory_space<vmem>>, vector<400x32xbf16>
    tpu.vector_store %arg4[%c0_6, %c0_7], %9 {strides = array<i32>} : memref<400x32xbf16, #tpu.memory_space<vmem>>, vector<400x32xbf16>,
    return
  }
  func.func @transform_0(%arg0: i32) -> (i32, i32) {
    %c0_i32 = arith.constant 0 : i32
    %c0_i32_0 = arith.constant 0 : i32
    return %arg0, %c0_i32 : i32, i32
  }
  func.func @transform_1(%arg0: i32) -> (i32, i32) {
    %c0_i32 = arith.constant 0 : i32
    %c0_i32_0 = arith.constant 0 : i32
    %c0_i32_1 = arith.constant 0 : i32
    return %c0_i32, %c0_i32_0 : i32, i32
  }
  func.func @transform_2(%arg0: i32) -> (i32, i32) {
    %c0_i32 = arith.constant 0 : i32
    %c0_i32_0 = arith.constant 0 : i32
    %c0_i32_1 = arith.constant 0 : i32
    return %c0_i32, %c0_i32_0 : i32, i32
  }
  func.func @transform_3(%arg0: i32) -> (i32, i32) {
    %c0_i32 = arith.constant 0 : i32
    %c0_i32_0 = arith.constant 0 : i32
    return %arg0, %c0_i32 : i32, i32
  }
}

module attributes {stable_mosaic.version = 11 : i64} {
  func.func @_matmul_bias_relu_kernel(%arg0: i32, %arg1: memref<96x512xbf16, #tpu.memory_space<vmem>>, %arg2: memref<512x64xbf16, #tpu.memory_space<vmem>>, %arg3: memref<1x64xf32, #tpu.memory_space<vmem>>, %arg4: memref<96x64xbf16, #tpu.memory_space<vmem>>) attributes {dimension_semantics = [#tpu.dimension_semantics<parallel>], iteration_bounds = array<i64: 2>, scalar_prefetch = 0 : i64, scratch_operands = 0 : i64, tpu.core_type = #tpu.core_type<tc>, window_params = [{transform_indices = @transform_0, window_bounds = array<i64: 96, 512>}, {pipeline_mode = #tpu.pipeline_mode<synchronous>, transform_indices = @transform_1, window_bounds = array<i64: 512, 64>}, {pipeline_mode = #tpu.pipeline_mode<synchronous>, transform_indices = @transform_2, window_bounds = array<i64: 1, 64>}, {transform_indices = @transform_3, window_bounds = array<i64: 96, 64>}]} {
    %c0 = arith.constant 0 : index
    %c0_0 = arith.constant 0 : index
    %0 = vector.load %arg1[%c0, %c0_0] : memref<96x512xbf16, #tpu.memory_space<vmem>>, vector<96x512xbf16>
    %c0_1 = arith.constant 0 : index
    %c0_2 = arith.constant 0 : index
    %1 = vector.load %arg2[%c0_1, %c0_2] : memref<512x64xbf16, #tpu.memory_space<vmem>>, vector<512x64xbf16>
    %cst = arith.constant dense<0.000000e+00> : vector<96x64xf32>
    %2 = tpu.matmul %0, %1, %cst {dimension_numbers = #tpu.dot_dimension_numbers<[1], [0], [0], [1], [0, 0, 1, 1], [], []>} : vector<96x512xbf16>, vector<512x64xbf16>, vector<96x64xf32> -> vector<96x64xf32>
    %c0_3 = arith.constant 0 : index
    %c0_4 = arith.constant 0 : index
    %3 = vector.load %arg3[%c0_3, %c0_4] : memref<1x64xf32, #tpu.memory_space<vmem>>, vector<1x64xf32>
    %4 = vector.broadcast %3 : vector<1x64xf32> to vector<96x64xf32>
    %5 = arith.addf %2, %4 : vector<96x64xf32>
    %cst_5 = arith.constant 0.000000e+00 : f32
    %6 = vector.broadcast %cst_5 : f32 to vector<96x64xf32>
    %7 = arith.maximumf %5, %6 : vector<96x64xf32>
    %8 = arith.truncf %7 : vector<96x64xf32> to vector<96x64xbf16>
    %c0_6 = arith.constant 0 : index
    %c0_7 = arith.constant 0 : index
    %9 = vector.load %arg4[%c0_6, %c0_7] : memref<96x64xbf16, #tpu.memory_space<vmem>>, vector<96x64xbf16>
    tpu.vector_store %arg4[%c0_6, %c0_7], %8 {strides = array<i32>} : memref<96x64xbf16, #tpu.memory_space<vmem>>, vector<96x64xbf16>,
    return
  }
  func.func @transform_0(%arg0: i32) -> (i32, i32) {
    %c0_i32 = arith.constant 0 : i32
    %c0_i32_0 = arith.constant 0 : i32
    return %arg0, %c0_i32 : i32, i32
  }
  func.func @transform_1(%arg0: i32) -> (i32, i32) {
    %c0_i32 = arith.constant 0 : i32
    %c0_i32_0 = arith.constant 0 : i32
    %c0_i32_1 = arith.constant 0 : i32
    return %c0_i32, %c0_i32_0 : i32, i32
  }
  func.func @transform_2(%arg0: i32) -> (i32, i32) {
    %c0_i32 = arith.constant 0 : i32
    %c0_i32_0 = arith.constant 0 : i32
    %c0_i32_1 = arith.constant 0 : i32
    return %c0_i32, %c0_i32_0 : i32, i32
  }
  func.func @transform_3(%arg0: i32) -> (i32, i32) {
    %c0_i32 = arith.constant 0 : i32
    %c0_i32_0 = arith.constant 0 : i32
    return %arg0, %c0_i32 : i32, i32
  }
}

module attributes {stable_mosaic.version = 11 : i64} {
  func.func @_matmul_bias_relu_kernel(%arg0: i32, %arg1: memref<64x576xbf16, #tpu.memory_space<vmem>>, %arg2: memref<576x64xbf16, #tpu.memory_space<vmem>>, %arg3: memref<1x64xf32, #tpu.memory_space<vmem>>, %arg4: memref<64x64xbf16, #tpu.memory_space<vmem>>) attributes {dimension_semantics = [#tpu.dimension_semantics<parallel>], iteration_bounds = array<i64: 2>, scalar_prefetch = 0 : i64, scratch_operands = 0 : i64, tpu.core_type = #tpu.core_type<tc>, window_params = [{transform_indices = @transform_0, window_bounds = array<i64: 64, 576>}, {pipeline_mode = #tpu.pipeline_mode<synchronous>, transform_indices = @transform_1, window_bounds = array<i64: 576, 64>}, {pipeline_mode = #tpu.pipeline_mode<synchronous>, transform_indices = @transform_2, window_bounds = array<i64: 1, 64>}, {transform_indices = @transform_3, window_bounds = array<i64: 64, 64>}]} {
    %c0 = arith.constant 0 : index
    %c0_0 = arith.constant 0 : index
    %0 = vector.load %arg1[%c0, %c0_0] : memref<64x576xbf16, #tpu.memory_space<vmem>>, vector<64x576xbf16>
    %c0_1 = arith.constant 0 : index
    %c0_2 = arith.constant 0 : index
    %1 = vector.load %arg2[%c0_1, %c0_2] : memref<576x64xbf16, #tpu.memory_space<vmem>>, vector<576x64xbf16>
    %cst = arith.constant dense<0.000000e+00> : vector<64x64xf32>
    %2 = tpu.matmul %0, %1, %cst {dimension_numbers = #tpu.dot_dimension_numbers<[1], [0], [0], [1], [0, 0, 1, 1], [], []>} : vector<64x576xbf16>, vector<576x64xbf16>, vector<64x64xf32> -> vector<64x64xf32>
    %c0_3 = arith.constant 0 : index
    %c0_4 = arith.constant 0 : index
    %3 = vector.load %arg3[%c0_3, %c0_4] : memref<1x64xf32, #tpu.memory_space<vmem>>, vector<1x64xf32>
    %4 = vector.broadcast %3 : vector<1x64xf32> to vector<64x64xf32>
    %5 = arith.addf %2, %4 : vector<64x64xf32>
    %cst_5 = arith.constant 0.000000e+00 : f32
    %6 = vector.broadcast %cst_5 : f32 to vector<64x64xf32>
    %7 = arith.maximumf %5, %6 : vector<64x64xf32>
    %8 = arith.truncf %7 : vector<64x64xf32> to vector<64x64xbf16>
    %c0_6 = arith.constant 0 : index
    %c0_7 = arith.constant 0 : index
    %9 = vector.load %arg4[%c0_6, %c0_7] : memref<64x64xbf16, #tpu.memory_space<vmem>>, vector<64x64xbf16>
    tpu.vector_store %arg4[%c0_6, %c0_7], %8 {strides = array<i32>} : memref<64x64xbf16, #tpu.memory_space<vmem>>, vector<64x64xbf16>,
    return
  }
  func.func @transform_0(%arg0: i32) -> (i32, i32) {
    %c0_i32 = arith.constant 0 : i32
    %c0_i32_0 = arith.constant 0 : i32
    return %arg0, %c0_i32 : i32, i32
  }
  func.func @transform_1(%arg0: i32) -> (i32, i32) {
    %c0_i32 = arith.constant 0 : i32
    %c0_i32_0 = arith.constant 0 : i32
    %c0_i32_1 = arith.constant 0 : i32
    return %c0_i32, %c0_i32_0 : i32, i32
  }
  func.func @transform_2(%arg0: i32) -> (i32, i32) {
    %c0_i32 = arith.constant 0 : i32
    %c0_i32_0 = arith.constant 0 : i32
    %c0_i32_1 = arith.constant 0 : i32
    return %c0_i32, %c0_i32_0 : i32, i32
  }
  func.func @transform_3(%arg0: i32) -> (i32, i32) {
    %c0_i32 = arith.constant 0 : i32
    %c0_i32_0 = arith.constant 0 : i32
    return %arg0, %c0_i32 : i32, i32
  }
}

module attributes {stable_mosaic.version = 11 : i64} {
  func.func @_dueling_head_kernel(%arg0: memref<2x3136xbf16, #tpu.memory_space<vmem>>, %arg1: memref<3136x512xbf16, #tpu.memory_space<vmem>>, %arg2: memref<1x512xf32, #tpu.memory_space<vmem>>, %arg3: memref<512x1024xbf16, #tpu.memory_space<vmem>>, %arg4: memref<1x1024xf32, #tpu.memory_space<vmem>>, %arg5: memref<512x1xbf16, #tpu.memory_space<vmem>>, %arg6: memref<1x1xf32, #tpu.memory_space<vmem>>, %arg7: memref<512x14xbf16, #tpu.memory_space<vmem>>, %arg8: memref<1x14xf32, #tpu.memory_space<vmem>>, %arg9: memref<2x14xf32, #tpu.memory_space<vmem>>) attributes {dimension_semantics = [], scalar_prefetch = 0 : i64, scratch_operands = 0 : i64, tpu.core_type = #tpu.core_type<tc>} {
    %c0 = arith.constant 0 : index
    %c0_0 = arith.constant 0 : index
    %0 = vector.load %arg0[%c0, %c0_0] : memref<2x3136xbf16, #tpu.memory_space<vmem>>, vector<2x3136xbf16>
    %c0_1 = arith.constant 0 : index
    %c0_2 = arith.constant 0 : index
    %1 = vector.load %arg1[%c0_1, %c0_2] : memref<3136x512xbf16, #tpu.memory_space<vmem>>, vector<3136x512xbf16>
    %cst = arith.constant dense<0.000000e+00> : vector<2x512xf32>
    %2 = tpu.matmul %0, %1, %cst {dimension_numbers = #tpu.dot_dimension_numbers<[1], [0], [0], [1], [0, 0, 1, 1], [], []>} : vector<2x3136xbf16>, vector<3136x512xbf16>, vector<2x512xf32> -> vector<2x512xf32>
    %c0_3 = arith.constant 0 : index
    %c0_4 = arith.constant 0 : index
    %3 = vector.load %arg2[%c0_3, %c0_4] : memref<1x512xf32, #tpu.memory_space<vmem>>, vector<1x512xf32>
    %4 = vector.broadcast %3 : vector<1x512xf32> to vector<2x512xf32>
    %5 = arith.addf %2, %4 : vector<2x512xf32>
    %cst_5 = arith.constant 0.000000e+00 : f32
    %6 = vector.broadcast %cst_5 : f32 to vector<2x512xf32>
    %7 = arith.maximumf %5, %6 : vector<2x512xf32>
    %8 = arith.truncf %7 : vector<2x512xf32> to vector<2x512xbf16>
    %c0_6 = arith.constant 0 : index
    %c0_7 = arith.constant 0 : index
    %9 = vector.load %arg3[%c0_6, %c0_7] : memref<512x1024xbf16, #tpu.memory_space<vmem>>, vector<512x1024xbf16>
    %cst_8 = arith.constant dense<0.000000e+00> : vector<2x1024xf32>
    %10 = tpu.matmul %8, %9, %cst_8 {dimension_numbers = #tpu.dot_dimension_numbers<[1], [0], [0], [1], [0, 0, 1, 1], [], []>} : vector<2x512xbf16>, vector<512x1024xbf16>, vector<2x1024xf32> -> vector<2x1024xf32>
    %c0_9 = arith.constant 0 : index
    %c0_10 = arith.constant 0 : index
    %11 = vector.load %arg4[%c0_9, %c0_10] : memref<1x1024xf32, #tpu.memory_space<vmem>>, vector<1x1024xf32>
    %12 = vector.broadcast %11 : vector<1x1024xf32> to vector<2x1024xf32>
    %13 = arith.addf %10, %12 : vector<2x1024xf32>
    %cst_11 = arith.constant 0.000000e+00 : f32
    %14 = vector.broadcast %cst_11 : f32 to vector<2x1024xf32>
    %15 = arith.maximumf %13, %14 : vector<2x1024xf32>
    %16 = vector.extract_strided_slice %15 {offsets = [0, 0], sizes = [2, 512], strides = [1, 1]} : vector<2x1024xf32> to vector<2x512xf32>
    %17 = arith.truncf %16 : vector<2x512xf32> to vector<2x512xbf16>
    %18 = vector.extract_strided_slice %15 {offsets = [0, 512], sizes = [2, 512], strides = [1, 1]} : vector<2x1024xf32> to vector<2x512xf32>
    %19 = arith.truncf %18 : vector<2x512xf32> to vector<2x512xbf16>
    %c0_12 = arith.constant 0 : index
    %c0_13 = arith.constant 0 : index
    %20 = vector.load %arg5[%c0_12, %c0_13] : memref<512x1xbf16, #tpu.memory_space<vmem>>, vector<512x1xbf16>
    %cst_14 = arith.constant dense<0.000000e+00> : vector<2x1xf32>
    %21 = tpu.matmul %17, %20, %cst_14 {dimension_numbers = #tpu.dot_dimension_numbers<[1], [0], [0], [1], [0, 0, 1, 1], [], []>} : vector<2x512xbf16>, vector<512x1xbf16>, vector<2x1xf32> -> vector<2x1xf32>
    %c0_15 = arith.constant 0 : index
    %c0_16 = arith.constant 0 : index
    %22 = vector.load %arg6[%c0_15, %c0_16] : memref<1x1xf32, #tpu.memory_space<vmem>>, vector<1x1xf32>
    %23 = vector.broadcast %22 : vector<1x1xf32> to vector<2x1xf32>
    %24 = arith.addf %21, %23 : vector<2x1xf32>
    %c0_17 = arith.constant 0 : index
    %c0_18 = arith.constant 0 : index
    %25 = vector.load %arg7[%c0_17, %c0_18] : memref<512x14xbf16, #tpu.memory_space<vmem>>, vector<512x14xbf16>
    %cst_19 = arith.constant dense<0.000000e+00> : vector<2x14xf32>
    %26 = tpu.matmul %19, %25, %cst_19 {dimension_numbers = #tpu.dot_dimension_numbers<[1], [0], [0], [1], [0, 0, 1, 1], [], []>} : vector<2x512xbf16>, vector<512x14xbf16>, vector<2x14xf32> -> vector<2x14xf32>
    %c0_20 = arith.constant 0 : index
    %c0_21 = arith.constant 0 : index
    %27 = vector.load %arg8[%c0_20, %c0_21] : memref<1x14xf32, #tpu.memory_space<vmem>>, vector<1x14xf32>
    %28 = vector.broadcast %27 : vector<1x14xf32> to vector<2x14xf32>
    %29 = arith.addf %26, %28 : vector<2x14xf32>
    %30 = vector.broadcast %24 : vector<2x1xf32> to vector<2x14xf32>
    %31 = arith.addf %30, %29 : vector<2x14xf32>
    %cst_22 = arith.constant dense<0.000000e+00> : vector<2xf32>
    %32 = vector.multi_reduction <add>, %29, %cst_22 [1] : vector<2x14xf32> to vector<2xf32>
    %33 = vector.shape_cast %32 : vector<2xf32> to vector<2x1xf32>
    %cst_23 = arith.constant 1.400000e+01 : f32
    %34 = vector.broadcast %cst_23 : f32 to vector<2x1xf32>
    %35 = arith.divf %33, %34 : vector<2x1xf32>
    %36 = vector.broadcast %35 : vector<2x1xf32> to vector<2x14xf32>
    %37 = arith.subf %31, %36 : vector<2x14xf32>
    %c0_24 = arith.constant 0 : index
    %c0_25 = arith.constant 0 : index
    %38 = vector.load %arg9[%c0_24, %c0_25] : memref<2x14xf32, #tpu.memory_space<vmem>>, vector<2x14xf32>
    tpu.vector_store %arg9[%c0_24, %c0_25], %37 {strides = array<i32>} : memref<2x14xf32, #tpu.memory_space<vmem>>, vector<2x14xf32>,
    return
  }
}

</mosaic_0001>

<llo_original>
// kernel: dueling_forward.4
$region0: #{dueling_forward.4}
  #allocation0 [shape = 'u32[]', space=smem, size = 0x4, offset = 0x4, fixed_abs, tag = 'smem constant byte address 0x4 - core index']
  #allocation1 [shape = 'u32[144,128]{1,0:T(1,128)}', space=vmem, size = 0x12000, scoped, tag = 'internal scratch']
  %s0 = inlined_call_operand.vmem [shape: f32[800,256], index: 0, kind: input, shape index: {}]
  %s1 = inlined_call_operand.vmem [shape: bf16[256,32], index: 1, kind: input, shape index: {}]
  %s2 = inlined_call_operand.vmem [shape: f32[1,32], index: 2, kind: input, shape index: {}]
  %s3 = inlined_call_operand.vmem [shape: bf16[800,32], index: 3, kind: output, shape index: {}]
  %s4 = sld [smem:[#allocation0]]
  $region45: #{dueling_forward.4} parent=0
    _
  %s6 = ssub.s32 1, %s4
  %s7 = scalar_select 0, %s6, %s4
  loop: start=0, step=1, limit=4
  $region2: #{dueling_forward.4} parent=0 // loop_pre_header
    _
  $region3: #{dueling_forward.4} parent=0 // loop_header
    %s9 = sphi 0, %s13
    %p10 = scmp.ge.s32.totalorder %s9, 4
    %s19 = sphi 0, %s21
    %s22 = sphi 0, %s19
    %s23 = sphi 0, %s22
    %s39 = sphi 0, %s23
    %s43 = sphi 0, %s43
    %s45 = sphi 0, %s43
    %s46 = sphi 0, %s45
    %s60 = sphi 0, %s46
    %s64 = sphi 0, %s64
    %s66 = sphi 0, %s64
    %s67 = sphi 0, %s66
    %s81 = sphi 0, %s67
    %s87 = sphi 0, %s89
    %s90 = sphi 0, %s87
    %s91 = sphi 0, %s90
    %s107 = sphi 0, %s91
  $region4: #{dueling_forward.4} parent=0 // loop_header_branch
    %12 = sbr.rel (%p10) target = $region8
  $region5: #{dueling_forward.4} parent=0 // loop_body
    %s14 = ssub.s32 %s9, 1
    %s15 = ssub.s32 %s9, 2
    %s16 = sadd.s32 %s9, 1
    %s17 = ssub.s32 %s9, %s16
    %p18 = scmp.eq.s32.totalorder %s17, 0
    %s20 = sadd.s32 %s19, 1
    %s21 = scalar_select %p18, %s19, %s20
    %p24 = pneg %p18
    %p25 = scmp.eq.s32.totalorder %s9, 1
    %p26 = por %p24, %p25
    %p27 = scmp.ne.s32.totalorder %s19, %s22
    %p28 = scmp.eq.s32.totalorder %s9, 0
    %p29 = por %p27, %p28
    %p30 = scmp.ne.s32.totalorder %s19, %s22
    %p31 = scmp.eq.s32.totalorder %s14, 1
    %p32 = por %p30, %p31
    %p33 = scmp.ne.s32.totalorder %s22, %s23
    %p34 = scmp.eq.s32.totalorder %s14, 0
    %p35 = por %p33, %p34
    %p36 = scmp.ne.s32.totalorder %s22, %s23
    %p37 = scmp.eq.s32.totalorder %s15, 1
    %p38 = por %p36, %p37
    %p40 = scmp.ne.s32.totalorder %s23, %s39
    %p41 = scmp.eq.s32.totalorder %s15, 0
    %p42 = por %p40, %p41
    %s44 = sadd.s32 %s43, 1
    %p47 = scmp.eq.s32.totalorder %s9, 1
    %p48 = scmp.ne.s32.totalorder %s43, %s45
    %p49 = scmp.eq.s32.totalorder %s9, 0
    %p50 = por %p48, %p49
    %p51 = scmp.ne.s32.totalorder %s43, %s45
    %p52 = scmp.eq.s32.totalorder %s14, 1
    %p53 = por %p51, %p52
    %p54 = scmp.ne.s32.totalorder %s45, %s46
    %p55 = scmp.eq.s32.totalorder %s14, 0
    %p56 = por %p54, %p55
    %p57 = scmp.ne.s32.totalorder %s45, %s46
    %p58 = scmp.eq.s32.totalorder %s15, 1
    %p59 = por %p57, %p58
    %p61 = scmp.ne.s32.totalorder %s46, %s60
    %p62 = scmp.eq.s32.totalorder %s15, 0
    %p63 = por %p61, %p62
    %s65 = sadd.s32 %s64, 1
    %p68 = scmp.eq.s32.totalorder %s9, 1
    %p69 = scmp.ne.s32.totalorder %s64, %s66
    %p70 = scmp.eq.s32.totalorder %s9, 0
    %p71 = por %p69, %p70
    %p72 = scmp.ne.s32.totalorder %s64, %s66
    %p73 = scmp.eq.s32.totalorder %s14, 1
    %p74 = por %p72, %p73
    %p75 = scmp.ne.s32.totalorder %s66, %s67
    %p76 = scmp.eq.s32.totalorder %s14, 0
    %p77 = por %p75, %p76
    %p78 = scmp.ne.s32.totalorder %s66, %s67
    %p79 = scmp.eq.s32.totalorder %s15, 1
    %p80 = por %p78, %p79
    %p82 = scmp.ne.s32.totalorder %s67, %s81
    %p83 = scmp.eq.s32.totalorder %s15, 0
    %p84 = por %p82, %p83
    %s85 = ssub.s32 %s9, %s16
    %p86 = scmp.eq.s32.totalorder %s85, 0
    %s88 = sadd.s32 %s87, 1
    %s89 = scalar_select %p86, %s87, %s88
    %p92 = pneg %p86
    %p93 = scmp.eq.s32.totalorder %s9, 1
    %p94 = por %p92, %p93
    %p95 = scmp.ne.s32.totalorder %s87, %s90
    %p96 = scmp.eq.s32.totalorder %s9, 0
    %p97 = por %p95, %p96
    %p98 = scmp.ne.s32.totalorder %s87, %s90
    %p99 = scmp.eq.s32.totalorder %s14, 1
    %p100 = por %p98, %p99
    %p101 = scmp.ne.s32.totalorder %s90, %s91
    %p102 = scmp.eq.s32.totalorder %s14, 0
    %p103 = por %p101, %p102
    %p104 = scmp.ne.s32.totalorder %s90, %s91
    %p105 = scmp.eq.s32.totalorder %s15, 1
    %p106 = por %p104, %p105
    %p108 = scmp.ne.s32.totalorder %s91, %s107
    %p109 = scmp.eq.s32.totalorder %s15, 0
    %p110 = por %p108, %p109
    %p111 = scmp.le.s32.totalorder 1, %s9
    %p112 = scmp.lt.s32.totalorder %s9, 3
    %p113 = pnand %p111, %p112
    %p114 = pneg %p113
    // Predicated region
    $region9: #{dueling_forward.4} parent=5 // pred_check
      _
    $region10: #{dueling_forward.4} parent=5 // pred_check_branch
      %116 = sbr.rel (%p113) target = $region12
    $region11: #{dueling_forward.4} parent=5 // pred_region
      %s117 = ssub.s32 %s9, 1
      // Predicated region
      $region13: #{dueling_forward.4} parent=11 // pred_check
        %p118 = pneg %p56
      $region14: #{dueling_forward.4} parent=11 // pred_check_branch
        %120 = sbr.rel (%p118) target = $region16
      $region15: #{dueling_forward.4} parent=11 // pred_region
        _
      $region16: #{dueling_forward.4} parent=11 // pred_fallthru
        _
      // Predicated region
      $region17: #{dueling_forward.4} parent=11 // pred_check
        %p121 = pneg %p77
      $region18: #{dueling_forward.4} parent=11 // pred_check_branch
        %123 = sbr.rel (%p121) target = $region20
      $region19: #{dueling_forward.4} parent=11 // pred_region
        _
      $region20: #{dueling_forward.4} parent=11 // pred_fallthru
        _
    $region12: #{dueling_forward.4} parent=5 // pred_fallthru
      _
    %p124 = scmp.lt.s32.totalorder %s9, 2
    // Predicated region
    $region21: #{dueling_forward.4} parent=5 // pred_check
      %p125 = pneg %p124
    $region22: #{dueling_forward.4} parent=5 // pred_check_branch
      %127 = sbr.rel (%p125) target = $region24
    $region23: #{dueling_forward.4} parent=5 // pred_region
      // Predicated region
      $region25: #{dueling_forward.4} parent=23 // pred_check
        %p128 = pneg %p29
      $region26: #{dueling_forward.4} parent=23 // pred_check_branch
        %130 = sbr.rel (%p128) target = $region28
      $region27: #{dueling_forward.4} parent=23 // pred_region
        %s131 = smul.u32 50, %s9
        %p132 = scmp.lt.s32.totalorder %s131, 99
        %s133 = scalar_select %p132, %s131, 99
        %s134 = smul.addr %s133, 2
        %s135 = smul.addr %s134, 8
        %s136 = scalar_lea.vmem %s0, %s135
        %s137 = smul.u32 50, %s9
      $region28: #{dueling_forward.4} parent=23 // pred_fallthru
        _
    $region24: #{dueling_forward.4} parent=5 // pred_fallthru
      _
    %p138 = scmp.le.s32.totalorder 1, %s9
    %p139 = scmp.lt.s32.totalorder %s9, 3
    %p140 = pnand %p138, %p139
    %p141 = pneg %p140
    // Predicated region
    $region29: #{dueling_forward.4} parent=5 // pred_check
      _
    $region30: #{dueling_forward.4} parent=5 // pred_check_branch
      %143 = sbr.rel (%p140) target = $region32
    $region31: #{dueling_forward.4} parent=5 // pred_region
      %s144 = ssub.s32 %s9, 1
      %s145 = smul.u32 50, %s14
      %p146 = scmp.lt.s32.totalorder %s145, 99
      %s147 = scalar_select %p146, %s145, 99
      %s148 = smul.addr %s147, 2
      %s149 = smul.addr %s148, 8
      %s150 = scalar_lea.vmem %s0, %s149
      %p151 = pneg %p35
      %p152 = pneg %p32
      %p153 = pneg %p56
      %p154 = pneg %p53
      %p155 = pneg %p77
      %p156 = pneg %p74
      %p157 = pneg %p103
      %p158 = pneg %p100
      %s159 = smul.u32 50, %s14
      %p160 = scmp.lt.s32.totalorder %s159, 99
      %s161 = scalar_select %p160, %s159, 99
      %s162 = smul.addr %s161, 4
      %s163 = scalar_lea.vmem %s3, %s162
      %s164 = smul.u32 50, %s14
      %p165 = scmp.lt.s32.totalorder %s164, 99
      %s166 = scalar_select %p165, %s164, 99
      %s167 = smul.addr %s166, 2
      %s168 = smul.addr %s167, 8
      %s169 = scalar_lea.vmem %s0, %s168
      %s170 = smul.u32 50, %s14
      %s171 = smul.u32 50, %s14
      %p172 = scmp.lt.s32.totalorder %s171, 99
      %s173 = scalar_select %p172, %s171, 99
      %s174 = smul.addr %s173, 4
      %s175 = scalar_lea.vmem %s3, %s174
      %s176 = smul.u32 50, %s14
      %v178 = vld [vmem:[%s169] sm:$0xff]
      %v179 = vld [vmem:[%s169 + $0x8] sm:$0xff]
      %v180 = vld [vmem:[%s169 + $0x10] sm:$0xff]
      %v181 = vld [vmem:[%s169 + $0x18] sm:$0xff]
      %v182 = vld [vmem:[%s169 + $0x20] sm:$0xff]
      %v183 = vld [vmem:[%s169 + $0x28] sm:$0xff]
      %v184 = vld [vmem:[%s169 + $0x30] sm:$0xff]
      %v185 = vld [vmem:[%s169 + $0x38] sm:$0xff]
      %v186 = vld [vmem:[%s169 + $0x40] sm:$0xff]
      %v187 = vld [vmem:[%s169 + $0x48] sm:$0xff]
      %v188 = vld [vmem:[%s169 + $0x50] sm:$0xff]
      %v189 = vld [vmem:[%s169 + $0x58] sm:$0xff]
      %v190 = vld [vmem:[%s169 + $0x60] sm:$0xff]
      %v191 = vld [vmem:[%s169 + $0x68] sm:$0xff]
      %v192 = vld [vmem:[%s169 + $0x70] sm:$0xff]
      %v193 = vld [vmem:[%s169 + $0x78] sm:$0xff]
      %v194 = vld [vmem:[%s169 + $0x80] sm:$0xff]
      %v195 = vld [vmem:[%s169 + $0x88] sm:$0xff]
      %v196 = vld [vmem:[%s169 + $0x90] sm:$0xff]
      %v197 = vld [vmem:[%s169 + $0x98] sm:$0xff]
      %v198 = vld [vmem:[%s169 + $0xa0] sm:$0xff]
      %v199 = vld [vmem:[%s169 + $0xa8] sm:$0xff]
      %v200 = vld [vmem:[%s169 + $0xb0] sm:$0xff]
      %v201 = vld [vmem:[%s169 + $0xb8] sm:$0xff]
      %v202 = vld [vmem:[%s169 + $0xc0] sm:$0xff]
      %v203 = vld [vmem:[%s169 + $0xc8] sm:$0xff]
      %v204 = vld [vmem:[%s169 + $0xd0] sm:$0xff]
      %v205 = vld [vmem:[%s169 + $0xd8] sm:$0xff]
      %v206 = vld [vmem:[%s169 + $0xe0] sm:$0xff]
      %v207 = vld [vmem:[%s169 + $0xe8] sm:$0xff]
      %v208 = vld [vmem:[%s169 + $0xf0] sm:$0xff]
      %v209 = vld [vmem:[%s169 + $0xf8] sm:$0xff]
      %v210 = vld [vmem:[%s169 + $0x100] sm:$0xff]
      %v211 = vld [vmem:[%s169 + $0x108] sm:$0xff]
      %v212 = vld [vmem:[%s169 + $0x110] sm:$0xff]
      %v213 = vld [vmem:[%s169 + $0x118] sm:$0xff]
      %v214 = vld [vmem:[%s169 + $0x120] sm:$0xff]
      %v215 = vld [vmem:[%s169 + $0x128] sm:$0xff]
      %v216 = vld [vmem:[%s169 + $0x130] sm:$0xff]
      %v217 = vld [vmem:[%s169 + $0x138] sm:$0xff]
      %v218 = vld [vmem:[%s169 + $0x140] sm:$0xff]
      %v219 = vld [vmem:[%s169 + $0x148] sm:$0xff]
      %v220 = vld [vmem:[%s169 + $0x150] sm:$0xff]
      %v221 = vld [vmem:[%s169 + $0x158] sm:$0xff]
      %v222 = vld [vmem:[%s169 + $0x160] sm:$0xff]
      %v223 = vld [vmem:[%s169 + $0x168] sm:$0xff]
      %v224 = vld [vmem:[%s169 + $0x170] sm:$0xff]
      %v225 = vld [vmem:[%s169 + $0x178] sm:$0xff]
      %v226 = vld [vmem:[%s169 + $0x180] sm:$0xff]
      %v227 = vld [vmem:[%s169 + $0x188] sm:$0xff]
      %v228 = vld [vmem:[%s169 + $0x190] sm:$0xff]
      %v229 = vld [vmem:[%s169 + $0x198] sm:$0xff]
      %v230 = vld [vmem:[%s169 + $0x1a0] sm:$0xff]
      %v231 = vld [vmem:[%s169 + $0x1a8] sm:$0xff]
      %v232 = vld [vmem:[%s169 + $0x1b0] sm:$0xff]
      %v233 = vld [vmem:[%s169 + $0x1b8] sm:$0xff]
      %v234 = vld [vmem:[%s169 + $0x1c0] sm:$0xff]
      %v235 = vld [vmem:[%s169 + $0x1c8] sm:$0xff]
      %v236 = vld [vmem:[%s169 + $0x1d0] sm:$0xff]
      %v237 = vld [vmem:[%s169 + $0x1d8] sm:$0xff]
      %v238 = vld [vmem:[%s169 + $0x1e0] sm:$0xff]
      %v239 = vld [vmem:[%s169 + $0x1e8] sm:$0xff]
      %v240 = vld [vmem:[%s169 + $0x1f0] sm:$0xff]
      %v241 = vld [vmem:[%s169 + $0x1f8] sm:$0xff]
      %v242 = vld [vmem:[%s169 + $0x200] sm:$0xff]
      %v243 = vld [vmem:[%s169 + $0x208] sm:$0xff]
      %v244 = vld [vmem:[%s169 + $0x210] sm:$0xff]
      %v245 = vld [vmem:[%s169 + $0x218] sm:$0xff]
      %v246 = vld [vmem:[%s169 + $0x220] sm:$0xff]
      %v247 = vld [vmem:[%s169 + $0x228] sm:$0xff]
      %v248 = vld [vmem:[%s169 + $0x230] sm:$0xff]
      %v249 = vld [vmem:[%s169 + $0x238] sm:$0xff]
      %v250 = vld [vmem:[%s169 + $0x240] sm:$0xff]
      %v251 = vld [vmem:[%s169 + $0x248] sm:$0xff]
      %v252 = vld [vmem:[%s169 + $0x250] sm:$0xff]
      %v253 = vld [vmem:[%s169 + $0x258] sm:$0xff]
      %v254 = vld [vmem:[%s169 + $0x260] sm:$0xff]
      %v255 = vld [vmem:[%s169 + $0x268] sm:$0xff]
      %v256 = vld [vmem:[%s169 + $0x270] sm:$0xff]
      %v257 = vld [vmem:[%s169 + $0x278] sm:$0xff]
      %v258 = vld [vmem:[%s169 + $0x280] sm:$0xff]
      %v259 = vld [vmem:[%s169 + $0x288] sm:$0xff]
      %v260 = vld [vmem:[%s169 + $0x290] sm:$0xff]
      %v261 = vld [vmem:[%s169 + $0x298] sm:$0xff]
      %v262 = vld [vmem:[%s169 + $0x2a0] sm:$0xff]
      %v263 = vld [vmem:[%s169 + $0x2a8] sm:$0xff]
      %v264 = vld [vmem:[%s169 + $0x2b0] sm:$0xff]
      %v265 = vld [vmem:[%s169 + $0x2b8] sm:$0xff]
      %v266 = vld [vmem:[%s169 + $0x2c0] sm:$0xff]
      %v267 = vld [vmem:[%s169 + $0x2c8] sm:$0xff]
      %v268 = vld [vmem:[%s169 + $0x2d0] sm:$0xff]
      %v269 = vld [vmem:[%s169 + $0x2d8] sm:$0xff]
      %v270 = vld [vmem:[%s169 + $0x2e0] sm:$0xff]
      %v271 = vld [vmem:[%s169 + $0x2e8] sm:$0xff]
      %v272 = vld [vmem:[%s169 + $0x2f0] sm:$0xff]
      %v273 = vld [vmem:[%s169 + $0x2f8] sm:$0xff]
      %v274 = vld [vmem:[%s169 + $0x300] sm:$0xff]
      %v275 = vld [vmem:[%s169 + $0x308] sm:$0xff]
      %v276 = vld [vmem:[%s169 + $0x310] sm:$0xff]
      %v277 = vld [vmem:[%s169 + $0x318] sm:$0xff]
      %v278 = vpack.c.bf16 %v180, %v178
      %v279 = vpack.c.bf16 %v181, %v179
      %v280 = vpack.c.bf16 %v184, %v182
      %v281 = vpack.c.bf16 %v185, %v183
      %v282 = vpack.c.bf16 %v188, %v186
      %v283 = vpack.c.bf16 %v189, %v187
      %v284 = vpack.c.bf16 %v192, %v190
      %v285 = vpack.c.bf16 %v193, %v191
      %v286 = vpack.c.bf16 %v196, %v194
      %v287 = vpack.c.bf16 %v197, %v195
      %v288 = vpack.c.bf16 %v200, %v198
      %v289 = vpack.c.bf16 %v201, %v199
      %v290 = vpack.c.bf16 %v204, %v202
      %v291 = vpack.c.bf16 %v205, %v203
      %v292 = vpack.c.bf16 %v208, %v206
      %v293 = vpack.c.bf16 %v209, %v207
      %v294 = vpack.c.bf16 %v212, %v210
      %v295 = vpack.c.bf16 %v213, %v211
      %v296 = vpack.c.bf16 %v216, %v214
      %v297 = vpack.c.bf16 %v217, %v215
      %v298 = vpack.c.bf16 %v220, %v218
      %v299 = vpack.c.bf16 %v221, %v219
      %v300 = vpack.c.bf16 %v224, %v222
      %v301 = vpack.c.bf16 %v225, %v223
      %v302 = vpack.c.bf16 %v228, %v226
      %v303 = vpack.c.bf16 %v229, %v227
      %v304 = vpack.c.bf16 %v232, %v230
      %v305 = vpack.c.bf16 %v233, %v231
      %v306 = vpack.c.bf16 %v236, %v234
      %v307 = vpack.c.bf16 %v237, %v235
      %v308 = vpack.c.bf16 %v240, %v238
      %v309 = vpack.c.bf16 %v241, %v239
      %v310 = vpack.c.bf16 %v244, %v242
      %v311 = vpack.c.bf16 %v245, %v243
      %v312 = vpack.c.bf16 %v248, %v246
      %v313 = vpack.c.bf16 %v249, %v247
      %v314 = vpack.c.bf16 %v252, %v250
      %v315 = vpack.c.bf16 %v253, %v251
      %v316 = vpack.c.bf16 %v256, %v254
      %v317 = vpack.c.bf16 %v257, %v255
      %v318 = vpack.c.bf16 %v260, %v258
      %v319 = vpack.c.bf16 %v261, %v259
      %v320 = vpack.c.bf16 %v264, %v262
      %v321 = vpack.c.bf16 %v265, %v263
      %v322 = vpack.c.bf16 %v268, %v266
      %v323 = vpack.c.bf16 %v269, %v267
      %v324 = vpack.c.bf16 %v272, %v270
      %v325 = vpack.c.bf16 %v273, %v271
      %v326 = vpack.c.bf16 %v276, %v274
      %v327 = vpack.c.bf16 %v277, %v275
      %v328 = vld [vmem:[%s1] sm:$0xf]
      %v329 = vld [vmem:[%s1 + $0x4] sm:$0xf]
      %v330 = vld [vmem:[%s1 + $0x8] sm:$0xf]
      %v331 = vld [vmem:[%s1 + $0xc] sm:$0xf]
      %v332 = vld [vmem:[%s1 + $0x10] sm:$0xf]
      %v333 = vld [vmem:[%s1 + $0x14] sm:$0xf]
      %v334 = vld [vmem:[%s1 + $0x18] sm:$0xf]
      %v335 = vld [vmem:[%s1 + $0x1c] sm:$0xf]
      %v336 = vld [vmem:[%s1 + $0x20] sm:$0xf]
      %v337 = vld [vmem:[%s1 + $0x24] sm:$0xf]
      %v338 = vld [vmem:[%s1 + $0x28] sm:$0xf]
      %v339 = vld [vmem:[%s1 + $0x2c] sm:$0xf]
      %v340 = vld [vmem:[%s1 + $0x30] sm:$0xf]
      %v341 = vld [vmem:[%s1 + $0x34] sm:$0xf]
      %v342 = vld [vmem:[%s1 + $0x38] sm:$0xf]
      %v343 = vld [vmem:[%s1 + $0x3c] sm:$0xf]
      %v344 = vld [vmem:[%s1 + $0x40] sm:$0xf]
      %v345 = vld [vmem:[%s1 + $0x44] sm:$0xf]
      %v346 = vld [vmem:[%s1 + $0x48] sm:$0xf]
      %v347 = vld [vmem:[%s1 + $0x4c] sm:$0xf]
      %v348 = vld [vmem:[%s1 + $0x50] sm:$0xf]
      %v349 = vld [vmem:[%s1 + $0x54] sm:$0xf]
      %v350 = vld [vmem:[%s1 + $0x58] sm:$0xf]
      %v351 = vld [vmem:[%s1 + $0x5c] sm:$0xf]
      %v352 = vld [vmem:[%s1 + $0x60] sm:$0xf]
      %v353 = vld [vmem:[%s1 + $0x64] sm:$0xf]
      %v354 = vld [vmem:[%s1 + $0x68] sm:$0xf]
      %v355 = vld [vmem:[%s1 + $0x6c] sm:$0xf]
      %v356 = vld [vmem:[%s1 + $0x70] sm:$0xf]
      %v357 = vld [vmem:[%s1 + $0x74] sm:$0xf]
      %v358 = vld [vmem:[%s1 + $0x78] sm:$0xf]
      %v359 = vld [vmem:[%s1 + $0x7c] sm:$0xf]
      %v360 = vld [vmem:[%s2] sm:$0x1]
      %v362 = vlaneseq
      %v363 = vshrl.u32 %v362, 7
      %v364 = vsub.s32 0, %v363
      %v365 = vrot.slane %v360, %v364
      %v399 = vunpack.c.l.b16 %v328
      %v400 = vunpack.c.l.b16 %v329
      %v401 = vunpack.c.l.b16 %v330
      %v402 = vunpack.c.l.b16 %v331
      %v403 = vunpack.c.l.b16 %v332
      %v404 = vunpack.c.l.b16 %v333
      %v405 = vunpack.c.l.b16 %v334
      %v406 = vunpack.c.l.b16 %v335
      %v407 = vunpack.c.l.b16 %v336
      %v408 = vunpack.c.l.b16 %v337
      %v409 = vunpack.c.l.b16 %v338
      %v410 = vunpack.c.l.b16 %v339
      %v411 = vunpack.c.l.b16 %v340
      %v412 = vunpack.c.l.b16 %v341
      %v413 = vunpack.c.l.b16 %v342
      %v414 = vunpack.c.l.b16 %v343
      %v415 = vunpack.c.l.b16 %v344
      %v416 = vunpack.c.l.b16 %v345
      %v417 = vunpack.c.l.b16 %v346
      %v418 = vunpack.c.l.b16 %v347
      %v419 = vunpack.c.l.b16 %v348
      %v420 = vunpack.c.l.b16 %v349
      %v421 = vunpack.c.l.b16 %v350
      %v422 = vunpack.c.l.b16 %v351
      %v423 = vunpack.c.l.b16 %v352
      %v424 = vunpack.c.l.b16 %v353
      %v425 = vunpack.c.l.b16 %v354
      %v426 = vunpack.c.l.b16 %v355
      %v427 = vunpack.c.l.b16 %v356
      %v428 = vunpack.c.l.b16 %v357
      %v429 = vunpack.c.l.b16 %v358
      %v430 = vunpack.c.l.b16 %v359
      %v431 = vpack.c.b16 %v400, %v399
      %v432 = vpack.c.b16 %v402, %v401
      %v433 = vpack.c.b16 %v404, %v403
      %v434 = vpack.c.b16 %v406, %v405
      %v435 = vpack.c.b16 %v408, %v407
      %v436 = vpack.c.b16 %v410, %v409
      %v437 = vpack.c.b16 %v412, %v411
      %v438 = vpack.c.b16 %v414, %v413
      %v439 = vpack.c.b16 %v416, %v415
      %v440 = vpack.c.b16 %v418, %v417
      %v441 = vpack.c.b16 %v420, %v419
      %v442 = vpack.c.b16 %v422, %v421
      %v443 = vpack.c.b16 %v424, %v423
      %v444 = vpack.c.b16 %v426, %v425
      %v445 = vpack.c.b16 %v428, %v427
      %v446 = vpack.c.b16 %v430, %v429
      %463 = vmatprep.subr.bf16.mxu0 0
      %464 = vmatpush1.bf16.msra.mxu0 %v431
      %465 = vmatprep.subr.bf16.mxu0 0
      %466 = vmatpush1.bf16.msra.mxu0 %v432
      %467 = vmatprep.subr.bf16.mxu0 0
      %468 = vmatpush1.bf16.msra.mxu0 %v433
      %469 = vmatprep.subr.bf16.mxu0 0
      %470 = vmatpush1.bf16.msra.mxu0 %v434
      %471 = vmatprep.subr.bf16.mxu0 0
      %472 = vmatpush1.bf16.msra.mxu0 %v435
      %473 = vmatprep.subr.bf16.mxu0 0
      %474 = vmatpush1.bf16.msra.mxu0 %v436
      %475 = vmatprep.subr.bf16.mxu0 0
      %476 = vmatpush1.bf16.msra.mxu0 %v437
      %477 = vmatprep.subr.bf16.mxu0 0
      %478 = vmatpush1.bf16.msra.mxu0 %v438
      %479 = vmatprep.subr.bf16.mxu0 0
      %480 = vmatpush1.bf16.msra.mxu0 %v439
      %481 = vmatprep.subr.bf16.mxu0 0
      %482 = vmatpush1.bf16.msra.mxu0 %v440
      %483 = vmatprep.subr.bf16.mxu0 0
      %484 = vmatpush1.bf16.msra.mxu0 %v441
      %485 = vmatprep.subr.bf16.mxu0 0
      %486 = vmatpush1.bf16.msra.mxu0 %v442
      %487 = vmatprep.subr.bf16.mxu0 0
      %488 = vmatpush1.bf16.msra.mxu0 %v443
      %489 = vmatprep.subr.bf16.mxu0 0
      %490 = vmatpush1.bf16.msra.mxu0 %v444
      %491 = vmatprep.subr.bf16.mxu0 0
      %492 = vmatpush1.bf16.msra.mxu0 %v445
      %493 = vmatprep.subr.bf16.mxu0 0
      %494 = vmatpush1.bf16.msra.mxu0 %v446
      %495 = vmatprep.mubr.bf16.mxu0 %v279
      %496 = vmatmul.mubr.bf16.gmra.mrb[0].mxu0 %v278
      %v497 = vpop.f32.mrb[0].mxu0
      %v498 = vadd.f32 %v365, %v497
      %v499 = vpop.f32.mrb[0].mxu0
      %v500 = vpop.f32.mrb[0].mxu0
      %v501 = vadd.f32 %v365, %v500
      %v502 = vpop.f32.mrb[0].mxu0
      %503 = vmatprep.mubr.bf16.mxu0 %v281
      %504 = vmatmul.mubr.bf16.gmra.mrb[0].mxu0 %v280
      %v505 = vpop.f32.mrb[0].mxu0
      %v506 = vadd.f32 %v365, %v505
      %v507 = vpop.f32.mrb[0].mxu0
      %v508 = vpop.f32.mrb[0].mxu0
      %v509 = vadd.f32 %v365, %v508
      %v510 = vpop.f32.mrb[0].mxu0
      %511 = vmatprep.mubr.bf16.mxu0 %v283
      %512 = vmatmul.mubr.bf16.gmra.mrb[0].mxu0 %v282
      %v513 = vpop.f32.mrb[0].mxu0
      %v514 = vadd.f32 %v365, %v513
      %v515 = vpop.f32.mrb[0].mxu0
      %v516 = vpop.f32.mrb[0].mxu0
      %v517 = vadd.f32 %v365, %v516
      %v518 = vpop.f32.mrb[0].mxu0
      %519 = vmatprep.mubr.bf16.mxu0 %v285
      %520 = vmatmul.mubr.bf16.gmra.mrb[0].mxu0 %v284
      %v521 = vpop.f32.mrb[0].mxu0
      %v522 = vadd.f32 %v365, %v521
      %v523 = vpop.f32.mrb[0].mxu0
      %v524 = vpop.f32.mrb[0].mxu0
      %v525 = vadd.f32 %v365, %v524
      %v526 = vpop.f32.mrb[0].mxu0
      %527 = vmatprep.mubr.bf16.mxu0 %v287
      %528 = vmatmul.mubr.bf16.gmra.mrb[0].mxu0 %v286
      %v529 = vpop.f32.mrb[0].mxu0
      %v530 = vadd.f32 %v365, %v529
      %v531 = vpop.f32.mrb[0].mxu0
      %v532 = vpop.f32.mrb[0].mxu0
      %v533 = vadd.f32 %v365, %v532
      %v534 = vpop.f32.mrb[0].mxu0
      %535 = vmatprep.mubr.bf16.mxu0 %v289
      %536 = vmatmul.mubr.bf16.gmra.mrb[0].mxu0 %v288
      %v537 = vpop.f32.mrb[0].mxu0
      %v538 = vadd.f32 %v365, %v537
      %v539 = vpop.f32.mrb[0].mxu0
      %v540 = vpop.f32.mrb[0].mxu0
      %v541 = vadd.f32 %v365, %v540
      %v542 = vpop.f32.mrb[0].mxu0
      %543 = vmatprep.mubr.bf16.mxu0 %v291
      %544 = vmatmul.mubr.bf16.gmra.mrb[0].mxu0 %v290
      %v545 = vpop.f32.mrb[0].mxu0
      %v546 = vadd.f32 %v365, %v545
      %v547 = vpop.f32.mrb[0].mxu0
      %v548 = vpop.f32.mrb[0].mxu0
      %v549 = vadd.f32 %v365, %v548
      %v550 = vpop.f32.mrb[0].mxu0
      %551 = vmatprep.mubr.bf16.mxu0 %v293
      %552 = vmatmul.mubr.bf16.gmra.mrb[0].mxu0 %v292
      %v553 = vpop.f32.mrb[0].mxu0
      %v554 = vadd.f32 %v365, %v553
      %v555 = vpop.f32.mrb[0].mxu0
      %v556 = vpop.f32.mrb[0].mxu0
      %v557 = vadd.f32 %v365, %v556
      %v558 = vpop.f32.mrb[0].mxu0
      %559 = vmatprep.mubr.bf16.mxu0 %v295
      %560 = vmatmul.mubr.bf16.gmra.mrb[0].mxu0 %v294
      %v561 = vpop.f32.mrb[0].mxu0
      %v562 = vadd.f32 %v365, %v561
      %v563 = vpop.f32.mrb[0].mxu0
      %v564 = vpop.f32.mrb[0].mxu0
      %v565 = vadd.f32 %v365, %v564
      %v566 = vpop.f32.mrb[0].mxu0
      %567 = vmatprep.mubr.bf16.mxu0 %v297
      %568 = vmatmul.mubr.bf16.gmra.mrb[0].mxu0 %v296
      %v569 = vpop.f32.mrb[0].mxu0
      %v570 = vadd.f32 %v365, %v569
      %v571 = vpop.f32.mrb[0].mxu0
      %v572 = vpop.f32.mrb[0].mxu0
      %v573 = vadd.f32 %v365, %v572
      %v574 = vpop.f32.mrb[0].mxu0
      %575 = vmatprep.mubr.bf16.mxu0 %v299
      %576 = vmatmul.mubr.bf16.gmra.mrb[0].mxu0 %v298
      %v577 = vpop.f32.mrb[0].mxu0
      %v578 = vadd.f32 %v365, %v577
      %v579 = vpop.f32.mrb[0].mxu0
      %v580 = vpop.f32.mrb[0].mxu0
      %v581 = vadd.f32 %v365, %v580
      %v582 = vpop.f32.mrb[0].mxu0
      %583 = vmatprep.mubr.bf16.mxu0 %v301
      %584 = vmatmul.mubr.bf16.gmra.mrb[0].mxu0 %v300
      %v585 = vpop.f32.mrb[0].mxu0
      %v586 = vadd.f32 %v365, %v585
      %v587 = vpop.f32.mrb[0].mxu0
      %v588 = vpop.f32.mrb[0].mxu0
      %v589 = vadd.f32 %v365, %v588
      %v590 = vpop.f32.mrb[0].mxu0
      %591 = vmatprep.mubr.bf16.mxu0 %v303
      %592 = vmatmul.mubr.bf16.gmra.mrb[0].mxu0 %v302
      %v593 = vpop.f32.mrb[0].mxu0
      %v594 = vadd.f32 %v365, %v593
      %v595 = vpop.f32.mrb[0].mxu0
      %v596 = vpop.f32.mrb[0].mxu0
      %v597 = vadd.f32 %v365, %v596
      %v598 = vpop.f32.mrb[0].mxu0
      %599 = vmatprep.mubr.bf16.mxu0 %v305
      %600 = vmatmul.mubr.bf16.gmra.mrb[0].mxu0 %v304
      %v601 = vpop.f32.mrb[0].mxu0
      %v602 = vadd.f32 %v365, %v601
      %v603 = vpop.f32.mrb[0].mxu0
      %v604 = vpop.f32.mrb[0].mxu0
      %v605 = vadd.f32 %v365, %v604
      %v606 = vpop.f32.mrb[0].mxu0
      %607 = vmatprep.mubr.bf16.mxu0 %v307
      %608 = vmatmul.mubr.bf16.gmra.mrb[0].mxu0 %v306
      %v609 = vpop.f32.mrb[0].mxu0
      %v610 = vadd.f32 %v365, %v609
      %v611 = vpop.f32.mrb[0].mxu0
      %v612 = vpop.f32.mrb[0].mxu0
      %v613 = vadd.f32 %v365, %v612
      %v614 = vpop.f32.mrb[0].mxu0
      %615 = vmatprep.mubr.bf16.mxu0 %v309
      %616 = vmatmul.mubr.bf16.gmra.mrb[0].mxu0 %v308
      %v617 = vpop.f32.mrb[0].mxu0
      %v618 = vadd.f32 %v365, %v617
      %v619 = vpop.f32.mrb[0].mxu0
      %v620 = vpop.f32.mrb[0].mxu0
      %v621 = vadd.f32 %v365, %v620
      %v622 = vpop.f32.mrb[0].mxu0
      %623 = vmatprep.mubr.bf16.mxu0 %v311
      %624 = vmatmul.mubr.bf16.gmra.mrb[0].mxu0 %v310
      %v625 = vpop.f32.mrb[0].mxu0
      %v626 = vadd.f32 %v365, %v625
      %v627 = vpop.f32.mrb[0].mxu0
      %v628 = vpop.f32.mrb[0].mxu0
      %v629 = vadd.f32 %v365, %v628
      %v630 = vpop.f32.mrb[0].mxu0
      %631 = vmatprep.mubr.bf16.mxu0 %v313
      %632 = vmatmul.mubr.bf16.gmra.mrb[0].mxu0 %v312
      %v633 = vpop.f32.mrb[0].mxu0
      %v634 = vadd.f32 %v365, %v633
      %v635 = vpop.f32.mrb[0].mxu0
      %v636 = vpop.f32.mrb[0].mxu0
      %v637 = vadd.f32 %v365, %v636
      %v638 = vpop.f32.mrb[0].mxu0
      %639 = vmatprep.mubr.bf16.mxu0 %v315
      %640 = vmatmul.mubr.bf16.gmra.mrb[0].mxu0 %v314
      %v641 = vpop.f32.mrb[0].mxu0
      %v642 = vadd.f32 %v365, %v641
      %v643 = vpop.f32.mrb[0].mxu0
      %v644 = vpop.f32.mrb[0].mxu0
      %v645 = vadd.f32 %v365, %v644
      %v646 = vpop.f32.mrb[0].mxu0
      %647 = vmatprep.mubr.bf16.mxu0 %v317
      %648 = vmatmul.mubr.bf16.gmra.mrb[0].mxu0 %v316
      %v649 = vpop.f32.mrb[0].mxu0
      %v650 = vadd.f32 %v365, %v649
      %v651 = vpop.f32.mrb[0].mxu0
      %v652 = vpop.f32.mrb[0].mxu0
      %v653 = vadd.f32 %v365, %v652
      %v654 = vpop.f32.mrb[0].mxu0
      %655 = vmatprep.mubr.bf16.mxu0 %v319
      %656 = vmatmul.mubr.bf16.gmra.mrb[0].mxu0 %v318
      %v657 = vpop.f32.mrb[0].mxu0
      %v658 = vadd.f32 %v365, %v657
      %v659 = vpop.f32.mrb[0].mxu0
      %v660 = vpop.f32.mrb[0].mxu0
      %v661 = vadd.f32 %v365, %v660
      %v662 = vpop.f32.mrb[0].mxu0
      %663 = vmatprep.mubr.bf16.mxu0 %v321
      %664 = vmatmul.mubr.bf16.gmra.mrb[0].mxu0 %v320
      %v665 = vpop.f32.mrb[0].mxu0
      %v666 = vadd.f32 %v365, %v665
      %v667 = vpop.f32.mrb[0].mxu0
      %v668 = vpop.f32.mrb[0].mxu0
      %v669 = vadd.f32 %v365, %v668
      %v670 = vpop.f32.mrb[0].mxu0
      %671 = vmatprep.mubr.bf16.mxu0 %v323
      %672 = vmatmul.mubr.bf16.gmra.mrb[0].mxu0 %v322
      %v673 = vpop.f32.mrb[0].mxu0
      %v674 = vadd.f32 %v365, %v673
      %v675 = vpop.f32.mrb[0].mxu0
      %v676 = vpop.f32.mrb[0].mxu0
      %v677 = vadd.f32 %v365, %v676
      %v678 = vpop.f32.mrb[0].mxu0
      %679 = vmatprep.mubr.bf16.mxu0 %v325
      %680 = vmatmul.mubr.bf16.gmra.mrb[0].mxu0 %v324
      %v681 = vpop.f32.mrb[0].mxu0
      %v682 = vadd.f32 %v365, %v681
      %v683 = vpop.f32.mrb[0].mxu0
      %v684 = vpop.f32.mrb[0].mxu0
      %v685 = vadd.f32 %v365, %v684
      %v686 = vpop.f32.mrb[0].mxu0
      %687 = vmatprep.mubr.bf16.mxu0 %v327
      %688 = vmatmul.mubr.bf16.gmra.mrb[0].mxu0 %v326
      %v689 = vpop.f32.mrb[0].mxu0
      %v690 = vadd.f32 %v365, %v689
      %v691 = vpop.f32.mrb[0].mxu0
      %v692 = vpop.f32.mrb[0].mxu0
      %v693 = vadd.f32 %v365, %v692
      %v694 = vpop.f32.mrb[0].mxu0
      %695 = vdwg.mxu0
      %v696 = vmax.f32 %v498, 0.0
      %v697 = vmax.f32 %v501, 0.0
      %v698 = vmax.f32 %v506, 0.0
      %v699 = vmax.f32 %v509, 0.0
      %v700 = vmax.f32 %v514, 0.0
      %v701 = vmax.f32 %v517, 0.0
      %v702 = vmax.f32 %v522, 0.0
      %v703 = vmax.f32 %v525, 0.0
      %v704 = vmax.f32 %v530, 0.0
      %v705 = vmax.f32 %v533, 0.0
      %v706 = vmax.f32 %v538, 0.0
      %v707 = vmax.f32 %v541, 0.0
      %v708 = vmax.f32 %v546, 0.0
      %v709 = vmax.f32 %v549, 0.0
      %v710 = vmax.f32 %v554, 0.0
      %v711 = vmax.f32 %v557, 0.0
      %v712 = vmax.f32 %v562, 0.0
      %v713 = vmax.f32 %v565, 0.0
      %v714 = vmax.f32 %v570, 0.0
      %v715 = vmax.f32 %v573, 0.0
      %v716 = vmax.f32 %v578, 0.0
      %v717 = vmax.f32 %v581, 0.0
      %v718 = vmax.f32 %v586, 0.0
      %v719 = vmax.f32 %v589, 0.0
      %v720 = vmax.f32 %v594, 0.0
      %v721 = vmax.f32 %v597, 0.0
      %v722 = vmax.f32 %v602, 0.0
      %v723 = vmax.f32 %v605, 0.0
      %v724 = vmax.f32 %v610, 0.0
      %v725 = vmax.f32 %v613, 0.0
      %v726 = vmax.f32 %v618, 0.0
      %v727 = vmax.f32 %v621, 0.0
      %v728 = vmax.f32 %v626, 0.0
      %v729 = vmax.f32 %v629, 0.0
      %v730 = vmax.f32 %v634, 0.0
      %v731 = vmax.f32 %v637, 0.0
      %v732 = vmax.f32 %v642, 0.0
      %v733 = vmax.f32 %v645, 0.0
      %v734 = vmax.f32 %v650, 0.0
      %v735 = vmax.f32 %v653, 0.0
      %v736 = vmax.f32 %v658, 0.0
      %v737 = vmax.f32 %v661, 0.0
      %v738 = vmax.f32 %v666, 0.0
      %v739 = vmax.f32 %v669, 0.0
      %v740 = vmax.f32 %v674, 0.0
      %v741 = vmax.f32 %v677, 0.0
      %v742 = vmax.f32 %v682, 0.0
      %v743 = vmax.f32 %v685, 0.0
      %v744 = vmax.f32 %v690, 0.0
      %v745 = vmax.f32 %v693, 0.0
      %v746 = vpack.c.bf16 %v697, %v696
      %v747 = vpack.c.bf16 %v699, %v698
      %v748 = vpack.c.bf16 %v701, %v700
      %v749 = vpack.c.bf16 %v703, %v702
      %v750 = vpack.c.bf16 %v705, %v704
      %v751 = vpack.c.bf16 %v707, %v706
      %v752 = vpack.c.bf16 %v709, %v708
      %v753 = vpack.c.bf16 %v711, %v710
      %v754 = vpack.c.bf16 %v713, %v712
      %v755 = vpack.c.bf16 %v715, %v714
      %v756 = vpack.c.bf16 %v717, %v716
      %v757 = vpack.c.bf16 %v719, %v718
      %v758 = vpack.c.bf16 %v721, %v720
      %v759 = vpack.c.bf16 %v723, %v722
      %v760 = vpack.c.bf16 %v725, %v724
      %v761 = vpack.c.bf16 %v727, %v726
      %v762 = vpack.c.bf16 %v729, %v728
      %v763 = vpack.c.bf16 %v731, %v730
      %v764 = vpack.c.bf16 %v733, %v732
      %v765 = vpack.c.bf16 %v735, %v734
      %v766 = vpack.c.bf16 %v737, %v736
      %v767 = vpack.c.bf16 %v739, %v738
      %v768 = vpack.c.bf16 %v741, %v740
      %v769 = vpack.c.bf16 %v743, %v742
      %v770 = vpack.c.bf16 %v745, %v744
      %v796 = vunpack.c.l.b16 %v746
      %v797 = vunpack.c.h.b16 %v746
      %v798 = vunpack.c.l.b16 %v747
      %v799 = vunpack.c.h.b16 %v747
      %v800 = vunpack.c.l.b16 %v748
      %v801 = vunpack.c.h.b16 %v748
      %v802 = vunpack.c.l.b16 %v749
      %v803 = vunpack.c.h.b16 %v749
      %v804 = vunpack.c.l.b16 %v750
      %v805 = vunpack.c.h.b16 %v750
      %v806 = vunpack.c.l.b16 %v751
      %v807 = vunpack.c.h.b16 %v751
      %v808 = vunpack.c.l.b16 %v752
      %v809 = vunpack.c.h.b16 %v752
      %v810 = vunpack.c.l.b16 %v753
      %v811 = vunpack.c.h.b16 %v753
      %v812 = vunpack.c.l.b16 %v754
      %v813 = vunpack.c.h.b16 %v754
      %v814 = vunpack.c.l.b16 %v755
      %v815 = vunpack.c.h.b16 %v755
      %v816 = vunpack.c.l.b16 %v756
      %v817 = vunpack.c.h.b16 %v756
      %v818 = vunpack.c.l.b16 %v757
      %v819 = vunpack.c.h.b16 %v757
      %v820 = vunpack.c.l.b16 %v758
      %v821 = vunpack.c.h.b16 %v758
      %v822 = vunpack.c.l.b16 %v759
      %v823 = vunpack.c.h.b16 %v759
      %v824 = vunpack.c.l.b16 %v760
      %v825 = vunpack.c.h.b16 %v760
      %v826 = vunpack.c.l.b16 %v761
      %v827 = vunpack.c.h.b16 %v761
      %v828 = vunpack.c.l.b16 %v762
      %v829 = vunpack.c.h.b16 %v762
      %v830 = vunpack.c.l.b16 %v763
      %v831 = vunpack.c.h.b16 %v763
      %v832 = vunpack.c.l.b16 %v764
      %v833 = vunpack.c.h.b16 %v764
      %v834 = vunpack.c.l.b16 %v765
      %v835 = vunpack.c.h.b16 %v765
      %v836 = vunpack.c.l.b16 %v766
      %v837 = vunpack.c.h.b16 %v766
      %v838 = vunpack.c.l.b16 %v767
      %v839 = vunpack.c.h.b16 %v767
      %v840 = vunpack.c.l.b16 %v768
      %v841 = vunpack.c.h.b16 %v768
      %v842 = vunpack.c.l.b16 %v769
      %v843 = vunpack.c.h.b16 %v769
      %v844 = vunpack.c.l.b16 %v770
      %v845 = vunpack.c.h.b16 %v770
      %v846 = vpack.c.b16 %v796, %v796
      %v847 = vpack.c.b16 %v797, %v797
      %v848 = vpack.c.b16 %v798, %v798
      %v849 = vpack.c.b16 %v799, %v799
      %v850 = vpack.c.b16 %v800, %v800
      %v851 = vpack.c.b16 %v801, %v801
      %v852 = vpack.c.b16 %v802, %v802
      %v853 = vpack.c.b16 %v803, %v803
      %v854 = vpack.c.b16 %v804, %v804
      %v855 = vpack.c.b16 %v805, %v805
      %v856 = vpack.c.b16 %v806, %v806
      %v857 = vpack.c.b16 %v807, %v807
      %v858 = vpack.c.b16 %v808, %v808
      %v859 = vpack.c.b16 %v809, %v809
      %v860 = vpack.c.b16 %v810, %v810
      %v861 = vpack.c.b16 %v811, %v811
      %v862 = vpack.c.b16 %v812, %v812
      %v863 = vpack.c.b16 %v813, %v813
      %v864 = vpack.c.b16 %v814, %v814
      %v865 = vpack.c.b16 %v815, %v815
      %v866 = vpack.c.b16 %v816, %v816
      %v867 = vpack.c.b16 %v817, %v817
      %v868 = vpack.c.b16 %v818, %v818
      %v869 = vpack.c.b16 %v819, %v819
      %v870 = vpack.c.b16 %v820, %v820
      %v871 = vpack.c.b16 %v821, %v821
      %v872 = vpack.c.b16 %v822, %v822
      %v873 = vpack.c.b16 %v823, %v823
      %v874 = vpack.c.b16 %v824, %v824
      %v875 = vpack.c.b16 %v825, %v825
      %v876 = vpack.c.b16 %v826, %v826
      %v877 = vpack.c.b16 %v827, %v827
      %v878 = vpack.c.b16 %v828, %v828
      %v879 = vpack.c.b16 %v829, %v829
      %v880 = vpack.c.b16 %v830, %v830
      %v881 = vpack.c.b16 %v831, %v831
      %v882 = vpack.c.b16 %v832, %v832
      %v883 = vpack.c.b16 %v833, %v833
      %v884 = vpack.c.b16 %v834, %v834
      %v885 = vpack.c.b16 %v835, %v835
      %v886 = vpack.c.b16 %v836, %v836
      %v887 = vpack.c.b16 %v837, %v837
      %v888 = vpack.c.b16 %v838, %v838
      %v889 = vpack.c.b16 %v839, %v839
      %v890 = vpack.c.b16 %v840, %v840
      %v891 = vpack.c.b16 %v841, %v841
      %v892 = vpack.c.b16 %v842, %v842
      %v893 = vpack.c.b16 %v843, %v843
      %v894 = vpack.c.b16 %v844, %v844
      %v895 = vpack.c.b16 %v845, %v845
      %vm946 = vcmask 257024
      %947 = vst.msk [vmem:[%s175] sm:$0xf] %vm946, %v846
      %948 = vst.msk [vmem:[%s175 + $0x4] sm:$0xf] %vm946, %v847
      %949 = vst.msk [vmem:[%s175 + $0x8] sm:$0xf] %vm946, %v848
      %950 = vst.msk [vmem:[%s175 + $0xc] sm:$0xf] %vm946, %v849
      %951 = vst.msk [vmem:[%s175 + $0x10] sm:$0xf] %vm946, %v850
      %952 = vst.msk [vmem:[%s175 + $0x14] sm:$0xf] %vm946, %v851
      %953 = vst.msk [vmem:[%s175 + $0x18] sm:$0xf] %vm946, %v852
      %954 = vst.msk [vmem:[%s175 + $0x1c] sm:$0xf] %vm946, %v853
      %955 = vst.msk [vmem:[%s175 + $0x20] sm:$0xf] %vm946, %v854
      %956 = vst.msk [vmem:[%s175 + $0x24] sm:$0xf] %vm946, %v855
      %957 = vst.msk [vmem:[%s175 + $0x28] sm:$0xf] %vm946, %v856
      %958 = vst.msk [vmem:[%s175 + $0x2c] sm:$0xf] %vm946, %v857
      %959 = vst.msk [vmem:[%s175 + $0x30] sm:$0xf] %vm946, %v858
      %960 = vst.msk [vmem:[%s175 + $0x34] sm:$0xf] %vm946, %v859
      %961 = vst.msk [vmem:[%s175 + $0x38] sm:$0xf] %vm946, %v860
      %962 = vst.msk [vmem:[%s175 + $0x3c] sm:$0xf] %vm946, %v861
      %963 = vst.msk [vmem:[%s175 + $0x40] sm:$0xf] %vm946, %v862
      %964 = vst.msk [vmem:[%s175 + $0x44] sm:$0xf] %vm946, %v863
      %965 = vst.msk [vmem:[%s175 + $0x48] sm:$0xf] %vm946, %v864
      %966 = vst.msk [vmem:[%s175 + $0x4c] sm:$0xf] %vm946, %v865
      %967 = vst.msk [vmem:[%s175 + $0x50] sm:$0xf] %vm946, %v866
      %968 = vst.msk [vmem:[%s175 + $0x54] sm:$0xf] %vm946, %v867
      %969 = vst.msk [vmem:[%s175 + $0x58] sm:$0xf] %vm946, %v868
      %970 = vst.msk [vmem:[%s175 + $0x5c] sm:$0xf] %vm946, %v869
      %971 = vst.msk [vmem:[%s175 + $0x60] sm:$0xf] %vm946, %v870
      %972 = vst.msk [vmem:[%s175 + $0x64] sm:$0xf] %vm946, %v871
      %973 = vst.msk [vmem:[%s175 + $0x68] sm:$0xf] %vm946, %v872
      %974 = vst.msk [vmem:[%s175 + $0x6c] sm:$0xf] %vm946, %v873
      %975 = vst.msk [vmem:[%s175 + $0x70] sm:$0xf] %vm946, %v874
      %976 = vst.msk [vmem:[%s175 + $0x74] sm:$0xf] %vm946, %v875
      %977 = vst.msk [vmem:[%s175 + $0x78] sm:$0xf] %vm946, %v876
      %978 = vst.msk [vmem:[%s175 + $0x7c] sm:$0xf] %vm946, %v877
      %979 = vst.msk [vmem:[%s175 + $0x80] sm:$0xf] %vm946, %v878
      %980 = vst.msk [vmem:[%s175 + $0x84] sm:$0xf] %vm946, %v879
      %981 = vst.msk [vmem:[%s175 + $0x88] sm:$0xf] %vm946, %v880
      %982 = vst.msk [vmem:[%s175 + $0x8c] sm:$0xf] %vm946, %v881
      %983 = vst.msk [vmem:[%s175 + $0x90] sm:$0xf] %vm946, %v882
      %984 = vst.msk [vmem:[%s175 + $0x94] sm:$0xf] %vm946, %v883
      %985 = vst.msk [vmem:[%s175 + $0x98] sm:$0xf] %vm946, %v884
      %986 = vst.msk [vmem:[%s175 + $0x9c] sm:$0xf] %vm946, %v885
      %987 = vst.msk [vmem:[%s175 + $0xa0] sm:$0xf] %vm946, %v886
      %988 = vst.msk [vmem:[%s175 + $0xa4] sm:$0xf] %vm946, %v887
      %989 = vst.msk [vmem:[%s175 + $0xa8] sm:$0xf] %vm946, %v888
      %990 = vst.msk [vmem:[%s175 + $0xac] sm:$0xf] %vm946, %v889
      %991 = vst.msk [vmem:[%s175 + $0xb0] sm:$0xf] %vm946, %v890
      %992 = vst.msk [vmem:[%s175 + $0xb4] sm:$0xf] %vm946, %v891
      %993 = vst.msk [vmem:[%s175 + $0xb8] sm:$0xf] %vm946, %v892
      %994 = vst.msk [vmem:[%s175 + $0xbc] sm:$0xf] %vm946, %v893
      %995 = vst.msk [vmem:[%s175 + $0xc0] sm:$0xf] %vm946, %v894
      %996 = vst.msk [vmem:[%s175 + $0xc4] sm:$0xf] %vm946, %v895
      %s997 = smul.u32 50, %s14
      %p998 = scmp.lt.s32.totalorder %s997, 99
      %s999 = scalar_select %p998, %s997, 99
      %s1000 = smul.addr %s999, 4
      %s1001 = scalar_lea.vmem %s3, %s1000
      // Predicated region
      $region33: #{dueling_forward.4} parent=31 // pred_check
        %p1002 = pneg %p100
      $region34: #{dueling_forward.4} parent=31 // pred_check_branch
        %1004 = sbr.rel (%p1002) target = $region36
      $region35: #{dueling_forward.4} parent=31 // pred_region
        %s1005 = smul.u32 50, %s14
      $region36: #{dueling_forward.4} parent=31 // pred_fallthru
        _
    $region32: #{dueling_forward.4} parent=5 // pred_fallthru
      _
    %p1006 = scmp.le.s32.totalorder 2, %s9
    // Predicated region
    $region37: #{dueling_forward.4} parent=5 // pred_check
      %p1007 = pneg %p1006
    $region38: #{dueling_forward.4} parent=5 // pred_check_branch
      %1009 = sbr.rel (%p1007) target = $region40
    $region39: #{dueling_forward.4} parent=5 // pred_region
      %s1010 = ssub.s32 %s9, 2
      // Predicated region
      $region41: #{dueling_forward.4} parent=39 // pred_check
        %p1011 = pneg %p106
      $region42: #{dueling_forward.4} parent=39 // pred_check_branch
        %1013 = sbr.rel (%p1011) target = $region44
      $region43: #{dueling_forward.4} parent=39 // pred_region
        %s1014 = smul.u32 50, %s15
        %p1015 = scmp.lt.s32.totalorder %s1014, 99
        %s1016 = scalar_select %p1015, %s1014, 99
        %s1017 = smul.addr %s1016, 4
        %s1018 = scalar_lea.vmem %s3, %s1017
      $region44: #{dueling_forward.4} parent=39 // pred_fallthru
        _
    $region40: #{dueling_forward.4} parent=5 // pred_fallthru
      _
  $region6: #{dueling_forward.4} parent=0 // loop_footer
    %s13 = sadd.s32 1, %s9
  $region7: #{dueling_forward.4} parent=0 // loop_footer_branch
    %8 = sbr.rel target = $region3
  $region8: #{dueling_forward.4} parent=0 // loop_exit
    _

// kernel: dueling_forward.5
$region0: #{dueling_forward.5}
  #allocation0 [shape = 'u32[]', space=smem, size = 0x4, offset = 0x4, fixed_abs, tag = 'smem constant byte address 0x4 - core index']
  #allocation1 [shape = 'u32[144,128]{1,0:T(1,128)}', space=vmem, size = 0x12000, scoped, tag = 'internal scratch']
  %s0 = inlined_call_operand.vmem [shape: bf16[162,512], index: 0, kind: input, shape index: {}]
  %s1 = inlined_call_operand.vmem [shape: bf16[512,64], index: 1, kind: input, shape index: {}]
  %s2 = inlined_call_operand.vmem [shape: f32[1,64], index: 2, kind: input, shape index: {}]
  %s3 = inlined_call_operand.vmem [shape: bf16[162,64], index: 3, kind: output, shape index: {}]
  %s4 = sld [smem:[#allocation0]]
  $region89: #{dueling_forward.5} parent=0
    _
  %s6 = ssub.s32 1, %s4
  %s7 = scalar_select 0, %s6, %s4
  $region1: #{dueling_forward.5} parent=0
    #allocation2 [shape = 'u8[49152]{0}', space=vmem, size = 0xc000, scoped, tag = 'output window, operand 0']
    loop: start=0, step=1, limit=4
    $region2: #{dueling_forward.5} parent=1 // loop_pre_header
      _
    $region3: #{dueling_forward.5} parent=1 // loop_header
      %s9 = sphi 0, %s13
      %p10 = scmp.ge.s32.totalorder %s9, 4
      %s19 = sphi 0, %s21
      %s22 = sphi 0, %s19
      %s23 = sphi 0, %s22
      %s39 = sphi 0, %s23
      %s43 = sphi 0, %s43
      %s45 = sphi 0, %s43
      %s46 = sphi 0, %s45
      %s60 = sphi 0, %s46
      %s64 = sphi 0, %s64
      %s66 = sphi 0, %s64
      %s67 = sphi 0, %s66
      %s81 = sphi 0, %s67
      %s87 = sphi 0, %s89
      %s90 = sphi 0, %s87
      %s91 = sphi 0, %s90
      %s107 = sphi 0, %s91
    $region4: #{dueling_forward.5} parent=1 // loop_header_branch
      %12 = sbr.rel (%p10) target = $region8
    $region5: #{dueling_forward.5} parent=1 // loop_body
      %s14 = ssub.s32 %s9, 1
      %s15 = ssub.s32 %s9, 2
      %s16 = sadd.s32 %s9, 1
      %s17 = ssub.s32 %s9, %s16
      %p18 = scmp.eq.s32.totalorder %s17, 0
      %s20 = sadd.s32 %s19, 1
      %s21 = scalar_select %p18, %s19, %s20
      %p24 = pneg %p18
      %p25 = scmp.eq.s32.totalorder %s9, 1
      %p26 = por %p24, %p25
      %p27 = scmp.ne.s32.totalorder %s19, %s22
      %p28 = scmp.eq.s32.totalorder %s9, 0
      %p29 = por %p27, %p28
      %p30 = scmp.ne.s32.totalorder %s19, %s22
      %p31 = scmp.eq.s32.totalorder %s14, 1
      %p32 = por %p30, %p31
      %p33 = scmp.ne.s32.totalorder %s22, %s23
      %p34 = scmp.eq.s32.totalorder %s14, 0
      %p35 = por %p33, %p34
      %p36 = scmp.ne.s32.totalorder %s22, %s23
      %p37 = scmp.eq.s32.totalorder %s15, 1
      %p38 = por %p36, %p37
      %p40 = scmp.ne.s32.totalorder %s23, %s39
      %p41 = scmp.eq.s32.totalorder %s15, 0
      %p42 = por %p40, %p41
      %s44 = sadd.s32 %s43, 1
      %p47 = scmp.eq.s32.totalorder %s9, 1
      %p48 = scmp.ne.s32.totalorder %s43, %s45
      %p49 = scmp.eq.s32.totalorder %s9, 0
      %p50 = por %p48, %p49
      %p51 = scmp.ne.s32.totalorder %s43, %s45
      %p52 = scmp.eq.s32.totalorder %s14, 1
      %p53 = por %p51, %p52
      %p54 = scmp.ne.s32.totalorder %s45, %s46
      %p55 = scmp.eq.s32.totalorder %s14, 0
      %p56 = por %p54, %p55
      %p57 = scmp.ne.s32.totalorder %s45, %s46
      %p58 = scmp.eq.s32.totalorder %s15, 1
      %p59 = por %p57, %p58
      %p61 = scmp.ne.s32.totalorder %s46, %s60
      %p62 = scmp.eq.s32.totalorder %s15, 0
      %p63 = por %p61, %p62
      %s65 = sadd.s32 %s64, 1
      %p68 = scmp.eq.s32.totalorder %s9, 1
      %p69 = scmp.ne.s32.totalorder %s64, %s66
      %p70 = scmp.eq.s32.totalorder %s9, 0
      %p71 = por %p69, %p70
      %p72 = scmp.ne.s32.totalorder %s64, %s66
      %p73 = scmp.eq.s32.totalorder %s14, 1
      %p74 = por %p72, %p73
      %p75 = scmp.ne.s32.totalorder %s66, %s67
      %p76 = scmp.eq.s32.totalorder %s14, 0
      %p77 = por %p75, %p76
      %p78 = scmp.ne.s32.totalorder %s66, %s67
      %p79 = scmp.eq.s32.totalorder %s15, 1
      %p80 = por %p78, %p79
      %p82 = scmp.ne.s32.totalorder %s67, %s81
      %p83 = scmp.eq.s32.totalorder %s15, 0
      %p84 = por %p82, %p83
      %s85 = ssub.s32 %s9, %s16
      %p86 = scmp.eq.s32.totalorder %s85, 0
      %s88 = sadd.s32 %s87, 1
      %s89 = scalar_select %p86, %s87, %s88
      %p92 = pneg %p86
      %p93 = scmp.eq.s32.totalorder %s9, 1
      %p94 = por %p92, %p93
      %p95 = scmp.ne.s32.totalorder %s87, %s90
      %p96 = scmp.eq.s32.totalorder %s9, 0
      %p97 = por %p95, %p96
      %p98 = scmp.ne.s32.totalorder %s87, %s90
      %p99 = scmp.eq.s32.totalorder %s14, 1
      %p100 = por %p98, %p99
      %p101 = scmp.ne.s32.totalorder %s90, %s91
      %p102 = scmp.eq.s32.totalorder %s14, 0
      %p103 = por %p101, %p102
      %p104 = scmp.ne.s32.totalorder %s90, %s91
      %p105 = scmp.eq.s32.totalorder %s15, 1
      %p106 = por %p104, %p105
      %p108 = scmp.ne.s32.totalorder %s91, %s107
      %p109 = scmp.eq.s32.totalorder %s15, 0
      %p110 = por %p108, %p109
      %p111 = scmp.le.s32.totalorder 1, %s9
      %p112 = scmp.lt.s32.totalorder %s9, 3
      %p113 = pnand %p111, %p112
      %p114 = pneg %p113
      // Predicated region
      $region9: #{dueling_forward.5} parent=5 // pred_check
        _
      $region10: #{dueling_forward.5} parent=5 // pred_check_branch
        %116 = sbr.rel (%p113) target = $region12
      $region11: #{dueling_forward.5} parent=5 // pred_region
        %s117 = ssub.s32 %s9, 1
        // Predicated region
        $region13: #{dueling_forward.5} parent=11 // pred_check
          %p118 = pneg %p56
        $region14: #{dueling_forward.5} parent=11 // pred_check_branch
          %120 = sbr.rel (%p118) target = $region16
        $region15: #{dueling_forward.5} parent=11 // pred_region
          _
        $region16: #{dueling_forward.5} parent=11 // pred_fallthru
          _
        // Predicated region
        $region17: #{dueling_forward.5} parent=11 // pred_check
          %p121 = pneg %p77
        $region18: #{dueling_forward.5} parent=11 // pred_check_branch
          %123 = sbr.rel (%p121) target = $region20
        $region19: #{dueling_forward.5} parent=11 // pred_region
          _
        $region20: #{dueling_forward.5} parent=11 // pred_fallthru
          _
      $region12: #{dueling_forward.5} parent=5 // pred_fallthru
        _
      %p124 = scmp.lt.s32.totalorder %s9, 2
      // Predicated region
      $region21: #{dueling_forward.5} parent=5 // pred_check
        %p125 = pneg %p124
      $region22: #{dueling_forward.5} parent=5 // pred_check_branch
        %127 = sbr.rel (%p125) target = $region24
      $region23: #{dueling_forward.5} parent=5 // pred_region
        // Predicated region
        $region25: #{dueling_forward.5} parent=23 // pred_check
          %p128 = pneg %p29
        $region26: #{dueling_forward.5} parent=23 // pred_check_branch
          %130 = sbr.rel (%p128) target = $region28
        $region27: #{dueling_forward.5} parent=23 // pred_region
          %s131 = smul.u32 12, %s9
          %s132 = ssub.s32 21, %s131
          %p133 = scmp.lt.s32.totalorder %s132, 12
          %s134 = scalar_select %p133, %s132, 12
          %s135 = smul.u32 64, %s134
          %s136 = smul.u32 %s135, 4
          %p137 = scmp.lt.s32.totalorder %s131, 20
          %s138 = scalar_select %p137, %s131, 20
          %s139 = smul.addr %s138, 4
          %s140 = smul.addr %s139, 4
          %s141 = scalar_lea.vmem %s0, %s140
          %s142 = smul.u32 12, %s9
          %s143 = ssub.s32 21, %s142
          %p144 = scmp.lt.s32.totalorder %s143, 12
          %s145 = scalar_select %p144, %s143, 12
          %s146 = smul.u32 64, %s145
          %s147 = smul.u32 %s146, 4
        $region28: #{dueling_forward.5} parent=23 // pred_fallthru
          _
      $region24: #{dueling_forward.5} parent=5 // pred_fallthru
        _
      %p148 = scmp.le.s32.totalorder 1, %s9
      %p149 = scmp.lt.s32.totalorder %s9, 3
      %p150 = pnand %p148, %p149
      %p151 = pneg %p150
      // Predicated region
      $region29: #{dueling_forward.5} parent=5 // pred_check
        _
      $region30: #{dueling_forward.5} parent=5 // pred_check_branch
        %153 = sbr.rel (%p150) target = $region32
      $region31: #{dueling_forward.5} parent=5 // pred_region
        %s154 = ssub.s32 %s9, 1
        %s155 = smul.u32 12, %s14
        %s156 = ssub.s32 21, %s155
        %p157 = scmp.lt.s32.totalorder %s156, 12
        %s158 = scalar_select %p157, %s156, 12
        %s159 = smul.u32 64, %s158
        %s160 = smul.u32 %s159, 4
        %p161 = scmp.lt.s32.totalorder %s155, 20
        %s162 = scalar_select %p161, %s155, 20
        %s163 = smul.addr %s162, 4
        %s164 = smul.addr %s163, 4
        %s165 = scalar_lea.vmem %s0, %s164
        %p166 = pneg %p35
        %p167 = pneg %p32
        %p168 = pneg %p56
        %p169 = pneg %p53
        %p170 = pneg %p77
        %p171 = pneg %p74
        %p172 = pneg %p103
        %p173 = pneg %p100
        %s174 = sand.u32 %s90, 1
        %s175 = sand.u32 %s90, 1
        %s176 = smul.addr %s175, 48
        %s177 = scalar_lea.vmem [#allocation2], %s176
        %s178 = smul.u32 12, %s14
        %s179 = ssub.s32 21, %s178
        %p180 = scmp.lt.s32.totalorder %s179, 12
        %s181 = scalar_select %p180, %s179, 12
        %s182 = smul.u32 64, %s181
        %s183 = smul.u32 %s182, 4
        %p184 = scmp.lt.s32.totalorder %s178, 20
        %s185 = scalar_select %p184, %s178, 20
        %s186 = smul.addr %s185, 4
        %s187 = smul.addr %s186, 4
        %s188 = scalar_lea.vmem %s0, %s187
        %s189 = smul.u32 12, %s14
        %s190 = ssub.s32 21, %s189
        %p191 = scmp.lt.s32.totalorder %s190, 12
        %s192 = scalar_select %p191, %s190, 12
        %s193 = smul.u32 64, %s192
        %s194 = smul.u32 %s193, 4
        %s195 = smul.u32 12, %s14
        %s196 = ssub.s32 21, %s195
        %p197 = scmp.lt.s32.totalorder %s196, 12
        %s198 = scalar_select %p197, %s196, 12
        %s199 = smul.u32 64, %s198
        %v201 = vld [vmem:[%s188] sm:$0xff]
        %v202 = vld [vmem:[%s188 + $0x8] sm:$0xff]
        %v203 = vld [vmem:[%s188 + $0x10] sm:$0xff]
        %v204 = vld [vmem:[%s188 + $0x18] sm:$0xff]
        %v205 = vld [vmem:[%s188 + $0x20] sm:$0xff]
        %v206 = vld [vmem:[%s188 + $0x28] sm:$0xff]
        %v207 = vld [vmem:[%s188 + $0x30] sm:$0xff]
        %v208 = vld [vmem:[%s188 + $0x38] sm:$0xff]
        %v209 = vld [vmem:[%s188 + $0x40] sm:$0xff]
        %v210 = vld [vmem:[%s188 + $0x48] sm:$0xff]
        %v211 = vld [vmem:[%s188 + $0x50] sm:$0xff]
        %v212 = vld [vmem:[%s188 + $0x58] sm:$0xff]
        %v213 = vld [vmem:[%s188 + $0x60] sm:$0xff]
        %v214 = vld [vmem:[%s188 + $0x68] sm:$0xff]
        %v215 = vld [vmem:[%s188 + $0x70] sm:$0xff]
        %v216 = vld [vmem:[%s188 + $0x78] sm:$0xff]
        %v217 = vld [vmem:[%s188 + $0x80] sm:$0xff]
        %v218 = vld [vmem:[%s188 + $0x88] sm:$0xff]
        %v219 = vld [vmem:[%s188 + $0x90] sm:$0xff]
        %v220 = vld [vmem:[%s188 + $0x98] sm:$0xff]
        %v221 = vld [vmem:[%s188 + $0xa0] sm:$0xff]
        %v222 = vld [vmem:[%s188 + $0xa8] sm:$0xff]
        %v223 = vld [vmem:[%s188 + $0xb0] sm:$0xff]
        %v224 = vld [vmem:[%s188 + $0xb8] sm:$0xff]
        %v225 = vld [vmem:[%s1] sm:$0xf]
        %v226 = vld [vmem:[%s1 + $0x4] sm:$0xf]
        %v227 = vld [vmem:[%s1 + $0x8] sm:$0xf]
        %v228 = vld [vmem:[%s1 + $0xc] sm:$0xf]
        %v229 = vld [vmem:[%s1 + $0x10] sm:$0xf]
        %v230 = vld [vmem:[%s1 + $0x14] sm:$0xf]
        %v231 = vld [vmem:[%s1 + $0x18] sm:$0xf]
        %v232 = vld [vmem:[%s1 + $0x1c] sm:$0xf]
        %v233 = vld [vmem:[%s1 + $0x20] sm:$0xf]
        %v234 = vld [vmem:[%s1 + $0x24] sm:$0xf]
        %v235 = vld [vmem:[%s1 + $0x28] sm:$0xf]
        %v236 = vld [vmem:[%s1 + $0x2c] sm:$0xf]
        %v237 = vld [vmem:[%s1 + $0x30] sm:$0xf]
        %v238 = vld [vmem:[%s1 + $0x34] sm:$0xf]
        %v239 = vld [vmem:[%s1 + $0x38] sm:$0xf]
        %v240 = vld [vmem:[%s1 + $0x3c] sm:$0xf]
        %v241 = vld [vmem:[%s1 + $0x40] sm:$0xf]
        %v242 = vld [vmem:[%s1 + $0x44] sm:$0xf]
        %v243 = vld [vmem:[%s1 + $0x48] sm:$0xf]
        %v244 = vld [vmem:[%s1 + $0x4c] sm:$0xf]
        %v245 = vld [vmem:[%s1 + $0x50] sm:$0xf]
        %v246 = vld [vmem:[%s1 + $0x54] sm:$0xf]
        %v247 = vld [vmem:[%s1 + $0x58] sm:$0xf]
        %v248 = vld [vmem:[%s1 + $0x5c] sm:$0xf]
        %v249 = vld [vmem:[%s1 + $0x60] sm:$0xf]
        %v250 = vld [vmem:[%s1 + $0x64] sm:$0xf]
        %v251 = vld [vmem:[%s1 + $0x68] sm:$0xf]
        %v252 = vld [vmem:[%s1 + $0x6c] sm:$0xf]
        %v253 = vld [vmem:[%s1 + $0x70] sm:$0xf]
        %v254 = vld [vmem:[%s1 + $0x74] sm:$0xf]
        %v255 = vld [vmem:[%s1 + $0x78] sm:$0xf]
        %v256 = vld [vmem:[%s1 + $0x7c] sm:$0xf]
        %v257 = vld [vmem:[%s1 + $0x80] sm:$0xf]
        %v258 = vld [vmem:[%s1 + $0x84] sm:$0xf]
        %v259 = vld [vmem:[%s1 + $0x88] sm:$0xf]
        %v260 = vld [vmem:[%s1 + $0x8c] sm:$0xf]
        %v261 = vld [vmem:[%s1 + $0x90] sm:$0xf]
        %v262 = vld [vmem:[%s1 + $0x94] sm:$0xf]
        %v263 = vld [vmem:[%s1 + $0x98] sm:$0xf]
        %v264 = vld [vmem:[%s1 + $0x9c] sm:$0xf]
        %v265 = vld [vmem:[%s1 + $0xa0] sm:$0xf]
        %v266 = vld [vmem:[%s1 + $0xa4] sm:$0xf]
        %v267 = vld [vmem:[%s1 + $0xa8] sm:$0xf]
        %v268 = vld [vmem:[%s1 + $0xac] sm:$0xf]
        %v269 = vld [vmem:[%s1 + $0xb0] sm:$0xf]
        %v270 = vld [vmem:[%s1 + $0xb4] sm:$0xf]
        %v271 = vld [vmem:[%s1 + $0xb8] sm:$0xf]
        %v272 = vld [vmem:[%s1 + $0xbc] sm:$0xf]
        %v273 = vld [vmem:[%s1 + $0xc0] sm:$0xf]
        %v274 = vld [vmem:[%s1 + $0xc4] sm:$0xf]
        %v275 = vld [vmem:[%s1 + $0xc8] sm:$0xf]
        %v276 = vld [vmem:[%s1 + $0xcc] sm:$0xf]
        %v277 = vld [vmem:[%s1 + $0xd0] sm:$0xf]
        %v278 = vld [vmem:[%s1 + $0xd4] sm:$0xf]
        %v279 = vld [vmem:[%s1 + $0xd8] sm:$0xf]
        %v280 = vld [vmem:[%s1 + $0xdc] sm:$0xf]
        %v281 = vld [vmem:[%s1 + $0xe0] sm:$0xf]
        %v282 = vld [vmem:[%s1 + $0xe4] sm:$0xf]
        %v283 = vld [vmem:[%s1 + $0xe8] sm:$0xf]
        %v284 = vld [vmem:[%s1 + $0xec] sm:$0xf]
        %v285 = vld [vmem:[%s1 + $0xf0] sm:$0xf]
        %v286 = vld [vmem:[%s1 + $0xf4] sm:$0xf]
        %v287 = vld [vmem:[%s1 + $0xf8] sm:$0xf]
        %v288 = vld [vmem:[%s1 + $0xfc] sm:$0xf]
        %v289 = vld [vmem:[%s2] sm:$0x1]
        %v291 = vlaneseq
        %v292 = vshrl.u32 %v291, 7
        %v293 = vsub.s32 0, %v292
        %v294 = vrot.slane %v289, %v293
        %v320 = vunpack.c.l.b16 %v201
        %v321 = vunpack.c.h.b16 %v201
        %v322 = vunpack.c.l.b16 %v202
        %v323 = vunpack.c.h.b16 %v202
        %v324 = vunpack.c.l.b16 %v203
        %v325 = vunpack.c.h.b16 %v203
        %v326 = vunpack.c.l.b16 %v204
        %v327 = vunpack.c.h.b16 %v204
        %v328 = vunpack.c.l.b16 %v205
        %v329 = vunpack.c.h.b16 %v205
        %v330 = vunpack.c.l.b16 %v206
        %v331 = vunpack.c.h.b16 %v206
        %v332 = vunpack.c.l.b16 %v207
        %v333 = vunpack.c.h.b16 %v207
        %v334 = vunpack.c.l.b16 %v208
        %v335 = vunpack.c.h.b16 %v208
        %v336 = vunpack.c.l.b16 %v209
        %v337 = vunpack.c.h.b16 %v209
        %v338 = vunpack.c.l.b16 %v210
        %v339 = vunpack.c.h.b16 %v210
        %v340 = vunpack.c.l.b16 %v211
        %v341 = vunpack.c.h.b16 %v211
        %v342 = vunpack.c.l.b16 %v212
        %v343 = vunpack.c.h.b16 %v212
        %v344 = vunpack.c.l.b16 %v213
        %v345 = vunpack.c.h.b16 %v213
        %v346 = vunpack.c.l.b16 %v214
        %v347 = vunpack.c.h.b16 %v214
        %v348 = vunpack.c.l.b16 %v215
        %v349 = vunpack.c.h.b16 %v215
        %v350 = vunpack.c.l.b16 %v216
        %v351 = vunpack.c.h.b16 %v216
        %v352 = vunpack.c.l.b16 %v217
        %v353 = vunpack.c.h.b16 %v217
        %v354 = vunpack.c.l.b16 %v218
        %v355 = vunpack.c.h.b16 %v218
        %v356 = vunpack.c.l.b16 %v219
        %v357 = vunpack.c.h.b16 %v219
        %v358 = vunpack.c.l.b16 %v220
        %v359 = vunpack.c.h.b16 %v220
        %v360 = vunpack.c.l.b16 %v221
        %v361 = vunpack.c.h.b16 %v221
        %v362 = vunpack.c.l.b16 %v222
        %v363 = vunpack.c.h.b16 %v222
        %v364 = vunpack.c.l.b16 %v223
        %v365 = vunpack.c.h.b16 %v223
        %v366 = vunpack.c.l.b16 %v224
        %v367 = vunpack.c.h.b16 %v224
        %v368 = vpack.c.b16 %v324, %v320
        %v369 = vpack.c.b16 %v325, %v321
        %v370 = vpack.c.b16 %v326, %v322
        %v371 = vpack.c.b16 %v327, %v323
        %v372 = vpack.c.b16 %v332, %v328
        %v373 = vpack.c.b16 %v333, %v329
        %v374 = vpack.c.b16 %v334, %v330
        %v375 = vpack.c.b16 %v335, %v331
        %v376 = vpack.c.b16 %v340, %v336
        %v377 = vpack.c.b16 %v341, %v337
        %v378 = vpack.c.b16 %v342, %v338
        %v379 = vpack.c.b16 %v343, %v339
        %v380 = vpack.c.b16 %v348, %v344
        %v381 = vpack.c.b16 %v349, %v345
        %v382 = vpack.c.b16 %v350, %v346
        %v383 = vpack.c.b16 %v351, %v347
        %v384 = vpack.c.b16 %v356, %v352
        %v385 = vpack.c.b16 %v357, %v353
        %v386 = vpack.c.b16 %v358, %v354
        %v387 = vpack.c.b16 %v359, %v355
        %v388 = vpack.c.b16 %v364, %v360
        %v389 = vpack.c.b16 %v365, %v361
        %v390 = vpack.c.b16 %v366, %v362
        %v391 = vpack.c.b16 %v367, %v363
        %v480 = vunpack.c.l.b16 %v225
        %v481 = vunpack.c.l.b16 %v226
        %v482 = vunpack.c.l.b16 %v227
        %v483 = vunpack.c.l.b16 %v228
        %v484 = vunpack.c.l.b16 %v229
        %v485 = vunpack.c.l.b16 %v230
        %v486 = vunpack.c.l.b16 %v231
        %v487 = vunpack.c.l.b16 %v232
        %v488 = vunpack.c.l.b16 %v233
        %v489 = vunpack.c.l.b16 %v234
        %v490 = vunpack.c.l.b16 %v235
        %v491 = vunpack.c.l.b16 %v236
        %v492 = vunpack.c.l.b16 %v237
        %v493 = vunpack.c.l.b16 %v238
        %v494 = vunpack.c.l.b16 %v239
        %v495 = vunpack.c.l.b16 %v240
        %v496 = vunpack.c.l.b16 %v241
        %v497 = vunpack.c.l.b16 %v242
        %v498 = vunpack.c.l.b16 %v243
        %v499 = vunpack.c.l.b16 %v244
        %v500 = vunpack.c.l.b16 %v245
        %v501 = vunpack.c.l.b16 %v246
        %v502 = vunpack.c.l.b16 %v247
        %v503 = vunpack.c.l.b16 %v248
        %v504 = vunpack.c.l.b16 %v249
        %v505 = vunpack.c.l.b16 %v250
        %v506 = vunpack.c.l.b16 %v251
        %v507 = vunpack.c.l.b16 %v252
        %v508 = vunpack.c.l.b16 %v253
        %v509 = vunpack.c.l.b16 %v254
        %v510 = vunpack.c.l.b16 %v255
        %v511 = vunpack.c.l.b16 %v256
        %v512 = vunpack.c.l.b16 %v257
        %v513 = vunpack.c.l.b16 %v258
        %v514 = vunpack.c.l.b16 %v259
        %v515 = vunpack.c.l.b16 %v260
        %v516 = vunpack.c.l.b16 %v261
        %v517 = vunpack.c.l.b16 %v262
        %v518 = vunpack.c.l.b16 %v263
        %v519 = vunpack.c.l.b16 %v264
        %v520 = vunpack.c.l.b16 %v265
        %v521 = vunpack.c.l.b16 %v266
        %v522 = vunpack.c.l.b16 %v267
        %v523 = vunpack.c.l.b16 %v268
        %v524 = vunpack.c.l.b16 %v269
        %v525 = vunpack.c.l.b16 %v270
        %v526 = vunpack.c.l.b16 %v271
        %v527 = vunpack.c.l.b16 %v272
        %v528 = vunpack.c.l.b16 %v273
        %v529 = vunpack.c.l.b16 %v274
        %v530 = vunpack.c.l.b16 %v275
        %v531 = vunpack.c.l.b16 %v276
        %v532 = vunpack.c.l.b16 %v277
        %v533 = vunpack.c.l.b16 %v278
        %v534 = vunpack.c.l.b16 %v279
        %v535 = vunpack.c.l.b16 %v280
        %v536 = vunpack.c.l.b16 %v281
        %v537 = vunpack.c.l.b16 %v282
        %v538 = vunpack.c.l.b16 %v283
        %v539 = vunpack.c.l.b16 %v284
        %v540 = vunpack.c.l.b16 %v285
        %v541 = vunpack.c.l.b16 %v286
        %v542 = vunpack.c.l.b16 %v287
        %v543 = vunpack.c.l.b16 %v288
        %v544 = vpack.c.b16 %v481, %v480
        %v545 = vpack.c.b16 %v483, %v482
        %v546 = vpack.c.b16 %v485, %v484
        %v547 = vpack.c.b16 %v487, %v486
        %v548 = vpack.c.b16 %v489, %v488
        %v549 = vpack.c.b16 %v491, %v490
        %v550 = vpack.c.b16 %v493, %v492
        %v551 = vpack.c.b16 %v495, %v494
        %v552 = vpack.c.b16 %v497, %v496
        %v553 = vpack.c.b16 %v499, %v498
        %v554 = vpack.c.b16 %v501, %v500
        %v555 = vpack.c.b16 %v503, %v502
        %v556 = vpack.c.b16 %v505, %v504
        %v557 = vpack.c.b16 %v507, %v506
        %v558 = vpack.c.b16 %v509, %v508
        %v559 = vpack.c.b16 %v511, %v510
        %v560 = vpack.c.b16 %v513, %v512
        %v561 = vpack.c.b16 %v515, %v514
        %v562 = vpack.c.b16 %v517, %v516
        %v563 = vpack.c.b16 %v519, %v518
        %v564 = vpack.c.b16 %v521, %v520
        %v565 = vpack.c.b16 %v523, %v522
        %v566 = vpack.c.b16 %v525, %v524
        %v567 = vpack.c.b16 %v527, %v526
        %v568 = vpack.c.b16 %v529, %v528
        %v569 = vpack.c.b16 %v531, %v530
        %v570 = vpack.c.b16 %v533, %v532
        %v571 = vpack.c.b16 %v535, %v534
        %v572 = vpack.c.b16 %v537, %v536
        %v573 = vpack.c.b16 %v539, %v538
        %v574 = vpack.c.b16 %v541, %v540
        %v575 = vpack.c.b16 %v543, %v542
        %608 = vmatprep.subr.bf16.mxu0 0
        %609 = vmatpush1.bf16.msra.mxu0 %v544
        %610 = vmatprep.subr.bf16.mxu0 0
        %611 = vmatpush1.bf16.msra.mxu0 %v545
        %612 = vmatprep.subr.bf16.mxu0 0
        %613 = vmatpush1.bf16.msra.mxu0 %v546
        %614 = vmatprep.subr.bf16.mxu0 0
        %615 = vmatpush1.bf16.msra.mxu0 %v547
        %616 = vmatprep.subr.bf16.mxu0 0
        %617 = vmatpush1.bf16.msra.mxu0 %v548
        %618 = vmatprep.subr.bf16.mxu0 0
        %619 = vmatpush1.bf16.msra.mxu0 %v549
        %620 = vmatprep.subr.bf16.mxu0 0
        %621 = vmatpush1.bf16.msra.mxu0 %v550
        %622 = vmatprep.subr.bf16.mxu0 0
        %623 = vmatpush1.bf16.msra.mxu0 %v551
        %624 = vmatprep.subr.bf16.mxu0 0
        %625 = vmatpush1.bf16.msra.mxu0 %v552
        %626 = vmatprep.subr.bf16.mxu0 0
        %627 = vmatpush1.bf16.msra.mxu0 %v553
        %628 = vmatprep.subr.bf16.mxu0 0
        %629 = vmatpush1.bf16.msra.mxu0 %v554
        %630 = vmatprep.subr.bf16.mxu0 0
        %631 = vmatpush1.bf16.msra.mxu0 %v555
        %632 = vmatprep.subr.bf16.mxu0 0
        %633 = vmatpush1.bf16.msra.mxu0 %v556
        %634 = vmatprep.subr.bf16.mxu0 0
        %635 = vmatpush1.bf16.msra.mxu0 %v557
        %636 = vmatprep.subr.bf16.mxu0 0
        %637 = vmatpush1.bf16.msra.mxu0 %v558
        %638 = vmatprep.subr.bf16.mxu0 0
        %639 = vmatpush1.bf16.msra.mxu0 %v559
        %640 = vmatprep.mubr.bf16.mxu0 %v369
        %641 = vmatmul.mubr.bf16.gmra.mrb[0].mxu0 %v368
        %v642 = vpop.f32.mrb[0].mxu0
        %v643 = vadd.f32 %v294, %v642
        %v644 = vpop.f32.mrb[0].mxu0
        %v645 = vpop.f32.mrb[0].mxu0
        %v646 = vadd.f32 %v294, %v645
        %v647 = vpop.f32.mrb[0].mxu0
        %648 = vmatprep.mubr.bf16.mxu0 %v373
        %649 = vmatmul.mubr.bf16.gmra.mrb[0].mxu0 %v372
        %v650 = vpop.f32.mrb[0].mxu0
        %v651 = vadd.f32 %v294, %v650
        %v652 = vpop.f32.mrb[0].mxu0
        %v653 = vpop.f32.mrb[0].mxu0
        %v654 = vadd.f32 %v294, %v653
        %v655 = vpop.f32.mrb[0].mxu0
        %656 = vmatprep.mubr.bf16.mxu0 %v377
        %657 = vmatmul.mubr.bf16.gmra.mrb[0].mxu0 %v376
        %v658 = vpop.f32.mrb[0].mxu0
        %v659 = vadd.f32 %v294, %v658
        %v660 = vpop.f32.mrb[0].mxu0
        %v661 = vpop.f32.mrb[0].mxu0
        %v662 = vadd.f32 %v294, %v661
        %v663 = vpop.f32.mrb[0].mxu0
        %664 = vmatprep.mubr.bf16.mxu0 %v381
        %665 = vmatmul.mubr.bf16.gmra.mrb[0].mxu0 %v380
        %v666 = vpop.f32.mrb[0].mxu0
        %v667 = vadd.f32 %v294, %v666
        %v668 = vpop.f32.mrb[0].mxu0
        %v669 = vpop.f32.mrb[0].mxu0
        %v670 = vadd.f32 %v294, %v669
        %v671 = vpop.f32.mrb[0].mxu0
        %672 = vmatprep.mubr.bf16.mxu0 %v385
        %673 = vmatmul.mubr.bf16.gmra.mrb[0].mxu0 %v384
        %v674 = vpop.f32.mrb[0].mxu0
        %v675 = vadd.f32 %v294, %v674
        %v676 = vpop.f32.mrb[0].mxu0
        %v677 = vpop.f32.mrb[0].mxu0
        %v678 = vadd.f32 %v294, %v677
        %v679 = vpop.f32.mrb[0].mxu0
        %680 = vmatprep.mubr.bf16.mxu0 %v389
        %681 = vmatmul.mubr.bf16.gmra.mrb[0].mxu0 %v388
        %v682 = vpop.f32.mrb[0].mxu0
        %v683 = vadd.f32 %v294, %v682
        %v684 = vpop.f32.mrb[0].mxu0
        %v685 = vpop.f32.mrb[0].mxu0
        %v686 = vadd.f32 %v294, %v685
        %v687 = vpop.f32.mrb[0].mxu0
        %688 = vdwg.mxu0
        %689 = vmatprep.subr.bf16.mxu0 0
        %690 = vmatpush1.bf16.msra.mxu0 %v560
        %691 = vmatprep.subr.bf16.mxu0 0
        %692 = vmatpush1.bf16.msra.mxu0 %v561
        %693 = vmatprep.subr.bf16.mxu0 0
        %694 = vmatpush1.bf16.msra.mxu0 %v562
        %695 = vmatprep.subr.bf16.mxu0 0
        %696 = vmatpush1.bf16.msra.mxu0 %v563
        %697 = vmatprep.subr.bf16.mxu0 0
        %698 = vmatpush1.bf16.msra.mxu0 %v564
        %699 = vmatprep.subr.bf16.mxu0 0
        %700 = vmatpush1.bf16.msra.mxu0 %v565
        %701 = vmatprep.subr.bf16.mxu0 0
        %702 = vmatpush1.bf16.msra.mxu0 %v566
        %703 = vmatprep.subr.bf16.mxu0 0
        %704 = vmatpush1.bf16.msra.mxu0 %v567
        %705 = vmatprep.subr.bf16.mxu0 0
        %706 = vmatpush1.bf16.msra.mxu0 %v568
        %707 = vmatprep.subr.bf16.mxu0 0
        %708 = vmatpush1.bf16.msra.mxu0 %v569
        %709 = vmatprep.subr.bf16.mxu0 0
        %710 = vmatpush1.bf16.msra.mxu0 %v570
        %711 = vmatprep.subr.bf16.mxu0 0
        %712 = vmatpush1.bf16.msra.mxu0 %v571
        %713 = vmatprep.subr.bf16.mxu0 0
        %714 = vmatpush1.bf16.msra.mxu0 %v572
        %715 = vmatprep.subr.bf16.mxu0 0
        %716 = vmatpush1.bf16.msra.mxu0 %v573
        %717 = vmatprep.subr.bf16.mxu0 0
        %718 = vmatpush1.bf16.msra.mxu0 %v574
        %719 = vmatprep.subr.bf16.mxu0 0
        %720 = vmatpush1.bf16.msra.mxu0 %v575
        %721 = vmatprep.mubr.bf16.mxu0 %v371
        %722 = vmatmul.mubr.bf16.gmra.mrb[0].mxu0 %v370
        %v723 = vpop.f32.mrb[0].mxu0
        %v724 = vadd.f32 %v643, %v723
        %v725 = vpop.f32.mrb[0].mxu0
        %v726 = vpop.f32.mrb[0].mxu0
        %v727 = vadd.f32 %v646, %v726
        %v728 = vpop.f32.mrb[0].mxu0
        %729 = vmatprep.mubr.bf16.mxu0 %v375
        %730 = vmatmul.mubr.bf16.gmra.mrb[0].mxu0 %v374
        %v731 = vpop.f32.mrb[0].mxu0
        %v732 = vadd.f32 %v651, %v731
        %v733 = vpop.f32.mrb[0].mxu0
        %v734 = vpop.f32.mrb[0].mxu0
        %v735 = vadd.f32 %v654, %v734
        %v736 = vpop.f32.mrb[0].mxu0
        %737 = vmatprep.mubr.bf16.mxu0 %v379
        %738 = vmatmul.mubr.bf16.gmra.mrb[0].mxu0 %v378
        %v739 = vpop.f32.mrb[0].mxu0
        %v740 = vadd.f32 %v659, %v739
        %v741 = vpop.f32.mrb[0].mxu0
        %v742 = vpop.f32.mrb[0].mxu0
        %v743 = vadd.f32 %v662, %v742
        %v744 = vpop.f32.mrb[0].mxu0
        %745 = vmatprep.mubr.bf16.mxu0 %v383
        %746 = vmatmul.mubr.bf16.gmra.mrb[0].mxu0 %v382
        %v747 = vpop.f32.mrb[0].mxu0
        %v748 = vadd.f32 %v667, %v747
        %v749 = vpop.f32.mrb[0].mxu0
        %v750 = vpop.f32.mrb[0].mxu0
        %v751 = vadd.f32 %v670, %v750
        %v752 = vpop.f32.mrb[0].mxu0
        %753 = vmatprep.mubr.bf16.mxu0 %v387
        %754 = vmatmul.mubr.bf16.gmra.mrb[0].mxu0 %v386
        %v755 = vpop.f32.mrb[0].mxu0
        %v756 = vadd.f32 %v675, %v755
        %v757 = vpop.f32.mrb[0].mxu0
        %v758 = vpop.f32.mrb[0].mxu0
        %v759 = vadd.f32 %v678, %v758
        %v760 = vpop.f32.mrb[0].mxu0
        %761 = vmatprep.mubr.bf16.mxu0 %v391
        %762 = vmatmul.mubr.bf16.gmra.mrb[0].mxu0 %v390
        %v763 = vpop.f32.mrb[0].mxu0
        %v764 = vadd.f32 %v683, %v763
        %v765 = vpop.f32.mrb[0].mxu0
        %v766 = vpop.f32.mrb[0].mxu0
        %v767 = vadd.f32 %v686, %v766
        %v768 = vpop.f32.mrb[0].mxu0
        %769 = vdwg.mxu0
        %v770 = vmax.f32 %v724, 0.0
        %v771 = vmax.f32 %v727, 0.0
        %v772 = vmax.f32 %v732, 0.0
        %v773 = vmax.f32 %v735, 0.0
        %v774 = vmax.f32 %v740, 0.0
        %v775 = vmax.f32 %v743, 0.0
        %v776 = vmax.f32 %v748, 0.0
        %v777 = vmax.f32 %v751, 0.0
        %v778 = vmax.f32 %v756, 0.0
        %v779 = vmax.f32 %v759, 0.0
        %v780 = vmax.f32 %v764, 0.0
        %v781 = vmax.f32 %v767, 0.0
        %v782 = vpack.c.bf16 %v771, %v770
        %v783 = vpack.c.bf16 %v773, %v772
        %v784 = vpack.c.bf16 %v775, %v774
        %v785 = vpack.c.bf16 %v777, %v776
        %v786 = vpack.c.bf16 %v779, %v778
        %v787 = vpack.c.bf16 %v781, %v780
        %v794 = vunpack.c.l.b16 %v782
        %v795 = vunpack.c.h.b16 %v782
        %v796 = vunpack.c.l.b16 %v783
        %v797 = vunpack.c.h.b16 %v783
        %v798 = vunpack.c.l.b16 %v784
        %v799 = vunpack.c.h.b16 %v784
        %v800 = vunpack.c.l.b16 %v785
        %v801 = vunpack.c.h.b16 %v785
        %v802 = vunpack.c.l.b16 %v786
        %v803 = vunpack.c.h.b16 %v786
        %v804 = vunpack.c.l.b16 %v787
        %v805 = vunpack.c.h.b16 %v787
        %v806 = vpack.c.b16 %v794, %v794
        %v807 = vpack.c.b16 %v795, %v795
        %v808 = vpack.c.b16 %v796, %v796
        %v809 = vpack.c.b16 %v797, %v797
        %v810 = vpack.c.b16 %v798, %v798
        %v811 = vpack.c.b16 %v799, %v799
        %v812 = vpack.c.b16 %v800, %v800
        %v813 = vpack.c.b16 %v801, %v801
        %v814 = vpack.c.b16 %v802, %v802
        %v815 = vpack.c.b16 %v803, %v803
        %v816 = vpack.c.b16 %v804, %v804
        %v817 = vpack.c.b16 %v805, %v805
        %vm830 = vcmask 519168
        %831 = vst.msk [vmem:[%s177] sm:$0xf] %vm830, %v806
        %832 = vst.msk [vmem:[%s177 + $0x4] sm:$0xf] %vm830, %v807
        %833 = vst.msk [vmem:[%s177 + $0x8] sm:$0xf] %vm830, %v808
        %834 = vst.msk [vmem:[%s177 + $0xc] sm:$0xf] %vm830, %v809
        %835 = vst.msk [vmem:[%s177 + $0x10] sm:$0xf] %vm830, %v810
        %836 = vst.msk [vmem:[%s177 + $0x14] sm:$0xf] %vm830, %v811
        %837 = vst.msk [vmem:[%s177 + $0x18] sm:$0xf] %vm830, %v812
        %838 = vst.msk [vmem:[%s177 + $0x1c] sm:$0xf] %vm830, %v813
        %839 = vst.msk [vmem:[%s177 + $0x20] sm:$0xf] %vm830, %v814
        %840 = vst.msk [vmem:[%s177 + $0x24] sm:$0xf] %vm830, %v815
        %841 = vst.msk [vmem:[%s177 + $0x28] sm:$0xf] %vm830, %v816
        %842 = vst.msk [vmem:[%s177 + $0x2c] sm:$0xf] %vm830, %v817
        %s843 = sand.u32 %s90, 1
        %s844 = sand.u32 %s90, 1
        %s845 = smul.addr %s844, 48
        %s846 = scalar_lea.vmem [#allocation2], %s845
        // Predicated region
        $region33: #{dueling_forward.5} parent=31 // pred_check
          %p847 = pneg %p100
        $region34: #{dueling_forward.5} parent=31 // pred_check_branch
          %849 = sbr.rel (%p847) target = $region36
        $region35: #{dueling_forward.5} parent=31 // pred_region
          %s850 = smul.u32 12, %s14
          %s851 = ssub.s32 21, %s850
          %p852 = scmp.lt.s32.totalorder %s851, 12
          %s853 = scalar_select %p852, %s851, 12
          %s854 = smul.u32 64, %s853
          %p855 = scmp.ne.s32.totalorder 0, %s854
          %s856 = smul.addr %s850, 4
          %s857 = scalar_lea.vmem %s3, %s856
          // Predicated region
          $region37: #{dueling_forward.5} parent=35 // pred_check
            %p858 = pneg %p855
          $region38: #{dueling_forward.5} parent=35 // pred_check_branch
            %860 = sbr.rel (%p858) target = $region40
          $region39: #{dueling_forward.5} parent=35 // pred_region
            // Predicated region
            $region41: #{dueling_forward.5} parent=39 // pred_check
              _
            $region42: #{dueling_forward.5} parent=39 // pred_check_branch
              %862 = sbr.rel target = $region44
            $region43: #{dueling_forward.5} parent=39 // pred_region
              // Predicated region
              $region63: #{dueling_forward.5} parent=43 // pred_check
                _
              $region64: #{dueling_forward.5} parent=43 // pred_check_branch
                %934 = sbr.rel (0) target = $region66
              $region65: #{dueling_forward.5} parent=43 // pred_region
                %s936 = sdiv.u32.pop %s853, 12
                %s937 = srem.u32.pop %s853, 12
                // While loop
                $region67: #{dueling_forward.5} parent=65 // loop_pre_header
                  _
                $region68: #{dueling_forward.5} parent=65 // loop_header
                  %s939 = sphi 0, %s941
                  %p940 = scmp.ge.s32.totalorder %s939, %s936
                  %s944 = sphi 0, %s973
                  %s945 = sphi %s846, %s976
                  %s946 = sphi %s857, %s977
                $region69: #{dueling_forward.5} parent=65 // loop_header_branch
                  %943 = sbr.rel (%p940) target = $region73
                $region70: #{dueling_forward.5} parent=65 // loop_body
                  %v947 = vld [vmem:[%s945] sm:$0xf]
                  %948 = vst [vmem:[%s946] sm:$0xf] %v947
                  %v949 = vld [vmem:[%s945 + $0x4] sm:$0xf]
                  %950 = vst [vmem:[%s946 + $0x4] sm:$0xf] %v949
                  %v951 = vld [vmem:[%s945 + $0x8] sm:$0xf]
                  %952 = vst [vmem:[%s946 + $0x8] sm:$0xf] %v951
                  %v953 = vld [vmem:[%s945 + $0xc] sm:$0xf]
                  %954 = vst [vmem:[%s946 + $0xc] sm:$0xf] %v953
                  %v955 = vld [vmem:[%s945 + $0x10] sm:$0xf]
                  %956 = vst [vmem:[%s946 + $0x10] sm:$0xf] %v955
                  %v957 = vld [vmem:[%s945 + $0x14] sm:$0xf]
                  %958 = vst [vmem:[%s946 + $0x14] sm:$0xf] %v957
                  %v959 = vld [vmem:[%s945 + $0x18] sm:$0xf]
                  %960 = vst [vmem:[%s946 + $0x18] sm:$0xf] %v959
                  %v961 = vld [vmem:[%s945 + $0x1c] sm:$0xf]
                  %962 = vst [vmem:[%s946 + $0x1c] sm:$0xf] %v961
                  %v963 = vld [vmem:[%s945 + $0x20] sm:$0xf]
                  %964 = vst [vmem:[%s946 + $0x20] sm:$0xf] %v963
                  %v965 = vld [vmem:[%s945 + $0x24] sm:$0xf]
                  %966 = vst [vmem:[%s946 + $0x24] sm:$0xf] %v965
                  %v967 = vld [vmem:[%s945 + $0x28] sm:$0xf]
                  %968 = vst [vmem:[%s946 + $0x28] sm:$0xf] %v967
                  %v969 = vld [vmem:[%s945 + $0x2c] sm:$0xf]
                  %970 = vst [vmem:[%s946 + $0x2c] sm:$0xf] %v969
                  %s971 = sadd.s32 1, %s944
                  %p972 = scmp.ge.s32.totalorder %s971, %s936
                  %s973 = scalar_select %p972, 0, %s971
                  %s974 = smul.u32 %s973, 48
                  %s975 = smul.u32 %s973, 48
                  %s976 = scalar_lea.vmem %s846, %s974 [#allocation2]
                  %s977 = scalar_lea.vmem %s857, %s975
                $region71: #{dueling_forward.5} parent=65 // loop_footer
                  %s941 = sadd.s32 %s939, 1
                $region72: #{dueling_forward.5} parent=65 // loop_footer_branch
                  %938 = sbr.rel target = $region68
                $region73: #{dueling_forward.5} parent=65 // loop_exit
                  _
                %s978 = sdiv.u32.pop %s853, 12
                %s979 = srem.u32.pop %s853, 12
                %s980 = smul.u32 %s978, 12
                %s981 = smul.u32 4, %s980
                %s982 = scalar_lea.vmem %s846, %s981 [#allocation2]
                %s983 = smul.u32 4, %s980
                %s984 = scalar_lea.vmem %s857, %s983
                // While loop
                $region74: #{dueling_forward.5} parent=65 // loop_pre_header
                  _
                $region75: #{dueling_forward.5} parent=65 // loop_header
                  %s986 = sphi 0, %s988
                  %p987 = scmp.ge.s32.totalorder %s986, %s979
                  %s991 = sphi 0, %s998
                  %s992 = sphi %s982, %s1001
                  %s993 = sphi %s984, %s1002
                $region76: #{dueling_forward.5} parent=65 // loop_header_branch
                  %990 = sbr.rel (%p987) target = $region80
                $region77: #{dueling_forward.5} parent=65 // loop_body
                  %v994 = vld [vmem:[%s992] sm:$0xf]
                  %995 = vst [vmem:[%s993] sm:$0xf] %v994
                  %s996 = sadd.s32 1, %s991
                  %p997 = scmp.ge.s32.totalorder %s996, %s979
                  %s998 = scalar_select %p997, 0, %s996
                  %s999 = smul.u32 %s998, 4
                  %s1000 = smul.u32 %s998, 4
                  %s1001 = scalar_lea.vmem %s982, %s999 [#allocation2]
                  %s1002 = scalar_lea.vmem %s984, %s1000
                $region78: #{dueling_forward.5} parent=65 // loop_footer
                  %s988 = sadd.s32 %s986, 1
                $region79: #{dueling_forward.5} parent=65 // loop_footer_branch
                  %985 = sbr.rel target = $region75
                $region80: #{dueling_forward.5} parent=65 // loop_exit
                  _
              $region66: #{dueling_forward.5} parent=43 // pred_fallthru
                _
            $region44: #{dueling_forward.5} parent=39 // pred_fallthru
              _
            // Predicated region
            $region45: #{dueling_forward.5} parent=39 // pred_check
              _
            $region46: #{dueling_forward.5} parent=39 // pred_check_branch
              %864 = sbr.rel (0) target = $region48
            $region47: #{dueling_forward.5} parent=39 // pred_region
              %s866 = sdiv.u32.pop %s853, 12
              %s867 = srem.u32.pop %s853, 12
              // While loop
              $region49: #{dueling_forward.5} parent=47 // loop_pre_header
                _
              $region50: #{dueling_forward.5} parent=47 // loop_header
                %s869 = sphi 0, %s871
                %p870 = scmp.ge.s32.totalorder %s869, %s866
                %s874 = sphi 0, %s903
                %s875 = sphi %s846, %s906
                %s876 = sphi %s857, %s907
              $region51: #{dueling_forward.5} parent=47 // loop_header_branch
                %873 = sbr.rel (%p870) target = $region55
              $region52: #{dueling_forward.5} parent=47 // loop_body
                %v877 = vld [vmem:[%s875] sm:$0xf]
                %878 = vst [vmem:[%s876] sm:$0xf] %v877
                %v879 = vld [vmem:[%s875 + $0x4] sm:$0xf]
                %880 = vst [vmem:[%s876 + $0x4] sm:$0xf] %v879
                %v881 = vld [vmem:[%s875 + $0x8] sm:$0xf]
                %882 = vst [vmem:[%s876 + $0x8] sm:$0xf] %v881
                %v883 = vld [vmem:[%s875 + $0xc] sm:$0xf]
                %884 = vst [vmem:[%s876 + $0xc] sm:$0xf] %v883
                %v885 = vld [vmem:[%s875 + $0x10] sm:$0xf]
                %886 = vst [vmem:[%s876 + $0x10] sm:$0xf] %v885
                %v887 = vld [vmem:[%s875 + $0x14] sm:$0xf]
                %888 = vst [vmem:[%s876 + $0x14] sm:$0xf] %v887
                %v889 = vld [vmem:[%s875 + $0x18] sm:$0xf]
                %890 = vst [vmem:[%s876 + $0x18] sm:$0xf] %v889
                %v891 = vld [vmem:[%s875 + $0x1c] sm:$0xf]
                %892 = vst [vmem:[%s876 + $0x1c] sm:$0xf] %v891
                %v893 = vld [vmem:[%s875 + $0x20] sm:$0xf]
                %894 = vst [vmem:[%s876 + $0x20] sm:$0xf] %v893
                %v895 = vld [vmem:[%s875 + $0x24] sm:$0xf]
                %896 = vst [vmem:[%s876 + $0x24] sm:$0xf] %v895
                %v897 = vld [vmem:[%s875 + $0x28] sm:$0xf]
                %898 = vst [vmem:[%s876 + $0x28] sm:$0xf] %v897
                %v899 = vld [vmem:[%s875 + $0x2c] sm:$0xf]
                %900 = vst [vmem:[%s876 + $0x2c] sm:$0xf] %v899
                %s901 = sadd.s32 1, %s874
                %p902 = scmp.ge.s32.totalorder %s901, %s866
                %s903 = scalar_select %p902, 0, %s901
                %s904 = smul.u32 %s903, 48
                %s905 = smul.u32 %s903, 48
                %s906 = scalar_lea.vmem %s846, %s904 [#allocation2]
                %s907 = scalar_lea.vmem %s857, %s905
              $region53: #{dueling_forward.5} parent=47 // loop_footer
                %s871 = sadd.s32 %s869, 1
              $region54: #{dueling_forward.5} parent=47 // loop_footer_branch
                %868 = sbr.rel target = $region50
              $region55: #{dueling_forward.5} parent=47 // loop_exit
                _
              %s908 = sdiv.u32.pop %s853, 12
              %s909 = srem.u32.pop %s853, 12
              %s910 = smul.u32 %s908, 12
              %s911 = smul.u32 4, %s910
              %s912 = scalar_lea.vmem %s846, %s911 [#allocation2]
              %s913 = smul.u32 4, %s910
              %s914 = scalar_lea.vmem %s857, %s913
              // While loop
              $region56: #{dueling_forward.5} parent=47 // loop_pre_header
                _
              $region57: #{dueling_forward.5} parent=47 // loop_header
                %s916 = sphi 0, %s918
                %p917 = scmp.ge.s32.totalorder %s916, %s909
                %s921 = sphi 0, %s928
                %s922 = sphi %s912, %s931
                %s923 = sphi %s914, %s932
              $region58: #{dueling_forward.5} parent=47 // loop_header_branch
                %920 = sbr.rel (%p917) target = $region62
              $region59: #{dueling_forward.5} parent=47 // loop_body
                %v924 = vld [vmem:[%s922] sm:$0xf]
                %925 = vst [vmem:[%s923] sm:$0xf] %v924
                %s926 = sadd.s32 1, %s921
                %p927 = scmp.ge.s32.totalorder %s926, %s909
                %s928 = scalar_select %p927, 0, %s926
                %s929 = smul.u32 %s928, 4
                %s930 = smul.u32 %s928, 4
                %s931 = scalar_lea.vmem %s912, %s929 [#allocation2]
                %s932 = scalar_lea.vmem %s914, %s930
              $region60: #{dueling_forward.5} parent=47 // loop_footer
                %s918 = sadd.s32 %s916, 1
              $region61: #{dueling_forward.5} parent=47 // loop_footer_branch
                %915 = sbr.rel target = $region57
              $region62: #{dueling_forward.5} parent=47 // loop_exit
                _
            $region48: #{dueling_forward.5} parent=39 // pred_fallthru
              _
          $region40: #{dueling_forward.5} parent=35 // pred_fallthru
            _
          %1003 = vnop
        $region36: #{dueling_forward.5} parent=31 // pred_fallthru
          _
      $region32: #{dueling_forward.5} parent=5 // pred_fallthru
        _
      %p1004 = scmp.le.s32.totalorder 2, %s9
      // Predicated region
      $region81: #{dueling_forward.5} parent=5 // pred_check
        %p1005 = pneg %p1004
      $region82: #{dueling_forward.5} parent=5 // pred_check_branch
        %1007 = sbr.rel (%p1005) target = $region84
      $region83: #{dueling_forward.5} parent=5 // pred_region
        %s1008 = ssub.s32 %s9, 2
        // Predicated region
        $region85: #{dueling_forward.5} parent=83 // pred_check
          %p1009 = pneg %p106
        $region86: #{dueling_forward.5} parent=83 // pred_check_branch
          %1011 = sbr.rel (%p1009) target = $region88
        $region87: #{dueling_forward.5} parent=83 // pred_region
          %s1012 = sand.u32 %s91, 1
          %s1013 = sand.u32 %s91, 1
          %s1014 = smul.addr %s1013, 48
          %s1015 = scalar_lea.vmem [#allocation2], %s1014
        $region88: #{dueling_forward.5} parent=83 // pred_fallthru
          _
      $region84: #{dueling_forward.5} parent=5 // pred_fallthru
        _
    $region6: #{dueling_forward.5} parent=1 // loop_footer
      %s13 = sadd.s32 1, %s9
    $region7: #{dueling_forward.5} parent=1 // loop_footer_branch
      %8 = sbr.rel target = $region3
    $region8: #{dueling_forward.5} parent=1 // loop_exit
      _

// kernel: dueling_forward.6
$region0: #{dueling_forward.6}
  #allocation0 [shape = 'u32[]', space=smem, size = 0x4, offset = 0x4, fixed_abs, tag = 'smem constant byte address 0x4 - core index']
  #allocation1 [shape = 'u32[144,128]{1,0:T(1,128)}', space=vmem, size = 0x12000, scoped, tag = 'internal scratch']
  %s0 = inlined_call_operand.vmem [shape: bf16[98,576], index: 0, kind: input, shape index: {}]
  %s1 = inlined_call_operand.vmem [shape: bf16[576,64], index: 1, kind: input, shape index: {}]
  %s2 = inlined_call_operand.vmem [shape: f32[1,64], index: 2, kind: input, shape index: {}]
  %s3 = inlined_call_operand.vmem [shape: bf16[98,64], index: 3, kind: output, shape index: {}]
  %s4 = sld [smem:[#allocation0]]
  $region89: #{dueling_forward.6} parent=0
    _
  %s6 = ssub.s32 1, %s4
  %s7 = scalar_select 0, %s6, %s4
  $region1: #{dueling_forward.6} parent=0
    #allocation2 [shape = 'u8[32768]{0}', space=vmem, size = 0x8000, scoped, tag = 'output window, operand 0']
    loop: start=0, step=1, limit=4
    $region2: #{dueling_forward.6} parent=1 // loop_pre_header
      _
    $region3: #{dueling_forward.6} parent=1 // loop_header
      %s9 = sphi 0, %s13
      %p10 = scmp.ge.s32.totalorder %s9, 4
      %s19 = sphi 0, %s21
      %s22 = sphi 0, %s19
      %s23 = sphi 0, %s22
      %s39 = sphi 0, %s23
      %s43 = sphi 0, %s43
      %s45 = sphi 0, %s43
      %s46 = sphi 0, %s45
      %s60 = sphi 0, %s46
      %s64 = sphi 0, %s64
      %s66 = sphi 0, %s64
      %s67 = sphi 0, %s66
      %s81 = sphi 0, %s67
      %s87 = sphi 0, %s89
      %s90 = sphi 0, %s87
      %s91 = sphi 0, %s90
      %s107 = sphi 0, %s91
    $region4: #{dueling_forward.6} parent=1 // loop_header_branch
      %12 = sbr.rel (%p10) target = $region8
    $region5: #{dueling_forward.6} parent=1 // loop_body
      %s14 = ssub.s32 %s9, 1
      %s15 = ssub.s32 %s9, 2
      %s16 = sadd.s32 %s9, 1
      %s17 = ssub.s32 %s9, %s16
      %p18 = scmp.eq.s32.totalorder %s17, 0
      %s20 = sadd.s32 %s19, 1
      %s21 = scalar_select %p18, %s19, %s20
      %p24 = pneg %p18
      %p25 = scmp.eq.s32.totalorder %s9, 1
      %p26 = por %p24, %p25
      %p27 = scmp.ne.s32.totalorder %s19, %s22
      %p28 = scmp.eq.s32.totalorder %s9, 0
      %p29 = por %p27, %p28
      %p30 = scmp.ne.s32.totalorder %s19, %s22
      %p31 = scmp.eq.s32.totalorder %s14, 1
      %p32 = por %p30, %p31
      %p33 = scmp.ne.s32.totalorder %s22, %s23
      %p34 = scmp.eq.s32.totalorder %s14, 0
      %p35 = por %p33, %p34
      %p36 = scmp.ne.s32.totalorder %s22, %s23
      %p37 = scmp.eq.s32.totalorder %s15, 1
      %p38 = por %p36, %p37
      %p40 = scmp.ne.s32.totalorder %s23, %s39
      %p41 = scmp.eq.s32.totalorder %s15, 0
      %p42 = por %p40, %p41
      %s44 = sadd.s32 %s43, 1
      %p47 = scmp.eq.s32.totalorder %s9, 1
      %p48 = scmp.ne.s32.totalorder %s43, %s45
      %p49 = scmp.eq.s32.totalorder %s9, 0
      %p50 = por %p48, %p49
      %p51 = scmp.ne.s32.totalorder %s43, %s45
      %p52 = scmp.eq.s32.totalorder %s14, 1
      %p53 = por %p51, %p52
      %p54 = scmp.ne.s32.totalorder %s45, %s46
      %p55 = scmp.eq.s32.totalorder %s14, 0
      %p56 = por %p54, %p55
      %p57 = scmp.ne.s32.totalorder %s45, %s46
      %p58 = scmp.eq.s32.totalorder %s15, 1
      %p59 = por %p57, %p58
      %p61 = scmp.ne.s32.totalorder %s46, %s60
      %p62 = scmp.eq.s32.totalorder %s15, 0
      %p63 = por %p61, %p62
      %s65 = sadd.s32 %s64, 1
      %p68 = scmp.eq.s32.totalorder %s9, 1
      %p69 = scmp.ne.s32.totalorder %s64, %s66
      %p70 = scmp.eq.s32.totalorder %s9, 0
      %p71 = por %p69, %p70
      %p72 = scmp.ne.s32.totalorder %s64, %s66
      %p73 = scmp.eq.s32.totalorder %s14, 1
      %p74 = por %p72, %p73
      %p75 = scmp.ne.s32.totalorder %s66, %s67
      %p76 = scmp.eq.s32.totalorder %s14, 0
      %p77 = por %p75, %p76
      %p78 = scmp.ne.s32.totalorder %s66, %s67
      %p79 = scmp.eq.s32.totalorder %s15, 1
      %p80 = por %p78, %p79
      %p82 = scmp.ne.s32.totalorder %s67, %s81
      %p83 = scmp.eq.s32.totalorder %s15, 0
      %p84 = por %p82, %p83
      %s85 = ssub.s32 %s9, %s16
      %p86 = scmp.eq.s32.totalorder %s85, 0
      %s88 = sadd.s32 %s87, 1
      %s89 = scalar_select %p86, %s87, %s88
      %p92 = pneg %p86
      %p93 = scmp.eq.s32.totalorder %s9, 1
      %p94 = por %p92, %p93
      %p95 = scmp.ne.s32.totalorder %s87, %s90
      %p96 = scmp.eq.s32.totalorder %s9, 0
      %p97 = por %p95, %p96
      %p98 = scmp.ne.s32.totalorder %s87, %s90
      %p99 = scmp.eq.s32.totalorder %s14, 1
      %p100 = por %p98, %p99
      %p101 = scmp.ne.s32.totalorder %s90, %s91
      %p102 = scmp.eq.s32.totalorder %s14, 0
      %p103 = por %p101, %p102
      %p104 = scmp.ne.s32.totalorder %s90, %s91
      %p105 = scmp.eq.s32.totalorder %s15, 1
      %p106 = por %p104, %p105
      %p108 = scmp.ne.s32.totalorder %s91, %s107
      %p109 = scmp.eq.s32.totalorder %s15, 0
      %p110 = por %p108, %p109
      %p111 = scmp.le.s32.totalorder 1, %s9
      %p112 = scmp.lt.s32.totalorder %s9, 3
      %p113 = pnand %p111, %p112
      %p114 = pneg %p113
      // Predicated region
      $region9: #{dueling_forward.6} parent=5 // pred_check
        _
      $region10: #{dueling_forward.6} parent=5 // pred_check_branch
        %116 = sbr.rel (%p113) target = $region12
      $region11: #{dueling_forward.6} parent=5 // pred_region
        %s117 = ssub.s32 %s9, 1
        // Predicated region
        $region13: #{dueling_forward.6} parent=11 // pred_check
          %p118 = pneg %p56
        $region14: #{dueling_forward.6} parent=11 // pred_check_branch
          %120 = sbr.rel (%p118) target = $region16
        $region15: #{dueling_forward.6} parent=11 // pred_region
          _
        $region16: #{dueling_forward.6} parent=11 // pred_fallthru
          _
        // Predicated region
        $region17: #{dueling_forward.6} parent=11 // pred_check
          %p121 = pneg %p77
        $region18: #{dueling_forward.6} parent=11 // pred_check_branch
          %123 = sbr.rel (%p121) target = $region20
        $region19: #{dueling_forward.6} parent=11 // pred_region
          _
        $region20: #{dueling_forward.6} parent=11 // pred_fallthru
          _
      $region12: #{dueling_forward.6} parent=5 // pred_fallthru
        _
      %p124 = scmp.lt.s32.totalorder %s9, 2
      // Predicated region
      $region21: #{dueling_forward.6} parent=5 // pred_check
        %p125 = pneg %p124
      $region22: #{dueling_forward.6} parent=5 // pred_check_branch
        %127 = sbr.rel (%p125) target = $region24
      $region23: #{dueling_forward.6} parent=5 // pred_region
        // Predicated region
        $region25: #{dueling_forward.6} parent=23 // pred_check
          %p128 = pneg %p29
        $region26: #{dueling_forward.6} parent=23 // pred_check_branch
          %130 = sbr.rel (%p128) target = $region28
        $region27: #{dueling_forward.6} parent=23 // pred_region
          %s131 = smul.u32 8, %s9
          %s132 = ssub.s32 13, %s131
          %p133 = scmp.lt.s32.totalorder %s132, 8
          %s134 = scalar_select %p133, %s132, 8
          %s135 = smul.u32 64, %s134
          %s136 = smul.u32 %s135, 5
          %p137 = scmp.lt.s32.totalorder %s131, 12
          %s138 = scalar_select %p137, %s131, 12
          %s139 = smul.addr %s138, 5
          %s140 = smul.addr %s139, 4
          %s141 = scalar_lea.vmem %s0, %s140
          %s142 = smul.u32 8, %s9
          %s143 = ssub.s32 13, %s142
          %p144 = scmp.lt.s32.totalorder %s143, 8
          %s145 = scalar_select %p144, %s143, 8
          %s146 = smul.u32 64, %s145
          %s147 = smul.u32 %s146, 5
        $region28: #{dueling_forward.6} parent=23 // pred_fallthru
          _
      $region24: #{dueling_forward.6} parent=5 // pred_fallthru
        _
      %p148 = scmp.le.s32.totalorder 1, %s9
      %p149 = scmp.lt.s32.totalorder %s9, 3
      %p150 = pnand %p148, %p149
      %p151 = pneg %p150
      // Predicated region
      $region29: #{dueling_forward.6} parent=5 // pred_check
        _
      $region30: #{dueling_forward.6} parent=5 // pred_check_branch
        %153 = sbr.rel (%p150) target = $region32
      $region31: #{dueling_forward.6} parent=5 // pred_region
        %s154 = ssub.s32 %s9, 1
        %s155 = smul.u32 8, %s14
        %s156 = ssub.s32 13, %s155
        %p157 = scmp.lt.s32.totalorder %s156, 8
        %s158 = scalar_select %p157, %s156, 8
        %s159 = smul.u32 64, %s158
        %s160 = smul.u32 %s159, 5
        %p161 = scmp.lt.s32.totalorder %s155, 12
        %s162 = scalar_select %p161, %s155, 12
        %s163 = smul.addr %s162, 5
        %s164 = smul.addr %s163, 4
        %s165 = scalar_lea.vmem %s0, %s164
        %p166 = pneg %p35
        %p167 = pneg %p32
        %p168 = pneg %p56
        %p169 = pneg %p53
        %p170 = pneg %p77
        %p171 = pneg %p74
        %p172 = pneg %p103
        %p173 = pneg %p100
        %s174 = sand.u32 %s90, 1
        %s175 = sand.u32 %s90, 1
        %s176 = smul.addr %s175, 32
        %s177 = scalar_lea.vmem [#allocation2], %s176
        %s178 = smul.u32 8, %s14
        %s179 = ssub.s32 13, %s178
        %p180 = scmp.lt.s32.totalorder %s179, 8
        %s181 = scalar_select %p180, %s179, 8
        %s182 = smul.u32 64, %s181
        %s183 = smul.u32 %s182, 5
        %p184 = scmp.lt.s32.totalorder %s178, 12
        %s185 = scalar_select %p184, %s178, 12
        %s186 = smul.addr %s185, 5
        %s187 = smul.addr %s186, 4
        %s188 = scalar_lea.vmem %s0, %s187
        %s189 = smul.u32 8, %s14
        %s190 = ssub.s32 13, %s189
        %p191 = scmp.lt.s32.totalorder %s190, 8
        %s192 = scalar_select %p191, %s190, 8
        %s193 = smul.u32 64, %s192
        %s194 = smul.u32 %s193, 5
        %s195 = smul.u32 8, %s14
        %s196 = ssub.s32 13, %s195
        %p197 = scmp.lt.s32.totalorder %s196, 8
        %s198 = scalar_select %p197, %s196, 8
        %s199 = smul.u32 64, %s198
        %v201 = vld [vmem:[%s188] sm:$0xff]
        %v202 = vld [vmem:[%s188 + $0x8] sm:$0xff]
        %v203 = vld [vmem:[%s188 + $0x10] sm:$0xf]
        %v204 = vld [vmem:[%s188 + $0x14] sm:$0xff]
        %v205 = vld [vmem:[%s188 + $0x1c] sm:$0xff]
        %v206 = vld [vmem:[%s188 + $0x24] sm:$0xf]
        %v207 = vld [vmem:[%s188 + $0x28] sm:$0xff]
        %v208 = vld [vmem:[%s188 + $0x30] sm:$0xff]
        %v209 = vld [vmem:[%s188 + $0x38] sm:$0xf]
        %v210 = vld [vmem:[%s188 + $0x3c] sm:$0xff]
        %v211 = vld [vmem:[%s188 + $0x44] sm:$0xff]
        %v212 = vld [vmem:[%s188 + $0x4c] sm:$0xf]
        %v213 = vld [vmem:[%s188 + $0x50] sm:$0xff]
        %v214 = vld [vmem:[%s188 + $0x58] sm:$0xff]
        %v215 = vld [vmem:[%s188 + $0x60] sm:$0xf]
        %v216 = vld [vmem:[%s188 + $0x64] sm:$0xff]
        %v217 = vld [vmem:[%s188 + $0x6c] sm:$0xff]
        %v218 = vld [vmem:[%s188 + $0x74] sm:$0xf]
        %v219 = vld [vmem:[%s188 + $0x78] sm:$0xff]
        %v220 = vld [vmem:[%s188 + $0x80] sm:$0xff]
        %v221 = vld [vmem:[%s188 + $0x88] sm:$0xf]
        %v222 = vld [vmem:[%s188 + $0x8c] sm:$0xff]
        %v223 = vld [vmem:[%s188 + $0x94] sm:$0xff]
        %v224 = vld [vmem:[%s188 + $0x9c] sm:$0xf]
        %v225 = vld [vmem:[%s1] sm:$0xf]
        %v226 = vld [vmem:[%s1 + $0x4] sm:$0xf]
        %v227 = vld [vmem:[%s1 + $0x8] sm:$0xf]
        %v228 = vld [vmem:[%s1 + $0xc] sm:$0xf]
        %v229 = vld [vmem:[%s1 + $0x10] sm:$0xf]
        %v230 = vld [vmem:[%s1 + $0x14] sm:$0xf]
        %v231 = vld [vmem:[%s1 + $0x18] sm:$0xf]
        %v232 = vld [vmem:[%s1 + $0x1c] sm:$0xf]
        %v233 = vld [vmem:[%s1 + $0x20] sm:$0xf]
        %v234 = vld [vmem:[%s1 + $0x24] sm:$0xf]
        %v235 = vld [vmem:[%s1 + $0x28] sm:$0xf]
        %v236 = vld [vmem:[%s1 + $0x2c] sm:$0xf]
        %v237 = vld [vmem:[%s1 + $0x30] sm:$0xf]
        %v238 = vld [vmem:[%s1 + $0x34] sm:$0xf]
        %v239 = vld [vmem:[%s1 + $0x38] sm:$0xf]
        %v240 = vld [vmem:[%s1 + $0x3c] sm:$0xf]
        %v241 = vld [vmem:[%s1 + $0x40] sm:$0xf]
        %v242 = vld [vmem:[%s1 + $0x44] sm:$0xf]
        %v243 = vld [vmem:[%s1 + $0x48] sm:$0xf]
        %v244 = vld [vmem:[%s1 + $0x4c] sm:$0xf]
        %v245 = vld [vmem:[%s1 + $0x50] sm:$0xf]
        %v246 = vld [vmem:[%s1 + $0x54] sm:$0xf]
        %v247 = vld [vmem:[%s1 + $0x58] sm:$0xf]
        %v248 = vld [vmem:[%s1 + $0x5c] sm:$0xf]
        %v249 = vld [vmem:[%s1 + $0x60] sm:$0xf]
        %v250 = vld [vmem:[%s1 + $0x64] sm:$0xf]
        %v251 = vld [vmem:[%s1 + $0x68] sm:$0xf]
        %v252 = vld [vmem:[%s1 + $0x6c] sm:$0xf]
        %v253 = vld [vmem:[%s1 + $0x70] sm:$0xf]
        %v254 = vld [vmem:[%s1 + $0x74] sm:$0xf]
        %v255 = vld [vmem:[%s1 + $0x78] sm:$0xf]
        %v256 = vld [vmem:[%s1 + $0x7c] sm:$0xf]
        %v257 = vld [vmem:[%s1 + $0x80] sm:$0xf]
        %v258 = vld [vmem:[%s1 + $0x84] sm:$0xf]
        %v259 = vld [vmem:[%s1 + $0x88] sm:$0xf]
        %v260 = vld [vmem:[%s1 + $0x8c] sm:$0xf]
        %v261 = vld [vmem:[%s1 + $0x90] sm:$0xf]
        %v262 = vld [vmem:[%s1 + $0x94] sm:$0xf]
        %v263 = vld [vmem:[%s1 + $0x98] sm:$0xf]
        %v264 = vld [vmem:[%s1 + $0x9c] sm:$0xf]
        %v265 = vld [vmem:[%s1 + $0xa0] sm:$0xf]
        %v266 = vld [vmem:[%s1 + $0xa4] sm:$0xf]
        %v267 = vld [vmem:[%s1 + $0xa8] sm:$0xf]
        %v268 = vld [vmem:[%s1 + $0xac] sm:$0xf]
        %v269 = vld [vmem:[%s1 + $0xb0] sm:$0xf]
        %v270 = vld [vmem:[%s1 + $0xb4] sm:$0xf]
        %v271 = vld [vmem:[%s1 + $0xb8] sm:$0xf]
        %v272 = vld [vmem:[%s1 + $0xbc] sm:$0xf]
        %v273 = vld [vmem:[%s1 + $0xc0] sm:$0xf]
        %v274 = vld [vmem:[%s1 + $0xc4] sm:$0xf]
        %v275 = vld [vmem:[%s1 + $0xc8] sm:$0xf]
        %v276 = vld [vmem:[%s1 + $0xcc] sm:$0xf]
        %v277 = vld [vmem:[%s1 + $0xd0] sm:$0xf]
        %v278 = vld [vmem:[%s1 + $0xd4] sm:$0xf]
        %v279 = vld [vmem:[%s1 + $0xd8] sm:$0xf]
        %v280 = vld [vmem:[%s1 + $0xdc] sm:$0xf]
        %v281 = vld [vmem:[%s1 + $0xe0] sm:$0xf]
        %v282 = vld [vmem:[%s1 + $0xe4] sm:$0xf]
        %v283 = vld [vmem:[%s1 + $0xe8] sm:$0xf]
        %v284 = vld [vmem:[%s1 + $0xec] sm:$0xf]
        %v285 = vld [vmem:[%s1 + $0xf0] sm:$0xf]
        %v286 = vld [vmem:[%s1 + $0xf4] sm:$0xf]
        %v287 = vld [vmem:[%s1 + $0xf8] sm:$0xf]
        %v288 = vld [vmem:[%s1 + $0xfc] sm:$0xf]
        %v289 = vld [vmem:[%s1 + $0x100] sm:$0xf]
        %v290 = vld [vmem:[%s1 + $0x104] sm:$0xf]
        %v291 = vld [vmem:[%s1 + $0x108] sm:$0xf]
        %v292 = vld [vmem:[%s1 + $0x10c] sm:$0xf]
        %v293 = vld [vmem:[%s1 + $0x110] sm:$0xf]
        %v294 = vld [vmem:[%s1 + $0x114] sm:$0xf]
        %v295 = vld [vmem:[%s1 + $0x118] sm:$0xf]
        %v296 = vld [vmem:[%s1 + $0x11c] sm:$0xf]
        %v297 = vld [vmem:[%s2] sm:$0x1]
        %v299 = vlaneseq
        %v300 = vshrl.u32 %v299, 7
        %v301 = vsub.s32 0, %v300
        %v302 = vrot.slane %v297, %v301
        %v328 = vunpack.c.l.b16 %v201
        %v329 = vunpack.c.h.b16 %v201
        %v330 = vunpack.c.l.b16 %v202
        %v331 = vunpack.c.h.b16 %v202
        %v332 = vunpack.c.l.b16 %v203
        %v333 = vunpack.c.l.b16 %v204
        %v334 = vunpack.c.h.b16 %v204
        %v335 = vunpack.c.l.b16 %v205
        %v336 = vunpack.c.h.b16 %v205
        %v337 = vunpack.c.l.b16 %v206
        %v338 = vunpack.c.l.b16 %v207
        %v339 = vunpack.c.h.b16 %v207
        %v340 = vunpack.c.l.b16 %v208
        %v341 = vunpack.c.h.b16 %v208
        %v342 = vunpack.c.l.b16 %v209
        %v343 = vunpack.c.l.b16 %v210
        %v344 = vunpack.c.h.b16 %v210
        %v345 = vunpack.c.l.b16 %v211
        %v346 = vunpack.c.h.b16 %v211
        %v347 = vunpack.c.l.b16 %v212
        %v348 = vunpack.c.l.b16 %v213
        %v349 = vunpack.c.h.b16 %v213
        %v350 = vunpack.c.l.b16 %v214
        %v351 = vunpack.c.h.b16 %v214
        %v352 = vunpack.c.l.b16 %v215
        %v353 = vunpack.c.l.b16 %v216
        %v354 = vunpack.c.h.b16 %v216
        %v355 = vunpack.c.l.b16 %v217
        %v356 = vunpack.c.h.b16 %v217
        %v357 = vunpack.c.l.b16 %v218
        %v358 = vunpack.c.l.b16 %v219
        %v359 = vunpack.c.h.b16 %v219
        %v360 = vunpack.c.l.b16 %v220
        %v361 = vunpack.c.h.b16 %v220
        %v362 = vunpack.c.l.b16 %v221
        %v363 = vunpack.c.l.b16 %v222
        %v364 = vunpack.c.h.b16 %v222
        %v365 = vunpack.c.l.b16 %v223
        %v366 = vunpack.c.h.b16 %v223
        %v367 = vunpack.c.l.b16 %v224
        %v368 = vpack.c.b16 %v333, %v328
        %v369 = vpack.c.b16 %v334, %v329
        %v370 = vpack.c.b16 %v335, %v330
        %v371 = vpack.c.b16 %v336, %v331
        %v372 = vpack.c.b16 %v337, %v332
        %v373 = vpack.c.b16 %v343, %v338
        %v374 = vpack.c.b16 %v344, %v339
        %v375 = vpack.c.b16 %v345, %v340
        %v376 = vpack.c.b16 %v346, %v341
        %v377 = vpack.c.b16 %v347, %v342
        %v378 = vpack.c.b16 %v353, %v348
        %v379 = vpack.c.b16 %v354, %v349
        %v380 = vpack.c.b16 %v355, %v350
        %v381 = vpack.c.b16 %v356, %v351
        %v382 = vpack.c.b16 %v357, %v352
        %v383 = vpack.c.b16 %v363, %v358
        %v384 = vpack.c.b16 %v364, %v359
        %v385 = vpack.c.b16 %v365, %v360
        %v386 = vpack.c.b16 %v366, %v361
        %v387 = vpack.c.b16 %v367, %v362
        %v476 = vunpack.c.l.b16 %v225
        %v477 = vunpack.c.l.b16 %v226
        %v478 = vunpack.c.l.b16 %v227
        %v479 = vunpack.c.l.b16 %v228
        %v480 = vunpack.c.l.b16 %v229
        %v481 = vunpack.c.l.b16 %v230
        %v482 = vunpack.c.l.b16 %v231
        %v483 = vunpack.c.l.b16 %v232
        %v484 = vunpack.c.l.b16 %v233
        %v485 = vunpack.c.l.b16 %v234
        %v486 = vunpack.c.l.b16 %v235
        %v487 = vunpack.c.l.b16 %v236
        %v488 = vunpack.c.l.b16 %v237
        %v489 = vunpack.c.l.b16 %v238
        %v490 = vunpack.c.l.b16 %v239
        %v491 = vunpack.c.l.b16 %v240
        %v492 = vunpack.c.l.b16 %v241
        %v493 = vunpack.c.l.b16 %v242
        %v494 = vunpack.c.l.b16 %v243
        %v495 = vunpack.c.l.b16 %v244
        %v496 = vunpack.c.l.b16 %v245
        %v497 = vunpack.c.l.b16 %v246
        %v498 = vunpack.c.l.b16 %v247
        %v499 = vunpack.c.l.b16 %v248
        %v500 = vunpack.c.l.b16 %v249
        %v501 = vunpack.c.l.b16 %v250
        %v502 = vunpack.c.l.b16 %v251
        %v503 = vunpack.c.l.b16 %v252
        %v504 = vunpack.c.l.b16 %v253
        %v505 = vunpack.c.l.b16 %v254
        %v506 = vunpack.c.l.b16 %v255
        %v507 = vunpack.c.l.b16 %v256
        %v508 = vunpack.c.l.b16 %v257
        %v509 = vunpack.c.l.b16 %v258
        %v510 = vunpack.c.l.b16 %v259
        %v511 = vunpack.c.l.b16 %v260
        %v512 = vunpack.c.l.b16 %v261
        %v513 = vunpack.c.l.b16 %v262
        %v514 = vunpack.c.l.b16 %v263
        %v515 = vunpack.c.l.b16 %v264
        %v516 = vunpack.c.l.b16 %v265
        %v517 = vunpack.c.l.b16 %v266
        %v518 = vunpack.c.l.b16 %v267
        %v519 = vunpack.c.l.b16 %v268
        %v520 = vunpack.c.l.b16 %v269
        %v521 = vunpack.c.l.b16 %v270
        %v522 = vunpack.c.l.b16 %v271
        %v523 = vunpack.c.l.b16 %v272
        %v524 = vunpack.c.l.b16 %v273
        %v525 = vunpack.c.l.b16 %v274
        %v526 = vunpack.c.l.b16 %v275
        %v527 = vunpack.c.l.b16 %v276
        %v528 = vunpack.c.l.b16 %v277
        %v529 = vunpack.c.l.b16 %v278
        %v530 = vunpack.c.l.b16 %v279
        %v531 = vunpack.c.l.b16 %v280
        %v532 = vunpack.c.l.b16 %v281
        %v533 = vunpack.c.l.b16 %v282
        %v534 = vunpack.c.l.b16 %v283
        %v535 = vunpack.c.l.b16 %v284
        %v536 = vunpack.c.l.b16 %v285
        %v537 = vunpack.c.l.b16 %v286
        %v538 = vunpack.c.l.b16 %v287
        %v539 = vunpack.c.l.b16 %v288
        %v540 = vunpack.c.l.b16 %v289
        %v541 = vunpack.c.l.b16 %v290
        %v542 = vunpack.c.l.b16 %v291
        %v543 = vunpack.c.l.b16 %v292
        %v544 = vunpack.c.l.b16 %v293
        %v545 = vunpack.c.l.b16 %v294
        %v546 = vunpack.c.l.b16 %v295
        %v547 = vunpack.c.l.b16 %v296
        %v548 = vpack.c.b16 %v477, %v476
        %v549 = vpack.c.b16 %v479, %v478
        %v550 = vpack.c.b16 %v481, %v480
        %v551 = vpack.c.b16 %v483, %v482
        %v552 = vpack.c.b16 %v485, %v484
        %v553 = vpack.c.b16 %v487, %v486
        %v554 = vpack.c.b16 %v489, %v488
        %v555 = vpack.c.b16 %v491, %v490
        %v556 = vpack.c.b16 %v493, %v492
        %v557 = vpack.c.b16 %v495, %v494
        %v558 = vpack.c.b16 %v497, %v496
        %v559 = vpack.c.b16 %v499, %v498
        %v560 = vpack.c.b16 %v501, %v500
        %v561 = vpack.c.b16 %v503, %v502
        %v562 = vpack.c.b16 %v505, %v504
        %v563 = vpack.c.b16 %v507, %v506
        %v564 = vpack.c.b16 %v509, %v508
        %v565 = vpack.c.b16 %v511, %v510
        %v566 = vpack.c.b16 %v513, %v512
        %v567 = vpack.c.b16 %v515, %v514
        %v568 = vpack.c.b16 %v517, %v516
        %v569 = vpack.c.b16 %v519, %v518
        %v570 = vpack.c.b16 %v521, %v520
        %v571 = vpack.c.b16 %v523, %v522
        %v572 = vpack.c.b16 %v525, %v524
        %v573 = vpack.c.b16 %v527, %v526
        %v574 = vpack.c.b16 %v529, %v528
        %v575 = vpack.c.b16 %v531, %v530
        %v576 = vpack.c.b16 %v533, %v532
        %v577 = vpack.c.b16 %v535, %v534
        %v578 = vpack.c.b16 %v537, %v536
        %v579 = vpack.c.b16 %v539, %v538
        %v580 = vpack.c.b16 %v541, %v540
        %v581 = vpack.c.b16 %v543, %v542
        %v582 = vpack.c.b16 %v545, %v544
        %v583 = vpack.c.b16 %v547, %v546
        %vm620 = vcmask 523264
        %v622 = vsel %vm620, %v372, 0
        %v625 = vsel %vm620, %v377, 0
        %v628 = vsel %vm620, %v382, 0
        %v631 = vsel %vm620, %v387, 0
        %633 = vmatprep.subr.bf16.mxu0 0
        %634 = vmatpush1.bf16.msra.mxu0 %v548
        %635 = vmatprep.subr.bf16.mxu0 0
        %636 = vmatpush1.bf16.msra.mxu0 %v549
        %637 = vmatprep.subr.bf16.mxu0 0
        %638 = vmatpush1.bf16.msra.mxu0 %v550
        %639 = vmatprep.subr.bf16.mxu0 0
        %640 = vmatpush1.bf16.msra.mxu0 %v551
        %641 = vmatprep.subr.bf16.mxu0 0
        %642 = vmatpush1.bf16.msra.mxu0 %v552
        %643 = vmatprep.subr.bf16.mxu0 0
        %644 = vmatpush1.bf16.msra.mxu0 %v553
        %645 = vmatprep.subr.bf16.mxu0 0
        %646 = vmatpush1.bf16.msra.mxu0 %v554
        %647 = vmatprep.subr.bf16.mxu0 0
        %648 = vmatpush1.bf16.msra.mxu0 %v555
        %649 = vmatprep.subr.bf16.mxu0 0
        %650 = vmatpush1.bf16.msra.mxu0 %v556
        %651 = vmatprep.subr.bf16.mxu0 0
        %652 = vmatpush1.bf16.msra.mxu0 %v557
        %653 = vmatprep.subr.bf16.mxu0 0
        %654 = vmatpush1.bf16.msra.mxu0 %v558
        %655 = vmatprep.subr.bf16.mxu0 0
        %656 = vmatpush1.bf16.msra.mxu0 %v559
        %657 = vmatprep.subr.bf16.mxu0 0
        %658 = vmatpush1.bf16.msra.mxu0 %v560
        %659 = vmatprep.subr.bf16.mxu0 0
        %660 = vmatpush1.bf16.msra.mxu0 %v561
        %661 = vmatprep.subr.bf16.mxu0 0
        %662 = vmatpush1.bf16.msra.mxu0 %v562
        %663 = vmatprep.subr.bf16.mxu0 0
        %664 = vmatpush1.bf16.msra.mxu0 %v563
        %665 = vmatprep.mubr.bf16.mxu0 %v369
        %666 = vmatmul.mubr.bf16.gmra.mrb[0].mxu0 %v368
        %v667 = vpop.f32.mrb[0].mxu0
        %v668 = vadd.f32 %v302, %v667
        %v669 = vpop.f32.mrb[0].mxu0
        %v670 = vpop.f32.mrb[0].mxu0
        %v671 = vadd.f32 %v302, %v670
        %v672 = vpop.f32.mrb[0].mxu0
        %673 = vmatprep.mubr.bf16.mxu0 %v374
        %674 = vmatmul.mubr.bf16.gmra.mrb[0].mxu0 %v373
        %v675 = vpop.f32.mrb[0].mxu0
        %v676 = vadd.f32 %v302, %v675
        %v677 = vpop.f32.mrb[0].mxu0
        %v678 = vpop.f32.mrb[0].mxu0
        %v679 = vadd.f32 %v302, %v678
        %v680 = vpop.f32.mrb[0].mxu0
        %681 = vmatprep.mubr.bf16.mxu0 %v379
        %682 = vmatmul.mubr.bf16.gmra.mrb[0].mxu0 %v378
        %v683 = vpop.f32.mrb[0].mxu0
        %v684 = vadd.f32 %v302, %v683
        %v685 = vpop.f32.mrb[0].mxu0
        %v686 = vpop.f32.mrb[0].mxu0
        %v687 = vadd.f32 %v302, %v686
        %v688 = vpop.f32.mrb[0].mxu0
        %689 = vmatprep.mubr.bf16.mxu0 %v384
        %690 = vmatmul.mubr.bf16.gmra.mrb[0].mxu0 %v383
        %v691 = vpop.f32.mrb[0].mxu0
        %v692 = vadd.f32 %v302, %v691
        %v693 = vpop.f32.mrb[0].mxu0
        %v694 = vpop.f32.mrb[0].mxu0
        %v695 = vadd.f32 %v302, %v694
        %v696 = vpop.f32.mrb[0].mxu0
        %697 = vdwg.mxu0
        %698 = vmatprep.subr.bf16.mxu0 0
        %699 = vmatpush1.bf16.msra.mxu0 %v564
        %700 = vmatprep.subr.bf16.mxu0 0
        %701 = vmatpush1.bf16.msra.mxu0 %v565
        %702 = vmatprep.subr.bf16.mxu0 0
        %703 = vmatpush1.bf16.msra.mxu0 %v566
        %704 = vmatprep.subr.bf16.mxu0 0
        %705 = vmatpush1.bf16.msra.mxu0 %v567
        %706 = vmatprep.subr.bf16.mxu0 0
        %707 = vmatpush1.bf16.msra.mxu0 %v568
        %708 = vmatprep.subr.bf16.mxu0 0
        %709 = vmatpush1.bf16.msra.mxu0 %v569
        %710 = vmatprep.subr.bf16.mxu0 0
        %711 = vmatpush1.bf16.msra.mxu0 %v570
        %712 = vmatprep.subr.bf16.mxu0 0
        %713 = vmatpush1.bf16.msra.mxu0 %v571
        %714 = vmatprep.subr.bf16.mxu0 0
        %715 = vmatpush1.bf16.msra.mxu0 %v572
        %716 = vmatprep.subr.bf16.mxu0 0
        %717 = vmatpush1.bf16.msra.mxu0 %v573
        %718 = vmatprep.subr.bf16.mxu0 0
        %719 = vmatpush1.bf16.msra.mxu0 %v574
        %720 = vmatprep.subr.bf16.mxu0 0
        %721 = vmatpush1.bf16.msra.mxu0 %v575
        %722 = vmatprep.subr.bf16.mxu0 0
        %723 = vmatpush1.bf16.msra.mxu0 %v576
        %724 = vmatprep.subr.bf16.mxu0 0
        %725 = vmatpush1.bf16.msra.mxu0 %v577
        %726 = vmatprep.subr.bf16.mxu0 0
        %727 = vmatpush1.bf16.msra.mxu0 %v578
        %728 = vmatprep.subr.bf16.mxu0 0
        %729 = vmatpush1.bf16.msra.mxu0 %v579
        %730 = vmatprep.mubr.bf16.mxu0 %v371
        %731 = vmatmul.mubr.bf16.gmra.mrb[0].mxu0 %v370
        %v732 = vpop.f32.mrb[0].mxu0
        %v733 = vadd.f32 %v668, %v732
        %v734 = vpop.f32.mrb[0].mxu0
        %v735 = vpop.f32.mrb[0].mxu0
        %v736 = vadd.f32 %v671, %v735
        %v737 = vpop.f32.mrb[0].mxu0
        %738 = vmatprep.mubr.bf16.mxu0 %v376
        %739 = vmatmul.mubr.bf16.gmra.mrb[0].mxu0 %v375
        %v740 = vpop.f32.mrb[0].mxu0
        %v741 = vadd.f32 %v676, %v740
        %v742 = vpop.f32.mrb[0].mxu0
        %v743 = vpop.f32.mrb[0].mxu0
        %v744 = vadd.f32 %v679, %v743
        %v745 = vpop.f32.mrb[0].mxu0
        %746 = vmatprep.mubr.bf16.mxu0 %v381
        %747 = vmatmul.mubr.bf16.gmra.mrb[0].mxu0 %v380
        %v748 = vpop.f32.mrb[0].mxu0
        %v749 = vadd.f32 %v684, %v748
        %v750 = vpop.f32.mrb[0].mxu0
        %v751 = vpop.f32.mrb[0].mxu0
        %v752 = vadd.f32 %v687, %v751
        %v753 = vpop.f32.mrb[0].mxu0
        %754 = vmatprep.mubr.bf16.mxu0 %v386
        %755 = vmatmul.mubr.bf16.gmra.mrb[0].mxu0 %v385
        %v756 = vpop.f32.mrb[0].mxu0
        %v757 = vadd.f32 %v692, %v756
        %v758 = vpop.f32.mrb[0].mxu0
        %v759 = vpop.f32.mrb[0].mxu0
        %v760 = vadd.f32 %v695, %v759
        %v761 = vpop.f32.mrb[0].mxu0
        %762 = vdwg.mxu0
        %763 = vmatprep.subr.bf16.mxu0 0
        %764 = vmatpush1.bf16.msra.mxu0 %v580
        %765 = vmatprep.subr.bf16.mxu0 0
        %766 = vmatpush1.bf16.msra.mxu0 %v581
        %767 = vmatprep.subr.bf16.mxu0 0
        %768 = vmatpush1.bf16.msra.mxu0 %v582
        %769 = vmatprep.subr.bf16.mxu0 0
        %770 = vmatpush1.bf16.msra.mxu0 %v583
        %771 = vmatprep.subr.bf16.mxu0 0
        %772 = vmatpush1.bf16.msra.mxu0 0
        %773 = vmatprep.subr.bf16.mxu0 0
        %774 = vmatpush1.bf16.msra.mxu0 0
        %775 = vmatprep.subr.bf16.mxu0 0
        %776 = vmatpush1.bf16.msra.mxu0 0
        %777 = vmatprep.subr.bf16.mxu0 0
        %778 = vmatpush1.bf16.msra.mxu0 0
        %779 = vmatprep.subr.bf16.mxu0 0
        %780 = vmatpush1.bf16.msra.mxu0 0
        %781 = vmatprep.subr.bf16.mxu0 0
        %782 = vmatpush1.bf16.msra.mxu0 0
        %783 = vmatprep.subr.bf16.mxu0 0
        %784 = vmatpush1.bf16.msra.mxu0 0
        %785 = vmatprep.subr.bf16.mxu0 0
        %786 = vmatpush1.bf16.msra.mxu0 0
        %787 = vmatprep.subr.bf16.mxu0 0
        %788 = vmatpush1.bf16.msra.mxu0 0
        %789 = vmatprep.subr.bf16.mxu0 0
        %790 = vmatpush1.bf16.msra.mxu0 0
        %791 = vmatprep.subr.bf16.mxu0 0
        %792 = vmatpush1.bf16.msra.mxu0 0
        %793 = vmatprep.subr.bf16.mxu0 0
        %794 = vmatpush1.bf16.msra.mxu0 0
        %795 = vmatprep.mubr.bf16.mxu0 0
        %796 = vmatmul.mubr.bf16.gmra.mrb[0].mxu0 %v622
        %v797 = vpop.f32.mrb[0].mxu0
        %v798 = vadd.f32 %v733, %v797
        %v799 = vpop.f32.mrb[0].mxu0
        %v800 = vpop.f32.mrb[0].mxu0
        %v801 = vadd.f32 %v736, %v800
        %v802 = vpop.f32.mrb[0].mxu0
        %803 = vmatprep.mubr.bf16.mxu0 0
        %804 = vmatmul.mubr.bf16.gmra.mrb[0].mxu0 %v625
        %v805 = vpop.f32.mrb[0].mxu0
        %v806 = vadd.f32 %v741, %v805
        %v807 = vpop.f32.mrb[0].mxu0
        %v808 = vpop.f32.mrb[0].mxu0
        %v809 = vadd.f32 %v744, %v808
        %v810 = vpop.f32.mrb[0].mxu0
        %811 = vmatprep.mubr.bf16.mxu0 0
        %812 = vmatmul.mubr.bf16.gmra.mrb[0].mxu0 %v628
        %v813 = vpop.f32.mrb[0].mxu0
        %v814 = vadd.f32 %v749, %v813
        %v815 = vpop.f32.mrb[0].mxu0
        %v816 = vpop.f32.mrb[0].mxu0
        %v817 = vadd.f32 %v752, %v816
        %v818 = vpop.f32.mrb[0].mxu0
        %819 = vmatprep.mubr.bf16.mxu0 0
        %820 = vmatmul.mubr.bf16.gmra.mrb[0].mxu0 %v631
        %v821 = vpop.f32.mrb[0].mxu0
        %v822 = vadd.f32 %v757, %v821
        %v823 = vpop.f32.mrb[0].mxu0
        %v824 = vpop.f32.mrb[0].mxu0
        %v825 = vadd.f32 %v760, %v824
        %v826 = vpop.f32.mrb[0].mxu0
        %827 = vdwg.mxu0
        %v828 = vmax.f32 %v798, 0.0
        %v829 = vmax.f32 %v801, 0.0
        %v830 = vmax.f32 %v806, 0.0
        %v831 = vmax.f32 %v809, 0.0
        %v832 = vmax.f32 %v814, 0.0
        %v833 = vmax.f32 %v817, 0.0
        %v834 = vmax.f32 %v822, 0.0
        %v835 = vmax.f32 %v825, 0.0
        %v836 = vpack.c.bf16 %v829, %v828
        %v837 = vpack.c.bf16 %v831, %v830
        %v838 = vpack.c.bf16 %v833, %v832
        %v839 = vpack.c.bf16 %v835, %v834
        %v844 = vunpack.c.l.b16 %v836
        %v845 = vunpack.c.h.b16 %v836
        %v846 = vunpack.c.l.b16 %v837
        %v847 = vunpack.c.h.b16 %v837
        %v848 = vunpack.c.l.b16 %v838
        %v849 = vunpack.c.h.b16 %v838
        %v850 = vunpack.c.l.b16 %v839
        %v851 = vunpack.c.h.b16 %v839
        %v852 = vpack.c.b16 %v844, %v844
        %v853 = vpack.c.b16 %v845, %v845
        %v854 = vpack.c.b16 %v846, %v846
        %v855 = vpack.c.b16 %v847, %v847
        %v856 = vpack.c.b16 %v848, %v848
        %v857 = vpack.c.b16 %v849, %v849
        %v858 = vpack.c.b16 %v850, %v850
        %v859 = vpack.c.b16 %v851, %v851
        %vm868 = vcmask 519168
        %869 = vst.msk [vmem:[%s177] sm:$0xf] %vm868, %v852
        %870 = vst.msk [vmem:[%s177 + $0x4] sm:$0xf] %vm868, %v853
        %871 = vst.msk [vmem:[%s177 + $0x8] sm:$0xf] %vm868, %v854
        %872 = vst.msk [vmem:[%s177 + $0xc] sm:$0xf] %vm868, %v855
        %873 = vst.msk [vmem:[%s177 + $0x10] sm:$0xf] %vm868, %v856
        %874 = vst.msk [vmem:[%s177 + $0x14] sm:$0xf] %vm868, %v857
        %875 = vst.msk [vmem:[%s177 + $0x18] sm:$0xf] %vm868, %v858
        %876 = vst.msk [vmem:[%s177 + $0x1c] sm:$0xf] %vm868, %v859
        %s877 = sand.u32 %s90, 1
        %s878 = sand.u32 %s90, 1
        %s879 = smul.addr %s878, 32
        %s880 = scalar_lea.vmem [#allocation2], %s879
        // Predicated region
        $region33: #{dueling_forward.6} parent=31 // pred_check
          %p881 = pneg %p100
        $region34: #{dueling_forward.6} parent=31 // pred_check_branch
          %883 = sbr.rel (%p881) target = $region36
        $region35: #{dueling_forward.6} parent=31 // pred_region
          %s884 = smul.u32 8, %s14
          %s885 = ssub.s32 13, %s884
          %p886 = scmp.lt.s32.totalorder %s885, 8
          %s887 = scalar_select %p886, %s885, 8
          %s888 = smul.u32 64, %s887
          %p889 = scmp.ne.s32.totalorder 0, %s888
          %s890 = smul.addr %s884, 4
          %s891 = scalar_lea.vmem %s3, %s890
          // Predicated region
          $region37: #{dueling_forward.6} parent=35 // pred_check
            %p892 = pneg %p889
          $region38: #{dueling_forward.6} parent=35 // pred_check_branch
            %894 = sbr.rel (%p892) target = $region40
          $region39: #{dueling_forward.6} parent=35 // pred_region
            // Predicated region
            $region41: #{dueling_forward.6} parent=39 // pred_check
              _
            $region42: #{dueling_forward.6} parent=39 // pred_check_branch
              %896 = sbr.rel target = $region44
            $region43: #{dueling_forward.6} parent=39 // pred_region
              // Predicated region
              $region63: #{dueling_forward.6} parent=43 // pred_check
                _
              $region64: #{dueling_forward.6} parent=43 // pred_check_branch
                %959 = sbr.rel (0) target = $region66
              $region65: #{dueling_forward.6} parent=43 // pred_region
                %s961 = sshrl.u32 %s887, 3
                // While loop
                $region67: #{dueling_forward.6} parent=65 // loop_pre_header
                  _
                $region68: #{dueling_forward.6} parent=65 // loop_header
                  %s963 = sphi 0, %s965
                  %p964 = scmp.ge.s32.totalorder %s963, %s961
                  %s968 = sphi 0, %s989
                  %s969 = sphi %s880, %s992
                  %s970 = sphi %s891, %s993
                $region69: #{dueling_forward.6} parent=65 // loop_header_branch
                  %967 = sbr.rel (%p964) target = $region73
                $region70: #{dueling_forward.6} parent=65 // loop_body
                  %v971 = vld [vmem:[%s969] sm:$0xf]
                  %972 = vst [vmem:[%s970] sm:$0xf] %v971
                  %v973 = vld [vmem:[%s969 + $0x4] sm:$0xf]
                  %974 = vst [vmem:[%s970 + $0x4] sm:$0xf] %v973
                  %v975 = vld [vmem:[%s969 + $0x8] sm:$0xf]
                  %976 = vst [vmem:[%s970 + $0x8] sm:$0xf] %v975
                  %v977 = vld [vmem:[%s969 + $0xc] sm:$0xf]
                  %978 = vst [vmem:[%s970 + $0xc] sm:$0xf] %v977
                  %v979 = vld [vmem:[%s969 + $0x10] sm:$0xf]
                  %980 = vst [vmem:[%s970 + $0x10] sm:$0xf] %v979
                  %v981 = vld [vmem:[%s969 + $0x14] sm:$0xf]
                  %982 = vst [vmem:[%s970 + $0x14] sm:$0xf] %v981
                  %v983 = vld [vmem:[%s969 + $0x18] sm:$0xf]
                  %984 = vst [vmem:[%s970 + $0x18] sm:$0xf] %v983
                  %v985 = vld [vmem:[%s969 + $0x1c] sm:$0xf]
                  %986 = vst [vmem:[%s970 + $0x1c] sm:$0xf] %v985
                  %s987 = sadd.s32 1, %s968
                  %p988 = scmp.ge.s32.totalorder %s987, %s961
                  %s989 = scalar_select %p988, 0, %s987
                  %s990 = smul.u32 %s989, 32
                  %s991 = smul.u32 %s989, 32
                  %s992 = scalar_lea.vmem %s880, %s990 [#allocation2]
                  %s993 = scalar_lea.vmem %s891, %s991
                $region71: #{dueling_forward.6} parent=65 // loop_footer
                  %s965 = sadd.s32 %s963, 1
                $region72: #{dueling_forward.6} parent=65 // loop_footer_branch
                  %962 = sbr.rel target = $region68
                $region73: #{dueling_forward.6} parent=65 // loop_exit
                  _
                %s994 = sshrl.u32 %s887, 3
                %s995 = sand.u32 %s887, 7
                %s996 = smul.u32 %s994, 8
                %s997 = smul.u32 4, %s996
                %s998 = scalar_lea.vmem %s880, %s997 [#allocation2]
                %s999 = smul.u32 4, %s996
                %s1000 = scalar_lea.vmem %s891, %s999
                // While loop
                $region74: #{dueling_forward.6} parent=65 // loop_pre_header
                  _
                $region75: #{dueling_forward.6} parent=65 // loop_header
                  %s1002 = sphi 0, %s1004
                  %p1003 = scmp.ge.s32.totalorder %s1002, %s995
                  %s1007 = sphi 0, %s1014
                  %s1008 = sphi %s998, %s1017
                  %s1009 = sphi %s1000, %s1018
                $region76: #{dueling_forward.6} parent=65 // loop_header_branch
                  %1006 = sbr.rel (%p1003) target = $region80
                $region77: #{dueling_forward.6} parent=65 // loop_body
                  %v1010 = vld [vmem:[%s1008] sm:$0xf]
                  %1011 = vst [vmem:[%s1009] sm:$0xf] %v1010
                  %s1012 = sadd.s32 1, %s1007
                  %p1013 = scmp.ge.s32.totalorder %s1012, %s995
                  %s1014 = scalar_select %p1013, 0, %s1012
                  %s1015 = smul.u32 %s1014, 4
                  %s1016 = smul.u32 %s1014, 4
                  %s1017 = scalar_lea.vmem %s998, %s1015 [#allocation2]
                  %s1018 = scalar_lea.vmem %s1000, %s1016
                $region78: #{dueling_forward.6} parent=65 // loop_footer
                  %s1004 = sadd.s32 %s1002, 1
                $region79: #{dueling_forward.6} parent=65 // loop_footer_branch
                  %1001 = sbr.rel target = $region75
                $region80: #{dueling_forward.6} parent=65 // loop_exit
                  _
              $region66: #{dueling_forward.6} parent=43 // pred_fallthru
                _
            $region44: #{dueling_forward.6} parent=39 // pred_fallthru
              _
            // Predicated region
            $region45: #{dueling_forward.6} parent=39 // pred_check
              _
            $region46: #{dueling_forward.6} parent=39 // pred_check_branch
              %898 = sbr.rel (0) target = $region48
            $region47: #{dueling_forward.6} parent=39 // pred_region
              %s900 = sshrl.u32 %s887, 3
              // While loop
              $region49: #{dueling_forward.6} parent=47 // loop_pre_header
                _
              $region50: #{dueling_forward.6} parent=47 // loop_header
                %s902 = sphi 0, %s904
                %p903 = scmp.ge.s32.totalorder %s902, %s900
                %s907 = sphi 0, %s928
                %s908 = sphi %s880, %s931
                %s909 = sphi %s891, %s932
              $region51: #{dueling_forward.6} parent=47 // loop_header_branch
                %906 = sbr.rel (%p903) target = $region55
              $region52: #{dueling_forward.6} parent=47 // loop_body
                %v910 = vld [vmem:[%s908] sm:$0xf]
                %911 = vst [vmem:[%s909] sm:$0xf] %v910
                %v912 = vld [vmem:[%s908 + $0x4] sm:$0xf]
                %913 = vst [vmem:[%s909 + $0x4] sm:$0xf] %v912
                %v914 = vld [vmem:[%s908 + $0x8] sm:$0xf]
                %915 = vst [vmem:[%s909 + $0x8] sm:$0xf] %v914
                %v916 = vld [vmem:[%s908 + $0xc] sm:$0xf]
                %917 = vst [vmem:[%s909 + $0xc] sm:$0xf] %v916
                %v918 = vld [vmem:[%s908 + $0x10] sm:$0xf]
                %919 = vst [vmem:[%s909 + $0x10] sm:$0xf] %v918
                %v920 = vld [vmem:[%s908 + $0x14] sm:$0xf]
                %921 = vst [vmem:[%s909 + $0x14] sm:$0xf] %v920
                %v922 = vld [vmem:[%s908 + $0x18] sm:$0xf]
                %923 = vst [vmem:[%s909 + $0x18] sm:$0xf] %v922
                %v924 = vld [vmem:[%s908 + $0x1c] sm:$0xf]
                %925 = vst [vmem:[%s909 + $0x1c] sm:$0xf] %v924
                %s926 = sadd.s32 1, %s907
                %p927 = scmp.ge.s32.totalorder %s926, %s900
                %s928 = scalar_select %p927, 0, %s926
                %s929 = smul.u32 %s928, 32
                %s930 = smul.u32 %s928, 32
                %s931 = scalar_lea.vmem %s880, %s929 [#allocation2]
                %s932 = scalar_lea.vmem %s891, %s930
              $region53: #{dueling_forward.6} parent=47 // loop_footer
                %s904 = sadd.s32 %s902, 1
              $region54: #{dueling_forward.6} parent=47 // loop_footer_branch
                %901 = sbr.rel target = $region50
              $region55: #{dueling_forward.6} parent=47 // loop_exit
                _
              %s933 = sshrl.u32 %s887, 3
              %s934 = sand.u32 %s887, 7
              %s935 = smul.u32 %s933, 8
              %s936 = smul.u32 4, %s935
              %s937 = scalar_lea.vmem %s880, %s936 [#allocation2]
              %s938 = smul.u32 4, %s935
              %s939 = scalar_lea.vmem %s891, %s938
              // While loop
              $region56: #{dueling_forward.6} parent=47 // loop_pre_header
                _
              $region57: #{dueling_forward.6} parent=47 // loop_header
                %s941 = sphi 0, %s943
                %p942 = scmp.ge.s32.totalorder %s941, %s934
                %s946 = sphi 0, %s953
                %s947 = sphi %s937, %s956
                %s948 = sphi %s939, %s957
              $region58: #{dueling_forward.6} parent=47 // loop_header_branch
                %945 = sbr.rel (%p942) target = $region62
              $region59: #{dueling_forward.6} parent=47 // loop_body
                %v949 = vld [vmem:[%s947] sm:$0xf]
                %950 = vst [vmem:[%s948] sm:$0xf] %v949
                %s951 = sadd.s32 1, %s946
                %p952 = scmp.ge.s32.totalorder %s951, %s934
                %s953 = scalar_select %p952, 0, %s951
                %s954 = smul.u32 %s953, 4
                %s955 = smul.u32 %s953, 4
                %s956 = scalar_lea.vmem %s937, %s954 [#allocation2]
                %s957 = scalar_lea.vmem %s939, %s955
              $region60: #{dueling_forward.6} parent=47 // loop_footer
                %s943 = sadd.s32 %s941, 1
              $region61: #{dueling_forward.6} parent=47 // loop_footer_branch
                %940 = sbr.rel target = $region57
              $region62: #{dueling_forward.6} parent=47 // loop_exit
                _
            $region48: #{dueling_forward.6} parent=39 // pred_fallthru
              _
          $region40: #{dueling_forward.6} parent=35 // pred_fallthru
            _
          %1019 = vnop
        $region36: #{dueling_forward.6} parent=31 // pred_fallthru
          _
      $region32: #{dueling_forward.6} parent=5 // pred_fallthru
        _
      %p1020 = scmp.le.s32.totalorder 2, %s9
      // Predicated region
      $region81: #{dueling_forward.6} parent=5 // pred_check
        %p1021 = pneg %p1020
      $region82: #{dueling_forward.6} parent=5 // pred_check_branch
        %1023 = sbr.rel (%p1021) target = $region84
      $region83: #{dueling_forward.6} parent=5 // pred_region
        %s1024 = ssub.s32 %s9, 2
        // Predicated region
        $region85: #{dueling_forward.6} parent=83 // pred_check
          %p1025 = pneg %p106
        $region86: #{dueling_forward.6} parent=83 // pred_check_branch
          %1027 = sbr.rel (%p1025) target = $region88
        $region87: #{dueling_forward.6} parent=83 // pred_region
          %s1028 = sand.u32 %s91, 1
          %s1029 = sand.u32 %s91, 1
          %s1030 = smul.addr %s1029, 32
          %s1031 = scalar_lea.vmem [#allocation2], %s1030
        $region88: #{dueling_forward.6} parent=83 // pred_fallthru
          _
      $region84: #{dueling_forward.6} parent=5 // pred_fallthru
        _
    $region6: #{dueling_forward.6} parent=1 // loop_footer
      %s13 = sadd.s32 1, %s9
    $region7: #{dueling_forward.6} parent=1 // loop_footer_branch
      %8 = sbr.rel target = $region3
    $region8: #{dueling_forward.6} parent=1 // loop_exit
      _

// kernel: dueling_forward.7
$region0: #{dueling_forward.7}
  #allocation0 [shape = 'u32[]', space=smem, size = 0x4, offset = 0x4, fixed_abs, tag = 'smem constant byte address 0x4 - core index']
  #allocation1 [shape = 'u32[144,128]{1,0:T(1,128)}', space=vmem, size = 0x12000, scoped, tag = 'internal scratch']
  #allocation2 [shape = 'f32[1,1]{1,0:T(1,128)S(1)}', space=vmem, size = 0x200, scoped, tag = 'scoped memory for dueling_forward.7']
  %s0 = inlined_call_operand.vmem [shape: bf16[2,3136], index: 0, kind: input, shape index: {}]
  %s1 = inlined_call_operand.vmem [shape: bf16[3136,512], index: 1, kind: input, shape index: {}]
  %s2 = inlined_call_operand.vmem [shape: f32[1,512], index: 2, kind: input, shape index: {}]
  %s3 = inlined_call_operand.vmem [shape: bf16[512,1024], index: 3, kind: input, shape index: {}]
  %s4 = inlined_call_operand.vmem [shape: f32[1,1024], index: 4, kind: input, shape index: {}]
  %s5 = inlined_call_operand.vmem [shape: bf16[512,1], index: 5, kind: input, shape index: {}]
  %s6 = inlined_call_operand.<no memory space> [shape: f32[1,1], index: 6, kind: input, shape index: {}]
  %s7 = inlined_call_operand.vmem [shape: bf16[512,14], index: 7, kind: input, shape index: {}]
  %s8 = inlined_call_operand.vmem [shape: f32[1,14], index: 8, kind: input, shape index: {}]
  %s9 = inlined_call_operand.hbm [shape: f32[2,14], index: 9, kind: output, shape index: {}]
  %s10 = sld [smem:[#allocation0]]
  $region46: #{dueling_forward.7} parent=0
    _
  %s12 = ssub.s32 1, %s10
  %s13 = scalar_select 0, %s12, %s10
  %v14 = vstv %s6
  %15 = vst [vmem:[#allocation2] sm:$0x1] %v14
  $region1: #{dueling_forward.7} parent=0
    #allocation3 [shape = 'u8[1024]{0}', space=vmem, size = 0x400, scoped, tag = 'output window, operand 0, single buffered']
    #allocation4 [shape = 's32[1]{0}', space=sflag, size = 0x4, scoped, tag = 'scoped memory for dueling_forward.7']
    %16 = vsyncpa [#allocation4], 0
    // Predicated region
    $region2: #{dueling_forward.7} parent=1 // pred_check
      _
    $region3: #{dueling_forward.7} parent=1 // pred_check_branch
      %18 = sbr.rel (0) target = $region5
    $region4: #{dueling_forward.7} parent=1 // pred_region
      _
    $region5: #{dueling_forward.7} parent=1 // pred_fallthru
      _
    // Predicated region
    $region6: #{dueling_forward.7} parent=1 // pred_check
      _
    $region7: #{dueling_forward.7} parent=1 // pred_check_branch
      %20 = sbr.rel (0) target = $region9
    $region8: #{dueling_forward.7} parent=1 // pred_region
      _
    $region9: #{dueling_forward.7} parent=1 // pred_fallthru
      _
    // Predicated region
    $region10: #{dueling_forward.7} parent=1 // pred_check
      _
    $region11: #{dueling_forward.7} parent=1 // pred_check_branch
      %22 = sbr.rel (0) target = $region13
    $region12: #{dueling_forward.7} parent=1 // pred_region
      _
    $region13: #{dueling_forward.7} parent=1 // pred_fallthru
      _
    // Predicated region
    $region14: #{dueling_forward.7} parent=1 // pred_check
      _
    $region15: #{dueling_forward.7} parent=1 // pred_check_branch
      %24 = sbr.rel (0) target = $region17
    $region16: #{dueling_forward.7} parent=1 // pred_region
      _
    $region17: #{dueling_forward.7} parent=1 // pred_fallthru
      _
    // Predicated region
    $region18: #{dueling_forward.7} parent=1 // pred_check
      _
    $region19: #{dueling_forward.7} parent=1 // pred_check_branch
      %26 = sbr.rel (0) target = $region21
    $region20: #{dueling_forward.7} parent=1 // pred_region
      _
    $region21: #{dueling_forward.7} parent=1 // pred_fallthru
      _
    // Predicated region
    $region22: #{dueling_forward.7} parent=1 // pred_check
      _
    $region23: #{dueling_forward.7} parent=1 // pred_check_branch
      %28 = sbr.rel (0) target = $region25
    $region24: #{dueling_forward.7} parent=1 // pred_region
      _
    $region25: #{dueling_forward.7} parent=1 // pred_fallthru
      _
    // Predicated region
    $region26: #{dueling_forward.7} parent=1 // pred_check
      _
    $region27: #{dueling_forward.7} parent=1 // pred_check_branch
      %30 = sbr.rel (0) target = $region29
    $region28: #{dueling_forward.7} parent=1 // pred_region
      _
    $region29: #{dueling_forward.7} parent=1 // pred_fallthru
      _
    // Predicated region
    $region30: #{dueling_forward.7} parent=1 // pred_check
      _
    $region31: #{dueling_forward.7} parent=1 // pred_check_branch
      %32 = sbr.rel (0) target = $region33
    $region32: #{dueling_forward.7} parent=1 // pred_region
      _
    $region33: #{dueling_forward.7} parent=1 // pred_fallthru
      _
    // Predicated region
    $region34: #{dueling_forward.7} parent=1 // pred_check
      _
    $region35: #{dueling_forward.7} parent=1 // pred_check_branch
      %34 = sbr.rel (0) target = $region37
    $region36: #{dueling_forward.7} parent=1 // pred_region
      _
    $region37: #{dueling_forward.7} parent=1 // pred_fallthru
      _
    %v36 = vld [vmem:[%s0] sm:$0xff]
    %v37 = vld [vmem:[%s0 + $0x8] sm:$0xff]
    %v38 = vld [vmem:[%s0 + $0x10] sm:$0xff]
    %v39 = vld [vmem:[%s0 + $0x18] sm:$0x1]
    %v40 = vld [vmem:[%s1] sm:$0xff]
    %v41 = vld [vmem:[%s1 + $0x8] sm:$0xff]
    %v42 = vld [vmem:[%s1 + $0x10] sm:$0xff]
    %v43 = vld [vmem:[%s1 + $0x18] sm:$0xff]
    %v44 = vld [vmem:[%s1 + $0x20] sm:$0xff]
    %v45 = vld [vmem:[%s1 + $0x28] sm:$0xff]
    %v46 = vld [vmem:[%s1 + $0x30] sm:$0xff]
    %v47 = vld [vmem:[%s1 + $0x38] sm:$0xff]
    %v48 = vld [vmem:[%s1 + $0x40] sm:$0xff]
    %v49 = vld [vmem:[%s1 + $0x48] sm:$0xff]
    %v50 = vld [vmem:[%s1 + $0x50] sm:$0xff]
    %v51 = vld [vmem:[%s1 + $0x58] sm:$0xff]
    %v52 = vld [vmem:[%s1 + $0x60] sm:$0xff]
    %v53 = vld [vmem:[%s1 + $0x68] sm:$0xff]
    %v54 = vld [vmem:[%s1 + $0x70] sm:$0xff]
    %v55 = vld [vmem:[%s1 + $0x78] sm:$0xff]
    %v56 = vld [vmem:[%s1 + $0x80] sm:$0xff]
    %v57 = vld [vmem:[%s1 + $0x88] sm:$0xff]
    %v58 = vld [vmem:[%s1 + $0x90] sm:$0xff]
    %v59 = vld [vmem:[%s1 + $0x98] sm:$0xff]
    %v60 = vld [vmem:[%s1 + $0xa0] sm:$0xff]
    %v61 = vld [vmem:[%s1 + $0xa8] sm:$0xff]
    %v62 = vld [vmem:[%s1 + $0xb0] sm:$0xff]
    %v63 = vld [vmem:[%s1 + $0xb8] sm:$0xff]
    %v64 = vld [vmem:[%s1 + $0xc0] sm:$0xff]
    %v65 = vld [vmem:[%s1 + $0xc8] sm:$0xff]
    %v66 = vld [vmem:[%s1 + $0xd0] sm:$0xff]
    %v67 = vld [vmem:[%s1 + $0xd8] sm:$0xff]
    %v68 = vld [vmem:[%s1 + $0xe0] sm:$0xff]
    %v69 = vld [vmem:[%s1 + $0xe8] sm:$0xff]
    %v70 = vld [vmem:[%s1 + $0xf0] sm:$0xff]
    %v71 = vld [vmem:[%s1 + $0xf8] sm:$0xff]
    %v72 = vld [vmem:[%s1 + $0x100] sm:$0xff]
    %v73 = vld [vmem:[%s1 + $0x108] sm:$0xff]
    %v74 = vld [vmem:[%s1 + $0x110] sm:$0xff]
    %v75 = vld [vmem:[%s1 + $0x118] sm:$0xff]
    %v76 = vld [vmem:[%s1 + $0x120] sm:$0xff]
    %v77 = vld [vmem:[%s1 + $0x128] sm:$0xff]
    %v78 = vld [vmem:[%s1 + $0x130] sm:$0xff]
    %v79 = vld [vmem:[%s1 + $0x138] sm:$0xff]
    %v80 = vld [vmem:[%s1 + $0x140] sm:$0xff]
    %v81 = vld [vmem:[%s1 + $0x148] sm:$0xff]
    %v82 = vld [vmem:[%s1 + $0x150] sm:$0xff]
    %v83 = vld [vmem:[%s1 + $0x158] sm:$0xff]
    %v84 = vld [vmem:[%s1 + $0x160] sm:$0xff]
    %v85 = vld [vmem:[%s1 + $0x168] sm:$0xff]
    %v86 = vld [vmem:[%s1 + $0x170] sm:$0xff]
    %v87 = vld [vmem:[%s1 + $0x178] sm:$0xff]
    %v88 = vld [vmem:[%s1 + $0x180] sm:$0xff]
    %v89 = vld [vmem:[%s1 + $0x188] sm:$0xff]
    %v90 = vld [vmem:[%s1 + $0x190] sm:$0xff]
    %v91 = vld [vmem:[%s1 + $0x198] sm:$0xff]
    %v92 = vld [vmem:[%s1 + $0x1a0] sm:$0xff]
    %v93 = vld [vmem:[%s1 + $0x1a8] sm:$0xff]
    %v94 = vld [vmem:[%s1 + $0x1b0] sm:$0xff]
    %v95 = vld [vmem:[%s1 + $0x1b8] sm:$0xff]
    %v96 = vld [vmem:[%s1 + $0x1c0] sm:$0xff]
    %v97 = vld [vmem:[%s1 + $0x1c8] sm:$0xff]
    %v98 = vld [vmem:[%s1 + $0x1d0] sm:$0xff]
    %v99 = vld [vmem:[%s1 + $0x1d8] sm:$0xff]
    %v100 = vld [vmem:[%s1 + $0x1e0] sm:$0xff]
    %v101 = vld [vmem:[%s1 + $0x1e8] sm:$0xff]
    %v102 = vld [vmem:[%s1 + $0x1f0] sm:$0xff]
    %v103 = vld [vmem:[%s1 + $0x1f8] sm:$0xff]
    %v104 = vld [vmem:[%s1 + $0x200] sm:$0xff]
    %v105 = vld [vmem:[%s1 + $0x208] sm:$0xff]
    %v106 = vld [vmem:[%s1 + $0x210] sm:$0xff]
    %v107 = vld [vmem:[%s1 + $0x218] sm:$0xff]
    %v108 = vld [vmem:[%s1 + $0x220] sm:$0xff]
    %v109 = vld [vmem:[%s1 + $0x228] sm:$0xff]
    %v110 = vld [vmem:[%s1 + $0x230] sm:$0xff]
    %v111 = vld [vmem:[%s1 + $0x238] sm:$0xff]
    %v112 = vld [vmem:[%s1 + $0x240] sm:$0xff]
    %v113 = vld [vmem:[%s1 + $0x248] sm:$0xff]
    %v114 = vld [vmem:[%s1 + $0x250] sm:$0xff]
    %v115 = vld [vmem:[%s1 + $0x258] sm:$0xff]
    %v116 = vld [vmem:[%s1 + $0x260] sm:$0xff]
    %v117 = vld [vmem:[%s1 + $0x268] sm:$0xff]
    %v118 = vld [vmem:[%s1 + $0x270] sm:$0xff]
    %v119 = vld [vmem:[%s1 + $0x278] sm:$0xff]
    %v120 = vld [vmem:[%s1 + $0x280] sm:$0xff]
    %v121 = vld [vmem:[%s1 + $0x288] sm:$0xff]
    %v122 = vld [vmem:[%s1 + $0x290] sm:$0xff]
    %v123 = vld [vmem:[%s1 + $0x298] sm:$0xff]
    %v124 = vld [vmem:[%s1 + $0x2a0] sm:$0xff]
    %v125 = vld [vmem:[%s1 + $0x2a8] sm:$0xff]
    %v126 = vld [vmem:[%s1 + $0x2b0] sm:$0xff]
    %v127 = vld [vmem:[%s1 + $0x2b8] sm:$0xff]
    %v128 = vld [vmem:[%s1 + $0x2c0] sm:$0xff]
    %v129 = vld [vmem:[%s1 + $0x2c8] sm:$0xff]
    %v130 = vld [vmem:[%s1 + $0x2d0] sm:$0xff]
    %v131 = vld [vmem:[%s1 + $0x2d8] sm:$0xff]
    %v132 = vld [vmem:[%s1 + $0x2e0] sm:$0xff]
    %v133 = vld [vmem:[%s1 + $0x2e8] sm:$0xff]
    %v134 = vld [vmem:[%s1 + $0x2f0] sm:$0xff]
    %v135 = vld [vmem:[%s1 + $0x2f8] sm:$0xff]
    %v136 = vld [vmem:[%s1 + $0x300] sm:$0xff]
    %v137 = vld [vmem:[%s1 + $0x308] sm:$0xff]
    %v138 = vld [vmem:[%s1 + $0x310] sm:$0xff]
    %v139 = vld [vmem:[%s1 + $0x318] sm:$0xff]
    %v140 = vld [vmem:[%s1 + $0x320] sm:$0xff]
    %v141 = vld [vmem:[%s1 + $0x328] sm:$0xff]
    %v142 = vld [vmem:[%s1 + $0x330] sm:$0xff]
    %v143 = vld [vmem:[%s1 + $0x338] sm:$0xff]
    %v144 = vld [vmem:[%s1 + $0x340] sm:$0xff]
    %v145 = vld [vmem:[%s1 + $0x348] sm:$0xff]
    %v146 = vld [vmem:[%s1 + $0x350] sm:$0xff]
    %v147 = vld [vmem:[%s1 + $0x358] sm:$0xff]
    %v148 = vld [vmem:[%s1 + $0x360] sm:$0xff]
    %v149 = vld [vmem:[%s1 + $0x368] sm:$0xff]
    %v150 = vld [vmem:[%s1 + $0x370] sm:$0xff]
    %v151 = vld [vmem:[%s1 + $0x378] sm:$0xff]
    %v152 = vld [vmem:[%s1 + $0x380] sm:$0xff]
    %v153 = vld [vmem:[%s1 + $0x388] sm:$0xff]
    %v154 = vld [vmem:[%s1 + $0x390] sm:$0xff]
    %v155 = vld [vmem:[%s1 + $0x398] sm:$0xff]
    %v156 = vld [vmem:[%s1 + $0x3a0] sm:$0xff]
    %v157 = vld [vmem:[%s1 + $0x3a8] sm:$0xff]
    %v158 = vld [vmem:[%s1 + $0x3b0] sm:$0xff]
    %v159 = vld [vmem:[%s1 + $0x3b8] sm:$0xff]
    %v160 = vld [vmem:[%s1 + $0x3c0] sm:$0xff]
    %v161 = vld [vmem:[%s1 + $0x3c8] sm:$0xff]
    %v162 = vld [vmem:[%s1 + $0x3d0] sm:$0xff]
    %v163 = vld [vmem:[%s1 + $0x3d8] sm:$0xff]
    %v164 = vld [vmem:[%s1 + $0x3e0] sm:$0xff]
    %v165 = vld [vmem:[%s1 + $0x3e8] sm:$0xff]
    %v166 = vld [vmem:[%s1 + $0x3f0] sm:$0xff]
    %v167 = vld [vmem:[%s1 + $0x3f8] sm:$0xff]
    %v168 = vld [vmem:[%s1 + $0x400] sm:$0xff]
    %v169 = vld [vmem:[%s1 + $0x408] sm:$0xff]
    %v170 = vld [vmem:[%s1 + $0x410] sm:$0xff]
    %v171 = vld [vmem:[%s1 + $0x418] sm:$0xff]
    %v172 = vld [vmem:[%s1 + $0x420] sm:$0xff]
    %v173 = vld [vmem:[%s1 + $0x428] sm:$0xff]
    %v174 = vld [vmem:[%s1 + $0x430] sm:$0xff]
    %v175 = vld [vmem:[%s1 + $0x438] sm:$0xff]
    %v176 = vld [vmem:[%s1 + $0x440] sm:$0xff]
    %v177 = vld [vmem:[%s1 + $0x448] sm:$0xff]
    %v178 = vld [vmem:[%s1 + $0x450] sm:$0xff]
    %v179 = vld [vmem:[%s1 + $0x458] sm:$0xff]
    %v180 = vld [vmem:[%s1 + $0x460] sm:$0xff]
    %v181 = vld [vmem:[%s1 + $0x468] sm:$0xff]
    %v182 = vld [vmem:[%s1 + $0x470] sm:$0xff]
    %v183 = vld [vmem:[%s1 + $0x478] sm:$0xff]
    %v184 = vld [vmem:[%s1 + $0x480] sm:$0xff]
    %v185 = vld [vmem:[%s1 + $0x488] sm:$0xff]
    %v186 = vld [vmem:[%s1 + $0x490] sm:$0xff]
    %v187 = vld [vmem:[%s1 + $0x498] sm:$0xff]
    %v188 = vld [vmem:[%s1 + $0x4a0] sm:$0xff]
    %v189 = vld [vmem:[%s1 + $0x4a8] sm:$0xff]
    %v190 = vld [vmem:[%s1 + $0x4b0] sm:$0xff]
    %v191 = vld [vmem:[%s1 + $0x4b8] sm:$0xff]
    %v192 = vld [vmem:[%s1 + $0x4c0] sm:$0xff]
    %v193 = vld [vmem:[%s1 + $0x4c8] sm:$0xff]
    %v194 = vld [vmem:[%s1 + $0x4d0] sm:$0xff]
    %v195 = vld [vmem:[%s1 + $0x4d8] sm:$0xff]
    %v196 = vld [vmem:[%s1 + $0x4e0] sm:$0xff]
    %v197 = vld [vmem:[%s1 + $0x4e8] sm:$0xff]
    %v198 = vld [vmem:[%s1 + $0x4f0] sm:$0xff]
    %v199 = vld [vmem:[%s1 + $0x4f8] sm:$0xff]
    %v200 = vld [vmem:[%s1 + $0x500] sm:$0xff]
    %v201 = vld [vmem:[%s1 + $0x508] sm:$0xff]
    %v202 = vld [vmem:[%s1 + $0x510] sm:$0xff]
    %v203 = vld [vmem:[%s1 + $0x518] sm:$0xff]
    %v204 = vld [vmem:[%s1 + $0x520] sm:$0xff]
    %v205 = vld [vmem:[%s1 + $0x528] sm:$0xff]
    %v206 = vld [vmem:[%s1 + $0x530] sm:$0xff]
    %v207 = vld [vmem:[%s1 + $0x538] sm:$0xff]
    %v208 = vld [vmem:[%s1 + $0x540] sm:$0xff]
    %v209 = vld [vmem:[%s1 + $0x548] sm:$0xff]
    %v210 = vld [vmem:[%s1 + $0x550] sm:$0xff]
    %v211 = vld [vmem:[%s1 + $0x558] sm:$0xff]
    %v212 = vld [vmem:[%s1 + $0x560] sm:$0xff]
    %v213 = vld [vmem:[%s1 + $0x568] sm:$0xff]
    %v214 = vld [vmem:[%s1 + $0x570] sm:$0xff]
    %v215 = vld [vmem:[%s1 + $0x578] sm:$0xff]
    %v216 = vld [vmem:[%s1 + $0x580] sm:$0xff]
    %v217 = vld [vmem:[%s1 + $0x588] sm:$0xff]
    %v218 = vld [vmem:[%s1 + $0x590] sm:$0xff]
    %v219 = vld [vmem:[%s1 + $0x598] sm:$0xff]
    %v220 = vld [vmem:[%s1 + $0x5a0] sm:$0xff]
    %v221 = vld [vmem:[%s1 + $0x5a8] sm:$0xff]
    %v222 = vld [vmem:[%s1 + $0x5b0] sm:$0xff]
    %v223 = vld [vmem:[%s1 + $0x5b8] sm:$0xff]
    %v224 = vld [vmem:[%s1 + $0x5c0] sm:$0xff]
    %v225 = vld [vmem:[%s1 + $0x5c8] sm:$0xff]
    %v226 = vld [vmem:[%s1 + $0x5d0] sm:$0xff]
    %v227 = vld [vmem:[%s1 + $0x5d8] sm:$0xff]
    %v228 = vld [vmem:[%s1 + $0x5e0] sm:$0xff]
    %v229 = vld [vmem:[%s1 + $0x5e8] sm:$0xff]
    %v230 = vld [vmem:[%s1 + $0x5f0] sm:$0xff]
    %v231 = vld [vmem:[%s1 + $0x5f8] sm:$0xff]
    %v232 = vld [vmem:[%s1 + $0x600] sm:$0xff]
    %v233 = vld [vmem:[%s1 + $0x608] sm:$0xff]
    %v234 = vld [vmem:[%s1 + $0x610] sm:$0xff]
    %v235 = vld [vmem:[%s1 + $0x618] sm:$0xff]
    %v236 = vld [vmem:[%s1 + $0x620] sm:$0xff]
    %v237 = vld [vmem:[%s1 + $0x628] sm:$0xff]
    %v238 = vld [vmem:[%s1 + $0x630] sm:$0xff]
    %v239 = vld [vmem:[%s1 + $0x638] sm:$0xff]
    %v240 = vld [vmem:[%s1 + $0x640] sm:$0xff]
    %v241 = vld [vmem:[%s1 + $0x648] sm:$0xff]
    %v242 = vld [vmem:[%s1 + $0x650] sm:$0xff]
    %v243 = vld [vmem:[%s1 + $0x658] sm:$0xff]
    %v244 = vld [vmem:[%s1 + $0x660] sm:$0xff]
    %v245 = vld [vmem:[%s1 + $0x668] sm:$0xff]
    %v246 = vld [vmem:[%s1 + $0x670] sm:$0xff]
    %v247 = vld [vmem:[%s1 + $0x678] sm:$0xff]
    %v248 = vld [vmem:[%s1 + $0x680] sm:$0xff]
    %v249 = vld [vmem:[%s1 + $0x688] sm:$0xff]
    %v250 = vld [vmem:[%s1 + $0x690] sm:$0xff]
    %v251 = vld [vmem:[%s1 + $0x698] sm:$0xff]
    %v252 = vld [vmem:[%s1 + $0x6a0] sm:$0xff]
    %v253 = vld [vmem:[%s1 + $0x6a8] sm:$0xff]
    %v254 = vld [vmem:[%s1 + $0x6b0] sm:$0xff]
    %v255 = vld [vmem:[%s1 + $0x6b8] sm:$0xff]
    %v256 = vld [vmem:[%s1 + $0x6c0] sm:$0xff]
    %v257 = vld [vmem:[%s1 + $0x6c8] sm:$0xff]
    %v258 = vld [vmem:[%s1 + $0x6d0] sm:$0xff]
    %v259 = vld [vmem:[%s1 + $0x6d8] sm:$0xff]
    %v260 = vld [vmem:[%s1 + $0x6e0] sm:$0xff]
    %v261 = vld [vmem:[%s1 + $0x6e8] sm:$0xff]
    %v262 = vld [vmem:[%s1 + $0x6f0] sm:$0xff]
    %v263 = vld [vmem:[%s1 + $0x6f8] sm:$0xff]
    %v264 = vld [vmem:[%s1 + $0x700] sm:$0xff]
    %v265 = vld [vmem:[%s1 + $0x708] sm:$0xff]
    %v266 = vld [vmem:[%s1 + $0x710] sm:$0xff]
    %v267 = vld [vmem:[%s1 + $0x718] sm:$0xff]
    %v268 = vld [vmem:[%s1 + $0x720] sm:$0xff]
    %v269 = vld [vmem:[%s1 + $0x728] sm:$0xff]
    %v270 = vld [vmem:[%s1 + $0x730] sm:$0xff]
    %v271 = vld [vmem:[%s1 + $0x738] sm:$0xff]
    %v272 = vld [vmem:[%s1 + $0x740] sm:$0xff]
    %v273 = vld [vmem:[%s1 + $0x748] sm:$0xff]
    %v274 = vld [vmem:[%s1 + $0x750] sm:$0xff]
    %v275 = vld [vmem:[%s1 + $0x758] sm:$0xff]
    %v276 = vld [vmem:[%s1 + $0x760] sm:$0xff]
    %v277 = vld [vmem:[%s1 + $0x768] sm:$0xff]
    %v278 = vld [vmem:[%s1 + $0x770] sm:$0xff]
    %v279 = vld [vmem:[%s1 + $0x778] sm:$0xff]
    %v280 = vld [vmem:[%s1 + $0x780] sm:$0xff]
    %v281 = vld [vmem:[%s1 + $0x788] sm:$0xff]
    %v282 = vld [vmem:[%s1 + $0x790] sm:$0xff]
    %v283 = vld [vmem:[%s1 + $0x798] sm:$0xff]
    %v284 = vld [vmem:[%s1 + $0x7a0] sm:$0xff]
    %v285 = vld [vmem:[%s1 + $0x7a8] sm:$0xff]
    %v286 = vld [vmem:[%s1 + $0x7b0] sm:$0xff]
    %v287 = vld [vmem:[%s1 + $0x7b8] sm:$0xff]
    %v288 = vld [vmem:[%s1 + $0x7c0] sm:$0xff]
    %v289 = vld [vmem:[%s1 + $0x7c8] sm:$0xff]
    %v290 = vld [vmem:[%s1 + $0x7d0] sm:$0xff]
    %v291 = vld [vmem:[%s1 + $0x7d8] sm:$0xff]
    %v292 = vld [vmem:[%s1 + $0x7e0] sm:$0xff]
    %v293 = vld [vmem:[%s1 + $0x7e8] sm:$0xff]
    %v294 = vld [vmem:[%s1 + $0x7f0] sm:$0xff]
    %v295 = vld [vmem:[%s1 + $0x7f8] sm:$0xff]
    %v296 = vld [vmem:[%s1 + $0x800] sm:$0xff]
    %v297 = vld [vmem:[%s1 + $0x808] sm:$0xff]
    %v298 = vld [vmem:[%s1 + $0x810] sm:$0xff]
    %v299 = vld [vmem:[%s1 + $0x818] sm:$0xff]
    %v300 = vld [vmem:[%s1 + $0x820] sm:$0xff]
    %v301 = vld [vmem:[%s1 + $0x828] sm:$0xff]
    %v302 = vld [vmem:[%s1 + $0x830] sm:$0xff]
    %v303 = vld [vmem:[%s1 + $0x838] sm:$0xff]
    %v304 = vld [vmem:[%s1 + $0x840] sm:$0xff]
    %v305 = vld [vmem:[%s1 + $0x848] sm:$0xff]
    %v306 = vld [vmem:[%s1 + $0x850] sm:$0xff]
    %v307 = vld [vmem:[%s1 + $0x858] sm:$0xff]
    %v308 = vld [vmem:[%s1 + $0x860] sm:$0xff]
    %v309 = vld [vmem:[%s1 + $0x868] sm:$0xff]
    %v310 = vld [vmem:[%s1 + $0x870] sm:$0xff]
    %v311 = vld [vmem:[%s1 + $0x878] sm:$0xff]
    %v312 = vld [vmem:[%s1 + $0x880] sm:$0xff]
    %v313 = vld [vmem:[%s1 + $0x888] sm:$0xff]
    %v314 = vld [vmem:[%s1 + $0x890] sm:$0xff]
    %v315 = vld [vmem:[%s1 + $0x898] sm:$0xff]
    %v316 = vld [vmem:[%s1 + $0x8a0] sm:$0xff]
    %v317 = vld [vmem:[%s1 + $0x8a8] sm:$0xff]
    %v318 = vld [vmem:[%s1 + $0x8b0] sm:$0xff]
    %v319 = vld [vmem:[%s1 + $0x8b8] sm:$0xff]
    %v320 = vld [vmem:[%s1 + $0x8c0] sm:$0xff]
    %v321 = vld [vmem:[%s1 + $0x8c8] sm:$0xff]
    %v322 = vld [vmem:[%s1 + $0x8d0] sm:$0xff]
    %v323 = vld [vmem:[%s1 + $0x8d8] sm:$0xff]
    %v324 = vld [vmem:[%s1 + $0x8e0] sm:$0xff]
    %v325 = vld [vmem:[%s1 + $0x8e8] sm:$0xff]
    %v326 = vld [vmem:[%s1 + $0x8f0] sm:$0xff]
    %v327 = vld [vmem:[%s1 + $0x8f8] sm:$0xff]
    %v328 = vld [vmem:[%s1 + $0x900] sm:$0xff]
    %v329 = vld [vmem:[%s1 + $0x908] sm:$0xff]
    %v330 = vld [vmem:[%s1 + $0x910] sm:$0xff]
    %v331 = vld [vmem:[%s1 + $0x918] sm:$0xff]
    %v332 = vld [vmem:[%s1 + $0x920] sm:$0xff]
    %v333 = vld [vmem:[%s1 + $0x928] sm:$0xff]
    %v334 = vld [vmem:[%s1 + $0x930] sm:$0xff]
    %v335 = vld [vmem:[%s1 + $0x938] sm:$0xff]
    %v336 = vld [vmem:[%s1 + $0x940] sm:$0xff]
    %v337 = vld [vmem:[%s1 + $0x948] sm:$0xff]
    %v338 = vld [vmem:[%s1 + $0x950] sm:$0xff]
    %v339 = vld [vmem:[%s1 + $0x958] sm:$0xff]
    %v340 = vld [vmem:[%s1 + $0x960] sm:$0xff]
    %v341 = vld [vmem:[%s1 + $0x968] sm:$0xff]
    %v342 = vld [vmem:[%s1 + $0x970] sm:$0xff]
    %v343 = vld [vmem:[%s1 + $0x978] sm:$0xff]
    %v344 = vld [vmem:[%s1 + $0x980] sm:$0xff]
    %v345 = vld [vmem:[%s1 + $0x988] sm:$0xff]
    %v346 = vld [vmem:[%s1 + $0x990] sm:$0xff]
    %v347 = vld [vmem:[%s1 + $0x998] sm:$0xff]
    %v348 = vld [vmem:[%s1 + $0x9a0] sm:$0xff]
    %v349 = vld [vmem:[%s1 + $0x9a8] sm:$0xff]
    %v350 = vld [vmem:[%s1 + $0x9b0] sm:$0xff]
    %v351 = vld [vmem:[%s1 + $0x9b8] sm:$0xff]
    %v352 = vld [vmem:[%s1 + $0x9c0] sm:$0xff]
    %v353 = vld [vmem:[%s1 + $0x9c8] sm:$0xff]
    %v354 = vld [vmem:[%s1 + $0x9d0] sm:$0xff]
    %v355 = vld [vmem:[%s1 + $0x9d8] sm:$0xff]
    %v356 = vld [vmem:[%s1 + $0x9e0] sm:$0xff]
    %v357 = vld [vmem:[%s1 + $0x9e8] sm:$0xff]
    %v358 = vld [vmem:[%s1 + $0x9f0] sm:$0xff]
    %v359 = vld [vmem:[%s1 + $0x9f8] sm:$0xff]
    %v360 = vld [vmem:[%s1 + $0xa00] sm:$0xff]
    %v361 = vld [vmem:[%s1 + $0xa08] sm:$0xff]
    %v362 = vld [vmem:[%s1 + $0xa10] sm:$0xff]
    %v363 = vld [vmem:[%s1 + $0xa18] sm:$0xff]
    %v364 = vld [vmem:[%s1 + $0xa20] sm:$0xff]
    %v365 = vld [vmem:[%s1 + $0xa28] sm:$0xff]
    %v366 = vld [vmem:[%s1 + $0xa30] sm:$0xff]
    %v367 = vld [vmem:[%s1 + $0xa38] sm:$0xff]
    %v368 = vld [vmem:[%s1 + $0xa40] sm:$0xff]
    %v369 = vld [vmem:[%s1 + $0xa48] sm:$0xff]
    %v370 = vld [vmem:[%s1 + $0xa50] sm:$0xff]
    %v371 = vld [vmem:[%s1 + $0xa58] sm:$0xff]
    %v372 = vld [vmem:[%s1 + $0xa60] sm:$0xff]
    %v373 = vld [vmem:[%s1 + $0xa68] sm:$0xff]
    %v374 = vld [vmem:[%s1 + $0xa70] sm:$0xff]
    %v375 = vld [vmem:[%s1 + $0xa78] sm:$0xff]
    %v376 = vld [vmem:[%s1 + $0xa80] sm:$0xff]
    %v377 = vld [vmem:[%s1 + $0xa88] sm:$0xff]
    %v378 = vld [vmem:[%s1 + $0xa90] sm:$0xff]
    %v379 = vld [vmem:[%s1 + $0xa98] sm:$0xff]
    %v380 = vld [vmem:[%s1 + $0xaa0] sm:$0xff]
    %v381 = vld [vmem:[%s1 + $0xaa8] sm:$0xff]
    %v382 = vld [vmem:[%s1 + $0xab0] sm:$0xff]
    %v383 = vld [vmem:[%s1 + $0xab8] sm:$0xff]
    %v384 = vld [vmem:[%s1 + $0xac0] sm:$0xff]
    %v385 = vld [vmem:[%s1 + $0xac8] sm:$0xff]
    %v386 = vld [vmem:[%s1 + $0xad0] sm:$0xff]
    %v387 = vld [vmem:[%s1 + $0xad8] sm:$0xff]
    %v388 = vld [vmem:[%s1 + $0xae0] sm:$0xff]
    %v389 = vld [vmem:[%s1 + $0xae8] sm:$0xff]
    %v390 = vld [vmem:[%s1 + $0xaf0] sm:$0xff]
    %v391 = vld [vmem:[%s1 + $0xaf8] sm:$0xff]
    %v392 = vld [vmem:[%s1 + $0xb00] sm:$0xff]
    %v393 = vld [vmem:[%s1 + $0xb08] sm:$0xff]
    %v394 = vld [vmem:[%s1 + $0xb10] sm:$0xff]
    %v395 = vld [vmem:[%s1 + $0xb18] sm:$0xff]
    %v396 = vld [vmem:[%s1 + $0xb20] sm:$0xff]
    %v397 = vld [vmem:[%s1 + $0xb28] sm:$0xff]
    %v398 = vld [vmem:[%s1 + $0xb30] sm:$0xff]
    %v399 = vld [vmem:[%s1 + $0xb38] sm:$0xff]
    %v400 = vld [vmem:[%s1 + $0xb40] sm:$0xff]
    %v401 = vld [vmem:[%s1 + $0xb48] sm:$0xff]
    %v402 = vld [vmem:[%s1 + $0xb50] sm:$0xff]
    %v403 = vld [vmem:[%s1 + $0xb58] sm:$0xff]
    %v404 = vld [vmem:[%s1 + $0xb60] sm:$0xff]
    %v405 = vld [vmem:[%s1 + $0xb68] sm:$0xff]
    %v406 = vld [vmem:[%s1 + $0xb70] sm:$0xff]
    %v407 = vld [vmem:[%s1 + $0xb78] sm:$0xff]
    %v408 = vld [vmem:[%s1 + $0xb80] sm:$0xff]
    %v409 = vld [vmem:[%s1 + $0xb88] sm:$0xff]
    %v410 = vld [vmem:[%s1 + $0xb90] sm:$0xff]
    %v411 = vld [vmem:[%s1 + $0xb98] sm:$0xff]
    %v412 = vld [vmem:[%s1 + $0xba0] sm:$0xff]
    %v413 = vld [vmem:[%s1 + $0xba8] sm:$0xff]
    %v414 = vld [vmem:[%s1 + $0xbb0] sm:$0xff]
    %v415 = vld [vmem:[%s1 + $0xbb8] sm:$0xff]
    %v416 = vld [vmem:[%s1 + $0xbc0] sm:$0xff]
    %v417 = vld [vmem:[%s1 + $0xbc8] sm:$0xff]
    %v418 = vld [vmem:[%s1 + $0xbd0] sm:$0xff]
    %v419 = vld [vmem:[%s1 + $0xbd8] sm:$0xff]
    %v420 = vld [vmem:[%s1 + $0xbe0] sm:$0xff]
    %v421 = vld [vmem:[%s1 + $0xbe8] sm:$0xff]
    %v422 = vld [vmem:[%s1 + $0xbf0] sm:$0xff]
    %v423 = vld [vmem:[%s1 + $0xbf8] sm:$0xff]
    %v424 = vld [vmem:[%s1 + $0xc00] sm:$0xff]
    %v425 = vld [vmem:[%s1 + $0xc08] sm:$0xff]
    %v426 = vld [vmem:[%s1 + $0xc10] sm:$0xff]
    %v427 = vld [vmem:[%s1 + $0xc18] sm:$0xff]
    %v428 = vld [vmem:[%s1 + $0xc20] sm:$0xff]
    %v429 = vld [vmem:[%s1 + $0xc28] sm:$0xff]
    %v430 = vld [vmem:[%s1 + $0xc30] sm:$0xff]
    %v431 = vld [vmem:[%s1 + $0xc38] sm:$0xff]
    %v432 = vld [vmem:[%s1 + $0xc40] sm:$0xff]
    %v433 = vld [vmem:[%s1 + $0xc48] sm:$0xff]
    %v434 = vld [vmem:[%s1 + $0xc50] sm:$0xff]
    %v435 = vld [vmem:[%s1 + $0xc58] sm:$0xff]
    %v436 = vld [vmem:[%s1 + $0xc60] sm:$0xff]
    %v437 = vld [vmem:[%s1 + $0xc68] sm:$0xff]
    %v438 = vld [vmem:[%s1 + $0xc70] sm:$0xff]
    %v439 = vld [vmem:[%s1 + $0xc78] sm:$0xff]
    %v440 = vld [vmem:[%s1 + $0xc80] sm:$0xff]
    %v441 = vld [vmem:[%s1 + $0xc88] sm:$0xff]
    %v442 = vld [vmem:[%s1 + $0xc90] sm:$0xff]
    %v443 = vld [vmem:[%s1 + $0xc98] sm:$0xff]
    %v444 = vld [vmem:[%s1 + $0xca0] sm:$0xff]
    %v445 = vld [vmem:[%s1 + $0xca8] sm:$0xff]
    %v446 = vld [vmem:[%s1 + $0xcb0] sm:$0xff]
    %v447 = vld [vmem:[%s1 + $0xcb8] sm:$0xff]
    %v448 = vld [vmem:[%s1 + $0xcc0] sm:$0xff]
    %v449 = vld [vmem:[%s1 + $0xcc8] sm:$0xff]
    %v450 = vld [vmem:[%s1 + $0xcd0] sm:$0xff]
    %v451 = vld [vmem:[%s1 + $0xcd8] sm:$0xff]
    %v452 = vld [vmem:[%s1 + $0xce0] sm:$0xff]
    %v453 = vld [vmem:[%s1 + $0xce8] sm:$0xff]
    %v454 = vld [vmem:[%s1 + $0xcf0] sm:$0xff]
    %v455 = vld [vmem:[%s1 + $0xcf8] sm:$0xff]
    %v456 = vld [vmem:[%s1 + $0xd00] sm:$0xff]
    %v457 = vld [vmem:[%s1 + $0xd08] sm:$0xff]
    %v458 = vld [vmem:[%s1 + $0xd10] sm:$0xff]
    %v459 = vld [vmem:[%s1 + $0xd18] sm:$0xff]
    %v460 = vld [vmem:[%s1 + $0xd20] sm:$0xff]
    %v461 = vld [vmem:[%s1 + $0xd28] sm:$0xff]
    %v462 = vld [vmem:[%s1 + $0xd30] sm:$0xff]
    %v463 = vld [vmem:[%s1 + $0xd38] sm:$0xff]
    %v464 = vld [vmem:[%s1 + $0xd40] sm:$0xff]
    %v465 = vld [vmem:[%s1 + $0xd48] sm:$0xff]
    %v466 = vld [vmem:[%s1 + $0xd50] sm:$0xff]
    %v467 = vld [vmem:[%s1 + $0xd58] sm:$0xff]
    %v468 = vld [vmem:[%s1 + $0xd60] sm:$0xff]
    %v469 = vld [vmem:[%s1 + $0xd68] sm:$0xff]
    %v470 = vld [vmem:[%s1 + $0xd70] sm:$0xff]
    %v471 = vld [vmem:[%s1 + $0xd78] sm:$0xff]
    %v472 = vld [vmem:[%s1 + $0xd80] sm:$0xff]
    %v473 = vld [vmem:[%s1 + $0xd88] sm:$0xff]
    %v474 = vld [vmem:[%s1 + $0xd90] sm:$0xff]
    %v475 = vld [vmem:[%s1 + $0xd98] sm:$0xff]
    %v476 = vld [vmem:[%s1 + $0xda0] sm:$0xff]
    %v477 = vld [vmem:[%s1 + $0xda8] sm:$0xff]
    %v478 = vld [vmem:[%s1 + $0xdb0] sm:$0xff]
    %v479 = vld [vmem:[%s1 + $0xdb8] sm:$0xff]
    %v480 = vld [vmem:[%s1 + $0xdc0] sm:$0xff]
    %v481 = vld [vmem:[%s1 + $0xdc8] sm:$0xff]
    %v482 = vld [vmem:[%s1 + $0xdd0] sm:$0xff]
    %v483 = vld [vmem:[%s1 + $0xdd8] sm:$0xff]
    %v484 = vld [vmem:[%s1 + $0xde0] sm:$0xff]
    %v485 = vld [vmem:[%s1 + $0xde8] sm:$0xff]
    %v486 = vld [vmem:[%s1 + $0xdf0] sm:$0xff]
    %v487 = vld [vmem:[%s1 + $0xdf8] sm:$0xff]
    %v488 = vld [vmem:[%s1 + $0xe00] sm:$0xff]
    %v489 = vld [vmem:[%s1 + $0xe08] sm:$0xff]
    %v490 = vld [vmem:[%s1 + $0xe10] sm:$0xff]
    %v491 = vld [vmem:[%s1 + $0xe18] sm:$0xff]
    %v492 = vld [vmem:[%s1 + $0xe20] sm:$0xff]
    %v493 = vld [vmem:[%s1 + $0xe28] sm:$0xff]
    %v494 = vld [vmem:[%s1 + $0xe30] sm:$0xff]
    %v495 = vld [vmem:[%s1 + $0xe38] sm:$0xff]
    %v496 = vld [vmem:[%s1 + $0xe40] sm:$0xff]
    %v497 = vld [vmem:[%s1 + $0xe48] sm:$0xff]
    %v498 = vld [vmem:[%s1 + $0xe50] sm:$0xff]
    %v499 = vld [vmem:[%s1 + $0xe58] sm:$0xff]
    %v500 = vld [vmem:[%s1 + $0xe60] sm:$0xff]
    %v501 = vld [vmem:[%s1 + $0xe68] sm:$0xff]
    %v502 = vld [vmem:[%s1 + $0xe70] sm:$0xff]
    %v503 = vld [vmem:[%s1 + $0xe78] sm:$0xff]
    %v504 = vld [vmem:[%s1 + $0xe80] sm:$0xff]
    %v505 = vld [vmem:[%s1 + $0xe88] sm:$0xff]
    %v506 = vld [vmem:[%s1 + $0xe90] sm:$0xff]
    %v507 = vld [vmem:[%s1 + $0xe98] sm:$0xff]
    %v508 = vld [vmem:[%s1 + $0xea0] sm:$0xff]
    %v509 = vld [vmem:[%s1 + $0xea8] sm:$0xff]
    %v510 = vld [vmem:[%s1 + $0xeb0] sm:$0xff]
    %v511 = vld [vmem:[%s1 + $0xeb8] sm:$0xff]
    %v512 = vld [vmem:[%s1 + $0xec0] sm:$0xff]
    %v513 = vld [vmem:[%s1 + $0xec8] sm:$0xff]
    %v514 = vld [vmem:[%s1 + $0xed0] sm:$0xff]
    %v515 = vld [vmem:[%s1 + $0xed8] sm:$0xff]
    %v516 = vld [vmem:[%s1 + $0xee0] sm:$0xff]
    %v517 = vld [vmem:[%s1 + $0xee8] sm:$0xff]
    %v518 = vld [vmem:[%s1 + $0xef0] sm:$0xff]
    %v519 = vld [vmem:[%s1 + $0xef8] sm:$0xff]
    %v520 = vld [vmem:[%s1 + $0xf00] sm:$0xff]
    %v521 = vld [vmem:[%s1 + $0xf08] sm:$0xff]
    %v522 = vld [vmem:[%s1 + $0xf10] sm:$0xff]
    %v523 = vld [vmem:[%s1 + $0xf18] sm:$0xff]
    %v524 = vld [vmem:[%s1 + $0xf20] sm:$0xff]
    %v525 = vld [vmem:[%s1 + $0xf28] sm:$0xff]
    %v526 = vld [vmem:[%s1 + $0xf30] sm:$0xff]
    %v527 = vld [vmem:[%s1 + $0xf38] sm:$0xff]
    %v528 = vld [vmem:[%s1 + $0xf40] sm:$0xff]
    %v529 = vld [vmem:[%s1 + $0xf48] sm:$0xff]
    %v530 = vld [vmem:[%s1 + $0xf50] sm:$0xff]
    %v531 = vld [vmem:[%s1 + $0xf58] sm:$0xff]
    %v532 = vld [vmem:[%s1 + $0xf60] sm:$0xff]
    %v533 = vld [vmem:[%s1 + $0xf68] sm:$0xff]
    %v534 = vld [vmem:[%s1 + $0xf70] sm:$0xff]
    %v535 = vld [vmem:[%s1 + $0xf78] sm:$0xff]
    %v536 = vld [vmem:[%s1 + $0xf80] sm:$0xff]
    %v537 = vld [vmem:[%s1 + $0xf88] sm:$0xff]
    %v538 = vld [vmem:[%s1 + $0xf90] sm:$0xff]
    %v539 = vld [vmem:[%s1 + $0xf98] sm:$0xff]
    %v540 = vld [vmem:[%s1 + $0xfa0] sm:$0xff]
    %v541 = vld [vmem:[%s1 + $0xfa8] sm:$0xff]
    %v542 = vld [vmem:[%s1 + $0xfb0] sm:$0xff]
    %v543 = vld [vmem:[%s1 + $0xfb8] sm:$0xff]
    %v544 = vld [vmem:[%s1 + $0xfc0] sm:$0xff]
    %v545 = vld [vmem:[%s1 + $0xfc8] sm:$0xff]
    %v546 = vld [vmem:[%s1 + $0xfd0] sm:$0xff]
    %v547 = vld [vmem:[%s1 + $0xfd8] sm:$0xff]
    %v548 = vld [vmem:[%s1 + $0xfe0] sm:$0xff]
    %v549 = vld [vmem:[%s1 + $0xfe8] sm:$0xff]
    %v550 = vld [vmem:[%s1 + $0xff0] sm:$0xff]
    %v551 = vld [vmem:[%s1 + $0xff8] sm:$0xff]
    %v552 = vld [vmem:[%s1 + $0x1000] sm:$0xff]
    %v553 = vld [vmem:[%s1 + $0x1008] sm:$0xff]
    %v554 = vld [vmem:[%s1 + $0x1010] sm:$0xff]
    %v555 = vld [vmem:[%s1 + $0x1018] sm:$0xff]
    %v556 = vld [vmem:[%s1 + $0x1020] sm:$0xff]
    %v557 = vld [vmem:[%s1 + $0x1028] sm:$0xff]
    %v558 = vld [vmem:[%s1 + $0x1030] sm:$0xff]
    %v559 = vld [vmem:[%s1 + $0x1038] sm:$0xff]
    %v560 = vld [vmem:[%s1 + $0x1040] sm:$0xff]
    %v561 = vld [vmem:[%s1 + $0x1048] sm:$0xff]
    %v562 = vld [vmem:[%s1 + $0x1050] sm:$0xff]
    %v563 = vld [vmem:[%s1 + $0x1058] sm:$0xff]
    %v564 = vld [vmem:[%s1 + $0x1060] sm:$0xff]
    %v565 = vld [vmem:[%s1 + $0x1068] sm:$0xff]
    %v566 = vld [vmem:[%s1 + $0x1070] sm:$0xff]
    %v567 = vld [vmem:[%s1 + $0x1078] sm:$0xff]
    %v568 = vld [vmem:[%s1 + $0x1080] sm:$0xff]
    %v569 = vld [vmem:[%s1 + $0x1088] sm:$0xff]
    %v570 = vld [vmem:[%s1 + $0x1090] sm:$0xff]
    %v571 = vld [vmem:[%s1 + $0x1098] sm:$0xff]
    %v572 = vld [vmem:[%s1 + $0x10a0] sm:$0xff]
    %v573 = vld [vmem:[%s1 + $0x10a8] sm:$0xff]
    %v574 = vld [vmem:[%s1 + $0x10b0] sm:$0xff]
    %v575 = vld [vmem:[%s1 + $0x10b8] sm:$0xff]
    %v576 = vld [vmem:[%s1 + $0x10c0] sm:$0xff]
    %v577 = vld [vmem:[%s1 + $0x10c8] sm:$0xff]
    %v578 = vld [vmem:[%s1 + $0x10d0] sm:$0xff]
    %v579 = vld [vmem:[%s1 + $0x10d8] sm:$0xff]
    %v580 = vld [vmem:[%s1 + $0x10e0] sm:$0xff]
    %v581 = vld [vmem:[%s1 + $0x10e8] sm:$0xff]
    %v582 = vld [vmem:[%s1 + $0x10f0] sm:$0xff]
    %v583 = vld [vmem:[%s1 + $0x10f8] sm:$0xff]
    %v584 = vld [vmem:[%s1 + $0x1100] sm:$0xff]
    %v585 = vld [vmem:[%s1 + $0x1108] sm:$0xff]
    %v586 = vld [vmem:[%s1 + $0x1110] sm:$0xff]
    %v587 = vld [vmem:[%s1 + $0x1118] sm:$0xff]
    %v588 = vld [vmem:[%s1 + $0x1120] sm:$0xff]
    %v589 = vld [vmem:[%s1 + $0x1128] sm:$0xff]
    %v590 = vld [vmem:[%s1 + $0x1130] sm:$0xff]
    %v591 = vld [vmem:[%s1 + $0x1138] sm:$0xff]
    %v592 = vld [vmem:[%s1 + $0x1140] sm:$0xff]
    %v593 = vld [vmem:[%s1 + $0x1148] sm:$0xff]
    %v594 = vld [vmem:[%s1 + $0x1150] sm:$0xff]
    %v595 = vld [vmem:[%s1 + $0x1158] sm:$0xff]
    %v596 = vld [vmem:[%s1 + $0x1160] sm:$0xff]
    %v597 = vld [vmem:[%s1 + $0x1168] sm:$0xff]
    %v598 = vld [vmem:[%s1 + $0x1170] sm:$0xff]
    %v599 = vld [vmem:[%s1 + $0x1178] sm:$0xff]
    %v600 = vld [vmem:[%s1 + $0x1180] sm:$0xff]
    %v601 = vld [vmem:[%s1 + $0x1188] sm:$0xff]
    %v602 = vld [vmem:[%s1 + $0x1190] sm:$0xff]
    %v603 = vld [vmem:[%s1 + $0x1198] sm:$0xff]
    %v604 = vld [vmem:[%s1 + $0x11a0] sm:$0xff]
    %v605 = vld [vmem:[%s1 + $0x11a8] sm:$0xff]
    %v606 = vld [vmem:[%s1 + $0x11b0] sm:$0xff]
    %v607 = vld [vmem:[%s1 + $0x11b8] sm:$0xff]
    %v608 = vld [vmem:[%s1 + $0x11c0] sm:$0xff]
    %v609 = vld [vmem:[%s1 + $0x11c8] sm:$0xff]
    %v610 = vld [vmem:[%s1 + $0x11d0] sm:$0xff]
    %v611 = vld [vmem:[%s1 + $0x11d8] sm:$0xff]
    %v612 = vld [vmem:[%s1 + $0x11e0] sm:$0xff]
    %v613 = vld [vmem:[%s1 + $0x11e8] sm:$0xff]
    %v614 = vld [vmem:[%s1 + $0x11f0] sm:$0xff]
    %v615 = vld [vmem:[%s1 + $0x11f8] sm:$0xff]
    %v616 = vld [vmem:[%s1 + $0x1200] sm:$0xff]
    %v617 = vld [vmem:[%s1 + $0x1208] sm:$0xff]
    %v618 = vld [vmem:[%s1 + $0x1210] sm:$0xff]
    %v619 = vld [vmem:[%s1 + $0x1218] sm:$0xff]
    %v620 = vld [vmem:[%s1 + $0x1220] sm:$0xff]
    %v621 = vld [vmem:[%s1 + $0x1228] sm:$0xff]
    %v622 = vld [vmem:[%s1 + $0x1230] sm:$0xff]
    %v623 = vld [vmem:[%s1 + $0x1238] sm:$0xff]
    %v624 = vld [vmem:[%s1 + $0x1240] sm:$0xff]
    %v625 = vld [vmem:[%s1 + $0x1248] sm:$0xff]
    %v626 = vld [vmem:[%s1 + $0x1250] sm:$0xff]
    %v627 = vld [vmem:[%s1 + $0x1258] sm:$0xff]
    %v628 = vld [vmem:[%s1 + $0x1260] sm:$0xff]
    %v629 = vld [vmem:[%s1 + $0x1268] sm:$0xff]
    %v630 = vld [vmem:[%s1 + $0x1270] sm:$0xff]
    %v631 = vld [vmem:[%s1 + $0x1278] sm:$0xff]
    %v632 = vld [vmem:[%s1 + $0x1280] sm:$0xff]
    %v633 = vld [vmem:[%s1 + $0x1288] sm:$0xff]
    %v634 = vld [vmem:[%s1 + $0x1290] sm:$0xff]
    %v635 = vld [vmem:[%s1 + $0x1298] sm:$0xff]
    %v636 = vld [vmem:[%s1 + $0x12a0] sm:$0xff]
    %v637 = vld [vmem:[%s1 + $0x12a8] sm:$0xff]
    %v638 = vld [vmem:[%s1 + $0x12b0] sm:$0xff]
    %v639 = vld [vmem:[%s1 + $0x12b8] sm:$0xff]
    %v640 = vld [vmem:[%s1 + $0x12c0] sm:$0xff]
    %v641 = vld [vmem:[%s1 + $0x12c8] sm:$0xff]
    %v642 = vld [vmem:[%s1 + $0x12d0] sm:$0xff]
    %v643 = vld [vmem:[%s1 + $0x12d8] sm:$0xff]
    %v644 = vld [vmem:[%s1 + $0x12e0] sm:$0xff]
    %v645 = vld [vmem:[%s1 + $0x12e8] sm:$0xff]
    %v646 = vld [vmem:[%s1 + $0x12f0] sm:$0xff]
    %v647 = vld [vmem:[%s1 + $0x12f8] sm:$0xff]
    %v648 = vld [vmem:[%s1 + $0x1300] sm:$0xff]
    %v649 = vld [vmem:[%s1 + $0x1308] sm:$0xff]
    %v650 = vld [vmem:[%s1 + $0x1310] sm:$0xff]
    %v651 = vld [vmem:[%s1 + $0x1318] sm:$0xff]
    %v652 = vld [vmem:[%s1 + $0x1320] sm:$0xff]
    %v653 = vld [vmem:[%s1 + $0x1328] sm:$0xff]
    %v654 = vld [vmem:[%s1 + $0x1330] sm:$0xff]
    %v655 = vld [vmem:[%s1 + $0x1338] sm:$0xff]
    %v656 = vld [vmem:[%s1 + $0x1340] sm:$0xff]
    %v657 = vld [vmem:[%s1 + $0x1348] sm:$0xff]
    %v658 = vld [vmem:[%s1 + $0x1350] sm:$0xff]
    %v659 = vld [vmem:[%s1 + $0x1358] sm:$0xff]
    %v660 = vld [vmem:[%s1 + $0x1360] sm:$0xff]
    %v661 = vld [vmem:[%s1 + $0x1368] sm:$0xff]
    %v662 = vld [vmem:[%s1 + $0x1370] sm:$0xff]
    %v663 = vld [vmem:[%s1 + $0x1378] sm:$0xff]
    %v664 = vld [vmem:[%s1 + $0x1380] sm:$0xff]
    %v665 = vld [vmem:[%s1 + $0x1388] sm:$0xff]
    %v666 = vld [vmem:[%s1 + $0x1390] sm:$0xff]
    %v667 = vld [vmem:[%s1 + $0x1398] sm:$0xff]
    %v668 = vld [vmem:[%s1 + $0x13a0] sm:$0xff]
    %v669 = vld [vmem:[%s1 + $0x13a8] sm:$0xff]
    %v670 = vld [vmem:[%s1 + $0x13b0] sm:$0xff]
    %v671 = vld [vmem:[%s1 + $0x13b8] sm:$0xff]
    %v672 = vld [vmem:[%s1 + $0x13c0] sm:$0xff]
    %v673 = vld [vmem:[%s1 + $0x13c8] sm:$0xff]
    %v674 = vld [vmem:[%s1 + $0x13d0] sm:$0xff]
    %v675 = vld [vmem:[%s1 + $0x13d8] sm:$0xff]
    %v676 = vld [vmem:[%s1 + $0x13e0] sm:$0xff]
    %v677 = vld [vmem:[%s1 + $0x13e8] sm:$0xff]
    %v678 = vld [vmem:[%s1 + $0x13f0] sm:$0xff]
    %v679 = vld [vmem:[%s1 + $0x13f8] sm:$0xff]
    %v680 = vld [vmem:[%s1 + $0x1400] sm:$0xff]
    %v681 = vld [vmem:[%s1 + $0x1408] sm:$0xff]
    %v682 = vld [vmem:[%s1 + $0x1410] sm:$0xff]
    %v683 = vld [vmem:[%s1 + $0x1418] sm:$0xff]
    %v684 = vld [vmem:[%s1 + $0x1420] sm:$0xff]
    %v685 = vld [vmem:[%s1 + $0x1428] sm:$0xff]
    %v686 = vld [vmem:[%s1 + $0x1430] sm:$0xff]
    %v687 = vld [vmem:[%s1 + $0x1438] sm:$0xff]
    %v688 = vld [vmem:[%s1 + $0x1440] sm:$0xff]
    %v689 = vld [vmem:[%s1 + $0x1448] sm:$0xff]
    %v690 = vld [vmem:[%s1 + $0x1450] sm:$0xff]
    %v691 = vld [vmem:[%s1 + $0x1458] sm:$0xff]
    %v692 = vld [vmem:[%s1 + $0x1460] sm:$0xff]
    %v693 = vld [vmem:[%s1 + $0x1468] sm:$0xff]
    %v694 = vld [vmem:[%s1 + $0x1470] sm:$0xff]
    %v695 = vld [vmem:[%s1 + $0x1478] sm:$0xff]
    %v696 = vld [vmem:[%s1 + $0x1480] sm:$0xff]
    %v697 = vld [vmem:[%s1 + $0x1488] sm:$0xff]
    %v698 = vld [vmem:[%s1 + $0x1490] sm:$0xff]
    %v699 = vld [vmem:[%s1 + $0x1498] sm:$0xff]
    %v700 = vld [vmem:[%s1 + $0x14a0] sm:$0xff]
    %v701 = vld [vmem:[%s1 + $0x14a8] sm:$0xff]
    %v702 = vld [vmem:[%s1 + $0x14b0] sm:$0xff]
    %v703 = vld [vmem:[%s1 + $0x14b8] sm:$0xff]
    %v704 = vld [vmem:[%s1 + $0x14c0] sm:$0xff]
    %v705 = vld [vmem:[%s1 + $0x14c8] sm:$0xff]
    %v706 = vld [vmem:[%s1 + $0x14d0] sm:$0xff]
    %v707 = vld [vmem:[%s1 + $0x14d8] sm:$0xff]
    %v708 = vld [vmem:[%s1 + $0x14e0] sm:$0xff]
    %v709 = vld [vmem:[%s1 + $0x14e8] sm:$0xff]
    %v710 = vld [vmem:[%s1 + $0x14f0] sm:$0xff]
    %v711 = vld [vmem:[%s1 + $0x14f8] sm:$0xff]
    %v712 = vld [vmem:[%s1 + $0x1500] sm:$0xff]
    %v713 = vld [vmem:[%s1 + $0x1508] sm:$0xff]
    %v714 = vld [vmem:[%s1 + $0x1510] sm:$0xff]
    %v715 = vld [vmem:[%s1 + $0x1518] sm:$0xff]
    %v716 = vld [vmem:[%s1 + $0x1520] sm:$0xff]
    %v717 = vld [vmem:[%s1 + $0x1528] sm:$0xff]
    %v718 = vld [vmem:[%s1 + $0x1530] sm:$0xff]
    %v719 = vld [vmem:[%s1 + $0x1538] sm:$0xff]
    %v720 = vld [vmem:[%s1 + $0x1540] sm:$0xff]
    %v721 = vld [vmem:[%s1 + $0x1548] sm:$0xff]
    %v722 = vld [vmem:[%s1 + $0x1550] sm:$0xff]
    %v723 = vld [vmem:[%s1 + $0x1558] sm:$0xff]
    %v724 = vld [vmem:[%s1 + $0x1560] sm:$0xff]
    %v725 = vld [vmem:[%s1 + $0x1568] sm:$0xff]
    %v726 = vld [vmem:[%s1 + $0x1570] sm:$0xff]
    %v727 = vld [vmem:[%s1 + $0x1578] sm:$0xff]
    %v728 = vld [vmem:[%s1 + $0x1580] sm:$0xff]
    %v729 = vld [vmem:[%s1 + $0x1588] sm:$0xff]
    %v730 = vld [vmem:[%s1 + $0x1590] sm:$0xff]
    %v731 = vld [vmem:[%s1 + $0x1598] sm:$0xff]
    %v732 = vld [vmem:[%s1 + $0x15a0] sm:$0xff]
    %v733 = vld [vmem:[%s1 + $0x15a8] sm:$0xff]
    %v734 = vld [vmem:[%s1 + $0x15b0] sm:$0xff]
    %v735 = vld [vmem:[%s1 + $0x15b8] sm:$0xff]
    %v736 = vld [vmem:[%s1 + $0x15c0] sm:$0xff]
    %v737 = vld [vmem:[%s1 + $0x15c8] sm:$0xff]
    %v738 = vld [vmem:[%s1 + $0x15d0] sm:$0xff]
    %v739 = vld [vmem:[%s1 + $0x15d8] sm:$0xff]
    %v740 = vld [vmem:[%s1 + $0x15e0] sm:$0xff]
    %v741 = vld [vmem:[%s1 + $0x15e8] sm:$0xff]
    %v742 = vld [vmem:[%s1 + $0x15f0] sm:$0xff]
    %v743 = vld [vmem:[%s1 + $0x15f8] sm:$0xff]
    %v744 = vld [vmem:[%s1 + $0x1600] sm:$0xff]
    %v745 = vld [vmem:[%s1 + $0x1608] sm:$0xff]
    %v746 = vld [vmem:[%s1 + $0x1610] sm:$0xff]
    %v747 = vld [vmem:[%s1 + $0x1618] sm:$0xff]
    %v748 = vld [vmem:[%s1 + $0x1620] sm:$0xff]
    %v749 = vld [vmem:[%s1 + $0x1628] sm:$0xff]
    %v750 = vld [vmem:[%s1 + $0x1630] sm:$0xff]
    %v751 = vld [vmem:[%s1 + $0x1638] sm:$0xff]
    %v752 = vld [vmem:[%s1 + $0x1640] sm:$0xff]
    %v753 = vld [vmem:[%s1 + $0x1648] sm:$0xff]
    %v754 = vld [vmem:[%s1 + $0x1650] sm:$0xff]
    %v755 = vld [vmem:[%s1 + $0x1658] sm:$0xff]
    %v756 = vld [vmem:[%s1 + $0x1660] sm:$0xff]
    %v757 = vld [vmem:[%s1 + $0x1668] sm:$0xff]
    %v758 = vld [vmem:[%s1 + $0x1670] sm:$0xff]
    %v759 = vld [vmem:[%s1 + $0x1678] sm:$0xff]
    %v760 = vld [vmem:[%s1 + $0x1680] sm:$0xff]
    %v761 = vld [vmem:[%s1 + $0x1688] sm:$0xff]
    %v762 = vld [vmem:[%s1 + $0x1690] sm:$0xff]
    %v763 = vld [vmem:[%s1 + $0x1698] sm:$0xff]
    %v764 = vld [vmem:[%s1 + $0x16a0] sm:$0xff]
    %v765 = vld [vmem:[%s1 + $0x16a8] sm:$0xff]
    %v766 = vld [vmem:[%s1 + $0x16b0] sm:$0xff]
    %v767 = vld [vmem:[%s1 + $0x16b8] sm:$0xff]
    %v768 = vld [vmem:[%s1 + $0x16c0] sm:$0xff]
    %v769 = vld [vmem:[%s1 + $0x16c8] sm:$0xff]
    %v770 = vld [vmem:[%s1 + $0x16d0] sm:$0xff]
    %v771 = vld [vmem:[%s1 + $0x16d8] sm:$0xff]
    %v772 = vld [vmem:[%s1 + $0x16e0] sm:$0xff]
    %v773 = vld [vmem:[%s1 + $0x16e8] sm:$0xff]
    %v774 = vld [vmem:[%s1 + $0x16f0] sm:$0xff]
    %v775 = vld [vmem:[%s1 + $0x16f8] sm:$0xff]
    %v776 = vld [vmem:[%s1 + $0x1700] sm:$0xff]
    %v777 = vld [vmem:[%s1 + $0x1708] sm:$0xff]
    %v778 = vld [vmem:[%s1 + $0x1710] sm:$0xff]
    %v779 = vld [vmem:[%s1 + $0x1718] sm:$0xff]
    %v780 = vld [vmem:[%s1 + $0x1720] sm:$0xff]
    %v781 = vld [vmem:[%s1 + $0x1728] sm:$0xff]
    %v782 = vld [vmem:[%s1 + $0x1730] sm:$0xff]
    %v783 = vld [vmem:[%s1 + $0x1738] sm:$0xff]
    %v784 = vld [vmem:[%s1 + $0x1740] sm:$0xff]
    %v785 = vld [vmem:[%s1 + $0x1748] sm:$0xff]
    %v786 = vld [vmem:[%s1 + $0x1750] sm:$0xff]
    %v787 = vld [vmem:[%s1 + $0x1758] sm:$0xff]
    %v788 = vld [vmem:[%s1 + $0x1760] sm:$0xff]
    %v789 = vld [vmem:[%s1 + $0x1768] sm:$0xff]
    %v790 = vld [vmem:[%s1 + $0x1770] sm:$0xff]
    %v791 = vld [vmem:[%s1 + $0x1778] sm:$0xff]
    %v792 = vld [vmem:[%s1 + $0x1780] sm:$0xff]
    %v793 = vld [vmem:[%s1 + $0x1788] sm:$0xff]
    %v794 = vld [vmem:[%s1 + $0x1790] sm:$0xff]
    %v795 = vld [vmem:[%s1 + $0x1798] sm:$0xff]
    %v796 = vld [vmem:[%s1 + $0x17a0] sm:$0xff]
    %v797 = vld [vmem:[%s1 + $0x17a8] sm:$0xff]
    %v798 = vld [vmem:[%s1 + $0x17b0] sm:$0xff]
    %v799 = vld [vmem:[%s1 + $0x17b8] sm:$0xff]
    %v800 = vld [vmem:[%s1 + $0x17c0] sm:$0xff]
    %v801 = vld [vmem:[%s1 + $0x17c8] sm:$0xff]
    %v802 = vld [vmem:[%s1 + $0x17d0] sm:$0xff]
    %v803 = vld [vmem:[%s1 + $0x17d8] sm:$0xff]
    %v804 = vld [vmem:[%s1 + $0x17e0] sm:$0xff]
    %v805 = vld [vmem:[%s1 + $0x17e8] sm:$0xff]
    %v806 = vld [vmem:[%s1 + $0x17f0] sm:$0xff]
    %v807 = vld [vmem:[%s1 + $0x17f8] sm:$0xff]
    %v808 = vld [vmem:[%s1 + $0x1800] sm:$0xff]
    %v809 = vld [vmem:[%s1 + $0x1808] sm:$0xff]
    %v810 = vld [vmem:[%s1 + $0x1810] sm:$0xff]
    %v811 = vld [vmem:[%s1 + $0x1818] sm:$0xff]
    %v812 = vld [vmem:[%s1 + $0x1820] sm:$0xff]
    %v813 = vld [vmem:[%s1 + $0x1828] sm:$0xff]
    %v814 = vld [vmem:[%s1 + $0x1830] sm:$0xff]
    %v815 = vld [vmem:[%s1 + $0x1838] sm:$0xff]
    %v816 = vld [vmem:[%s1 + $0x1840] sm:$0xff]
    %v817 = vld [vmem:[%s1 + $0x1848] sm:$0xff]
    %v818 = vld [vmem:[%s1 + $0x1850] sm:$0xff]
    %v819 = vld [vmem:[%s1 + $0x1858] sm:$0xff]
    %v820 = vld [vmem:[%s1 + $0x1860] sm:$0xff]
    %v821 = vld [vmem:[%s1 + $0x1868] sm:$0xff]
    %v822 = vld [vmem:[%s1 + $0x1870] sm:$0xff]
    %v823 = vld [vmem:[%s1 + $0x1878] sm:$0xff]
    %v824 = vld [vmem:[%s2] sm:$0xf]
    %v826 = vlaneseq
    %v827 = vshrl.u32 %v826, 7
    %v828 = vsub.s32 0, %v827
    %v829 = vrot.slane %v824, %v828
    %v830 = vlaneseq
    %v831 = vshrl.u32 %v830, 7
    %v832 = vsub.s32 1, %v831
    %v833 = vrot.slane %v824, %v832
    %v834 = vlaneseq
    %v835 = vshrl.u32 %v834, 7
    %v836 = vsub.s32 2, %v835
    %v837 = vrot.slane %v824, %v836
    %v838 = vlaneseq
    %v839 = vshrl.u32 %v838, 7
    %v840 = vsub.s32 3, %v839
    %v841 = vrot.slane %v824, %v840
    %v850 = vcombine.high %v36, %v36
    %v852 = vunpack.c.l.s4 1966171168
    %v853 = vunpack.c.0.s8 %v852
    %v854 = vlaneseq
    %v855 = vshrl.u32 %v854, 7
    %v856 = vsub.s32 %v853, %v855
    %v857 = vrot.slane %v36, %v856
    %v859 = vunpack.c.l.s4 1966171168
    %v860 = vunpack.c.0.s8 %v859
    %v861 = vlaneseq
    %v862 = vshrl.u32 %v861, 7
    %v863 = vsub.s32 %v860, %v862
    %v864 = vrot.slane %v850, %v863
    %v865 = vcombine.high %v857, %v857
    %v866 = vcombine.high %v864, %v864
    %v868 = vunpack.c.l.s4 1966171168
    %v869 = vunpack.c.0.s8 %v868
    %v870 = vlaneseq
    %v871 = vshrl.u32 %v870, 7
    %v872 = vsub.s32 %v869, %v871
    %v873 = vrot.slane %v857, %v872
    %v875 = vunpack.c.l.s4 1966171168
    %v876 = vunpack.c.0.s8 %v875
    %v877 = vlaneseq
    %v878 = vshrl.u32 %v877, 7
    %v879 = vsub.s32 %v876, %v878
    %v880 = vrot.slane %v864, %v879
    %v882 = vunpack.c.l.s4 1966171168
    %v883 = vunpack.c.0.s8 %v882
    %v884 = vlaneseq
    %v885 = vshrl.u32 %v884, 7
    %v886 = vsub.s32 %v883, %v885
    %v887 = vrot.slane %v865, %v886
    %v889 = vunpack.c.l.s4 1966171168
    %v890 = vunpack.c.0.s8 %v889
    %v891 = vlaneseq
    %v892 = vshrl.u32 %v891, 7
    %v893 = vsub.s32 %v890, %v892
    %v894 = vrot.slane %v866, %v893
    %v895 = vcombine.high %v873, %v873
    %v896 = vcombine.high %v880, %v880
    %v897 = vcombine.high %v887, %v887
    %v898 = vcombine.high %v894, %v894
    %v899 = vcombine.high %v37, %v37
    %v901 = vunpack.c.l.s4 1966171168
    %v902 = vunpack.c.0.s8 %v901
    %v903 = vlaneseq
    %v904 = vshrl.u32 %v903, 7
    %v905 = vsub.s32 %v902, %v904
    %v906 = vrot.slane %v37, %v905
    %v908 = vunpack.c.l.s4 1966171168
    %v909 = vunpack.c.0.s8 %v908
    %v910 = vlaneseq
    %v911 = vshrl.u32 %v910, 7
    %v912 = vsub.s32 %v909, %v911
    %v913 = vrot.slane %v899, %v912
    %v914 = vcombine.high %v906, %v906
    %v915 = vcombine.high %v913, %v913
    %v917 = vunpack.c.l.s4 1966171168
    %v918 = vunpack.c.0.s8 %v917
    %v919 = vlaneseq
    %v920 = vshrl.u32 %v919, 7
    %v921 = vsub.s32 %v918, %v920
    %v922 = vrot.slane %v906, %v921
    %v924 = vunpack.c.l.s4 1966171168
    %v925 = vunpack.c.0.s8 %v924
    %v926 = vlaneseq
    %v927 = vshrl.u32 %v926, 7
    %v928 = vsub.s32 %v925, %v927
    %v929 = vrot.slane %v913, %v928
    %v931 = vunpack.c.l.s4 1966171168
    %v932 = vunpack.c.0.s8 %v931
    %v933 = vlaneseq
    %v934 = vshrl.u32 %v933, 7
    %v935 = vsub.s32 %v932, %v934
    %v936 = vrot.slane %v914, %v935
    %v938 = vunpack.c.l.s4 1966171168
    %v939 = vunpack.c.0.s8 %v938
    %v940 = vlaneseq
    %v941 = vshrl.u32 %v940, 7
    %v942 = vsub.s32 %v939, %v941
    %v943 = vrot.slane %v915, %v942
    %v944 = vcombine.high %v922, %v922
    %v945 = vcombine.high %v929, %v929
    %v946 = vcombine.high %v936, %v936
    %v947 = vcombine.high %v943, %v943
    %v948 = vcombine.high %v38, %v38
    %v950 = vunpack.c.l.s4 1966171168
    %v951 = vunpack.c.0.s8 %v950
    %v952 = vlaneseq
    %v953 = vshrl.u32 %v952, 7
    %v954 = vsub.s32 %v951, %v953
    %v955 = vrot.slane %v38, %v954
    %v957 = vunpack.c.l.s4 1966171168
    %v958 = vunpack.c.0.s8 %v957
    %v959 = vlaneseq
    %v960 = vshrl.u32 %v959, 7
    %v961 = vsub.s32 %v958, %v960
    %v962 = vrot.slane %v948, %v961
    %v963 = vcombine.high %v955, %v955
    %v964 = vcombine.high %v962, %v962
    %v966 = vunpack.c.l.s4 1966171168
    %v967 = vunpack.c.0.s8 %v966
    %v968 = vlaneseq
    %v969 = vshrl.u32 %v968, 7
    %v970 = vsub.s32 %v967, %v969
    %v971 = vrot.slane %v955, %v970
    %v973 = vunpack.c.l.s4 1966171168
    %v974 = vunpack.c.0.s8 %v973
    %v975 = vlaneseq
    %v976 = vshrl.u32 %v975, 7
    %v977 = vsub.s32 %v974, %v976
    %v978 = vrot.slane %v962, %v977
    %v980 = vunpack.c.l.s4 1966171168
    %v981 = vunpack.c.0.s8 %v980
    %v982 = vlaneseq
    %v983 = vshrl.u32 %v982, 7
    %v984 = vsub.s32 %v981, %v983
    %v985 = vrot.slane %v963, %v984
    %v987 = vunpack.c.l.s4 1966171168
    %v988 = vunpack.c.0.s8 %v987
    %v989 = vlaneseq
    %v990 = vshrl.u32 %v989, 7
    %v991 = vsub.s32 %v988, %v990
    %v992 = vrot.slane %v964, %v991
    %v993 = vcombine.high %v971, %v971
    %v994 = vcombine.high %v978, %v978
    %v995 = vcombine.high %v985, %v985
    %v996 = vcombine.high %v992, %v992
    %v998 = vunpack.c.l.s4 1966171168
    %v999 = vunpack.c.0.s8 %v998
    %v1000 = vlaneseq
    %v1001 = vshrl.u32 %v1000, 7
    %v1002 = vsub.s32 %v999, %v1001
    %v1003 = vrot.slane %v39, %v1002
    %v1005 = vunpack.c.l.s4 1966171168
    %v1006 = vunpack.c.0.s8 %v1005
    %v1007 = vlaneseq
    %v1008 = vshrl.u32 %v1007, 7
    %v1009 = vsub.s32 %v1006, %v1008
    %v1010 = vrot.slane %v1003, %v1009
    %v1819 = vunpack.c.l.b16 %v40
    %v1820 = vunpack.c.h.b16 %v40
    %v1821 = vunpack.c.l.b16 %v41
    %v1822 = vunpack.c.h.b16 %v41
    %v1823 = vunpack.c.l.b16 %v42
    %v1824 = vunpack.c.h.b16 %v42
    %v1825 = vunpack.c.l.b16 %v43
    %v1826 = vunpack.c.h.b16 %v43
    %v1827 = vunpack.c.l.b16 %v44
    %v1828 = vunpack.c.h.b16 %v44
    %v1829 = vunpack.c.l.b16 %v45
    %v1830 = vunpack.c.h.b16 %v45
    %v1831 = vunpack.c.l.b16 %v46
    %v1832 = vunpack.c.h.b16 %v46
    %v1833 = vunpack.c.l.b16 %v47
    %v1834 = vunpack.c.h.b16 %v47
    %v1835 = vunpack.c.l.b16 %v48
    %v1836 = vunpack.c.h.b16 %v48
    %v1837 = vunpack.c.l.b16 %v49
    %v1838 = vunpack.c.h.b16 %v49
    %v1839 = vunpack.c.l.b16 %v50
    %v1840 = vunpack.c.h.b16 %v50
    %v1841 = vunpack.c.l.b16 %v51
    %v1842 = vunpack.c.h.b16 %v51
    %v1843 = vunpack.c.l.b16 %v52
    %v1844 = vunpack.c.h.b16 %v52
    %v1845 = vunpack.c.l.b16 %v53
    %v1846 = vunpack.c.h.b16 %v53
    %v1847 = vunpack.c.l.b16 %v54
    %v1848 = vunpack.c.h.b16 %v54
    %v1849 = vunpack.c.l.b16 %v55
    %v1850 = vunpack.c.h.b16 %v55
    %v1851 = vunpack.c.l.b16 %v56
    %v1852 = vunpack.c.h.b16 %v56
    %v1853 = vunpack.c.l.b16 %v57
    %v1854 = vunpack.c.h.b16 %v57
    %v1855 = vunpack.c.l.b16 %v58
    %v1856 = vunpack.c.h.b16 %v58
    %v1857 = vunpack.c.l.b16 %v59
    %v1858 = vunpack.c.h.b16 %v59
    %v1859 = vunpack.c.l.b16 %v60
    %v1860 = vunpack.c.h.b16 %v60
    %v1861 = vunpack.c.l.b16 %v61
    %v1862 = vunpack.c.h.b16 %v61
    %v1863 = vunpack.c.l.b16 %v62
    %v1864 = vunpack.c.h.b16 %v62
    %v1865 = vunpack.c.l.b16 %v63
    %v1866 = vunpack.c.h.b16 %v63
    %v1867 = vunpack.c.l.b16 %v64
    %v1868 = vunpack.c.h.b16 %v64
    %v1869 = vunpack.c.l.b16 %v65
    %v1870 = vunpack.c.h.b16 %v65
    %v1871 = vunpack.c.l.b16 %v66
    %v1872 = vunpack.c.h.b16 %v66
    %v1873 = vunpack.c.l.b16 %v67
    %v1874 = vunpack.c.h.b16 %v67
    %v1875 = vunpack.c.l.b16 %v68
    %v1876 = vunpack.c.h.b16 %v68
    %v1877 = vunpack.c.l.b16 %v69
    %v1878 = vunpack.c.h.b16 %v69
    %v1879 = vunpack.c.l.b16 %v70
    %v1880 = vunpack.c.h.b16 %v70
    %v1881 = vunpack.c.l.b16 %v71
    %v1882 = vunpack.c.h.b16 %v71
    %v1883 = vunpack.c.l.b16 %v72
    %v1884 = vunpack.c.h.b16 %v72
    %v1885 = vunpack.c.l.b16 %v73
    %v1886 = vunpack.c.h.b16 %v73
    %v1887 = vunpack.c.l.b16 %v74
    %v1888 = vunpack.c.h.b16 %v74
    %v1889 = vunpack.c.l.b16 %v75
    %v1890 = vunpack.c.h.b16 %v75
    %v1891 = vunpack.c.l.b16 %v76
    %v1892 = vunpack.c.h.b16 %v76
    %v1893 = vunpack.c.l.b16 %v77
    %v1894 = vunpack.c.h.b16 %v77
    %v1895 = vunpack.c.l.b16 %v78
    %v1896 = vunpack.c.h.b16 %v78
    %v1897 = vunpack.c.l.b16 %v79
    %v1898 = vunpack.c.h.b16 %v79
    %v1899 = vunpack.c.l.b16 %v80
    %v1900 = vunpack.c.h.b16 %v80
    %v1901 = vunpack.c.l.b16 %v81
    %v1902 = vunpack.c.h.b16 %v81
    %v1903 = vunpack.c.l.b16 %v82
    %v1904 = vunpack.c.h.b16 %v82
    %v1905 = vunpack.c.l.b16 %v83
    %v1906 = vunpack.c.h.b16 %v83
    %v1907 = vunpack.c.l.b16 %v84
    %v1908 = vunpack.c.h.b16 %v84
    %v1909 = vunpack.c.l.b16 %v85
    %v1910 = vunpack.c.h.b16 %v85
    %v1911 = vunpack.c.l.b16 %v86
    %v1912 = vunpack.c.h.b16 %v86
    %v1913 = vunpack.c.l.b16 %v87
    %v1914 = vunpack.c.h.b16 %v87
    %v1915 = vunpack.c.l.b16 %v88
    %v1916 = vunpack.c.h.b16 %v88
    %v1917 = vunpack.c.l.b16 %v89
    %v1918 = vunpack.c.h.b16 %v89
    %v1919 = vunpack.c.l.b16 %v90
    %v1920 = vunpack.c.h.b16 %v90
    %v1921 = vunpack.c.l.b16 %v91
    %v1922 = vunpack.c.h.b16 %v91
    %v1923 = vunpack.c.l.b16 %v92
    %v1924 = vunpack.c.h.b16 %v92
    %v1925 = vunpack.c.l.b16 %v93
    %v1926 = vunpack.c.h.b16 %v93
    %v1927 = vunpack.c.l.b16 %v94
    %v1928 = vunpack.c.h.b16 %v94
    %v1929 = vunpack.c.l.b16 %v95
    %v1930 = vunpack.c.h.b16 %v95
    %v1931 = vunpack.c.l.b16 %v96
    %v1932 = vunpack.c.h.b16 %v96
    %v1933 = vunpack.c.l.b16 %v97
    %v1934 = vunpack.c.h.b16 %v97
    %v1935 = vunpack.c.l.b16 %v98
    %v1936 = vunpack.c.h.b16 %v98
    %v1937 = vunpack.c.l.b16 %v99
    %v1938 = vunpack.c.h.b16 %v99
    %v1939 = vunpack.c.l.b16 %v100
    %v1940 = vunpack.c.h.b16 %v100
    %v1941 = vunpack.c.l.b16 %v101
    %v1942 = vunpack.c.h.b16 %v101
    %v1943 = vunpack.c.l.b16 %v102
    %v1944 = vunpack.c.h.b16 %v102
    %v1945 = vunpack.c.l.b16 %v103
    %v1946 = vunpack.c.h.b16 %v103
    %v1947 = vunpack.c.l.b16 %v104
    %v1948 = vunpack.c.h.b16 %v104
    %v1949 = vunpack.c.l.b16 %v105
    %v1950 = vunpack.c.h.b16 %v105
    %v1951 = vunpack.c.l.b16 %v106
    %v1952 = vunpack.c.h.b16 %v106
    %v1953 = vunpack.c.l.b16 %v107
    %v1954 = vunpack.c.h.b16 %v107
    %v1955 = vunpack.c.l.b16 %v108
    %v1956 = vunpack.c.h.b16 %v108
    %v1957 = vunpack.c.l.b16 %v109
    %v1958 = vunpack.c.h.b16 %v109
    %v1959 = vunpack.c.l.b16 %v110
    %v1960 = vunpack.c.h.b16 %v110
    %v1961 = vunpack.c.l.b16 %v111
    %v1962 = vunpack.c.h.b16 %v111
    %v1963 = vunpack.c.l.b16 %v112
    %v1964 = vunpack.c.h.b16 %v112
    %v1965 = vunpack.c.l.b16 %v113
    %v1966 = vunpack.c.h.b16 %v113
    %v1967 = vunpack.c.l.b16 %v114
    %v1968 = vunpack.c.h.b16 %v114
    %v1969 = vunpack.c.l.b16 %v115
    %v1970 = vunpack.c.h.b16 %v115
    %v1971 = vunpack.c.l.b16 %v116
    %v1972 = vunpack.c.h.b16 %v116
    %v1973 = vunpack.c.l.b16 %v117
    %v1974 = vunpack.c.h.b16 %v117
    %v1975 = vunpack.c.l.b16 %v118
    %v1976 = vunpack.c.h.b16 %v118
    %v1977 = vunpack.c.l.b16 %v119
    %v1978 = vunpack.c.h.b16 %v119
    %v1979 = vunpack.c.l.b16 %v120
    %v1980 = vunpack.c.h.b16 %v120
    %v1981 = vunpack.c.l.b16 %v121
    %v1982 = vunpack.c.h.b16 %v121
    %v1983 = vunpack.c.l.b16 %v122
    %v1984 = vunpack.c.h.b16 %v122
    %v1985 = vunpack.c.l.b16 %v123
    %v1986 = vunpack.c.h.b16 %v123
    %v1987 = vunpack.c.l.b16 %v124
    %v1988 = vunpack.c.h.b16 %v124
    %v1989 = vunpack.c.l.b16 %v125
    %v1990 = vunpack.c.h.b16 %v125
    %v1991 = vunpack.c.l.b16 %v126
    %v1992 = vunpack.c.h.b16 %v126
    %v1993 = vunpack.c.l.b16 %v127
    %v1994 = vunpack.c.h.b16 %v127
    %v1995 = vunpack.c.l.b16 %v128
    %v1996 = vunpack.c.h.b16 %v128
    %v1997 = vunpack.c.l.b16 %v129
    %v1998 = vunpack.c.h.b16 %v129
    %v1999 = vunpack.c.l.b16 %v130
    %v2000 = vunpack.c.h.b16 %v130
    %v2001 = vunpack.c.l.b16 %v131
    %v2002 = vunpack.c.h.b16 %v131
    %v2003 = vunpack.c.l.b16 %v132
    %v2004 = vunpack.c.h.b16 %v132
    %v2005 = vunpack.c.l.b16 %v133
    %v2006 = vunpack.c.h.b16 %v133
    %v2007 = vunpack.c.l.b16 %v134
    %v2008 = vunpack.c.h.b16 %v134
    %v2009 = vunpack.c.l.b16 %v135
    %v2010 = vunpack.c.h.b16 %v135
    %v2011 = vunpack.c.l.b16 %v136
    %v2012 = vunpack.c.h.b16 %v136
    %v2013 = vunpack.c.l.b16 %v137
    %v2014 = vunpack.c.h.b16 %v137
    %v2015 = vunpack.c.l.b16 %v138
    %v2016 = vunpack.c.h.b16 %v138
    %v2017 = vunpack.c.l.b16 %v139
    %v2018 = vunpack.c.h.b16 %v139
    %v2019 = vunpack.c.l.b16 %v140
    %v2020 = vunpack.c.h.b16 %v140
    %v2021 = vunpack.c.l.b16 %v141
    %v2022 = vunpack.c.h.b16 %v141
    %v2023 = vunpack.c.l.b16 %v142
    %v2024 = vunpack.c.h.b16 %v142
    %v2025 = vunpack.c.l.b16 %v143
    %v2026 = vunpack.c.h.b16 %v143
    %v2027 = vunpack.c.l.b16 %v144
    %v2028 = vunpack.c.h.b16 %v144
    %v2029 = vunpack.c.l.b16 %v145
    %v2030 = vunpack.c.h.b16 %v145
    %v2031 = vunpack.c.l.b16 %v146
    %v2032 = vunpack.c.h.b16 %v146
    %v2033 = vunpack.c.l.b16 %v147
    %v2034 = vunpack.c.h.b16 %v147
    %v2035 = vunpack.c.l.b16 %v148
    %v2036 = vunpack.c.h.b16 %v148
    %v2037 = vunpack.c.l.b16 %v149
    %v2038 = vunpack.c.h.b16 %v149
    %v2039 = vunpack.c.l.b16 %v150
    %v2040 = vunpack.c.h.b16 %v150
    %v2041 = vunpack.c.l.b16 %v151
    %v2042 = vunpack.c.h.b16 %v151
    %v2043 = vunpack.c.l.b16 %v152
    %v2044 = vunpack.c.h.b16 %v152
    %v2045 = vunpack.c.l.b16 %v153
    %v2046 = vunpack.c.h.b16 %v153
    %v2047 = vunpack.c.l.b16 %v154
    %v2048 = vunpack.c.h.b16 %v154
    %v2049 = vunpack.c.l.b16 %v155
    %v2050 = vunpack.c.h.b16 %v155
    %v2051 = vunpack.c.l.b16 %v156
    %v2052 = vunpack.c.h.b16 %v156
    %v2053 = vunpack.c.l.b16 %v157
    %v2054 = vunpack.c.h.b16 %v157
    %v2055 = vunpack.c.l.b16 %v158
    %v2056 = vunpack.c.h.b16 %v158
    %v2057 = vunpack.c.l.b16 %v159
    %v2058 = vunpack.c.h.b16 %v159
    %v2059 = vunpack.c.l.b16 %v160
    %v2060 = vunpack.c.h.b16 %v160
    %v2061 = vunpack.c.l.b16 %v161
    %v2062 = vunpack.c.h.b16 %v161
    %v2063 = vunpack.c.l.b16 %v162
    %v2064 = vunpack.c.h.b16 %v162
    %v2065 = vunpack.c.l.b16 %v163
    %v2066 = vunpack.c.h.b16 %v163
    %v2067 = vunpack.c.l.b16 %v164
    %v2068 = vunpack.c.h.b16 %v164
    %v2069 = vunpack.c.l.b16 %v165
    %v2070 = vunpack.c.h.b16 %v165
    %v2071 = vunpack.c.l.b16 %v166
    %v2072 = vunpack.c.h.b16 %v166
    %v2073 = vunpack.c.l.b16 %v167
    %v2074 = vunpack.c.h.b16 %v167
    %v2075 = vunpack.c.l.b16 %v168
    %v2076 = vunpack.c.h.b16 %v168
    %v2077 = vunpack.c.l.b16 %v169
    %v2078 = vunpack.c.h.b16 %v169
    %v2079 = vunpack.c.l.b16 %v170
    %v2080 = vunpack.c.h.b16 %v170
    %v2081 = vunpack.c.l.b16 %v171
    %v2082 = vunpack.c.h.b16 %v171
    %v2083 = vunpack.c.l.b16 %v172
    %v2084 = vunpack.c.h.b16 %v172
    %v2085 = vunpack.c.l.b16 %v173
    %v2086 = vunpack.c.h.b16 %v173
    %v2087 = vunpack.c.l.b16 %v174
    %v2088 = vunpack.c.h.b16 %v174
    %v2089 = vunpack.c.l.b16 %v175
    %v2090 = vunpack.c.h.b16 %v175
    %v2091 = vunpack.c.l.b16 %v176
    %v2092 = vunpack.c.h.b16 %v176
    %v2093 = vunpack.c.l.b16 %v177
    %v2094 = vunpack.c.h.b16 %v177
    %v2095 = vunpack.c.l.b16 %v178
    %v2096 = vunpack.c.h.b16 %v178
    %v2097 = vunpack.c.l.b16 %v179
    %v2098 = vunpack.c.h.b16 %v179
    %v2099 = vunpack.c.l.b16 %v180
    %v2100 = vunpack.c.h.b16 %v180
    %v2101 = vunpack.c.l.b16 %v181
    %v2102 = vunpack.c.h.b16 %v181
    %v2103 = vunpack.c.l.b16 %v182
    %v2104 = vunpack.c.h.b16 %v182
    %v2105 = vunpack.c.l.b16 %v183
    %v2106 = vunpack.c.h.b16 %v183
    %v2107 = vunpack.c.l.b16 %v184
    %v2108 = vunpack.c.h.b16 %v184
    %v2109 = vunpack.c.l.b16 %v185
    %v2110 = vunpack.c.h.b16 %v185
    %v2111 = vunpack.c.l.b16 %v186
    %v2112 = vunpack.c.h.b16 %v186
    %v2113 = vunpack.c.l.b16 %v187
    %v2114 = vunpack.c.h.b16 %v187
    %v2115 = vunpack.c.l.b16 %v188
    %v2116 = vunpack.c.h.b16 %v188
    %v2117 = vunpack.c.l.b16 %v189
    %v2118 = vunpack.c.h.b16 %v189
    %v2119 = vunpack.c.l.b16 %v190
    %v2120 = vunpack.c.h.b16 %v190
    %v2121 = vunpack.c.l.b16 %v191
    %v2122 = vunpack.c.h.b16 %v191
    %v2123 = vunpack.c.l.b16 %v192
    %v2124 = vunpack.c.h.b16 %v192
    %v2125 = vunpack.c.l.b16 %v193
    %v2126 = vunpack.c.h.b16 %v193
    %v2127 = vunpack.c.l.b16 %v194
    %v2128 = vunpack.c.h.b16 %v194
    %v2129 = vunpack.c.l.b16 %v195
    %v2130 = vunpack.c.h.b16 %v195
    %v2131 = vunpack.c.l.b16 %v196
    %v2132 = vunpack.c.h.b16 %v196
    %v2133 = vunpack.c.l.b16 %v197
    %v2134 = vunpack.c.h.b16 %v197
    %v2135 = vunpack.c.l.b16 %v198
    %v2136 = vunpack.c.h.b16 %v198
    %v2137 = vunpack.c.l.b16 %v199
    %v2138 = vunpack.c.h.b16 %v199
    %v2139 = vunpack.c.l.b16 %v200
    %v2140 = vunpack.c.h.b16 %v200
    %v2141 = vunpack.c.l.b16 %v201
    %v2142 = vunpack.c.h.b16 %v201
    %v2143 = vunpack.c.l.b16 %v202
    %v2144 = vunpack.c.h.b16 %v202
    %v2145 = vunpack.c.l.b16 %v203
    %v2146 = vunpack.c.h.b16 %v203
    %v2147 = vunpack.c.l.b16 %v204
    %v2148 = vunpack.c.h.b16 %v204
    %v2149 = vunpack.c.l.b16 %v205
    %v2150 = vunpack.c.h.b16 %v205
    %v2151 = vunpack.c.l.b16 %v206
    %v2152 = vunpack.c.h.b16 %v206
    %v2153 = vunpack.c.l.b16 %v207
    %v2154 = vunpack.c.h.b16 %v207
    %v2155 = vunpack.c.l.b16 %v208
    %v2156 = vunpack.c.h.b16 %v208
    %v2157 = vunpack.c.l.b16 %v209
    %v2158 = vunpack.c.h.b16 %v209
    %v2159 = vunpack.c.l.b16 %v210
    %v2160 = vunpack.c.h.b16 %v210
    %v2161 = vunpack.c.l.b16 %v211
    %v2162 = vunpack.c.h.b16 %v211
    %v2163 = vunpack.c.l.b16 %v212
    %v2164 = vunpack.c.h.b16 %v212
    %v2165 = vunpack.c.l.b16 %v213
    %v2166 = vunpack.c.h.b16 %v213
    %v2167 = vunpack.c.l.b16 %v214
    %v2168 = vunpack.c.h.b16 %v214
    %v2169 = vunpack.c.l.b16 %v215
    %v2170 = vunpack.c.h.b16 %v215
    %v2171 = vunpack.c.l.b16 %v216
    %v2172 = vunpack.c.h.b16 %v216
    %v2173 = vunpack.c.l.b16 %v217
    %v2174 = vunpack.c.h.b16 %v217
    %v2175 = vunpack.c.l.b16 %v218
    %v2176 = vunpack.c.h.b16 %v218
    %v2177 = vunpack.c.l.b16 %v219
    %v2178 = vunpack.c.h.b16 %v219
    %v2179 = vunpack.c.l.b16 %v220
    %v2180 = vunpack.c.h.b16 %v220
    %v2181 = vunpack.c.l.b16 %v221
    %v2182 = vunpack.c.h.b16 %v221
    %v2183 = vunpack.c.l.b16 %v222
    %v2184 = vunpack.c.h.b16 %v222
    %v2185 = vunpack.c.l.b16 %v223
    %v2186 = vunpack.c.h.b16 %v223
    %v2187 = vunpack.c.l.b16 %v224
    %v2188 = vunpack.c.h.b16 %v224
    %v2189 = vunpack.c.l.b16 %v225
    %v2190 = vunpack.c.h.b16 %v225
    %v2191 = vunpack.c.l.b16 %v226
    %v2192 = vunpack.c.h.b16 %v226
    %v2193 = vunpack.c.l.b16 %v227
    %v2194 = vunpack.c.h.b16 %v227
    %v2195 = vunpack.c.l.b16 %v228
    %v2196 = vunpack.c.h.b16 %v228
    %v2197 = vunpack.c.l.b16 %v229
    %v2198 = vunpack.c.h.b16 %v229
    %v2199 = vunpack.c.l.b16 %v230
    %v2200 = vunpack.c.h.b16 %v230
    %v2201 = vunpack.c.l.b16 %v231
    %v2202 = vunpack.c.h.b16 %v231
    %v2203 = vunpack.c.l.b16 %v232
    %v2204 = vunpack.c.h.b16 %v232
    %v2205 = vunpack.c.l.b16 %v233
    %v2206 = vunpack.c.h.b16 %v233
    %v2207 = vunpack.c.l.b16 %v234
    %v2208 = vunpack.c.h.b16 %v234
    %v2209 = vunpack.c.l.b16 %v235
    %v2210 = vunpack.c.h.b16 %v235
    %v2211 = vunpack.c.l.b16 %v236
    %v2212 = vunpack.c.h.b16 %v236
    %v2213 = vunpack.c.l.b16 %v237
    %v2214 = vunpack.c.h.b16 %v237
    %v2215 = vunpack.c.l.b16 %v238
    %v2216 = vunpack.c.h.b16 %v238
    %v2217 = vunpack.c.l.b16 %v239
    %v2218 = vunpack.c.h.b16 %v239
    %v2219 = vunpack.c.l.b16 %v240
    %v2220 = vunpack.c.h.b16 %v240
    %v2221 = vunpack.c.l.b16 %v241
    %v2222 = vunpack.c.h.b16 %v241
    %v2223 = vunpack.c.l.b16 %v242
    %v2224 = vunpack.c.h.b16 %v242
    %v2225 = vunpack.c.l.b16 %v243
    %v2226 = vunpack.c.h.b16 %v243
    %v2227 = vunpack.c.l.b16 %v244
    %v2228 = vunpack.c.h.b16 %v244
    %v2229 = vunpack.c.l.b16 %v245
    %v2230 = vunpack.c.h.b16 %v245
    %v2231 = vunpack.c.l.b16 %v246
    %v2232 = vunpack.c.h.b16 %v246
    %v2233 = vunpack.c.l.b16 %v247
    %v2234 = vunpack.c.h.b16 %v247
    %v2235 = vunpack.c.l.b16 %v248
    %v2236 = vunpack.c.h.b16 %v248
    %v2237 = vunpack.c.l.b16 %v249
    %v2238 = vunpack.c.h.b16 %v249
    %v2239 = vunpack.c.l.b16 %v250
    %v2240 = vunpack.c.h.b16 %v250
    %v2241 = vunpack.c.l.b16 %v251
    %v2242 = vunpack.c.h.b16 %v251
    %v2243 = vunpack.c.l.b16 %v252
    %v2244 = vunpack.c.h.b16 %v252
    %v2245 = vunpack.c.l.b16 %v253
    %v2246 = vunpack.c.h.b16 %v253
    %v2247 = vunpack.c.l.b16 %v254
    %v2248 = vunpack.c.h.b16 %v254
    %v2249 = vunpack.c.l.b16 %v255
    %v2250 = vunpack.c.h.b16 %v255
    %v2251 = vunpack.c.l.b16 %v256
    %v2252 = vunpack.c.h.b16 %v256
    %v2253 = vunpack.c.l.b16 %v257
    %v2254 = vunpack.c.h.b16 %v257
    %v2255 = vunpack.c.l.b16 %v258
    %v2256 = vunpack.c.h.b16 %v258
    %v2257 = vunpack.c.l.b16 %v259
    %v2258 = vunpack.c.h.b16 %v259
    %v2259 = vunpack.c.l.b16 %v260
    %v2260 = vunpack.c.h.b16 %v260
    %v2261 = vunpack.c.l.b16 %v261
    %v2262 = vunpack.c.h.b16 %v261
    %v2263 = vunpack.c.l.b16 %v262
    %v2264 = vunpack.c.h.b16 %v262
    %v2265 = vunpack.c.l.b16 %v263
    %v2266 = vunpack.c.h.b16 %v263
    %v2267 = vunpack.c.l.b16 %v264
    %v2268 = vunpack.c.h.b16 %v264
    %v2269 = vunpack.c.l.b16 %v265
    %v2270 = vunpack.c.h.b16 %v265
    %v2271 = vunpack.c.l.b16 %v266
    %v2272 = vunpack.c.h.b16 %v266
    %v2273 = vunpack.c.l.b16 %v267
    %v2274 = vunpack.c.h.b16 %v267
    %v2275 = vunpack.c.l.b16 %v268
    %v2276 = vunpack.c.h.b16 %v268
    %v2277 = vunpack.c.l.b16 %v269
    %v2278 = vunpack.c.h.b16 %v269
    %v2279 = vunpack.c.l.b16 %v270
    %v2280 = vunpack.c.h.b16 %v270
    %v2281 = vunpack.c.l.b16 %v271
    %v2282 = vunpack.c.h.b16 %v271
    %v2283 = vunpack.c.l.b16 %v272
    %v2284 = vunpack.c.h.b16 %v272
    %v2285 = vunpack.c.l.b16 %v273
    %v2286 = vunpack.c.h.b16 %v273
    %v2287 = vunpack.c.l.b16 %v274
    %v2288 = vunpack.c.h.b16 %v274
    %v2289 = vunpack.c.l.b16 %v275
    %v2290 = vunpack.c.h.b16 %v275
    %v2291 = vunpack.c.l.b16 %v276
    %v2292 = vunpack.c.h.b16 %v276
    %v2293 = vunpack.c.l.b16 %v277
    %v2294 = vunpack.c.h.b16 %v277
    %v2295 = vunpack.c.l.b16 %v278
    %v2296 = vunpack.c.h.b16 %v278
    %v2297 = vunpack.c.l.b16 %v279
    %v2298 = vunpack.c.h.b16 %v279
    %v2299 = vunpack.c.l.b16 %v280
    %v2300 = vunpack.c.h.b16 %v280
    %v2301 = vunpack.c.l.b16 %v281
    %v2302 = vunpack.c.h.b16 %v281
    %v2303 = vunpack.c.l.b16 %v282
    %v2304 = vunpack.c.h.b16 %v282
    %v2305 = vunpack.c.l.b16 %v283
    %v2306 = vunpack.c.h.b16 %v283
    %v2307 = vunpack.c.l.b16 %v284
    %v2308 = vunpack.c.h.b16 %v284
    %v2309 = vunpack.c.l.b16 %v285
    %v2310 = vunpack.c.h.b16 %v285
    %v2311 = vunpack.c.l.b16 %v286
    %v2312 = vunpack.c.h.b16 %v286
    %v2313 = vunpack.c.l.b16 %v287
    %v2314 = vunpack.c.h.b16 %v287
    %v2315 = vunpack.c.l.b16 %v288
    %v2316 = vunpack.c.h.b16 %v288
    %v2317 = vunpack.c.l.b16 %v289
    %v2318 = vunpack.c.h.b16 %v289
    %v2319 = vunpack.c.l.b16 %v290
    %v2320 = vunpack.c.h.b16 %v290
    %v2321 = vunpack.c.l.b16 %v291
    %v2322 = vunpack.c.h.b16 %v291
    %v2323 = vunpack.c.l.b16 %v292
    %v2324 = vunpack.c.h.b16 %v292
    %v2325 = vunpack.c.l.b16 %v293
    %v2326 = vunpack.c.h.b16 %v293
    %v2327 = vunpack.c.l.b16 %v294
    %v2328 = vunpack.c.h.b16 %v294
    %v2329 = vunpack.c.l.b16 %v295
    %v2330 = vunpack.c.h.b16 %v295
    %v2331 = vunpack.c.l.b16 %v296
    %v2332 = vunpack.c.h.b16 %v296
    %v2333 = vunpack.c.l.b16 %v297
    %v2334 = vunpack.c.h.b16 %v297
    %v2335 = vunpack.c.l.b16 %v298
    %v2336 = vunpack.c.h.b16 %v298
    %v2337 = vunpack.c.l.b16 %v299
    %v2338 = vunpack.c.h.b16 %v299
    %v2339 = vunpack.c.l.b16 %v300
    %v2340 = vunpack.c.h.b16 %v300
    %v2341 = vunpack.c.l.b16 %v301
    %v2342 = vunpack.c.h.b16 %v301
    %v2343 = vunpack.c.l.b16 %v302
    %v2344 = vunpack.c.h.b16 %v302
    %v2345 = vunpack.c.l.b16 %v303
    %v2346 = vunpack.c.h.b16 %v303
    %v2347 = vunpack.c.l.b16 %v304
    %v2348 = vunpack.c.h.b16 %v304
    %v2349 = vunpack.c.l.b16 %v305
    %v2350 = vunpack.c.h.b16 %v305
    %v2351 = vunpack.c.l.b16 %v306
    %v2352 = vunpack.c.h.b16 %v306
    %v2353 = vunpack.c.l.b16 %v307
    %v2354 = vunpack.c.h.b16 %v307
    %v2355 = vunpack.c.l.b16 %v308
    %v2356 = vunpack.c.h.b16 %v308
    %v2357 = vunpack.c.l.b16 %v309
    %v2358 = vunpack.c.h.b16 %v309
    %v2359 = vunpack.c.l.b16 %v310
    %v2360 = vunpack.c.h.b16 %v310
    %v2361 = vunpack.c.l.b16 %v311
    %v2362 = vunpack.c.h.b16 %v311
    %v2363 = vunpack.c.l.b16 %v312
    %v2364 = vunpack.c.h.b16 %v312
    %v2365 = vunpack.c.l.b16 %v313
    %v2366 = vunpack.c.h.b16 %v313
    %v2367 = vunpack.c.l.b16 %v314
    %v2368 = vunpack.c.h.b16 %v314
    %v2369 = vunpack.c.l.b16 %v315
    %v2370 = vunpack.c.h.b16 %v315
    %v2371 = vunpack.c.l.b16 %v316
    %v2372 = vunpack.c.h.b16 %v316
    %v2373 = vunpack.c.l.b16 %v317
    %v2374 = vunpack.c.h.b16 %v317
    %v2375 = vunpack.c.l.b16 %v318
    %v2376 = vunpack.c.h.b16 %v318
    %v2377 = vunpack.c.l.b16 %v319
    %v2378 = vunpack.c.h.b16 %v319
    %v2379 = vunpack.c.l.b16 %v320
    %v2380 = vunpack.c.h.b16 %v320
    %v2381 = vunpack.c.l.b16 %v321
    %v2382 = vunpack.c.h.b16 %v321
    %v2383 = vunpack.c.l.b16 %v322
    %v2384 = vunpack.c.h.b16 %v322
    %v2385 = vunpack.c.l.b16 %v323
    %v2386 = vunpack.c.h.b16 %v323
    %v2387 = vunpack.c.l.b16 %v324
    %v2388 = vunpack.c.h.b16 %v324
    %v2389 = vunpack.c.l.b16 %v325
    %v2390 = vunpack.c.h.b16 %v325
    %v2391 = vunpack.c.l.b16 %v326
    %v2392 = vunpack.c.h.b16 %v326
    %v2393 = vunpack.c.l.b16 %v327
    %v2394 = vunpack.c.h.b16 %v327
    %v2395 = vunpack.c.l.b16 %v328
    %v2396 = vunpack.c.h.b16 %v328
    %v2397 = vunpack.c.l.b16 %v329
    %v2398 = vunpack.c.h.b16 %v329
    %v2399 = vunpack.c.l.b16 %v330
    %v2400 = vunpack.c.h.b16 %v330
    %v2401 = vunpack.c.l.b16 %v331
    %v2402 = vunpack.c.h.b16 %v331
    %v2403 = vunpack.c.l.b16 %v332
    %v2404 = vunpack.c.h.b16 %v332
    %v2405 = vunpack.c.l.b16 %v333
    %v2406 = vunpack.c.h.b16 %v333
    %v2407 = vunpack.c.l.b16 %v334
    %v2408 = vunpack.c.h.b16 %v334
    %v2409 = vunpack.c.l.b16 %v335
    %v2410 = vunpack.c.h.b16 %v335
    %v2411 = vunpack.c.l.b16 %v336
    %v2412 = vunpack.c.h.b16 %v336
    %v2413 = vunpack.c.l.b16 %v337
    %v2414 = vunpack.c.h.b16 %v337
    %v2415 = vunpack.c.l.b16 %v338
    %v2416 = vunpack.c.h.b16 %v338
    %v2417 = vunpack.c.l.b16 %v339
    %v2418 = vunpack.c.h.b16 %v339
    %v2419 = vunpack.c.l.b16 %v340
    %v2420 = vunpack.c.h.b16 %v340
    %v2421 = vunpack.c.l.b16 %v341
    %v2422 = vunpack.c.h.b16 %v341
    %v2423 = vunpack.c.l.b16 %v342
    %v2424 = vunpack.c.h.b16 %v342
    %v2425 = vunpack.c.l.b16 %v343
    %v2426 = vunpack.c.h.b16 %v343
    %v2427 = vunpack.c.l.b16 %v344
    %v2428 = vunpack.c.h.b16 %v344
    %v2429 = vunpack.c.l.b16 %v345
    %v2430 = vunpack.c.h.b16 %v345
    %v2431 = vunpack.c.l.b16 %v346
    %v2432 = vunpack.c.h.b16 %v346
    %v2433 = vunpack.c.l.b16 %v347
    %v2434 = vunpack.c.h.b16 %v347
    %v2435 = vunpack.c.l.b16 %v348
    %v2436 = vunpack.c.h.b16 %v348
    %v2437 = vunpack.c.l.b16 %v349
    %v2438 = vunpack.c.h.b16 %v349
    %v2439 = vunpack.c.l.b16 %v350
    %v2440 = vunpack.c.h.b16 %v350
    %v2441 = vunpack.c.l.b16 %v351
    %v2442 = vunpack.c.h.b16 %v351
    %v2443 = vunpack.c.l.b16 %v352
    %v2444 = vunpack.c.h.b16 %v352
    %v2445 = vunpack.c.l.b16 %v353
    %v2446 = vunpack.c.h.b16 %v353
    %v2447 = vunpack.c.l.b16 %v354
    %v2448 = vunpack.c.h.b16 %v354
    %v2449 = vunpack.c.l.b16 %v355
    %v2450 = vunpack.c.h.b16 %v355
    %v2451 = vunpack.c.l.b16 %v356
    %v2452 = vunpack.c.h.b16 %v356
    %v2453 = vunpack.c.l.b16 %v357
    %v2454 = vunpack.c.h.b16 %v357
    %v2455 = vunpack.c.l.b16 %v358
    %v2456 = vunpack.c.h.b16 %v358
    %v2457 = vunpack.c.l.b16 %v359
    %v2458 = vunpack.c.h.b16 %v359
    %v2459 = vunpack.c.l.b16 %v360
    %v2460 = vunpack.c.h.b16 %v360
    %v2461 = vunpack.c.l.b16 %v361
    %v2462 = vunpack.c.h.b16 %v361
    %v2463 = vunpack.c.l.b16 %v362
    %v2464 = vunpack.c.h.b16 %v362
    %v2465 = vunpack.c.l.b16 %v363
    %v2466 = vunpack.c.h.b16 %v363
    %v2467 = vunpack.c.l.b16 %v364
    %v2468 = vunpack.c.h.b16 %v364
    %v2469 = vunpack.c.l.b16 %v365
    %v2470 = vunpack.c.h.b16 %v365
    %v2471 = vunpack.c.l.b16 %v366
    %v2472 = vunpack.c.h.b16 %v366
    %v2473 = vunpack.c.l.b16 %v367
    %v2474 = vunpack.c.h.b16 %v367
    %v2475 = vunpack.c.l.b16 %v368
    %v2476 = vunpack.c.h.b16 %v368
    %v2477 = vunpack.c.l.b16 %v369
    %v2478 = vunpack.c.h.b16 %v369
    %v2479 = vunpack.c.l.b16 %v370
    %v2480 = vunpack.c.h.b16 %v370
    %v2481 = vunpack.c.l.b16 %v371
    %v2482 = vunpack.c.h.b16 %v371
    %v2483 = vunpack.c.l.b16 %v372
    %v2484 = vunpack.c.h.b16 %v372
    %v2485 = vunpack.c.l.b16 %v373
    %v2486 = vunpack.c.h.b16 %v373
    %v2487 = vunpack.c.l.b16 %v374
    %v2488 = vunpack.c.h.b16 %v374
    %v2489 = vunpack.c.l.b16 %v375
    %v2490 = vunpack.c.h.b16 %v375
    %v2491 = vunpack.c.l.b16 %v376
    %v2492 = vunpack.c.h.b16 %v376
    %v2493 = vunpack.c.l.b16 %v377
    %v2494 = vunpack.c.h.b16 %v377
    %v2495 = vunpack.c.l.b16 %v378
    %v2496 = vunpack.c.h.b16 %v378
    %v2497 = vunpack.c.l.b16 %v379
    %v2498 = vunpack.c.h.b16 %v379
    %v2499 = vunpack.c.l.b16 %v380
    %v2500 = vunpack.c.h.b16 %v380
    %v2501 = vunpack.c.l.b16 %v381
    %v2502 = vunpack.c.h.b16 %v381
    %v2503 = vunpack.c.l.b16 %v382
    %v2504 = vunpack.c.h.b16 %v382
    %v2505 = vunpack.c.l.b16 %v383
    %v2506 = vunpack.c.h.b16 %v383
    %v2507 = vunpack.c.l.b16 %v384
    %v2508 = vunpack.c.h.b16 %v384
    %v2509 = vunpack.c.l.b16 %v385
    %v2510 = vunpack.c.h.b16 %v385
    %v2511 = vunpack.c.l.b16 %v386
    %v2512 = vunpack.c.h.b16 %v386
    %v2513 = vunpack.c.l.b16 %v387
    %v2514 = vunpack.c.h.b16 %v387
    %v2515 = vunpack.c.l.b16 %v388
    %v2516 = vunpack.c.h.b16 %v388
    %v2517 = vunpack.c.l.b16 %v389
    %v2518 = vunpack.c.h.b16 %v389
    %v2519 = vunpack.c.l.b16 %v390
    %v2520 = vunpack.c.h.b16 %v390
    %v2521 = vunpack.c.l.b16 %v391
    %v2522 = vunpack.c.h.b16 %v391
    %v2523 = vunpack.c.l.b16 %v392
    %v2524 = vunpack.c.h.b16 %v392
    %v2525 = vunpack.c.l.b16 %v393
    %v2526 = vunpack.c.h.b16 %v393
    %v2527 = vunpack.c.l.b16 %v394
    %v2528 = vunpack.c.h.b16 %v394
    %v2529 = vunpack.c.l.b16 %v395
    %v2530 = vunpack.c.h.b16 %v395
    %v2531 = vunpack.c.l.b16 %v396
    %v2532 = vunpack.c.h.b16 %v396
    %v2533 = vunpack.c.l.b16 %v397
    %v2534 = vunpack.c.h.b16 %v397
    %v2535 = vunpack.c.l.b16 %v398
    %v2536 = vunpack.c.h.b16 %v398
    %v2537 = vunpack.c.l.b16 %v399
    %v2538 = vunpack.c.h.b16 %v399
    %v2539 = vunpack.c.l.b16 %v400
    %v2540 = vunpack.c.h.b16 %v400
    %v2541 = vunpack.c.l.b16 %v401
    %v2542 = vunpack.c.h.b16 %v401
    %v2543 = vunpack.c.l.b16 %v402
    %v2544 = vunpack.c.h.b16 %v402
    %v2545 = vunpack.c.l.b16 %v403
    %v2546 = vunpack.c.h.b16 %v403
    %v2547 = vunpack.c.l.b16 %v404
    %v2548 = vunpack.c.h.b16 %v404
    %v2549 = vunpack.c.l.b16 %v405
    %v2550 = vunpack.c.h.b16 %v405
    %v2551 = vunpack.c.l.b16 %v406
    %v2552 = vunpack.c.h.b16 %v406
    %v2553 = vunpack.c.l.b16 %v407
    %v2554 = vunpack.c.h.b16 %v407
    %v2555 = vunpack.c.l.b16 %v408
    %v2556 = vunpack.c.h.b16 %v408
    %v2557 = vunpack.c.l.b16 %v409
    %v2558 = vunpack.c.h.b16 %v409
    %v2559 = vunpack.c.l.b16 %v410
    %v2560 = vunpack.c.h.b16 %v410
    %v2561 = vunpack.c.l.b16 %v411
    %v2562 = vunpack.c.h.b16 %v411
    %v2563 = vunpack.c.l.b16 %v412
    %v2564 = vunpack.c.h.b16 %v412
    %v2565 = vunpack.c.l.b16 %v413
    %v2566 = vunpack.c.h.b16 %v413
    %v2567 = vunpack.c.l.b16 %v414
    %v2568 = vunpack.c.h.b16 %v414
    %v2569 = vunpack.c.l.b16 %v415
    %v2570 = vunpack.c.h.b16 %v415
    %v2571 = vunpack.c.l.b16 %v416
    %v2572 = vunpack.c.h.b16 %v416
    %v2573 = vunpack.c.l.b16 %v417
    %v2574 = vunpack.c.h.b16 %v417
    %v2575 = vunpack.c.l.b16 %v418
    %v2576 = vunpack.c.h.b16 %v418
    %v2577 = vunpack.c.l.b16 %v419
    %v2578 = vunpack.c.h.b16 %v419
    %v2579 = vunpack.c.l.b16 %v420
    %v2580 = vunpack.c.h.b16 %v420
    %v2581 = vunpack.c.l.b16 %v421
    %v2582 = vunpack.c.h.b16 %v421
    %v2583 = vunpack.c.l.b16 %v422
    %v2584 = vunpack.c.h.b16 %v422
    %v2585 = vunpack.c.l.b16 %v423
    %v2586 = vunpack.c.h.b16 %v423
    %v2587 = vunpack.c.l.b16 %v424
    %v2588 = vunpack.c.h.b16 %v424
    %v2589 = vunpack.c.l.b16 %v425
    %v2590 = vunpack.c.h.b16 %v425
    %v2591 = vunpack.c.l.b16 %v426
    %v2592 = vunpack.c.h.b16 %v426
    %v2593 = vunpack.c.l.b16 %v427
    %v2594 = vunpack.c.h.b16 %v427
    %v2595 = vunpack.c.l.b16 %v428
    %v2596 = vunpack.c.h.b16 %v428
    %v2597 = vunpack.c.l.b16 %v429
    %v2598 = vunpack.c.h.b16 %v429
    %v2599 = vunpack.c.l.b16 %v430
    %v2600 = vunpack.c.h.b16 %v430
    %v2601 = vunpack.c.l.b16 %v431
    %v2602 = vunpack.c.h.b16 %v431
    %v2603 = vunpack.c.l.b16 %v432
    %v2604 = vunpack.c.h.b16 %v432
    %v2605 = vunpack.c.l.b16 %v433
    %v2606 = vunpack.c.h.b16 %v433
    %v2607 = vunpack.c.l.b16 %v434
    %v2608 = vunpack.c.h.b16 %v434
    %v2609 = vunpack.c.l.b16 %v435
    %v2610 = vunpack.c.h.b16 %v435
    %v2611 = vunpack.c.l.b16 %v436
    %v2612 = vunpack.c.h.b16 %v436
    %v2613 = vunpack.c.l.b16 %v437
    %v2614 = vunpack.c.h.b16 %v437
    %v2615 = vunpack.c.l.b16 %v438
    %v2616 = vunpack.c.h.b16 %v438
    %v2617 = vunpack.c.l.b16 %v439
    %v2618 = vunpack.c.h.b16 %v439
    %v2619 = vunpack.c.l.b16 %v440
    %v2620 = vunpack.c.h.b16 %v440
    %v2621 = vunpack.c.l.b16 %v441
    %v2622 = vunpack.c.h.b16 %v441
    %v2623 = vunpack.c.l.b16 %v442
    %v2624 = vunpack.c.h.b16 %v442
    %v2625 = vunpack.c.l.b16 %v443
    %v2626 = vunpack.c.h.b16 %v443
    %v2627 = vunpack.c.l.b16 %v444
    %v2628 = vunpack.c.h.b16 %v444
    %v2629 = vunpack.c.l.b16 %v445
    %v2630 = vunpack.c.h.b16 %v445
    %v2631 = vunpack.c.l.b16 %v446
    %v2632 = vunpack.c.h.b16 %v446
    %v2633 = vunpack.c.l.b16 %v447
    %v2634 = vunpack.c.h.b16 %v447
    %v2635 = vunpack.c.l.b16 %v448
    %v2636 = vunpack.c.h.b16 %v448
    %v2637 = vunpack.c.l.b16 %v449
    %v2638 = vunpack.c.h.b16 %v449
    %v2639 = vunpack.c.l.b16 %v450
    %v2640 = vunpack.c.h.b16 %v450
    %v2641 = vunpack.c.l.b16 %v451
    %v2642 = vunpack.c.h.b16 %v451
    %v2643 = vunpack.c.l.b16 %v452
    %v2644 = vunpack.c.h.b16 %v452
    %v2645 = vunpack.c.l.b16 %v453
    %v2646 = vunpack.c.h.b16 %v453
    %v2647 = vunpack.c.l.b16 %v454
    %v2648 = vunpack.c.h.b16 %v454
    %v2649 = vunpack.c.l.b16 %v455
    %v2650 = vunpack.c.h.b16 %v455
    %v2651 = vunpack.c.l.b16 %v456
    %v2652 = vunpack.c.h.b16 %v456
    %v2653 = vunpack.c.l.b16 %v457
    %v2654 = vunpack.c.h.b16 %v457
    %v2655 = vunpack.c.l.b16 %v458
    %v2656 = vunpack.c.h.b16 %v458
    %v2657 = vunpack.c.l.b16 %v459
    %v2658 = vunpack.c.h.b16 %v459
    %v2659 = vunpack.c.l.b16 %v460
    %v2660 = vunpack.c.h.b16 %v460
    %v2661 = vunpack.c.l.b16 %v461
    %v2662 = vunpack.c.h.b16 %v461
    %v2663 = vunpack.c.l.b16 %v462
    %v2664 = vunpack.c.h.b16 %v462
    %v2665 = vunpack.c.l.b16 %v463
    %v2666 = vunpack.c.h.b16 %v463
    %v2667 = vunpack.c.l.b16 %v464
    %v2668 = vunpack.c.h.b16 %v464
    %v2669 = vunpack.c.l.b16 %v465
    %v2670 = vunpack.c.h.b16 %v465
    %v2671 = vunpack.c.l.b16 %v466
    %v2672 = vunpack.c.h.b16 %v466
    %v2673 = vunpack.c.l.b16 %v467
    %v2674 = vunpack.c.h.b16 %v467
    %v2675 = vunpack.c.l.b16 %v468
    %v2676 = vunpack.c.h.b16 %v468
    %v2677 = vunpack.c.l.b16 %v469
    %v2678 = vunpack.c.h.b16 %v469
    %v2679 = vunpack.c.l.b16 %v470
    %v2680 = vunpack.c.h.b16 %v470
    %v2681 = vunpack.c.l.b16 %v471
    %v2682 = vunpack.c.h.b16 %v471
    %v2683 = vunpack.c.l.b16 %v472
    %v2684 = vunpack.c.h.b16 %v472
    %v2685 = vunpack.c.l.b16 %v473
    %v2686 = vunpack.c.h.b16 %v473
    %v2687 = vunpack.c.l.b16 %v474
    %v2688 = vunpack.c.h.b16 %v474
    %v2689 = vunpack.c.l.b16 %v475
    %v2690 = vunpack.c.h.b16 %v475
    %v2691 = vunpack.c.l.b16 %v476
    %v2692 = vunpack.c.h.b16 %v476
    %v2693 = vunpack.c.l.b16 %v477
    %v2694 = vunpack.c.h.b16 %v477
    %v2695 = vunpack.c.l.b16 %v478
    %v2696 = vunpack.c.h.b16 %v478
    %v2697 = vunpack.c.l.b16 %v479
    %v2698 = vunpack.c.h.b16 %v479
    %v2699 = vunpack.c.l.b16 %v480
    %v2700 = vunpack.c.h.b16 %v480
    %v2701 = vunpack.c.l.b16 %v481
    %v2702 = vunpack.c.h.b16 %v481
    %v2703 = vunpack.c.l.b16 %v482
    %v2704 = vunpack.c.h.b16 %v482
    %v2705 = vunpack.c.l.b16 %v483
    %v2706 = vunpack.c.h.b16 %v483
    %v2707 = vunpack.c.l.b16 %v484
    %v2708 = vunpack.c.h.b16 %v484
    %v2709 = vunpack.c.l.b16 %v485
    %v2710 = vunpack.c.h.b16 %v485
    %v2711 = vunpack.c.l.b16 %v486
    %v2712 = vunpack.c.h.b16 %v486
    %v2713 = vunpack.c.l.b16 %v487
    %v2714 = vunpack.c.h.b16 %v487
    %v2715 = vunpack.c.l.b16 %v488
    %v2716 = vunpack.c.h.b16 %v488
    %v2717 = vunpack.c.l.b16 %v489
    %v2718 = vunpack.c.h.b16 %v489
    %v2719 = vunpack.c.l.b16 %v490
    %v2720 = vunpack.c.h.b16 %v490
    %v2721 = vunpack.c.l.b16 %v491
    %v2722 = vunpack.c.h.b16 %v491
    %v2723 = vunpack.c.l.b16 %v492
    %v2724 = vunpack.c.h.b16 %v492
    %v2725 = vunpack.c.l.b16 %v493
    %v2726 = vunpack.c.h.b16 %v493
    %v2727 = vunpack.c.l.b16 %v494
    %v2728 = vunpack.c.h.b16 %v494
    %v2729 = vunpack.c.l.b16 %v495
    %v2730 = vunpack.c.h.b16 %v495
    %v2731 = vunpack.c.l.b16 %v496
    %v2732 = vunpack.c.h.b16 %v496
    %v2733 = vunpack.c.l.b16 %v497
    %v2734 = vunpack.c.h.b16 %v497
    %v2735 = vunpack.c.l.b16 %v498
    %v2736 = vunpack.c.h.b16 %v498
    %v2737 = vunpack.c.l.b16 %v499
    %v2738 = vunpack.c.h.b16 %v499
    %v2739 = vunpack.c.l.b16 %v500
    %v2740 = vunpack.c.h.b16 %v500
    %v2741 = vunpack.c.l.b16 %v501
    %v2742 = vunpack.c.h.b16 %v501
    %v2743 = vunpack.c.l.b16 %v502
    %v2744 = vunpack.c.h.b16 %v502
    %v2745 = vunpack.c.l.b16 %v503
    %v2746 = vunpack.c.h.b16 %v503
    %v2747 = vunpack.c.l.b16 %v504
    %v2748 = vunpack.c.h.b16 %v504
    %v2749 = vunpack.c.l.b16 %v505
    %v2750 = vunpack.c.h.b16 %v505
    %v2751 = vunpack.c.l.b16 %v506
    %v2752 = vunpack.c.h.b16 %v506
    %v2753 = vunpack.c.l.b16 %v507
    %v2754 = vunpack.c.h.b16 %v507
    %v2755 = vunpack.c.l.b16 %v508
    %v2756 = vunpack.c.h.b16 %v508
    %v2757 = vunpack.c.l.b16 %v509
    %v2758 = vunpack.c.h.b16 %v509
    %v2759 = vunpack.c.l.b16 %v510
    %v2760 = vunpack.c.h.b16 %v510
    %v2761 = vunpack.c.l.b16 %v511
    %v2762 = vunpack.c.h.b16 %v511
    %v2763 = vunpack.c.l.b16 %v512
    %v2764 = vunpack.c.h.b16 %v512
    %v2765 = vunpack.c.l.b16 %v513
    %v2766 = vunpack.c.h.b16 %v513
    %v2767 = vunpack.c.l.b16 %v514
    %v2768 = vunpack.c.h.b16 %v514
    %v2769 = vunpack.c.l.b16 %v515
    %v2770 = vunpack.c.h.b16 %v515
    %v2771 = vunpack.c.l.b16 %v516
    %v2772 = vunpack.c.h.b16 %v516
    %v2773 = vunpack.c.l.b16 %v517
    %v2774 = vunpack.c.h.b16 %v517
    %v2775 = vunpack.c.l.b16 %v518
    %v2776 = vunpack.c.h.b16 %v518
    %v2777 = vunpack.c.l.b16 %v519
    %v2778 = vunpack.c.h.b16 %v519
    %v2779 = vunpack.c.l.b16 %v520
    %v2780 = vunpack.c.h.b16 %v520
    %v2781 = vunpack.c.l.b16 %v521
    %v2782 = vunpack.c.h.b16 %v521
    %v2783 = vunpack.c.l.b16 %v522
    %v2784 = vunpack.c.h.b16 %v522
    %v2785 = vunpack.c.l.b16 %v523
    %v2786 = vunpack.c.h.b16 %v523
    %v2787 = vunpack.c.l.b16 %v524
    %v2788 = vunpack.c.h.b16 %v524
    %v2789 = vunpack.c.l.b16 %v525
    %v2790 = vunpack.c.h.b16 %v525
    %v2791 = vunpack.c.l.b16 %v526
    %v2792 = vunpack.c.h.b16 %v526
    %v2793 = vunpack.c.l.b16 %v527
    %v2794 = vunpack.c.h.b16 %v527
    %v2795 = vunpack.c.l.b16 %v528
    %v2796 = vunpack.c.h.b16 %v528
    %v2797 = vunpack.c.l.b16 %v529
    %v2798 = vunpack.c.h.b16 %v529
    %v2799 = vunpack.c.l.b16 %v530
    %v2800 = vunpack.c.h.b16 %v530
    %v2801 = vunpack.c.l.b16 %v531
    %v2802 = vunpack.c.h.b16 %v531
    %v2803 = vunpack.c.l.b16 %v532
    %v2804 = vunpack.c.h.b16 %v532
    %v2805 = vunpack.c.l.b16 %v533
    %v2806 = vunpack.c.h.b16 %v533
    %v2807 = vunpack.c.l.b16 %v534
    %v2808 = vunpack.c.h.b16 %v534
    %v2809 = vunpack.c.l.b16 %v535
    %v2810 = vunpack.c.h.b16 %v535
    %v2811 = vunpack.c.l.b16 %v536
    %v2812 = vunpack.c.h.b16 %v536
    %v2813 = vunpack.c.l.b16 %v537
    %v2814 = vunpack.c.h.b16 %v537
    %v2815 = vunpack.c.l.b16 %v538
    %v2816 = vunpack.c.h.b16 %v538
    %v2817 = vunpack.c.l.b16 %v539
    %v2818 = vunpack.c.h.b16 %v539
    %v2819 = vunpack.c.l.b16 %v540
    %v2820 = vunpack.c.h.b16 %v540
    %v2821 = vunpack.c.l.b16 %v541
    %v2822 = vunpack.c.h.b16 %v541
    %v2823 = vunpack.c.l.b16 %v542
    %v2824 = vunpack.c.h.b16 %v542
    %v2825 = vunpack.c.l.b16 %v543
    %v2826 = vunpack.c.h.b16 %v543
    %v2827 = vunpack.c.l.b16 %v544
    %v2828 = vunpack.c.h.b16 %v544
    %v2829 = vunpack.c.l.b16 %v545
    %v2830 = vunpack.c.h.b16 %v545
    %v2831 = vunpack.c.l.b16 %v546
    %v2832 = vunpack.c.h.b16 %v546
    %v2833 = vunpack.c.l.b16 %v547
    %v2834 = vunpack.c.h.b16 %v547
    %v2835 = vunpack.c.l.b16 %v548
    %v2836 = vunpack.c.h.b16 %v548
    %v2837 = vunpack.c.l.b16 %v549
    %v2838 = vunpack.c.h.b16 %v549
    %v2839 = vunpack.c.l.b16 %v550
    %v2840 = vunpack.c.h.b16 %v550
    %v2841 = vunpack.c.l.b16 %v551
    %v2842 = vunpack.c.h.b16 %v551
    %v2843 = vunpack.c.l.b16 %v552
    %v2844 = vunpack.c.h.b16 %v552
    %v2845 = vunpack.c.l.b16 %v553
    %v2846 = vunpack.c.h.b16 %v553
    %v2847 = vunpack.c.l.b16 %v554
    %v2848 = vunpack.c.h.b16 %v554
    %v2849 = vunpack.c.l.b16 %v555
    %v2850 = vunpack.c.h.b16 %v555
    %v2851 = vunpack.c.l.b16 %v556
    %v2852 = vunpack.c.h.b16 %v556
    %v2853 = vunpack.c.l.b16 %v557
    %v2854 = vunpack.c.h.b16 %v557
    %v2855 = vunpack.c.l.b16 %v558
    %v2856 = vunpack.c.h.b16 %v558
    %v2857 = vunpack.c.l.b16 %v559
    %v2858 = vunpack.c.h.b16 %v559
    %v2859 = vunpack.c.l.b16 %v560
    %v2860 = vunpack.c.h.b16 %v560
    %v2861 = vunpack.c.l.b16 %v561
    %v2862 = vunpack.c.h.b16 %v561
    %v2863 = vunpack.c.l.b16 %v562
    %v2864 = vunpack.c.h.b16 %v562
    %v2865 = vunpack.c.l.b16 %v563
    %v2866 = vunpack.c.h.b16 %v563
    %v2867 = vunpack.c.l.b16 %v564
    %v2868 = vunpack.c.h.b16 %v564
    %v2869 = vunpack.c.l.b16 %v565
    %v2870 = vunpack.c.h.b16 %v565
    %v2871 = vunpack.c.l.b16 %v566
    %v2872 = vunpack.c.h.b16 %v566
    %v2873 = vunpack.c.l.b16 %v567
    %v2874 = vunpack.c.h.b16 %v567
    %v2875 = vunpack.c.l.b16 %v568
    %v2876 = vunpack.c.h.b16 %v568
    %v2877 = vunpack.c.l.b16 %v569
    %v2878 = vunpack.c.h.b16 %v569
    %v2879 = vunpack.c.l.b16 %v570
    %v2880 = vunpack.c.h.b16 %v570
    %v2881 = vunpack.c.l.b16 %v571
    %v2882 = vunpack.c.h.b16 %v571
    %v2883 = vunpack.c.l.b16 %v572
    %v2884 = vunpack.c.h.b16 %v572
    %v2885 = vunpack.c.l.b16 %v573
    %v2886 = vunpack.c.h.b16 %v573
    %v2887 = vunpack.c.l.b16 %v574
    %v2888 = vunpack.c.h.b16 %v574
    %v2889 = vunpack.c.l.b16 %v575
    %v2890 = vunpack.c.h.b16 %v575
    %v2891 = vunpack.c.l.b16 %v576
    %v2892 = vunpack.c.h.b16 %v576
    %v2893 = vunpack.c.l.b16 %v577
    %v2894 = vunpack.c.h.b16 %v577
    %v2895 = vunpack.c.l.b16 %v578
    %v2896 = vunpack.c.h.b16 %v578
    %v2897 = vunpack.c.l.b16 %v579
    %v2898 = vunpack.c.h.b16 %v579
    %v2899 = vunpack.c.l.b16 %v580
    %v2900 = vunpack.c.h.b16 %v580
    %v2901 = vunpack.c.l.b16 %v581
    %v2902 = vunpack.c.h.b16 %v581
    %v2903 = vunpack.c.l.b16 %v582
    %v2904 = vunpack.c.h.b16 %v582
    %v2905 = vunpack.c.l.b16 %v583
    %v2906 = vunpack.c.h.b16 %v583
    %v2907 = vunpack.c.l.b16 %v584
    %v2908 = vunpack.c.h.b16 %v584
    %v2909 = vunpack.c.l.b16 %v585
    %v2910 = vunpack.c.h.b16 %v585
    %v2911 = vunpack.c.l.b16 %v586
    %v2912 = vunpack.c.h.b16 %v586
    %v2913 = vunpack.c.l.b16 %v587
    %v2914 = vunpack.c.h.b16 %v587
    %v2915 = vunpack.c.l.b16 %v588
    %v2916 = vunpack.c.h.b16 %v588
    %v2917 = vunpack.c.l.b16 %v589
    %v2918 = vunpack.c.h.b16 %v589
    %v2919 = vunpack.c.l.b16 %v590
    %v2920 = vunpack.c.h.b16 %v590
    %v2921 = vunpack.c.l.b16 %v591
    %v2922 = vunpack.c.h.b16 %v591
    %v2923 = vunpack.c.l.b16 %v592
    %v2924 = vunpack.c.h.b16 %v592
    %v2925 = vunpack.c.l.b16 %v593
    %v2926 = vunpack.c.h.b16 %v593
    %v2927 = vunpack.c.l.b16 %v594
    %v2928 = vunpack.c.h.b16 %v594
    %v2929 = vunpack.c.l.b16 %v595
    %v2930 = vunpack.c.h.b16 %v595
    %v2931 = vunpack.c.l.b16 %v596
    %v2932 = vunpack.c.h.b16 %v596
    %v2933 = vunpack.c.l.b16 %v597
    %v2934 = vunpack.c.h.b16 %v597
    %v2935 = vunpack.c.l.b16 %v598
    %v2936 = vunpack.c.h.b16 %v598
    %v2937 = vunpack.c.l.b16 %v599
    %v2938 = vunpack.c.h.b16 %v599
    %v2939 = vunpack.c.l.b16 %v600
    %v2940 = vunpack.c.h.b16 %v600
    %v2941 = vunpack.c.l.b16 %v601
    %v2942 = vunpack.c.h.b16 %v601
    %v2943 = vunpack.c.l.b16 %v602
    %v2944 = vunpack.c.h.b16 %v602
    %v2945 = vunpack.c.l.b16 %v603
    %v2946 = vunpack.c.h.b16 %v603
    %v2947 = vunpack.c.l.b16 %v604
    %v2948 = vunpack.c.h.b16 %v604
    %v2949 = vunpack.c.l.b16 %v605
    %v2950 = vunpack.c.h.b16 %v605
    %v2951 = vunpack.c.l.b16 %v606
    %v2952 = vunpack.c.h.b16 %v606
    %v2953 = vunpack.c.l.b16 %v607
    %v2954 = vunpack.c.h.b16 %v607
    %v2955 = vunpack.c.l.b16 %v608
    %v2956 = vunpack.c.h.b16 %v608
    %v2957 = vunpack.c.l.b16 %v609
    %v2958 = vunpack.c.h.b16 %v609
    %v2959 = vunpack.c.l.b16 %v610
    %v2960 = vunpack.c.h.b16 %v610
    %v2961 = vunpack.c.l.b16 %v611
    %v2962 = vunpack.c.h.b16 %v611
    %v2963 = vunpack.c.l.b16 %v612
    %v2964 = vunpack.c.h.b16 %v612
    %v2965 = vunpack.c.l.b16 %v613
    %v2966 = vunpack.c.h.b16 %v613
    %v2967 = vunpack.c.l.b16 %v614
    %v2968 = vunpack.c.h.b16 %v614
    %v2969 = vunpack.c.l.b16 %v615
    %v2970 = vunpack.c.h.b16 %v615
    %v2971 = vunpack.c.l.b16 %v616
    %v2972 = vunpack.c.h.b16 %v616
    %v2973 = vunpack.c.l.b16 %v617
    %v2974 = vunpack.c.h.b16 %v617
    %v2975 = vunpack.c.l.b16 %v618
    %v2976 = vunpack.c.h.b16 %v618
    %v2977 = vunpack.c.l.b16 %v619
    %v2978 = vunpack.c.h.b16 %v619
    %v2979 = vunpack.c.l.b16 %v620
    %v2980 = vunpack.c.h.b16 %v620
    %v2981 = vunpack.c.l.b16 %v621
    %v2982 = vunpack.c.h.b16 %v621
    %v2983 = vunpack.c.l.b16 %v622
    %v2984 = vunpack.c.h.b16 %v622
    %v2985 = vunpack.c.l.b16 %v623
    %v2986 = vunpack.c.h.b16 %v623
    %v2987 = vunpack.c.l.b16 %v624
    %v2988 = vunpack.c.h.b16 %v624
    %v2989 = vunpack.c.l.b16 %v625
    %v2990 = vunpack.c.h.b16 %v625
    %v2991 = vunpack.c.l.b16 %v626
    %v2992 = vunpack.c.h.b16 %v626
    %v2993 = vunpack.c.l.b16 %v627
    %v2994 = vunpack.c.h.b16 %v627
    %v2995 = vunpack.c.l.b16 %v628
    %v2996 = vunpack.c.h.b16 %v628
    %v2997 = vunpack.c.l.b16 %v629
    %v2998 = vunpack.c.h.b16 %v629
    %v2999 = vunpack.c.l.b16 %v630
    %v3000 = vunpack.c.h.b16 %v630
    %v3001 = vunpack.c.l.b16 %v631
    %v3002 = vunpack.c.h.b16 %v631
    %v3003 = vunpack.c.l.b16 %v632
    %v3004 = vunpack.c.h.b16 %v632
    %v3005 = vunpack.c.l.b16 %v633
    %v3006 = vunpack.c.h.b16 %v633
    %v3007 = vunpack.c.l.b16 %v634
    %v3008 = vunpack.c.h.b16 %v634
    %v3009 = vunpack.c.l.b16 %v635
    %v3010 = vunpack.c.h.b16 %v635
    %v3011 = vunpack.c.l.b16 %v636
    %v3012 = vunpack.c.h.b16 %v636
    %v3013 = vunpack.c.l.b16 %v637
    %v3014 = vunpack.c.h.b16 %v637
    %v3015 = vunpack.c.l.b16 %v638
    %v3016 = vunpack.c.h.b16 %v638
    %v3017 = vunpack.c.l.b16 %v639
    %v3018 = vunpack.c.h.b16 %v639
    %v3019 = vunpack.c.l.b16 %v640
    %v3020 = vunpack.c.h.b16 %v640
    %v3021 = vunpack.c.l.b16 %v641
    %v3022 = vunpack.c.h.b16 %v641
    %v3023 = vunpack.c.l.b16 %v642
    %v3024 = vunpack.c.h.b16 %v642
    %v3025 = vunpack.c.l.b16 %v643
    %v3026 = vunpack.c.h.b16 %v643
    %v3027 = vunpack.c.l.b16 %v644
    %v3028 = vunpack.c.h.b16 %v644
    %v3029 = vunpack.c.l.b16 %v645
    %v3030 = vunpack.c.h.b16 %v645
    %v3031 = vunpack.c.l.b16 %v646
    %v3032 = vunpack.c.h.b16 %v646
    %v3033 = vunpack.c.l.b16 %v647
    %v3034 = vunpack.c.h.b16 %v647
    %v3035 = vunpack.c.l.b16 %v648
    %v3036 = vunpack.c.h.b16 %v648
    %v3037 = vunpack.c.l.b16 %v649
    %v3038 = vunpack.c.h.b16 %v649
    %v3039 = vunpack.c.l.b16 %v650
    %v3040 = vunpack.c.h.b16 %v650
    %v3041 = vunpack.c.l.b16 %v651
    %v3042 = vunpack.c.h.b16 %v651
    %v3043 = vunpack.c.l.b16 %v652
    %v3044 = vunpack.c.h.b16 %v652
    %v3045 = vunpack.c.l.b16 %v653
    %v3046 = vunpack.c.h.b16 %v653
    %v3047 = vunpack.c.l.b16 %v654
    %v3048 = vunpack.c.h.b16 %v654
    %v3049 = vunpack.c.l.b16 %v655
    %v3050 = vunpack.c.h.b16 %v655
    %v3051 = vunpack.c.l.b16 %v656
    %v3052 = vunpack.c.h.b16 %v656
    %v3053 = vunpack.c.l.b16 %v657
    %v3054 = vunpack.c.h.b16 %v657
    %v3055 = vunpack.c.l.b16 %v658
    %v3056 = vunpack.c.h.b16 %v658
    %v3057 = vunpack.c.l.b16 %v659
    %v3058 = vunpack.c.h.b16 %v659
    %v3059 = vunpack.c.l.b16 %v660
    %v3060 = vunpack.c.h.b16 %v660
    %v3061 = vunpack.c.l.b16 %v661
    %v3062 = vunpack.c.h.b16 %v661
    %v3063 = vunpack.c.l.b16 %v662
    %v3064 = vunpack.c.h.b16 %v662
    %v3065 = vunpack.c.l.b16 %v663
    %v3066 = vunpack.c.h.b16 %v663
    %v3067 = vunpack.c.l.b16 %v664
    %v3068 = vunpack.c.h.b16 %v664
    %v3069 = vunpack.c.l.b16 %v665
    %v3070 = vunpack.c.h.b16 %v665
    %v3071 = vunpack.c.l.b16 %v666
    %v3072 = vunpack.c.h.b16 %v666
    %v3073 = vunpack.c.l.b16 %v667
    %v3074 = vunpack.c.h.b16 %v667
    %v3075 = vunpack.c.l.b16 %v668
    %v3076 = vunpack.c.h.b16 %v668
    %v3077 = vunpack.c.l.b16 %v669
    %v3078 = vunpack.c.h.b16 %v669
    %v3079 = vunpack.c.l.b16 %v670
    %v3080 = vunpack.c.h.b16 %v670
    %v3081 = vunpack.c.l.b16 %v671
    %v3082 = vunpack.c.h.b16 %v671
    %v3083 = vunpack.c.l.b16 %v672
    %v3084 = vunpack.c.h.b16 %v672
    %v3085 = vunpack.c.l.b16 %v673
    %v3086 = vunpack.c.h.b16 %v673
    %v3087 = vunpack.c.l.b16 %v674
    %v3088 = vunpack.c.h.b16 %v674
    %v3089 = vunpack.c.l.b16 %v675
    %v3090 = vunpack.c.h.b16 %v675
    %v3091 = vunpack.c.l.b16 %v676
    %v3092 = vunpack.c.h.b16 %v676
    %v3093 = vunpack.c.l.b16 %v677
    %v3094 = vunpack.c.h.b16 %v677
    %v3095 = vunpack.c.l.b16 %v678
    %v3096 = vunpack.c.h.b16 %v678
    %v3097 = vunpack.c.l.b16 %v679
    %v3098 = vunpack.c.h.b16 %v679
    %v3099 = vunpack.c.l.b16 %v680
    %v3100 = vunpack.c.h.b16 %v680
    %v3101 = vunpack.c.l.b16 %v681
    %v3102 = vunpack.c.h.b16 %v681
    %v3103 = vunpack.c.l.b16 %v682
    %v3104 = vunpack.c.h.b16 %v682
    %v3105 = vunpack.c.l.b16 %v683
    %v3106 = vunpack.c.h.b16 %v683
    %v3107 = vunpack.c.l.b16 %v684
    %v3108 = vunpack.c.h.b16 %v684
    %v3109 = vunpack.c.l.b16 %v685
    %v3110 = vunpack.c.h.b16 %v685
    %v3111 = vunpack.c.l.b16 %v686
    %v3112 = vunpack.c.h.b16 %v686
    %v3113 = vunpack.c.l.b16 %v687
    %v3114 = vunpack.c.h.b16 %v687
    %v3115 = vunpack.c.l.b16 %v688
    %v3116 = vunpack.c.h.b16 %v688
    %v3117 = vunpack.c.l.b16 %v689
    %v3118 = vunpack.c.h.b16 %v689
    %v3119 = vunpack.c.l.b16 %v690
    %v3120 = vunpack.c.h.b16 %v690
    %v3121 = vunpack.c.l.b16 %v691
    %v3122 = vunpack.c.h.b16 %v691
    %v3123 = vunpack.c.l.b16 %v692
    %v3124 = vunpack.c.h.b16 %v692
    %v3125 = vunpack.c.l.b16 %v693
    %v3126 = vunpack.c.h.b16 %v693
    %v3127 = vunpack.c.l.b16 %v694
    %v3128 = vunpack.c.h.b16 %v694
    %v3129 = vunpack.c.l.b16 %v695
    %v3130 = vunpack.c.h.b16 %v695
    %v3131 = vunpack.c.l.b16 %v696
    %v3132 = vunpack.c.h.b16 %v696
    %v3133 = vunpack.c.l.b16 %v697
    %v3134 = vunpack.c.h.b16 %v697
    %v3135 = vunpack.c.l.b16 %v698
    %v3136 = vunpack.c.h.b16 %v698
    %v3137 = vunpack.c.l.b16 %v699
    %v3138 = vunpack.c.h.b16 %v699
    %v3139 = vunpack.c.l.b16 %v700
    %v3140 = vunpack.c.h.b16 %v700
    %v3141 = vunpack.c.l.b16 %v701
    %v3142 = vunpack.c.h.b16 %v701
    %v3143 = vunpack.c.l.b16 %v702
    %v3144 = vunpack.c.h.b16 %v702
    %v3145 = vunpack.c.l.b16 %v703
    %v3146 = vunpack.c.h.b16 %v703
    %v3147 = vunpack.c.l.b16 %v704
    %v3148 = vunpack.c.h.b16 %v704
    %v3149 = vunpack.c.l.b16 %v705
    %v3150 = vunpack.c.h.b16 %v705
    %v3151 = vunpack.c.l.b16 %v706
    %v3152 = vunpack.c.h.b16 %v706
    %v3153 = vunpack.c.l.b16 %v707
    %v3154 = vunpack.c.h.b16 %v707
    %v3155 = vunpack.c.l.b16 %v708
    %v3156 = vunpack.c.h.b16 %v708
    %v3157 = vunpack.c.l.b16 %v709
    %v3158 = vunpack.c.h.b16 %v709
    %v3159 = vunpack.c.l.b16 %v710
    %v3160 = vunpack.c.h.b16 %v710
    %v3161 = vunpack.c.l.b16 %v711
    %v3162 = vunpack.c.h.b16 %v711
    %v3163 = vunpack.c.l.b16 %v712
    %v3164 = vunpack.c.h.b16 %v712
    %v3165 = vunpack.c.l.b16 %v713
    %v3166 = vunpack.c.h.b16 %v713
    %v3167 = vunpack.c.l.b16 %v714
    %v3168 = vunpack.c.h.b16 %v714
    %v3169 = vunpack.c.l.b16 %v715
    %v3170 = vunpack.c.h.b16 %v715
    %v3171 = vunpack.c.l.b16 %v716
    %v3172 = vunpack.c.h.b16 %v716
    %v3173 = vunpack.c.l.b16 %v717
    %v3174 = vunpack.c.h.b16 %v717
    %v3175 = vunpack.c.l.b16 %v718
    %v3176 = vunpack.c.h.b16 %v718
    %v3177 = vunpack.c.l.b16 %v719
    %v3178 = vunpack.c.h.b16 %v719
    %v3179 = vunpack.c.l.b16 %v720
    %v3180 = vunpack.c.h.b16 %v720
    %v3181 = vunpack.c.l.b16 %v721
    %v3182 = vunpack.c.h.b16 %v721
    %v3183 = vunpack.c.l.b16 %v722
    %v3184 = vunpack.c.h.b16 %v722
    %v3185 = vunpack.c.l.b16 %v723
    %v3186 = vunpack.c.h.b16 %v723
    %v3187 = vunpack.c.l.b16 %v724
    %v3188 = vunpack.c.h.b16 %v724
    %v3189 = vunpack.c.l.b16 %v725
    %v3190 = vunpack.c.h.b16 %v725
    %v3191 = vunpack.c.l.b16 %v726
    %v3192 = vunpack.c.h.b16 %v726
    %v3193 = vunpack.c.l.b16 %v727
    %v3194 = vunpack.c.h.b16 %v727
    %v3195 = vunpack.c.l.b16 %v728
    %v3196 = vunpack.c.h.b16 %v728
    %v3197 = vunpack.c.l.b16 %v729
    %v3198 = vunpack.c.h.b16 %v729
    %v3199 = vunpack.c.l.b16 %v730
    %v3200 = vunpack.c.h.b16 %v730
    %v3201 = vunpack.c.l.b16 %v731
    %v3202 = vunpack.c.h.b16 %v731
    %v3203 = vunpack.c.l.b16 %v732
    %v3204 = vunpack.c.h.b16 %v732
    %v3205 = vunpack.c.l.b16 %v733
    %v3206 = vunpack.c.h.b16 %v733
    %v3207 = vunpack.c.l.b16 %v734
    %v3208 = vunpack.c.h.b16 %v734
    %v3209 = vunpack.c.l.b16 %v735
    %v3210 = vunpack.c.h.b16 %v735
    %v3211 = vunpack.c.l.b16 %v736
    %v3212 = vunpack.c.h.b16 %v736
    %v3213 = vunpack.c.l.b16 %v737
    %v3214 = vunpack.c.h.b16 %v737
    %v3215 = vunpack.c.l.b16 %v738
    %v3216 = vunpack.c.h.b16 %v738
    %v3217 = vunpack.c.l.b16 %v739
    %v3218 = vunpack.c.h.b16 %v739
    %v3219 = vunpack.c.l.b16 %v740
    %v3220 = vunpack.c.h.b16 %v740
    %v3221 = vunpack.c.l.b16 %v741
    %v3222 = vunpack.c.h.b16 %v741
    %v3223 = vunpack.c.l.b16 %v742
    %v3224 = vunpack.c.h.b16 %v742
    %v3225 = vunpack.c.l.b16 %v743
    %v3226 = vunpack.c.h.b16 %v743
    %v3227 = vunpack.c.l.b16 %v744
    %v3228 = vunpack.c.h.b16 %v744
    %v3229 = vunpack.c.l.b16 %v745
    %v3230 = vunpack.c.h.b16 %v745
    %v3231 = vunpack.c.l.b16 %v746
    %v3232 = vunpack.c.h.b16 %v746
    %v3233 = vunpack.c.l.b16 %v747
    %v3234 = vunpack.c.h.b16 %v747
    %v3235 = vunpack.c.l.b16 %v748
    %v3236 = vunpack.c.h.b16 %v748
    %v3237 = vunpack.c.l.b16 %v749
    %v3238 = vunpack.c.h.b16 %v749
    %v3239 = vunpack.c.l.b16 %v750
    %v3240 = vunpack.c.h.b16 %v750
    %v3241 = vunpack.c.l.b16 %v751
    %v3242 = vunpack.c.h.b16 %v751
    %v3243 = vunpack.c.l.b16 %v752
    %v3244 = vunpack.c.h.b16 %v752
    %v3245 = vunpack.c.l.b16 %v753
    %v3246 = vunpack.c.h.b16 %v753
    %v3247 = vunpack.c.l.b16 %v754
    %v3248 = vunpack.c.h.b16 %v754
    %v3249 = vunpack.c.l.b16 %v755
    %v3250 = vunpack.c.h.b16 %v755
    %v3251 = vunpack.c.l.b16 %v756
    %v3252 = vunpack.c.h.b16 %v756
    %v3253 = vunpack.c.l.b16 %v757
    %v3254 = vunpack.c.h.b16 %v757
    %v3255 = vunpack.c.l.b16 %v758
    %v3256 = vunpack.c.h.b16 %v758
    %v3257 = vunpack.c.l.b16 %v759
    %v3258 = vunpack.c.h.b16 %v759
    %v3259 = vunpack.c.l.b16 %v760
    %v3260 = vunpack.c.h.b16 %v760
    %v3261 = vunpack.c.l.b16 %v761
    %v3262 = vunpack.c.h.b16 %v761
    %v3263 = vunpack.c.l.b16 %v762
    %v3264 = vunpack.c.h.b16 %v762
    %v3265 = vunpack.c.l.b16 %v763
    %v3266 = vunpack.c.h.b16 %v763
    %v3267 = vunpack.c.l.b16 %v764
    %v3268 = vunpack.c.h.b16 %v764
    %v3269 = vunpack.c.l.b16 %v765
    %v3270 = vunpack.c.h.b16 %v765
    %v3271 = vunpack.c.l.b16 %v766
    %v3272 = vunpack.c.h.b16 %v766
    %v3273 = vunpack.c.l.b16 %v767
    %v3274 = vunpack.c.h.b16 %v767
    %v3275 = vunpack.c.l.b16 %v768
    %v3276 = vunpack.c.h.b16 %v768
    %v3277 = vunpack.c.l.b16 %v769
    %v3278 = vunpack.c.h.b16 %v769
    %v3279 = vunpack.c.l.b16 %v770
    %v3280 = vunpack.c.h.b16 %v770
    %v3281 = vunpack.c.l.b16 %v771
    %v3282 = vunpack.c.h.b16 %v771
    %v3283 = vunpack.c.l.b16 %v772
    %v3284 = vunpack.c.h.b16 %v772
    %v3285 = vunpack.c.l.b16 %v773
    %v3286 = vunpack.c.h.b16 %v773
    %v3287 = vunpack.c.l.b16 %v774
    %v3288 = vunpack.c.h.b16 %v774
    %v3289 = vunpack.c.l.b16 %v775
    %v3290 = vunpack.c.h.b16 %v775
    %v3291 = vunpack.c.l.b16 %v776
    %v3292 = vunpack.c.h.b16 %v776
    %v3293 = vunpack.c.l.b16 %v777
    %v3294 = vunpack.c.h.b16 %v777
    %v3295 = vunpack.c.l.b16 %v778
    %v3296 = vunpack.c.h.b16 %v778
    %v3297 = vunpack.c.l.b16 %v779
    %v3298 = vunpack.c.h.b16 %v779
    %v3299 = vunpack.c.l.b16 %v780
    %v3300 = vunpack.c.h.b16 %v780
    %v3301 = vunpack.c.l.b16 %v781
    %v3302 = vunpack.c.h.b16 %v781
    %v3303 = vunpack.c.l.b16 %v782
    %v3304 = vunpack.c.h.b16 %v782
    %v3305 = vunpack.c.l.b16 %v783
    %v3306 = vunpack.c.h.b16 %v783
    %v3307 = vunpack.c.l.b16 %v784
    %v3308 = vunpack.c.h.b16 %v784
    %v3309 = vunpack.c.l.b16 %v785
    %v3310 = vunpack.c.h.b16 %v785
    %v3311 = vunpack.c.l.b16 %v786
    %v3312 = vunpack.c.h.b16 %v786
    %v3313 = vunpack.c.l.b16 %v787
    %v3314 = vunpack.c.h.b16 %v787
    %v3315 = vunpack.c.l.b16 %v788
    %v3316 = vunpack.c.h.b16 %v788
    %v3317 = vunpack.c.l.b16 %v789
    %v3318 = vunpack.c.h.b16 %v789
    %v3319 = vunpack.c.l.b16 %v790
    %v3320 = vunpack.c.h.b16 %v790
    %v3321 = vunpack.c.l.b16 %v791
    %v3322 = vunpack.c.h.b16 %v791
    %v3323 = vunpack.c.l.b16 %v792
    %v3324 = vunpack.c.h.b16 %v792
    %v3325 = vunpack.c.l.b16 %v793
    %v3326 = vunpack.c.h.b16 %v793
    %v3327 = vunpack.c.l.b16 %v794
    %v3328 = vunpack.c.h.b16 %v794
    %v3329 = vunpack.c.l.b16 %v795
    %v3330 = vunpack.c.h.b16 %v795
    %v3331 = vunpack.c.l.b16 %v796
    %v3332 = vunpack.c.h.b16 %v796
    %v3333 = vunpack.c.l.b16 %v797
    %v3334 = vunpack.c.h.b16 %v797
    %v3335 = vunpack.c.l.b16 %v798
    %v3336 = vunpack.c.h.b16 %v798
    %v3337 = vunpack.c.l.b16 %v799
    %v3338 = vunpack.c.h.b16 %v799
    %v3339 = vunpack.c.l.b16 %v800
    %v3340 = vunpack.c.h.b16 %v800
    %v3341 = vunpack.c.l.b16 %v801
    %v3342 = vunpack.c.h.b16 %v801
    %v3343 = vunpack.c.l.b16 %v802
    %v3344 = vunpack.c.h.b16 %v802
    %v3345 = vunpack.c.l.b16 %v803
    %v3346 = vunpack.c.h.b16 %v803
    %v3347 = vunpack.c.l.b16 %v804
    %v3348 = vunpack.c.h.b16 %v804
    %v3349 = vunpack.c.l.b16 %v805
    %v3350 = vunpack.c.h.b16 %v805
    %v3351 = vunpack.c.l.b16 %v806
    %v3352 = vunpack.c.h.b16 %v806
    %v3353 = vunpack.c.l.b16 %v807
    %v3354 = vunpack.c.h.b16 %v807
    %v3355 = vunpack.c.l.b16 %v808
    %v3356 = vunpack.c.h.b16 %v808
    %v3357 = vunpack.c.l.b16 %v809
    %v3358 = vunpack.c.h.b16 %v809
    %v3359 = vunpack.c.l.b16 %v810
    %v3360 = vunpack.c.h.b16 %v810
    %v3361 = vunpack.c.l.b16 %v811
    %v3362 = vunpack.c.h.b16 %v811
    %v3363 = vunpack.c.l.b16 %v812
    %v3364 = vunpack.c.h.b16 %v812
    %v3365 = vunpack.c.l.b16 %v813
    %v3366 = vunpack.c.h.b16 %v813
    %v3367 = vunpack.c.l.b16 %v814
    %v3368 = vunpack.c.h.b16 %v814
    %v3369 = vunpack.c.l.b16 %v815
    %v3370 = vunpack.c.h.b16 %v815
    %v3371 = vunpack.c.l.b16 %v816
    %v3372 = vunpack.c.h.b16 %v816
    %v3373 = vunpack.c.l.b16 %v817
    %v3374 = vunpack.c.h.b16 %v817
    %v3375 = vunpack.c.l.b16 %v818
    %v3376 = vunpack.c.h.b16 %v818
    %v3377 = vunpack.c.l.b16 %v819
    %v3378 = vunpack.c.h.b16 %v819
    %v3379 = vunpack.c.l.b16 %v820
    %v3380 = vunpack.c.h.b16 %v820
    %v3381 = vunpack.c.l.b16 %v821
    %v3382 = vunpack.c.h.b16 %v821
    %v3383 = vunpack.c.l.b16 %v822
    %v3384 = vunpack.c.h.b16 %v822
    %v3385 = vunpack.c.l.b16 %v823
    %v3386 = vunpack.c.h.b16 %v823
    %v3387 = vpack.c.b16 %v1823, %v1819
    %v3388 = vpack.c.b16 %v1824, %v1820
    %v3389 = vpack.c.b16 %v1825, %v1821
    %v3390 = vpack.c.b16 %v1826, %v1822
    %v3391 = vpack.c.b16 %v1831, %v1827
    %v3392 = vpack.c.b16 %v1832, %v1828
    %v3393 = vpack.c.b16 %v1833, %v1829
    %v3394 = vpack.c.b16 %v1834, %v1830
    %v3395 = vpack.c.b16 %v1839, %v1835
    %v3396 = vpack.c.b16 %v1840, %v1836
    %v3397 = vpack.c.b16 %v1841, %v1837
    %v3398 = vpack.c.b16 %v1842, %v1838
    %v3399 = vpack.c.b16 %v1847, %v1843
    %v3400 = vpack.c.b16 %v1848, %v1844
    %v3401 = vpack.c.b16 %v1849, %v1845
    %v3402 = vpack.c.b16 %v1850, %v1846
    %v3403 = vpack.c.b16 %v1855, %v1851
    %v3404 = vpack.c.b16 %v1856, %v1852
    %v3405 = vpack.c.b16 %v1857, %v1853
    %v3406 = vpack.c.b16 %v1858, %v1854
    %v3407 = vpack.c.b16 %v1863, %v1859
    %v3408 = vpack.c.b16 %v1864, %v1860
    %v3409 = vpack.c.b16 %v1865, %v1861
    %v3410 = vpack.c.b16 %v1866, %v1862
    %v3411 = vpack.c.b16 %v1871, %v1867
    %v3412 = vpack.c.b16 %v1872, %v1868
    %v3413 = vpack.c.b16 %v1873, %v1869
    %v3414 = vpack.c.b16 %v1874, %v1870
    %v3415 = vpack.c.b16 %v1879, %v1875
    %v3416 = vpack.c.b16 %v1880, %v1876
    %v3417 = vpack.c.b16 %v1881, %v1877
    %v3418 = vpack.c.b16 %v1882, %v1878
    %v3419 = vpack.c.b16 %v1887, %v1883
    %v3420 = vpack.c.b16 %v1888, %v1884
    %v3421 = vpack.c.b16 %v1889, %v1885
    %v3422 = vpack.c.b16 %v1890, %v1886
    %v3423 = vpack.c.b16 %v1895, %v1891
    %v3424 = vpack.c.b16 %v1896, %v1892
    %v3425 = vpack.c.b16 %v1897, %v1893
    %v3426 = vpack.c.b16 %v1898, %v1894
    %v3427 = vpack.c.b16 %v1903, %v1899
    %v3428 = vpack.c.b16 %v1904, %v1900
    %v3429 = vpack.c.b16 %v1905, %v1901
    %v3430 = vpack.c.b16 %v1906, %v1902
    %v3431 = vpack.c.b16 %v1911, %v1907
    %v3432 = vpack.c.b16 %v1912, %v1908
    %v3433 = vpack.c.b16 %v1913, %v1909
    %v3434 = vpack.c.b16 %v1914, %v1910
    %v3435 = vpack.c.b16 %v1919, %v1915
    %v3436 = vpack.c.b16 %v1920, %v1916
    %v3437 = vpack.c.b16 %v1921, %v1917
    %v3438 = vpack.c.b16 %v1922, %v1918
    %v3439 = vpack.c.b16 %v1927, %v1923
    %v3440 = vpack.c.b16 %v1928, %v1924
    %v3441 = vpack.c.b16 %v1929, %v1925
    %v3442 = vpack.c.b16 %v1930, %v1926
    %v3443 = vpack.c.b16 %v1935, %v1931
    %v3444 = vpack.c.b16 %v1936, %v1932
    %v3445 = vpack.c.b16 %v1937, %v1933
    %v3446 = vpack.c.b16 %v1938, %v1934
    %v3447 = vpack.c.b16 %v1943, %v1939
    %v3448 = vpack.c.b16 %v1944, %v1940
    %v3449 = vpack.c.b16 %v1945, %v1941
    %v3450 = vpack.c.b16 %v1946, %v1942
    %v3451 = vpack.c.b16 %v1951, %v1947
    %v3452 = vpack.c.b16 %v1952, %v1948
    %v3453 = vpack.c.b16 %v1953, %v1949
    %v3454 = vpack.c.b16 %v1954, %v1950
    %v3455 = vpack.c.b16 %v1959, %v1955
    %v3456 = vpack.c.b16 %v1960, %v1956
    %v3457 = vpack.c.b16 %v1961, %v1957
    %v3458 = vpack.c.b16 %v1962, %v1958
    %v3459 = vpack.c.b16 %v1967, %v1963
    %v3460 = vpack.c.b16 %v1968, %v1964
    %v3461 = vpack.c.b16 %v1969, %v1965
    %v3462 = vpack.c.b16 %v1970, %v1966
    %v3463 = vpack.c.b16 %v1975, %v1971
    %v3464 = vpack.c.b16 %v1976, %v1972
    %v3465 = vpack.c.b16 %v1977, %v1973
    %v3466 = vpack.c.b16 %v1978, %v1974
    %v3467 = vpack.c.b16 %v1983, %v1979
    %v3468 = vpack.c.b16 %v1984, %v1980
    %v3469 = vpack.c.b16 %v1985, %v1981
    %v3470 = vpack.c.b16 %v1986, %v1982
    %v3471 = vpack.c.b16 %v1991, %v1987
    %v3472 = vpack.c.b16 %v1992, %v1988
    %v3473 = vpack.c.b16 %v1993, %v1989
    %v3474 = vpack.c.b16 %v1994, %v1990
    %v3475 = vpack.c.b16 %v1999, %v1995
    %v3476 = vpack.c.b16 %v2000, %v1996
    %v3477 = vpack.c.b16 %v2001, %v1997
    %v3478 = vpack.c.b16 %v2002, %v1998
    %v3479 = vpack.c.b16 %v2007, %v2003
    %v3480 = vpack.c.b16 %v2008, %v2004
    %v3481 = vpack.c.b16 %v2009, %v2005
    %v3482 = vpack.c.b16 %v2010, %v2006
    %v3483 = vpack.c.b16 %v2015, %v2011
    %v3484 = vpack.c.b16 %v2016, %v2012
    %v3485 = vpack.c.b16 %v2017, %v2013
    %v3486 = vpack.c.b16 %v2018, %v2014
    %v3487 = vpack.c.b16 %v2023, %v2019
    %v3488 = vpack.c.b16 %v2024, %v2020
    %v3489 = vpack.c.b16 %v2025, %v2021
    %v3490 = vpack.c.b16 %v2026, %v2022
    %v3491 = vpack.c.b16 %v2031, %v2027
    %v3492 = vpack.c.b16 %v2032, %v2028
    %v3493 = vpack.c.b16 %v2033, %v2029
    %v3494 = vpack.c.b16 %v2034, %v2030
    %v3495 = vpack.c.b16 %v2039, %v2035
    %v3496 = vpack.c.b16 %v2040, %v2036
    %v3497 = vpack.c.b16 %v2041, %v2037
    %v3498 = vpack.c.b16 %v2042, %v2038
    %v3499 = vpack.c.b16 %v2047, %v2043
    %v3500 = vpack.c.b16 %v2048, %v2044
    %v3501 = vpack.c.b16 %v2049, %v2045
    %v3502 = vpack.c.b16 %v2050, %v2046
    %v3503 = vpack.c.b16 %v2055, %v2051
    %v3504 = vpack.c.b16 %v2056, %v2052
    %v3505 = vpack.c.b16 %v2057, %v2053
    %v3506 = vpack.c.b16 %v2058, %v2054
    %v3507 = vpack.c.b16 %v2063, %v2059
    %v3508 = vpack.c.b16 %v2064, %v2060
    %v3509 = vpack.c.b16 %v2065, %v2061
    %v3510 = vpack.c.b16 %v2066, %v2062
    %v3511 = vpack.c.b16 %v2071, %v2067
    %v3512 = vpack.c.b16 %v2072, %v2068
    %v3513 = vpack.c.b16 %v2073, %v2069
    %v3514 = vpack.c.b16 %v2074, %v2070
    %v3515 = vpack.c.b16 %v2079, %v2075
    %v3516 = vpack.c.b16 %v2080, %v2076
    %v3517 = vpack.c.b16 %v2081, %v2077
    %v3518 = vpack.c.b16 %v2082, %v2078
    %v3519 = vpack.c.b16 %v2087, %v2083
    %v3520 = vpack.c.b16 %v2088, %v2084
    %v3521 = vpack.c.b16 %v2089, %v2085
    %v3522 = vpack.c.b16 %v2090, %v2086
    %v3523 = vpack.c.b16 %v2095, %v2091
    %v3524 = vpack.c.b16 %v2096, %v2092
    %v3525 = vpack.c.b16 %v2097, %v2093
    %v3526 = vpack.c.b16 %v2098, %v2094
    %v3527 = vpack.c.b16 %v2103, %v2099
    %v3528 = vpack.c.b16 %v2104, %v2100
    %v3529 = vpack.c.b16 %v2105, %v2101
    %v3530 = vpack.c.b16 %v2106, %v2102
    %v3531 = vpack.c.b16 %v2111, %v2107
    %v3532 = vpack.c.b16 %v2112, %v2108
    %v3533 = vpack.c.b16 %v2113, %v2109
    %v3534 = vpack.c.b16 %v2114, %v2110
    %v3535 = vpack.c.b16 %v2119, %v2115
    %v3536 = vpack.c.b16 %v2120, %v2116
    %v3537 = vpack.c.b16 %v2121, %v2117
    %v3538 = vpack.c.b16 %v2122, %v2118
    %v3539 = vpack.c.b16 %v2127, %v2123
    %v3540 = vpack.c.b16 %v2128, %v2124
    %v3541 = vpack.c.b16 %v2129, %v2125
    %v3542 = vpack.c.b16 %v2130, %v2126
    %v3543 = vpack.c.b16 %v2135, %v2131
    %v3544 = vpack.c.b16 %v2136, %v2132
    %v3545 = vpack.c.b16 %v2137, %v2133
    %v3546 = vpack.c.b16 %v2138, %v2134
    %v3547 = vpack.c.b16 %v2143, %v2139
    %v3548 = vpack.c.b16 %v2144, %v2140
    %v3549 = vpack.c.b16 %v2145, %v2141
    %v3550 = vpack.c.b16 %v2146, %v2142
    %v3551 = vpack.c.b16 %v2151, %v2147
    %v3552 = vpack.c.b16 %v2152, %v2148
    %v3553 = vpack.c.b16 %v2153, %v2149
    %v3554 = vpack.c.b16 %v2154, %v2150
    %v3555 = vpack.c.b16 %v2159, %v2155
    %v3556 = vpack.c.b16 %v2160, %v2156
    %v3557 = vpack.c.b16 %v2161, %v2157
    %v3558 = vpack.c.b16 %v2162, %v2158
    %v3559 = vpack.c.b16 %v2167, %v2163
    %v3560 = vpack.c.b16 %v2168, %v2164
    %v3561 = vpack.c.b16 %v2169, %v2165
    %v3562 = vpack.c.b16 %v2170, %v2166
    %v3563 = vpack.c.b16 %v2175, %v2171
    %v3564 = vpack.c.b16 %v2176, %v2172
    %v3565 = vpack.c.b16 %v2177, %v2173
    %v3566 = vpack.c.b16 %v2178, %v2174
    %v3567 = vpack.c.b16 %v2183, %v2179
    %v3568 = vpack.c.b16 %v2184, %v2180
    %v3569 = vpack.c.b16 %v2185, %v2181
    %v3570 = vpack.c.b16 %v2186, %v2182
    %v3571 = vpack.c.b16 %v2191, %v2187
    %v3572 = vpack.c.b16 %v2192, %v2188
    %v3573 = vpack.c.b16 %v2193, %v2189
    %v3574 = vpack.c.b16 %v2194, %v2190
    %v3575 = vpack.c.b16 %v2199, %v2195
    %v3576 = vpack.c.b16 %v2200, %v2196
    %v3577 = vpack.c.b16 %v2201, %v2197
    %v3578 = vpack.c.b16 %v2202, %v2198
    %v3579 = vpack.c.b16 %v2207, %v2203
    %v3580 = vpack.c.b16 %v2208, %v2204
    %v3581 = vpack.c.b16 %v2209, %v2205
    %v3582 = vpack.c.b16 %v2210, %v2206
    %v3583 = vpack.c.b16 %v2215, %v2211
    %v3584 = vpack.c.b16 %v2216, %v2212
    %v3585 = vpack.c.b16 %v2217, %v2213
    %v3586 = vpack.c.b16 %v2218, %v2214
    %v3587 = vpack.c.b16 %v2223, %v2219
    %v3588 = vpack.c.b16 %v2224, %v2220
    %v3589 = vpack.c.b16 %v2225, %v2221
    %v3590 = vpack.c.b16 %v2226, %v2222
    %v3591 = vpack.c.b16 %v2231, %v2227
    %v3592 = vpack.c.b16 %v2232, %v2228
    %v3593 = vpack.c.b16 %v2233, %v2229
    %v3594 = vpack.c.b16 %v2234, %v2230
    %v3595 = vpack.c.b16 %v2239, %v2235
    %v3596 = vpack.c.b16 %v2240, %v2236
    %v3597 = vpack.c.b16 %v2241, %v2237
    %v3598 = vpack.c.b16 %v2242, %v2238
    %v3599 = vpack.c.b16 %v2247, %v2243
    %v3600 = vpack.c.b16 %v2248, %v2244
    %v3601 = vpack.c.b16 %v2249, %v2245
    %v3602 = vpack.c.b16 %v2250, %v2246
    %v3603 = vpack.c.b16 %v2255, %v2251
    %v3604 = vpack.c.b16 %v2256, %v2252
    %v3605 = vpack.c.b16 %v2257, %v2253
    %v3606 = vpack.c.b16 %v2258, %v2254
    %v3607 = vpack.c.b16 %v2263, %v2259
    %v3608 = vpack.c.b16 %v2264, %v2260
    %v3609 = vpack.c.b16 %v2265, %v2261
    %v3610 = vpack.c.b16 %v2266, %v2262
    %v3611 = vpack.c.b16 %v2271, %v2267
    %v3612 = vpack.c.b16 %v2272, %v2268
    %v3613 = vpack.c.b16 %v2273, %v2269
    %v3614 = vpack.c.b16 %v2274, %v2270
    %v3615 = vpack.c.b16 %v2279, %v2275
    %v3616 = vpack.c.b16 %v2280, %v2276
    %v3617 = vpack.c.b16 %v2281, %v2277
    %v3618 = vpack.c.b16 %v2282, %v2278
    %v3619 = vpack.c.b16 %v2287, %v2283
    %v3620 = vpack.c.b16 %v2288, %v2284
    %v3621 = vpack.c.b16 %v2289, %v2285
    %v3622 = vpack.c.b16 %v2290, %v2286
    %v3623 = vpack.c.b16 %v2295, %v2291
    %v3624 = vpack.c.b16 %v2296, %v2292
    %v3625 = vpack.c.b16 %v2297, %v2293
    %v3626 = vpack.c.b16 %v2298, %v2294
    %v3627 = vpack.c.b16 %v2303, %v2299
    %v3628 = vpack.c.b16 %v2304, %v2300
    %v3629 = vpack.c.b16 %v2305, %v2301
    %v3630 = vpack.c.b16 %v2306, %v2302
    %v3631 = vpack.c.b16 %v2311, %v2307
    %v3632 = vpack.c.b16 %v2312, %v2308
    %v3633 = vpack.c.b16 %v2313, %v2309
    %v3634 = vpack.c.b16 %v2314, %v2310
    %v3635 = vpack.c.b16 %v2319, %v2315
    %v3636 = vpack.c.b16 %v2320, %v2316
    %v3637 = vpack.c.b16 %v2321, %v2317
    %v3638 = vpack.c.b16 %v2322, %v2318
    %v3639 = vpack.c.b16 %v2327, %v2323
    %v3640 = vpack.c.b16 %v2328, %v2324
    %v3641 = vpack.c.b16 %v2329, %v2325
    %v3642 = vpack.c.b16 %v2330, %v2326
    %v3643 = vpack.c.b16 %v2335, %v2331
    %v3644 = vpack.c.b16 %v2336, %v2332
    %v3645 = vpack.c.b16 %v2337, %v2333
    %v3646 = vpack.c.b16 %v2338, %v2334
    %v3647 = vpack.c.b16 %v2343, %v2339
    %v3648 = vpack.c.b16 %v2344, %v2340
    %v3649 = vpack.c.b16 %v2345, %v2341
    %v3650 = vpack.c.b16 %v2346, %v2342
    %v3651 = vpack.c.b16 %v2351, %v2347
    %v3652 = vpack.c.b16 %v2352, %v2348
    %v3653 = vpack.c.b16 %v2353, %v2349
    %v3654 = vpack.c.b16 %v2354, %v2350
    %v3655 = vpack.c.b16 %v2359, %v2355
    %v3656 = vpack.c.b16 %v2360, %v2356
    %v3657 = vpack.c.b16 %v2361, %v2357
    %v3658 = vpack.c.b16 %v2362, %v2358
    %v3659 = vpack.c.b16 %v2367, %v2363
    %v3660 = vpack.c.b16 %v2368, %v2364
    %v3661 = vpack.c.b16 %v2369, %v2365
    %v3662 = vpack.c.b16 %v2370, %v2366
    %v3663 = vpack.c.b16 %v2375, %v2371
    %v3664 = vpack.c.b16 %v2376, %v2372
    %v3665 = vpack.c.b16 %v2377, %v2373
    %v3666 = vpack.c.b16 %v2378, %v2374
    %v3667 = vpack.c.b16 %v2383, %v2379
    %v3668 = vpack.c.b16 %v2384, %v2380
    %v3669 = vpack.c.b16 %v2385, %v2381
    %v3670 = vpack.c.b16 %v2386, %v2382
    %v3671 = vpack.c.b16 %v2391, %v2387
    %v3672 = vpack.c.b16 %v2392, %v2388
    %v3673 = vpack.c.b16 %v2393, %v2389
    %v3674 = vpack.c.b16 %v2394, %v2390
    %v3675 = vpack.c.b16 %v2399, %v2395
    %v3676 = vpack.c.b16 %v2400, %v2396
    %v3677 = vpack.c.b16 %v2401, %v2397
    %v3678 = vpack.c.b16 %v2402, %v2398
    %v3679 = vpack.c.b16 %v2407, %v2403
    %v3680 = vpack.c.b16 %v2408, %v2404
    %v3681 = vpack.c.b16 %v2409, %v2405
    %v3682 = vpack.c.b16 %v2410, %v2406
    %v3683 = vpack.c.b16 %v2415, %v2411
    %v3684 = vpack.c.b16 %v2416, %v2412
    %v3685 = vpack.c.b16 %v2417, %v2413
    %v3686 = vpack.c.b16 %v2418, %v2414
    %v3687 = vpack.c.b16 %v2423, %v2419
    %v3688 = vpack.c.b16 %v2424, %v2420
    %v3689 = vpack.c.b16 %v2425, %v2421
    %v3690 = vpack.c.b16 %v2426, %v2422
    %v3691 = vpack.c.b16 %v2431, %v2427
    %v3692 = vpack.c.b16 %v2432, %v2428
    %v3693 = vpack.c.b16 %v2433, %v2429
    %v3694 = vpack.c.b16 %v2434, %v2430
    %v3695 = vpack.c.b16 %v2439, %v2435
    %v3696 = vpack.c.b16 %v2440, %v2436
    %v3697 = vpack.c.b16 %v2441, %v2437
    %v3698 = vpack.c.b16 %v2442, %v2438
    %v3699 = vpack.c.b16 %v2447, %v2443
    %v3700 = vpack.c.b16 %v2448, %v2444
    %v3701 = vpack.c.b16 %v2449, %v2445
    %v3702 = vpack.c.b16 %v2450, %v2446
    %v3703 = vpack.c.b16 %v2455, %v2451
    %v3704 = vpack.c.b16 %v2456, %v2452
    %v3705 = vpack.c.b16 %v2457, %v2453
    %v3706 = vpack.c.b16 %v2458, %v2454
    %v3707 = vpack.c.b16 %v2463, %v2459
    %v3708 = vpack.c.b16 %v2464, %v2460
    %v3709 = vpack.c.b16 %v2465, %v2461
    %v3710 = vpack.c.b16 %v2466, %v2462
    %v3711 = vpack.c.b16 %v2471, %v2467
    %v3712 = vpack.c.b16 %v2472, %v2468
    %v3713 = vpack.c.b16 %v2473, %v2469
    %v3714 = vpack.c.b16 %v2474, %v2470
    %v3715 = vpack.c.b16 %v2479, %v2475
    %v3716 = vpack.c.b16 %v2480, %v2476
    %v3717 = vpack.c.b16 %v2481, %v2477
    %v3718 = vpack.c.b16 %v2482, %v2478
    %v3719 = vpack.c.b16 %v2487, %v2483
    %v3720 = vpack.c.b16 %v2488, %v2484
    %v3721 = vpack.c.b16 %v2489, %v2485
    %v3722 = vpack.c.b16 %v2490, %v2486
    %v3723 = vpack.c.b16 %v2495, %v2491
    %v3724 = vpack.c.b16 %v2496, %v2492
    %v3725 = vpack.c.b16 %v2497, %v2493
    %v3726 = vpack.c.b16 %v2498, %v2494
    %v3727 = vpack.c.b16 %v2503, %v2499
    %v3728 = vpack.c.b16 %v2504, %v2500
    %v3729 = vpack.c.b16 %v2505, %v2501
    %v3730 = vpack.c.b16 %v2506, %v2502
    %v3731 = vpack.c.b16 %v2511, %v2507
    %v3732 = vpack.c.b16 %v2512, %v2508
    %v3733 = vpack.c.b16 %v2513, %v2509
    %v3734 = vpack.c.b16 %v2514, %v2510
    %v3735 = vpack.c.b16 %v2519, %v2515
    %v3736 = vpack.c.b16 %v2520, %v2516
    %v3737 = vpack.c.b16 %v2521, %v2517
    %v3738 = vpack.c.b16 %v2522, %v2518
    %v3739 = vpack.c.b16 %v2527, %v2523
    %v3740 = vpack.c.b16 %v2528, %v2524
    %v3741 = vpack.c.b16 %v2529, %v2525
    %v3742 = vpack.c.b16 %v2530, %v2526
    %v3743 = vpack.c.b16 %v2535, %v2531
    %v3744 = vpack.c.b16 %v2536, %v2532
    %v3745 = vpack.c.b16 %v2537, %v2533
    %v3746 = vpack.c.b16 %v2538, %v2534
    %v3747 = vpack.c.b16 %v2543, %v2539
    %v3748 = vpack.c.b16 %v2544, %v2540
    %v3749 = vpack.c.b16 %v2545, %v2541
    %v3750 = vpack.c.b16 %v2546, %v2542
    %v3751 = vpack.c.b16 %v2551, %v2547
    %v3752 = vpack.c.b16 %v2552, %v2548
    %v3753 = vpack.c.b16 %v2553, %v2549
    %v3754 = vpack.c.b16 %v2554, %v2550
    %v3755 = vpack.c.b16 %v2559, %v2555
    %v3756 = vpack.c.b16 %v2560, %v2556
    %v3757 = vpack.c.b16 %v2561, %v2557
    %v3758 = vpack.c.b16 %v2562, %v2558
    %v3759 = vpack.c.b16 %v2567, %v2563
    %v3760 = vpack.c.b16 %v2568, %v2564
    %v3761 = vpack.c.b16 %v2569, %v2565
    %v3762 = vpack.c.b16 %v2570, %v2566
    %v3763 = vpack.c.b16 %v2575, %v2571
    %v3764 = vpack.c.b16 %v2576, %v2572
    %v3765 = vpack.c.b16 %v2577, %v2573
    %v3766 = vpack.c.b16 %v2578, %v2574
    %v3767 = vpack.c.b16 %v2583, %v2579
    %v3768 = vpack.c.b16 %v2584, %v2580
    %v3769 = vpack.c.b16 %v2585, %v2581
    %v3770 = vpack.c.b16 %v2586, %v2582
    %v3771 = vpack.c.b16 %v2591, %v2587
    %v3772 = vpack.c.b16 %v2592, %v2588
    %v3773 = vpack.c.b16 %v2593, %v2589
    %v3774 = vpack.c.b16 %v2594, %v2590
    %v3775 = vpack.c.b16 %v2599, %v2595
    %v3776 = vpack.c.b16 %v2600, %v2596
    %v3777 = vpack.c.b16 %v2601, %v2597
    %v3778 = vpack.c.b16 %v2602, %v2598
    %v3779 = vpack.c.b16 %v2607, %v2603
    %v3780 = vpack.c.b16 %v2608, %v2604
    %v3781 = vpack.c.b16 %v2609, %v2605
    %v3782 = vpack.c.b16 %v2610, %v2606
    %v3783 = vpack.c.b16 %v2615, %v2611
    %v3784 = vpack.c.b16 %v2616, %v2612
    %v3785 = vpack.c.b16 %v2617, %v2613
    %v3786 = vpack.c.b16 %v2618, %v2614
    %v3787 = vpack.c.b16 %v2623, %v2619
    %v3788 = vpack.c.b16 %v2624, %v2620
    %v3789 = vpack.c.b16 %v2625, %v2621
    %v3790 = vpack.c.b16 %v2626, %v2622
    %v3791 = vpack.c.b16 %v2631, %v2627
    %v3792 = vpack.c.b16 %v2632, %v2628
    %v3793 = vpack.c.b16 %v2633, %v2629
    %v3794 = vpack.c.b16 %v2634, %v2630
    %v3795 = vpack.c.b16 %v2639, %v2635
    %v3796 = vpack.c.b16 %v2640, %v2636
    %v3797 = vpack.c.b16 %v2641, %v2637
    %v3798 = vpack.c.b16 %v2642, %v2638
    %v3799 = vpack.c.b16 %v2647, %v2643
    %v3800 = vpack.c.b16 %v2648, %v2644
    %v3801 = vpack.c.b16 %v2649, %v2645
    %v3802 = vpack.c.b16 %v2650, %v2646
    %v3803 = vpack.c.b16 %v2655, %v2651
    %v3804 = vpack.c.b16 %v2656, %v2652
    %v3805 = vpack.c.b16 %v2657, %v2653
    %v3806 = vpack.c.b16 %v2658, %v2654
    %v3807 = vpack.c.b16 %v2663, %v2659
    %v3808 = vpack.c.b16 %v2664, %v2660
    %v3809 = vpack.c.b16 %v2665, %v2661
    %v3810 = vpack.c.b16 %v2666, %v2662
    %v3811 = vpack.c.b16 %v2671, %v2667
    %v3812 = vpack.c.b16 %v2672, %v2668
    %v3813 = vpack.c.b16 %v2673, %v2669
    %v3814 = vpack.c.b16 %v2674, %v2670
    %v3815 = vpack.c.b16 %v2679, %v2675
    %v3816 = vpack.c.b16 %v2680, %v2676
    %v3817 = vpack.c.b16 %v2681, %v2677
    %v3818 = vpack.c.b16 %v2682, %v2678
    %v3819 = vpack.c.b16 %v2687, %v2683
    %v3820 = vpack.c.b16 %v2688, %v2684
    %v3821 = vpack.c.b16 %v2689, %v2685
    %v3822 = vpack.c.b16 %v2690, %v2686
    %v3823 = vpack.c.b16 %v2695, %v2691
    %v3824 = vpack.c.b16 %v2696, %v2692
    %v3825 = vpack.c.b16 %v2697, %v2693
    %v3826 = vpack.c.b16 %v2698, %v2694
    %v3827 = vpack.c.b16 %v2703, %v2699
    %v3828 = vpack.c.b16 %v2704, %v2700
    %v3829 = vpack.c.b16 %v2705, %v2701
    %v3830 = vpack.c.b16 %v2706, %v2702
    %v3831 = vpack.c.b16 %v2711, %v2707
    %v3832 = vpack.c.b16 %v2712, %v2708
    %v3833 = vpack.c.b16 %v2713, %v2709
    %v3834 = vpack.c.b16 %v2714, %v2710
    %v3835 = vpack.c.b16 %v2719, %v2715
    %v3836 = vpack.c.b16 %v2720, %v2716
    %v3837 = vpack.c.b16 %v2721, %v2717
    %v3838 = vpack.c.b16 %v2722, %v2718
    %v3839 = vpack.c.b16 %v2727, %v2723
    %v3840 = vpack.c.b16 %v2728, %v2724
    %v3841 = vpack.c.b16 %v2729, %v2725
    %v3842 = vpack.c.b16 %v2730, %v2726
    %v3843 = vpack.c.b16 %v2735, %v2731
    %v3844 = vpack.c.b16 %v2736, %v2732
    %v3845 = vpack.c.b16 %v2737, %v2733
    %v3846 = vpack.c.b16 %v2738, %v2734
    %v3847 = vpack.c.b16 %v2743, %v2739
    %v3848 = vpack.c.b16 %v2744, %v2740
    %v3849 = vpack.c.b16 %v2745, %v2741
    %v3850 = vpack.c.b16 %v2746, %v2742
    %v3851 = vpack.c.b16 %v2751, %v2747
    %v3852 = vpack.c.b16 %v2752, %v2748
    %v3853 = vpack.c.b16 %v2753, %v2749
    %v3854 = vpack.c.b16 %v2754, %v2750
    %v3855 = vpack.c.b16 %v2759, %v2755
    %v3856 = vpack.c.b16 %v2760, %v2756
    %v3857 = vpack.c.b16 %v2761, %v2757
    %v3858 = vpack.c.b16 %v2762, %v2758
    %v3859 = vpack.c.b16 %v2767, %v2763
    %v3860 = vpack.c.b16 %v2768, %v2764
    %v3861 = vpack.c.b16 %v2769, %v2765
    %v3862 = vpack.c.b16 %v2770, %v2766
    %v3863 = vpack.c.b16 %v2775, %v2771
    %v3864 = vpack.c.b16 %v2776, %v2772
    %v3865 = vpack.c.b16 %v2777, %v2773
    %v3866 = vpack.c.b16 %v2778, %v2774
    %v3867 = vpack.c.b16 %v2783, %v2779
    %v3868 = vpack.c.b16 %v2784, %v2780
    %v3869 = vpack.c.b16 %v2785, %v2781
    %v3870 = vpack.c.b16 %v2786, %v2782
    %v3871 = vpack.c.b16 %v2791, %v2787
    %v3872 = vpack.c.b16 %v2792, %v2788
    %v3873 = vpack.c.b16 %v2793, %v2789
    %v3874 = vpack.c.b16 %v2794, %v2790
    %v3875 = vpack.c.b16 %v2799, %v2795
    %v3876 = vpack.c.b16 %v2800, %v2796
    %v3877 = vpack.c.b16 %v2801, %v2797
    %v3878 = vpack.c.b16 %v2802, %v2798
    %v3879 = vpack.c.b16 %v2807, %v2803
    %v3880 = vpack.c.b16 %v2808, %v2804
    %v3881 = vpack.c.b16 %v2809, %v2805
    %v3882 = vpack.c.b16 %v2810, %v2806
    %v3883 = vpack.c.b16 %v2815, %v2811
    %v3884 = vpack.c.b16 %v2816, %v2812
    %v3885 = vpack.c.b16 %v2817, %v2813
    %v3886 = vpack.c.b16 %v2818, %v2814
    %v3887 = vpack.c.b16 %v2823, %v2819
    %v3888 = vpack.c.b16 %v2824, %v2820
    %v3889 = vpack.c.b16 %v2825, %v2821
    %v3890 = vpack.c.b16 %v2826, %v2822
    %v3891 = vpack.c.b16 %v2831, %v2827
    %v3892 = vpack.c.b16 %v2832, %v2828
    %v3893 = vpack.c.b16 %v2833, %v2829
    %v3894 = vpack.c.b16 %v2834, %v2830
    %v3895 = vpack.c.b16 %v2839, %v2835
    %v3896 = vpack.c.b16 %v2840, %v2836
    %v3897 = vpack.c.b16 %v2841, %v2837
    %v3898 = vpack.c.b16 %v2842, %v2838
    %v3899 = vpack.c.b16 %v2847, %v2843
    %v3900 = vpack.c.b16 %v2848, %v2844
    %v3901 = vpack.c.b16 %v2849, %v2845
    %v3902 = vpack.c.b16 %v2850, %v2846
    %v3903 = vpack.c.b16 %v2855, %v2851
    %v3904 = vpack.c.b16 %v2856, %v2852
    %v3905 = vpack.c.b16 %v2857, %v2853
    %v3906 = vpack.c.b16 %v2858, %v2854
    %v3907 = vpack.c.b16 %v2863, %v2859
    %v3908 = vpack.c.b16 %v2864, %v2860
    %v3909 = vpack.c.b16 %v2865, %v2861
    %v3910 = vpack.c.b16 %v2866, %v2862
    %v3911 = vpack.c.b16 %v2871, %v2867
    %v3912 = vpack.c.b16 %v2872, %v2868
    %v3913 = vpack.c.b16 %v2873, %v2869
    %v3914 = vpack.c.b16 %v2874, %v2870
    %v3915 = vpack.c.b16 %v2879, %v2875
    %v3916 = vpack.c.b16 %v2880, %v2876
    %v3917 = vpack.c.b16 %v2881, %v2877
    %v3918 = vpack.c.b16 %v2882, %v2878
    %v3919 = vpack.c.b16 %v2887, %v2883
    %v3920 = vpack.c.b16 %v2888, %v2884
    %v3921 = vpack.c.b16 %v2889, %v2885
    %v3922 = vpack.c.b16 %v2890, %v2886
    %v3923 = vpack.c.b16 %v2895, %v2891
    %v3924 = vpack.c.b16 %v2896, %v2892
    %v3925 = vpack.c.b16 %v2897, %v2893
    %v3926 = vpack.c.b16 %v2898, %v2894
    %v3927 = vpack.c.b16 %v2903, %v2899
    %v3928 = vpack.c.b16 %v2904, %v2900
    %v3929 = vpack.c.b16 %v2905, %v2901
    %v3930 = vpack.c.b16 %v2906, %v2902
    %v3931 = vpack.c.b16 %v2911, %v2907
    %v3932 = vpack.c.b16 %v2912, %v2908
    %v3933 = vpack.c.b16 %v2913, %v2909
    %v3934 = vpack.c.b16 %v2914, %v2910
    %v3935 = vpack.c.b16 %v2919, %v2915
    %v3936 = vpack.c.b16 %v2920, %v2916
    %v3937 = vpack.c.b16 %v2921, %v2917
    %v3938 = vpack.c.b16 %v2922, %v2918
    %v3939 = vpack.c.b16 %v2927, %v2923
    %v3940 = vpack.c.b16 %v2928, %v2924
    %v3941 = vpack.c.b16 %v2929, %v2925
    %v3942 = vpack.c.b16 %v2930, %v2926
    %v3943 = vpack.c.b16 %v2935, %v2931
    %v3944 = vpack.c.b16 %v2936, %v2932
    %v3945 = vpack.c.b16 %v2937, %v2933
    %v3946 = vpack.c.b16 %v2938, %v2934
    %v3947 = vpack.c.b16 %v2943, %v2939
    %v3948 = vpack.c.b16 %v2944, %v2940
    %v3949 = vpack.c.b16 %v2945, %v2941
    %v3950 = vpack.c.b16 %v2946, %v2942
    %v3951 = vpack.c.b16 %v2951, %v2947
    %v3952 = vpack.c.b16 %v2952, %v2948
    %v3953 = vpack.c.b16 %v2953, %v2949
    %v3954 = vpack.c.b16 %v2954, %v2950
    %v3955 = vpack.c.b16 %v2959, %v2955
    %v3956 = vpack.c.b16 %v2960, %v2956
    %v3957 = vpack.c.b16 %v2961, %v2957
    %v3958 = vpack.c.b16 %v2962, %v2958
    %v3959 = vpack.c.b16 %v2967, %v2963
    %v3960 = vpack.c.b16 %v2968, %v2964
    %v3961 = vpack.c.b16 %v2969, %v2965
    %v3962 = vpack.c.b16 %v2970, %v2966
    %v3963 = vpack.c.b16 %v2975, %v2971
    %v3964 = vpack.c.b16 %v2976, %v2972
    %v3965 = vpack.c.b16 %v2977, %v2973
    %v3966 = vpack.c.b16 %v2978, %v2974
    %v3967 = vpack.c.b16 %v2983, %v2979
    %v3968 = vpack.c.b16 %v2984, %v2980
    %v3969 = vpack.c.b16 %v2985, %v2981
    %v3970 = vpack.c.b16 %v2986, %v2982
    %v3971 = vpack.c.b16 %v2991, %v2987
    %v3972 = vpack.c.b16 %v2992, %v2988
    %v3973 = vpack.c.b16 %v2993, %v2989
    %v3974 = vpack.c.b16 %v2994, %v2990
    %v3975 = vpack.c.b16 %v2999, %v2995
    %v3976 = vpack.c.b16 %v3000, %v2996
    %v3977 = vpack.c.b16 %v3001, %v2997
    %v3978 = vpack.c.b16 %v3002, %v2998
    %v3979 = vpack.c.b16 %v3007, %v3003
    %v3980 = vpack.c.b16 %v3008, %v3004
    %v3981 = vpack.c.b16 %v3009, %v3005
    %v3982 = vpack.c.b16 %v3010, %v3006
    %v3983 = vpack.c.b16 %v3015, %v3011
    %v3984 = vpack.c.b16 %v3016, %v3012
    %v3985 = vpack.c.b16 %v3017, %v3013
    %v3986 = vpack.c.b16 %v3018, %v3014
    %v3987 = vpack.c.b16 %v3023, %v3019
    %v3988 = vpack.c.b16 %v3024, %v3020
    %v3989 = vpack.c.b16 %v3025, %v3021
    %v3990 = vpack.c.b16 %v3026, %v3022
    %v3991 = vpack.c.b16 %v3031, %v3027
    %v3992 = vpack.c.b16 %v3032, %v3028
    %v3993 = vpack.c.b16 %v3033, %v3029
    %v3994 = vpack.c.b16 %v3034, %v3030
    %v3995 = vpack.c.b16 %v3039, %v3035
    %v3996 = vpack.c.b16 %v3040, %v3036
    %v3997 = vpack.c.b16 %v3041, %v3037
    %v3998 = vpack.c.b16 %v3042, %v3038
    %v3999 = vpack.c.b16 %v3047, %v3043
    %v4000 = vpack.c.b16 %v3048, %v3044
    %v4001 = vpack.c.b16 %v3049, %v3045
    %v4002 = vpack.c.b16 %v3050, %v3046
    %v4003 = vpack.c.b16 %v3055, %v3051
    %v4004 = vpack.c.b16 %v3056, %v3052
    %v4005 = vpack.c.b16 %v3057, %v3053
    %v4006 = vpack.c.b16 %v3058, %v3054
    %v4007 = vpack.c.b16 %v3063, %v3059
    %v4008 = vpack.c.b16 %v3064, %v3060
    %v4009 = vpack.c.b16 %v3065, %v3061
    %v4010 = vpack.c.b16 %v3066, %v3062
    %v4011 = vpack.c.b16 %v3071, %v3067
    %v4012 = vpack.c.b16 %v3072, %v3068
    %v4013 = vpack.c.b16 %v3073, %v3069
    %v4014 = vpack.c.b16 %v3074, %v3070
    %v4015 = vpack.c.b16 %v3079, %v3075
    %v4016 = vpack.c.b16 %v3080, %v3076
    %v4017 = vpack.c.b16 %v3081, %v3077
    %v4018 = vpack.c.b16 %v3082, %v3078
    %v4019 = vpack.c.b16 %v3087, %v3083
    %v4020 = vpack.c.b16 %v3088, %v3084
    %v4021 = vpack.c.b16 %v3089, %v3085
    %v4022 = vpack.c.b16 %v3090, %v3086
    %v4023 = vpack.c.b16 %v3095, %v3091
    %v4024 = vpack.c.b16 %v3096, %v3092
    %v4025 = vpack.c.b16 %v3097, %v3093
    %v4026 = vpack.c.b16 %v3098, %v3094
    %v4027 = vpack.c.b16 %v3103, %v3099
    %v4028 = vpack.c.b16 %v3104, %v3100
    %v4029 = vpack.c.b16 %v3105, %v3101
    %v4030 = vpack.c.b16 %v3106, %v3102
    %v4031 = vpack.c.b16 %v3111, %v3107
    %v4032 = vpack.c.b16 %v3112, %v3108
    %v4033 = vpack.c.b16 %v3113, %v3109
    %v4034 = vpack.c.b16 %v3114, %v3110
    %v4035 = vpack.c.b16 %v3119, %v3115
    %v4036 = vpack.c.b16 %v3120, %v3116
    %v4037 = vpack.c.b16 %v3121, %v3117
    %v4038 = vpack.c.b16 %v3122, %v3118
    %v4039 = vpack.c.b16 %v3127, %v3123
    %v4040 = vpack.c.b16 %v3128, %v3124
    %v4041 = vpack.c.b16 %v3129, %v3125
    %v4042 = vpack.c.b16 %v3130, %v3126
    %v4043 = vpack.c.b16 %v3135, %v3131
    %v4044 = vpack.c.b16 %v3136, %v3132
    %v4045 = vpack.c.b16 %v3137, %v3133
    %v4046 = vpack.c.b16 %v3138, %v3134
    %v4047 = vpack.c.b16 %v3143, %v3139
    %v4048 = vpack.c.b16 %v3144, %v3140
    %v4049 = vpack.c.b16 %v3145, %v3141
    %v4050 = vpack.c.b16 %v3146, %v3142
    %v4051 = vpack.c.b16 %v3151, %v3147
    %v4052 = vpack.c.b16 %v3152, %v3148
    %v4053 = vpack.c.b16 %v3153, %v3149
    %v4054 = vpack.c.b16 %v3154, %v3150
    %v4055 = vpack.c.b16 %v3159, %v3155
    %v4056 = vpack.c.b16 %v3160, %v3156
    %v4057 = vpack.c.b16 %v3161, %v3157
    %v4058 = vpack.c.b16 %v3162, %v3158
    %v4059 = vpack.c.b16 %v3167, %v3163
    %v4060 = vpack.c.b16 %v3168, %v3164
    %v4061 = vpack.c.b16 %v3169, %v3165
    %v4062 = vpack.c.b16 %v3170, %v3166
    %v4063 = vpack.c.b16 %v3175, %v3171
    %v4064 = vpack.c.b16 %v3176, %v3172
    %v4065 = vpack.c.b16 %v3177, %v3173
    %v4066 = vpack.c.b16 %v3178, %v3174
    %v4067 = vpack.c.b16 %v3183, %v3179
    %v4068 = vpack.c.b16 %v3184, %v3180
    %v4069 = vpack.c.b16 %v3185, %v3181
    %v4070 = vpack.c.b16 %v3186, %v3182
    %v4071 = vpack.c.b16 %v3191, %v3187
    %v4072 = vpack.c.b16 %v3192, %v3188
    %v4073 = vpack.c.b16 %v3193, %v3189
    %v4074 = vpack.c.b16 %v3194, %v3190
    %v4075 = vpack.c.b16 %v3199, %v3195
    %v4076 = vpack.c.b16 %v3200, %v3196
    %v4077 = vpack.c.b16 %v3201, %v3197
    %v4078 = vpack.c.b16 %v3202, %v3198
    %v4079 = vpack.c.b16 %v3207, %v3203
    %v4080 = vpack.c.b16 %v3208, %v3204
    %v4081 = vpack.c.b16 %v3209, %v3205
    %v4082 = vpack.c.b16 %v3210, %v3206
    %v4083 = vpack.c.b16 %v3215, %v3211
    %v4084 = vpack.c.b16 %v3216, %v3212
    %v4085 = vpack.c.b16 %v3217, %v3213
    %v4086 = vpack.c.b16 %v3218, %v3214
    %v4087 = vpack.c.b16 %v3223, %v3219
    %v4088 = vpack.c.b16 %v3224, %v3220
    %v4089 = vpack.c.b16 %v3225, %v3221
    %v4090 = vpack.c.b16 %v3226, %v3222
    %v4091 = vpack.c.b16 %v3231, %v3227
    %v4092 = vpack.c.b16 %v3232, %v3228
    %v4093 = vpack.c.b16 %v3233, %v3229
    %v4094 = vpack.c.b16 %v3234, %v3230
    %v4095 = vpack.c.b16 %v3239, %v3235
    %v4096 = vpack.c.b16 %v3240, %v3236
    %v4097 = vpack.c.b16 %v3241, %v3237
    %v4098 = vpack.c.b16 %v3242, %v3238
    %v4099 = vpack.c.b16 %v3247, %v3243
    %v4100 = vpack.c.b16 %v3248, %v3244
    %v4101 = vpack.c.b16 %v3249, %v3245
    %v4102 = vpack.c.b16 %v3250, %v3246
    %v4103 = vpack.c.b16 %v3255, %v3251
    %v4104 = vpack.c.b16 %v3256, %v3252
    %v4105 = vpack.c.b16 %v3257, %v3253
    %v4106 = vpack.c.b16 %v3258, %v3254
    %v4107 = vpack.c.b16 %v3263, %v3259
    %v4108 = vpack.c.b16 %v3264, %v3260
    %v4109 = vpack.c.b16 %v3265, %v3261
    %v4110 = vpack.c.b16 %v3266, %v3262
    %v4111 = vpack.c.b16 %v3271, %v3267
    %v4112 = vpack.c.b16 %v3272, %v3268
    %v4113 = vpack.c.b16 %v3273, %v3269
    %v4114 = vpack.c.b16 %v3274, %v3270
    %v4115 = vpack.c.b16 %v3279, %v3275
    %v4116 = vpack.c.b16 %v3280, %v3276
    %v4117 = vpack.c.b16 %v3281, %v3277
    %v4118 = vpack.c.b16 %v3282, %v3278
    %v4119 = vpack.c.b16 %v3287, %v3283
    %v4120 = vpack.c.b16 %v3288, %v3284
    %v4121 = vpack.c.b16 %v3289, %v3285
    %v4122 = vpack.c.b16 %v3290, %v3286
    %v4123 = vpack.c.b16 %v3295, %v3291
    %v4124 = vpack.c.b16 %v3296, %v3292
    %v4125 = vpack.c.b16 %v3297, %v3293
    %v4126 = vpack.c.b16 %v3298, %v3294
    %v4127 = vpack.c.b16 %v3303, %v3299
    %v4128 = vpack.c.b16 %v3304, %v3300
    %v4129 = vpack.c.b16 %v3305, %v3301
    %v4130 = vpack.c.b16 %v3306, %v3302
    %v4131 = vpack.c.b16 %v3311, %v3307
    %v4132 = vpack.c.b16 %v3312, %v3308
    %v4133 = vpack.c.b16 %v3313, %v3309
    %v4134 = vpack.c.b16 %v3314, %v3310
    %v4135 = vpack.c.b16 %v3319, %v3315
    %v4136 = vpack.c.b16 %v3320, %v3316
    %v4137 = vpack.c.b16 %v3321, %v3317
    %v4138 = vpack.c.b16 %v3322, %v3318
    %v4139 = vpack.c.b16 %v3327, %v3323
    %v4140 = vpack.c.b16 %v3328, %v3324
    %v4141 = vpack.c.b16 %v3329, %v3325
    %v4142 = vpack.c.b16 %v3330, %v3326
    %v4143 = vpack.c.b16 %v3335, %v3331
    %v4144 = vpack.c.b16 %v3336, %v3332
    %v4145 = vpack.c.b16 %v3337, %v3333
    %v4146 = vpack.c.b16 %v3338, %v3334
    %v4147 = vpack.c.b16 %v3343, %v3339
    %v4148 = vpack.c.b16 %v3344, %v3340
    %v4149 = vpack.c.b16 %v3345, %v3341
    %v4150 = vpack.c.b16 %v3346, %v3342
    %v4151 = vpack.c.b16 %v3351, %v3347
    %v4152 = vpack.c.b16 %v3352, %v3348
    %v4153 = vpack.c.b16 %v3353, %v3349
    %v4154 = vpack.c.b16 %v3354, %v3350
    %v4155 = vpack.c.b16 %v3359, %v3355
    %v4156 = vpack.c.b16 %v3360, %v3356
    %v4157 = vpack.c.b16 %v3361, %v3357
    %v4158 = vpack.c.b16 %v3362, %v3358
    %v4159 = vpack.c.b16 %v3367, %v3363
    %v4160 = vpack.c.b16 %v3368, %v3364
    %v4161 = vpack.c.b16 %v3369, %v3365
    %v4162 = vpack.c.b16 %v3370, %v3366
    %v4163 = vpack.c.b16 %v3375, %v3371
    %v4164 = vpack.c.b16 %v3376, %v3372
    %v4165 = vpack.c.b16 %v3377, %v3373
    %v4166 = vpack.c.b16 %v3378, %v3374
    %v4167 = vpack.c.b16 %v3383, %v3379
    %v4168 = vpack.c.b16 %v3384, %v3380
    %v4169 = vpack.c.b16 %v3385, %v3381
    %v4170 = vpack.c.b16 %v3386, %v3382
    %vm4955 = vcmask 523264
    %v4957 = vsel %vm4955, %v1010, 0
    %4959 = vmatprep.subr.bf16.mxu0 %v3388
    %4960 = vmatpush1.bf16.msra.mxu0 %v3387
    %4961 = vmatprep.subr.bf16.mxu0 %v3392
    %4962 = vmatpush1.bf16.msra.mxu0 %v3391
    %4963 = vmatprep.subr.bf16.mxu0 %v3396
    %4964 = vmatpush1.bf16.msra.mxu0 %v3395
    %4965 = vmatprep.subr.bf16.mxu0 %v3400
    %4966 = vmatpush1.bf16.msra.mxu0 %v3399
    %4967 = vmatprep.subr.bf16.mxu0 %v3404
    %4968 = vmatpush1.bf16.msra.mxu0 %v3403
    %4969 = vmatprep.subr.bf16.mxu0 %v3408
    %4970 = vmatpush1.bf16.msra.mxu0 %v3407
    %4971 = vmatprep.subr.bf16.mxu0 %v3412
    %4972 = vmatpush1.bf16.msra.mxu0 %v3411
    %4973 = vmatprep.subr.bf16.mxu0 %v3416
    %4974 = vmatpush1.bf16.msra.mxu0 %v3415
    %4975 = vmatprep.subr.bf16.mxu0 %v3420
    %4976 = vmatpush1.bf16.msra.mxu0 %v3419
    %4977 = vmatprep.subr.bf16.mxu0 %v3424
    %4978 = vmatpush1.bf16.msra.mxu0 %v3423
    %4979 = vmatprep.subr.bf16.mxu0 %v3428
    %4980 = vmatpush1.bf16.msra.mxu0 %v3427
    %4981 = vmatprep.subr.bf16.mxu0 %v3432
    %4982 = vmatpush1.bf16.msra.mxu0 %v3431
    %4983 = vmatprep.subr.bf16.mxu0 %v3436
    %4984 = vmatpush1.bf16.msra.mxu0 %v3435
    %4985 = vmatprep.subr.bf16.mxu0 %v3440
    %4986 = vmatpush1.bf16.msra.mxu0 %v3439
    %4987 = vmatprep.subr.bf16.mxu0 %v3444
    %4988 = vmatpush1.bf16.msra.mxu0 %v3443
    %4989 = vmatprep.subr.bf16.mxu0 %v3448
    %4990 = vmatpush1.bf16.msra.mxu0 %v3447
    %4991 = vmatprep.mubr.bf16.mxu0 %v887
    %4992 = vmatmul.mubr.bf16.gmra.mrb[0].mxu0 %v873
    %v4993 = vpop.f32.mrb[0].mxu0
    %v4994 = vadd.f32 %v829, %v4993
    %v4995 = vpop.f32.mrb[0].mxu0
    %v4996 = vadd.f32 %v833, %v4995
    %v4997 = vpop.f32.mrb[0].mxu0
    %v4998 = vpop.f32.mrb[0].mxu0
    %4999 = vdwg.mxu0
    %5000 = vmatprep.subr.bf16.mxu0 %v3452
    %5001 = vmatpush1.bf16.msra.mxu0 %v3451
    %5002 = vmatprep.subr.bf16.mxu0 %v3456
    %5003 = vmatpush1.bf16.msra.mxu0 %v3455
    %5004 = vmatprep.subr.bf16.mxu0 %v3460
    %5005 = vmatpush1.bf16.msra.mxu0 %v3459
    %5006 = vmatprep.subr.bf16.mxu0 %v3464
    %5007 = vmatpush1.bf16.msra.mxu0 %v3463
    %5008 = vmatprep.subr.bf16.mxu0 %v3468
    %5009 = vmatpush1.bf16.msra.mxu0 %v3467
    %5010 = vmatprep.subr.bf16.mxu0 %v3472
    %5011 = vmatpush1.bf16.msra.mxu0 %v3471
    %5012 = vmatprep.subr.bf16.mxu0 %v3476
    %5013 = vmatpush1.bf16.msra.mxu0 %v3475
    %5014 = vmatprep.subr.bf16.mxu0 %v3480
    %5015 = vmatpush1.bf16.msra.mxu0 %v3479
    %5016 = vmatprep.subr.bf16.mxu0 %v3484
    %5017 = vmatpush1.bf16.msra.mxu0 %v3483
    %5018 = vmatprep.subr.bf16.mxu0 %v3488
    %5019 = vmatpush1.bf16.msra.mxu0 %v3487
    %5020 = vmatprep.subr.bf16.mxu0 %v3492
    %5021 = vmatpush1.bf16.msra.mxu0 %v3491
    %5022 = vmatprep.subr.bf16.mxu0 %v3496
    %5023 = vmatpush1.bf16.msra.mxu0 %v3495
    %5024 = vmatprep.subr.bf16.mxu0 %v3500
    %5025 = vmatpush1.bf16.msra.mxu0 %v3499
    %5026 = vmatprep.subr.bf16.mxu0 %v3504
    %5027 = vmatpush1.bf16.msra.mxu0 %v3503
    %5028 = vmatprep.subr.bf16.mxu0 %v3508
    %5029 = vmatpush1.bf16.msra.mxu0 %v3507
    %5030 = vmatprep.subr.bf16.mxu0 %v3512
    %5031 = vmatpush1.bf16.msra.mxu0 %v3511
    %5032 = vmatprep.mubr.bf16.mxu0 %v897
    %5033 = vmatmul.mubr.bf16.gmra.mrb[0].mxu0 %v895
    %v5034 = vpop.f32.mrb[0].mxu0
    %v5035 = vadd.f32 %v4994, %v5034
    %v5036 = vpop.f32.mrb[0].mxu0
    %v5037 = vadd.f32 %v4996, %v5036
    %v5038 = vpop.f32.mrb[0].mxu0
    %v5039 = vpop.f32.mrb[0].mxu0
    %5040 = vdwg.mxu0
    %5041 = vmatprep.subr.bf16.mxu0 %v3516
    %5042 = vmatpush1.bf16.msra.mxu0 %v3515
    %5043 = vmatprep.subr.bf16.mxu0 %v3520
    %5044 = vmatpush1.bf16.msra.mxu0 %v3519
    %5045 = vmatprep.subr.bf16.mxu0 %v3524
    %5046 = vmatpush1.bf16.msra.mxu0 %v3523
    %5047 = vmatprep.subr.bf16.mxu0 %v3528
    %5048 = vmatpush1.bf16.msra.mxu0 %v3527
    %5049 = vmatprep.subr.bf16.mxu0 %v3532
    %5050 = vmatpush1.bf16.msra.mxu0 %v3531
    %5051 = vmatprep.subr.bf16.mxu0 %v3536
    %5052 = vmatpush1.bf16.msra.mxu0 %v3535
    %5053 = vmatprep.subr.bf16.mxu0 %v3540
    %5054 = vmatpush1.bf16.msra.mxu0 %v3539
    %5055 = vmatprep.subr.bf16.mxu0 %v3544
    %5056 = vmatpush1.bf16.msra.mxu0 %v3543
    %5057 = vmatprep.subr.bf16.mxu0 %v3548
    %5058 = vmatpush1.bf16.msra.mxu0 %v3547
    %5059 = vmatprep.subr.bf16.mxu0 %v3552
    %5060 = vmatpush1.bf16.msra.mxu0 %v3551
    %5061 = vmatprep.subr.bf16.mxu0 %v3556
    %5062 = vmatpush1.bf16.msra.mxu0 %v3555
    %5063 = vmatprep.subr.bf16.mxu0 %v3560
    %5064 = vmatpush1.bf16.msra.mxu0 %v3559
    %5065 = vmatprep.subr.bf16.mxu0 %v3564
    %5066 = vmatpush1.bf16.msra.mxu0 %v3563
    %5067 = vmatprep.subr.bf16.mxu0 %v3568
    %5068 = vmatpush1.bf16.msra.mxu0 %v3567
    %5069 = vmatprep.subr.bf16.mxu0 %v3572
    %5070 = vmatpush1.bf16.msra.mxu0 %v3571
    %5071 = vmatprep.subr.bf16.mxu0 %v3576
    %5072 = vmatpush1.bf16.msra.mxu0 %v3575
    %5073 = vmatprep.mubr.bf16.mxu0 %v894
    %5074 = vmatmul.mubr.bf16.gmra.mrb[0].mxu0 %v880
    %v5075 = vpop.f32.mrb[0].mxu0
    %v5076 = vadd.f32 %v5035, %v5075
    %v5077 = vpop.f32.mrb[0].mxu0
    %v5078 = vadd.f32 %v5037, %v5077
    %v5079 = vpop.f32.mrb[0].mxu0
    %v5080 = vpop.f32.mrb[0].mxu0
    %5081 = vdwg.mxu0
    %5082 = vmatprep.subr.bf16.mxu0 %v3580
    %5083 = vmatpush1.bf16.msra.mxu0 %v3579
    %5084 = vmatprep.subr.bf16.mxu0 %v3584
    %5085 = vmatpush1.bf16.msra.mxu0 %v3583
    %5086 = vmatprep.subr.bf16.mxu0 %v3588
    %5087 = vmatpush1.bf16.msra.mxu0 %v3587
    %5088 = vmatprep.subr.bf16.mxu0 %v3592
    %5089 = vmatpush1.bf16.msra.mxu0 %v3591
    %5090 = vmatprep.subr.bf16.mxu0 %v3596
    %5091 = vmatpush1.bf16.msra.mxu0 %v3595
    %5092 = vmatprep.subr.bf16.mxu0 %v3600
    %5093 = vmatpush1.bf16.msra.mxu0 %v3599
    %5094 = vmatprep.subr.bf16.mxu0 %v3604
    %5095 = vmatpush1.bf16.msra.mxu0 %v3603
    %5096 = vmatprep.subr.bf16.mxu0 %v3608
    %5097 = vmatpush1.bf16.msra.mxu0 %v3607
    %5098 = vmatprep.subr.bf16.mxu0 %v3612
    %5099 = vmatpush1.bf16.msra.mxu0 %v3611
    %5100 = vmatprep.subr.bf16.mxu0 %v3616
    %5101 = vmatpush1.bf16.msra.mxu0 %v3615
    %5102 = vmatprep.subr.bf16.mxu0 %v3620
    %5103 = vmatpush1.bf16.msra.mxu0 %v3619
    %5104 = vmatprep.subr.bf16.mxu0 %v3624
    %5105 = vmatpush1.bf16.msra.mxu0 %v3623
    %5106 = vmatprep.subr.bf16.mxu0 %v3628
    %5107 = vmatpush1.bf16.msra.mxu0 %v3627
    %5108 = vmatprep.subr.bf16.mxu0 %v3632
    %5109 = vmatpush1.bf16.msra.mxu0 %v3631
    %5110 = vmatprep.subr.bf16.mxu0 %v3636
    %5111 = vmatpush1.bf16.msra.mxu0 %v3635
    %5112 = vmatprep.subr.bf16.mxu0 %v3640
    %5113 = vmatpush1.bf16.msra.mxu0 %v3639
    %5114 = vmatprep.mubr.bf16.mxu0 %v898
    %5115 = vmatmul.mubr.bf16.gmra.mrb[0].mxu0 %v896
    %v5116 = vpop.f32.mrb[0].mxu0
    %v5117 = vadd.f32 %v5076, %v5116
    %v5118 = vpop.f32.mrb[0].mxu0
    %v5119 = vadd.f32 %v5078, %v5118
    %v5120 = vpop.f32.mrb[0].mxu0
    %v5121 = vpop.f32.mrb[0].mxu0
    %5122 = vdwg.mxu0
    %5123 = vmatprep.subr.bf16.mxu0 %v3644
    %5124 = vmatpush1.bf16.msra.mxu0 %v3643
    %5125 = vmatprep.subr.bf16.mxu0 %v3648
    %5126 = vmatpush1.bf16.msra.mxu0 %v3647
    %5127 = vmatprep.subr.bf16.mxu0 %v3652
    %5128 = vmatpush1.bf16.msra.mxu0 %v3651
    %5129 = vmatprep.subr.bf16.mxu0 %v3656
    %5130 = vmatpush1.bf16.msra.mxu0 %v3655
    %5131 = vmatprep.subr.bf16.mxu0 %v3660
    %5132 = vmatpush1.bf16.msra.mxu0 %v3659
    %5133 = vmatprep.subr.bf16.mxu0 %v3664
    %5134 = vmatpush1.bf16.msra.mxu0 %v3663
    %5135 = vmatprep.subr.bf16.mxu0 %v3668
    %5136 = vmatpush1.bf16.msra.mxu0 %v3667
    %5137 = vmatprep.subr.bf16.mxu0 %v3672
    %5138 = vmatpush1.bf16.msra.mxu0 %v3671
    %5139 = vmatprep.subr.bf16.mxu0 %v3676
    %5140 = vmatpush1.bf16.msra.mxu0 %v3675
    %5141 = vmatprep.subr.bf16.mxu0 %v3680
    %5142 = vmatpush1.bf16.msra.mxu0 %v3679
    %5143 = vmatprep.subr.bf16.mxu0 %v3684
    %5144 = vmatpush1.bf16.msra.mxu0 %v3683
    %5145 = vmatprep.subr.bf16.mxu0 %v3688
    %5146 = vmatpush1.bf16.msra.mxu0 %v3687
    %5147 = vmatprep.subr.bf16.mxu0 %v3692
    %5148 = vmatpush1.bf16.msra.mxu0 %v3691
    %5149 = vmatprep.subr.bf16.mxu0 %v3696
    %5150 = vmatpush1.bf16.msra.mxu0 %v3695
    %5151 = vmatprep.subr.bf16.mxu0 %v3700
    %5152 = vmatpush1.bf16.msra.mxu0 %v3699
    %5153 = vmatprep.subr.bf16.mxu0 %v3704
    %5154 = vmatpush1.bf16.msra.mxu0 %v3703
    %5155 = vmatprep.mubr.bf16.mxu0 %v936
    %5156 = vmatmul.mubr.bf16.gmra.mrb[0].mxu0 %v922
    %v5157 = vpop.f32.mrb[0].mxu0
    %v5158 = vadd.f32 %v5117, %v5157
    %v5159 = vpop.f32.mrb[0].mxu0
    %v5160 = vadd.f32 %v5119, %v5159
    %v5161 = vpop.f32.mrb[0].mxu0
    %v5162 = vpop.f32.mrb[0].mxu0
    %5163 = vdwg.mxu0
    %5164 = vmatprep.subr.bf16.mxu0 %v3708
    %5165 = vmatpush1.bf16.msra.mxu0 %v3707
    %5166 = vmatprep.subr.bf16.mxu0 %v3712
    %5167 = vmatpush1.bf16.msra.mxu0 %v3711
    %5168 = vmatprep.subr.bf16.mxu0 %v3716
    %5169 = vmatpush1.bf16.msra.mxu0 %v3715
    %5170 = vmatprep.subr.bf16.mxu0 %v3720
    %5171 = vmatpush1.bf16.msra.mxu0 %v3719
    %5172 = vmatprep.subr.bf16.mxu0 %v3724
    %5173 = vmatpush1.bf16.msra.mxu0 %v3723
    %5174 = vmatprep.subr.bf16.mxu0 %v3728
    %5175 = vmatpush1.bf16.msra.mxu0 %v3727
    %5176 = vmatprep.subr.bf16.mxu0 %v3732
    %5177 = vmatpush1.bf16.msra.mxu0 %v3731
    %5178 = vmatprep.subr.bf16.mxu0 %v3736
    %5179 = vmatpush1.bf16.msra.mxu0 %v3735
    %5180 = vmatprep.subr.bf16.mxu0 %v3740
    %5181 = vmatpush1.bf16.msra.mxu0 %v3739
    %5182 = vmatprep.subr.bf16.mxu0 %v3744
    %5183 = vmatpush1.bf16.msra.mxu0 %v3743
    %5184 = vmatprep.subr.bf16.mxu0 %v3748
    %5185 = vmatpush1.bf16.msra.mxu0 %v3747
    %5186 = vmatprep.subr.bf16.mxu0 %v3752
    %5187 = vmatpush1.bf16.msra.mxu0 %v3751
    %5188 = vmatprep.subr.bf16.mxu0 %v3756
    %5189 = vmatpush1.bf16.msra.mxu0 %v3755
    %5190 = vmatprep.subr.bf16.mxu0 %v3760
    %5191 = vmatpush1.bf16.msra.mxu0 %v3759
    %5192 = vmatprep.subr.bf16.mxu0 %v3764
    %5193 = vmatpush1.bf16.msra.mxu0 %v3763
    %5194 = vmatprep.subr.bf16.mxu0 %v3768
    %5195 = vmatpush1.bf16.msra.mxu0 %v3767
    %5196 = vmatprep.mubr.bf16.mxu0 %v946
    %5197 = vmatmul.mubr.bf16.gmra.mrb[0].mxu0 %v944
    %v5198 = vpop.f32.mrb[0].mxu0
    %v5199 = vadd.f32 %v5158, %v5198
    %v5200 = vpop.f32.mrb[0].mxu0
    %v5201 = vadd.f32 %v5160, %v5200
    %v5202 = vpop.f32.mrb[0].mxu0
    %v5203 = vpop.f32.mrb[0].mxu0
    %5204 = vdwg.mxu0
    %5205 = vmatprep.subr.bf16.mxu0 %v3772
    %5206 = vmatpush1.bf16.msra.mxu0 %v3771
    %5207 = vmatprep.subr.bf16.mxu0 %v3776
    %5208 = vmatpush1.bf16.msra.mxu0 %v3775
    %5209 = vmatprep.subr.bf16.mxu0 %v3780
    %5210 = vmatpush1.bf16.msra.mxu0 %v3779
    %5211 = vmatprep.subr.bf16.mxu0 %v3784
    %5212 = vmatpush1.bf16.msra.mxu0 %v3783
    %5213 = vmatprep.subr.bf16.mxu0 %v3788
    %5214 = vmatpush1.bf16.msra.mxu0 %v3787
    %5215 = vmatprep.subr.bf16.mxu0 %v3792
    %5216 = vmatpush1.bf16.msra.mxu0 %v3791
    %5217 = vmatprep.subr.bf16.mxu0 %v3796
    %5218 = vmatpush1.bf16.msra.mxu0 %v3795
    %5219 = vmatprep.subr.bf16.mxu0 %v3800
    %5220 = vmatpush1.bf16.msra.mxu0 %v3799
    %5221 = vmatprep.subr.bf16.mxu0 %v3804
    %5222 = vmatpush1.bf16.msra.mxu0 %v3803
    %5223 = vmatprep.subr.bf16.mxu0 %v3808
    %5224 = vmatpush1.bf16.msra.mxu0 %v3807
    %5225 = vmatprep.subr.bf16.mxu0 %v3812
    %5226 = vmatpush1.bf16.msra.mxu0 %v3811
    %5227 = vmatprep.subr.bf16.mxu0 %v3816
    %5228 = vmatpush1.bf16.msra.mxu0 %v3815
    %5229 = vmatprep.subr.bf16.mxu0 %v3820
    %5230 = vmatpush1.bf16.msra.mxu0 %v3819
    %5231 = vmatprep.subr.bf16.mxu0 %v3824
    %5232 = vmatpush1.bf16.msra.mxu0 %v3823
    %5233 = vmatprep.subr.bf16.mxu0 %v3828
    %5234 = vmatpush1.bf16.msra.mxu0 %v3827
    %5235 = vmatprep.subr.bf16.mxu0 %v3832
    %5236 = vmatpush1.bf16.msra.mxu0 %v3831
    %5237 = vmatprep.mubr.bf16.mxu0 %v943
    %5238 = vmatmul.mubr.bf16.gmra.mrb[0].mxu0 %v929
    %v5239 = vpop.f32.mrb[0].mxu0
    %v5240 = vadd.f32 %v5199, %v5239
    %v5241 = vpop.f32.mrb[0].mxu0
    %v5242 = vadd.f32 %v5201, %v5241
    %v5243 = vpop.f32.mrb[0].mxu0
    %v5244 = vpop.f32.mrb[0].mxu0
    %5245 = vdwg.mxu0
    %5246 = vmatprep.subr.bf16.mxu0 %v3836
    %5247 = vmatpush1.bf16.msra.mxu0 %v3835
    %5248 = vmatprep.subr.bf16.mxu0 %v3840
    %5249 = vmatpush1.bf16.msra.mxu0 %v3839
    %5250 = vmatprep.subr.bf16.mxu0 %v3844
    %5251 = vmatpush1.bf16.msra.mxu0 %v3843
    %5252 = vmatprep.subr.bf16.mxu0 %v3848
    %5253 = vmatpush1.bf16.msra.mxu0 %v3847
    %5254 = vmatprep.subr.bf16.mxu0 %v3852
    %5255 = vmatpush1.bf16.msra.mxu0 %v3851
    %5256 = vmatprep.subr.bf16.mxu0 %v3856
    %5257 = vmatpush1.bf16.msra.mxu0 %v3855
    %5258 = vmatprep.subr.bf16.mxu0 %v3860
    %5259 = vmatpush1.bf16.msra.mxu0 %v3859
    %5260 = vmatprep.subr.bf16.mxu0 %v3864
    %5261 = vmatpush1.bf16.msra.mxu0 %v3863
    %5262 = vmatprep.subr.bf16.mxu0 %v3868
    %5263 = vmatpush1.bf16.msra.mxu0 %v3867
    %5264 = vmatprep.subr.bf16.mxu0 %v3872
    %5265 = vmatpush1.bf16.msra.mxu0 %v3871
    %5266 = vmatprep.subr.bf16.mxu0 %v3876
    %5267 = vmatpush1.bf16.msra.mxu0 %v3875
    %5268 = vmatprep.subr.bf16.mxu0 %v3880
    %5269 = vmatpush1.bf16.msra.mxu0 %v3879
    %5270 = vmatprep.subr.bf16.mxu0 %v3884
    %5271 = vmatpush1.bf16.msra.mxu0 %v3883
    %5272 = vmatprep.subr.bf16.mxu0 %v3888
    %5273 = vmatpush1.bf16.msra.mxu0 %v3887
    %5274 = vmatprep.subr.bf16.mxu0 %v3892
    %5275 = vmatpush1.bf16.msra.mxu0 %v3891
    %5276 = vmatprep.subr.bf16.mxu0 %v3896
    %5277 = vmatpush1.bf16.msra.mxu0 %v3895
    %5278 = vmatprep.mubr.bf16.mxu0 %v947
    %5279 = vmatmul.mubr.bf16.gmra.mrb[0].mxu0 %v945
    %v5280 = vpop.f32.mrb[0].mxu0
    %v5281 = vadd.f32 %v5240, %v5280
    %v5282 = vpop.f32.mrb[0].mxu0
    %v5283 = vadd.f32 %v5242, %v5282
    %v5284 = vpop.f32.mrb[0].mxu0
    %v5285 = vpop.f32.mrb[0].mxu0
    %5286 = vdwg.mxu0
    %5287 = vmatprep.subr.bf16.mxu0 %v3900
    %5288 = vmatpush1.bf16.msra.mxu0 %v3899
    %5289 = vmatprep.subr.bf16.mxu0 %v3904
    %5290 = vmatpush1.bf16.msra.mxu0 %v3903
    %5291 = vmatprep.subr.bf16.mxu0 %v3908
    %5292 = vmatpush1.bf16.msra.mxu0 %v3907
    %5293 = vmatprep.subr.bf16.mxu0 %v3912
    %5294 = vmatpush1.bf16.msra.mxu0 %v3911
    %5295 = vmatprep.subr.bf16.mxu0 %v3916
    %5296 = vmatpush1.bf16.msra.mxu0 %v3915
    %5297 = vmatprep.subr.bf16.mxu0 %v3920
    %5298 = vmatpush1.bf16.msra.mxu0 %v3919
    %5299 = vmatprep.subr.bf16.mxu0 %v3924
    %5300 = vmatpush1.bf16.msra.mxu0 %v3923
    %5301 = vmatprep.subr.bf16.mxu0 %v3928
    %5302 = vmatpush1.bf16.msra.mxu0 %v3927
    %5303 = vmatprep.subr.bf16.mxu0 %v3932
    %5304 = vmatpush1.bf16.msra.mxu0 %v3931
    %5305 = vmatprep.subr.bf16.mxu0 %v3936
    %5306 = vmatpush1.bf16.msra.mxu0 %v3935
    %5307 = vmatprep.subr.bf16.mxu0 %v3940
    %5308 = vmatpush1.bf16.msra.mxu0 %v3939
    %5309 = vmatprep.subr.bf16.mxu0 %v3944
    %5310 = vmatpush1.bf16.msra.mxu0 %v3943
    %5311 = vmatprep.subr.bf16.mxu0 %v3948
    %5312 = vmatpush1.bf16.msra.mxu0 %v3947
    %5313 = vmatprep.subr.bf16.mxu0 %v3952
    %5314 = vmatpush1.bf16.msra.mxu0 %v3951
    %5315 = vmatprep.subr.bf16.mxu0 %v3956
    %5316 = vmatpush1.bf16.msra.mxu0 %v3955
    %5317 = vmatprep.subr.bf16.mxu0 %v3960
    %5318 = vmatpush1.bf16.msra.mxu0 %v3959
    %5319 = vmatprep.mubr.bf16.mxu0 %v985
    %5320 = vmatmul.mubr.bf16.gmra.mrb[0].mxu0 %v971
    %v5321 = vpop.f32.mrb[0].mxu0
    %v5322 = vadd.f32 %v5281, %v5321
    %v5323 = vpop.f32.mrb[0].mxu0
    %v5324 = vadd.f32 %v5283, %v5323
    %v5325 = vpop.f32.mrb[0].mxu0
    %v5326 = vpop.f32.mrb[0].mxu0
    %5327 = vdwg.mxu0
    %5328 = vmatprep.subr.bf16.mxu0 %v3964
    %5329 = vmatpush1.bf16.msra.mxu0 %v3963
    %5330 = vmatprep.subr.bf16.mxu0 %v3968
    %5331 = vmatpush1.bf16.msra.mxu0 %v3967
    %5332 = vmatprep.subr.bf16.mxu0 %v3972
    %5333 = vmatpush1.bf16.msra.mxu0 %v3971
    %5334 = vmatprep.subr.bf16.mxu0 %v3976
    %5335 = vmatpush1.bf16.msra.mxu0 %v3975
    %5336 = vmatprep.subr.bf16.mxu0 %v3980
    %5337 = vmatpush1.bf16.msra.mxu0 %v3979
    %5338 = vmatprep.subr.bf16.mxu0 %v3984
    %5339 = vmatpush1.bf16.msra.mxu0 %v3983
    %5340 = vmatprep.subr.bf16.mxu0 %v3988
    %5341 = vmatpush1.bf16.msra.mxu0 %v3987
    %5342 = vmatprep.subr.bf16.mxu0 %v3992
    %5343 = vmatpush1.bf16.msra.mxu0 %v3991
    %5344 = vmatprep.subr.bf16.mxu0 %v3996
    %5345 = vmatpush1.bf16.msra.mxu0 %v3995
    %5346 = vmatprep.subr.bf16.mxu0 %v4000
    %5347 = vmatpush1.bf16.msra.mxu0 %v3999
    %5348 = vmatprep.subr.bf16.mxu0 %v4004
    %5349 = vmatpush1.bf16.msra.mxu0 %v4003
    %5350 = vmatprep.subr.bf16.mxu0 %v4008
    %5351 = vmatpush1.bf16.msra.mxu0 %v4007
    %5352 = vmatprep.subr.bf16.mxu0 %v4012
    %5353 = vmatpush1.bf16.msra.mxu0 %v4011
    %5354 = vmatprep.subr.bf16.mxu0 %v4016
    %5355 = vmatpush1.bf16.msra.mxu0 %v4015
    %5356 = vmatprep.subr.bf16.mxu0 %v4020
    %5357 = vmatpush1.bf16.msra.mxu0 %v4019
    %5358 = vmatprep.subr.bf16.mxu0 %v4024
    %5359 = vmatpush1.bf16.msra.mxu0 %v4023
    %5360 = vmatprep.mubr.bf16.mxu0 %v995
    %5361 = vmatmul.mubr.bf16.gmra.mrb[0].mxu0 %v993
    %v5362 = vpop.f32.mrb[0].mxu0
    %v5363 = vadd.f32 %v5322, %v5362
    %v5364 = vpop.f32.mrb[0].mxu0
    %v5365 = vadd.f32 %v5324, %v5364
    %v5366 = vpop.f32.mrb[0].mxu0
    %v5367 = vpop.f32.mrb[0].mxu0
    %5368 = vdwg.mxu0
    %5369 = vmatprep.subr.bf16.mxu0 %v4028
    %5370 = vmatpush1.bf16.msra.mxu0 %v4027
    %5371 = vmatprep.subr.bf16.mxu0 %v4032
    %5372 = vmatpush1.bf16.msra.mxu0 %v4031
    %5373 = vmatprep.subr.bf16.mxu0 %v4036
    %5374 = vmatpush1.bf16.msra.mxu0 %v4035
    %5375 = vmatprep.subr.bf16.mxu0 %v4040
    %5376 = vmatpush1.bf16.msra.mxu0 %v4039
    %5377 = vmatprep.subr.bf16.mxu0 %v4044
    %5378 = vmatpush1.bf16.msra.mxu0 %v4043
    %5379 = vmatprep.subr.bf16.mxu0 %v4048
    %5380 = vmatpush1.bf16.msra.mxu0 %v4047
    %5381 = vmatprep.subr.bf16.mxu0 %v4052
    %5382 = vmatpush1.bf16.msra.mxu0 %v4051
    %5383 = vmatprep.subr.bf16.mxu0 %v4056
    %5384 = vmatpush1.bf16.msra.mxu0 %v4055
    %5385 = vmatprep.subr.bf16.mxu0 %v4060
    %5386 = vmatpush1.bf16.msra.mxu0 %v4059
    %5387 = vmatprep.subr.bf16.mxu0 %v4064
    %5388 = vmatpush1.bf16.msra.mxu0 %v4063
    %5389 = vmatprep.subr.bf16.mxu0 %v4068
    %5390 = vmatpush1.bf16.msra.mxu0 %v4067
    %5391 = vmatprep.subr.bf16.mxu0 %v4072
    %5392 = vmatpush1.bf16.msra.mxu0 %v4071
    %5393 = vmatprep.subr.bf16.mxu0 %v4076
    %5394 = vmatpush1.bf16.msra.mxu0 %v4075
    %5395 = vmatprep.subr.bf16.mxu0 %v4080
    %5396 = vmatpush1.bf16.msra.mxu0 %v4079
    %5397 = vmatprep.subr.bf16.mxu0 %v4084
    %5398 = vmatpush1.bf16.msra.mxu0 %v4083
    %5399 = vmatprep.subr.bf16.mxu0 %v4088
    %5400 = vmatpush1.bf16.msra.mxu0 %v4087
    %5401 = vmatprep.mubr.bf16.mxu0 %v992
    %5402 = vmatmul.mubr.bf16.gmra.mrb[0].mxu0 %v978
    %v5403 = vpop.f32.mrb[0].mxu0
    %v5404 = vadd.f32 %v5363, %v5403
    %v5405 = vpop.f32.mrb[0].mxu0
    %v5406 = vadd.f32 %v5365, %v5405
    %v5407 = vpop.f32.mrb[0].mxu0
    %v5408 = vpop.f32.mrb[0].mxu0
    %5409 = vdwg.mxu0
    %5410 = vmatprep.subr.bf16.mxu0 %v4092
    %5411 = vmatpush1.bf16.msra.mxu0 %v4091
    %5412 = vmatprep.subr.bf16.mxu0 %v4096
    %5413 = vmatpush1.bf16.msra.mxu0 %v4095
    %5414 = vmatprep.subr.bf16.mxu0 %v4100
    %5415 = vmatpush1.bf16.msra.mxu0 %v4099
    %5416 = vmatprep.subr.bf16.mxu0 %v4104
    %5417 = vmatpush1.bf16.msra.mxu0 %v4103
    %5418 = vmatprep.subr.bf16.mxu0 %v4108
    %5419 = vmatpush1.bf16.msra.mxu0 %v4107
    %5420 = vmatprep.subr.bf16.mxu0 %v4112
    %5421 = vmatpush1.bf16.msra.mxu0 %v4111
    %5422 = vmatprep.subr.bf16.mxu0 %v4116
    %5423 = vmatpush1.bf16.msra.mxu0 %v4115
    %5424 = vmatprep.subr.bf16.mxu0 %v4120
    %5425 = vmatpush1.bf16.msra.mxu0 %v4119
    %5426 = vmatprep.subr.bf16.mxu0 %v4124
    %5427 = vmatpush1.bf16.msra.mxu0 %v4123
    %5428 = vmatprep.subr.bf16.mxu0 %v4128
    %5429 = vmatpush1.bf16.msra.mxu0 %v4127
    %5430 = vmatprep.subr.bf16.mxu0 %v4132
    %5431 = vmatpush1.bf16.msra.mxu0 %v4131
    %5432 = vmatprep.subr.bf16.mxu0 %v4136
    %5433 = vmatpush1.bf16.msra.mxu0 %v4135
    %5434 = vmatprep.subr.bf16.mxu0 %v4140
    %5435 = vmatpush1.bf16.msra.mxu0 %v4139
    %5436 = vmatprep.subr.bf16.mxu0 %v4144
    %5437 = vmatpush1.bf16.msra.mxu0 %v4143
    %5438 = vmatprep.subr.bf16.mxu0 %v4148
    %5439 = vmatpush1.bf16.msra.mxu0 %v4147
    %5440 = vmatprep.subr.bf16.mxu0 %v4152
    %5441 = vmatpush1.bf16.msra.mxu0 %v4151
    %5442 = vmatprep.mubr.bf16.mxu0 %v996
    %5443 = vmatmul.mubr.bf16.gmra.mrb[0].mxu0 %v994
    %v5444 = vpop.f32.mrb[0].mxu0
    %v5445 = vadd.f32 %v5404, %v5444
    %v5446 = vpop.f32.mrb[0].mxu0
    %v5447 = vadd.f32 %v5406, %v5446
    %v5448 = vpop.f32.mrb[0].mxu0
    %v5449 = vpop.f32.mrb[0].mxu0
    %5450 = vdwg.mxu0
    %5451 = vmatprep.subr.bf16.mxu0 %v4156
    %5452 = vmatpush1.bf16.msra.mxu0 %v4155
    %5453 = vmatprep.subr.bf16.mxu0 %v4160
    %5454 = vmatpush1.bf16.msra.mxu0 %v4159
    %5455 = vmatprep.subr.bf16.mxu0 %v4164
    %5456 = vmatpush1.bf16.msra.mxu0 %v4163
    %5457 = vmatprep.subr.bf16.mxu0 %v4168
    %5458 = vmatpush1.bf16.msra.mxu0 %v4167
    %5459 = vmatprep.subr.bf16.mxu0 0
    %5460 = vmatpush1.bf16.msra.mxu0 0
    %5461 = vmatprep.subr.bf16.mxu0 0
    %5462 = vmatpush1.bf16.msra.mxu0 0
    %5463 = vmatprep.subr.bf16.mxu0 0
    %5464 = vmatpush1.bf16.msra.mxu0 0
    %5465 = vmatprep.subr.bf16.mxu0 0
    %5466 = vmatpush1.bf16.msra.mxu0 0
    %5467 = vmatprep.subr.bf16.mxu0 0
    %5468 = vmatpush1.bf16.msra.mxu0 0
    %5469 = vmatprep.subr.bf16.mxu0 0
    %5470 = vmatpush1.bf16.msra.mxu0 0
    %5471 = vmatprep.subr.bf16.mxu0 0
    %5472 = vmatpush1.bf16.msra.mxu0 0
    %5473 = vmatprep.subr.bf16.mxu0 0
    %5474 = vmatpush1.bf16.msra.mxu0 0
    %5475 = vmatprep.subr.bf16.mxu0 0
    %5476 = vmatpush1.bf16.msra.mxu0 0
    %5477 = vmatprep.subr.bf16.mxu0 0
    %5478 = vmatpush1.bf16.msra.mxu0 0
    %5479 = vmatprep.subr.bf16.mxu0 0
    %5480 = vmatpush1.bf16.msra.mxu0 0
    %5481 = vmatprep.subr.bf16.mxu0 0
    %5482 = vmatpush1.bf16.msra.mxu0 0
    %5483 = vmatprep.mubr.bf16.mxu0 0
    %5484 = vmatmul.mubr.bf16.gmra.mrb[0].mxu0 %v4957
    %v5485 = vpop.f32.mrb[0].mxu0
    %v5486 = vadd.f32 %v5445, %v5485
    %v5487 = vpop.f32.mrb[0].mxu0
    %v5488 = vadd.f32 %v5447, %v5487
    %v5489 = vpop.f32.mrb[0].mxu0
    %v5490 = vpop.f32.mrb[0].mxu0
    %5491 = vdwg.mxu0
    %5492 = vmatprep.subr.bf16.mxu0 %v3390
    %5493 = vmatpush1.bf16.msra.mxu0 %v3389
    %5494 = vmatprep.subr.bf16.mxu0 %v3394
    %5495 = vmatpush1.bf16.msra.mxu0 %v3393
    %5496 = vmatprep.subr.bf16.mxu0 %v3398
    %5497 = vmatpush1.bf16.msra.mxu0 %v3397
    %5498 = vmatprep.subr.bf16.mxu0 %v3402
    %5499 = vmatpush1.bf16.msra.mxu0 %v3401
    %5500 = vmatprep.subr.bf16.mxu0 %v3406
    %5501 = vmatpush1.bf16.msra.mxu0 %v3405
    %5502 = vmatprep.subr.bf16.mxu0 %v3410
    %5503 = vmatpush1.bf16.msra.mxu0 %v3409
    %5504 = vmatprep.subr.bf16.mxu0 %v3414
    %5505 = vmatpush1.bf16.msra.mxu0 %v3413
    %5506 = vmatprep.subr.bf16.mxu0 %v3418
    %5507 = vmatpush1.bf16.msra.mxu0 %v3417
    %5508 = vmatprep.subr.bf16.mxu0 %v3422
    %5509 = vmatpush1.bf16.msra.mxu0 %v3421
    %5510 = vmatprep.subr.bf16.mxu0 %v3426
    %5511 = vmatpush1.bf16.msra.mxu0 %v3425
    %5512 = vmatprep.subr.bf16.mxu0 %v3430
    %5513 = vmatpush1.bf16.msra.mxu0 %v3429
    %5514 = vmatprep.subr.bf16.mxu0 %v3434
    %5515 = vmatpush1.bf16.msra.mxu0 %v3433
    %5516 = vmatprep.subr.bf16.mxu0 %v3438
    %5517 = vmatpush1.bf16.msra.mxu0 %v3437
    %5518 = vmatprep.subr.bf16.mxu0 %v3442
    %5519 = vmatpush1.bf16.msra.mxu0 %v3441
    %5520 = vmatprep.subr.bf16.mxu0 %v3446
    %5521 = vmatpush1.bf16.msra.mxu0 %v3445
    %5522 = vmatprep.subr.bf16.mxu0 %v3450
    %5523 = vmatpush1.bf16.msra.mxu0 %v3449
    %5524 = vmatprep.mubr.bf16.mxu0 %v887
    %5525 = vmatmul.mubr.bf16.gmra.mrb[0].mxu0 %v873
    %v5526 = vpop.f32.mrb[0].mxu0
    %v5527 = vadd.f32 %v837, %v5526
    %v5528 = vpop.f32.mrb[0].mxu0
    %v5529 = vadd.f32 %v841, %v5528
    %v5530 = vpop.f32.mrb[0].mxu0
    %v5531 = vpop.f32.mrb[0].mxu0
    %5532 = vdwg.mxu0
    %5533 = vmatprep.subr.bf16.mxu0 %v3454
    %5534 = vmatpush1.bf16.msra.mxu0 %v3453
    %5535 = vmatprep.subr.bf16.mxu0 %v3458
    %5536 = vmatpush1.bf16.msra.mxu0 %v3457
    %5537 = vmatprep.subr.bf16.mxu0 %v3462
    %5538 = vmatpush1.bf16.msra.mxu0 %v3461
    %5539 = vmatprep.subr.bf16.mxu0 %v3466
    %5540 = vmatpush1.bf16.msra.mxu0 %v3465
    %5541 = vmatprep.subr.bf16.mxu0 %v3470
    %5542 = vmatpush1.bf16.msra.mxu0 %v3469
    %5543 = vmatprep.subr.bf16.mxu0 %v3474
    %5544 = vmatpush1.bf16.msra.mxu0 %v3473
    %5545 = vmatprep.subr.bf16.mxu0 %v3478
    %5546 = vmatpush1.bf16.msra.mxu0 %v3477
    %5547 = vmatprep.subr.bf16.mxu0 %v3482
    %5548 = vmatpush1.bf16.msra.mxu0 %v3481
    %5549 = vmatprep.subr.bf16.mxu0 %v3486
    %5550 = vmatpush1.bf16.msra.mxu0 %v3485
    %5551 = vmatprep.subr.bf16.mxu0 %v3490
    %5552 = vmatpush1.bf16.msra.mxu0 %v3489
    %5553 = vmatprep.subr.bf16.mxu0 %v3494
    %5554 = vmatpush1.bf16.msra.mxu0 %v3493
    %5555 = vmatprep.subr.bf16.mxu0 %v3498
    %5556 = vmatpush1.bf16.msra.mxu0 %v3497
    %5557 = vmatprep.subr.bf16.mxu0 %v3502
    %5558 = vmatpush1.bf16.msra.mxu0 %v3501
    %5559 = vmatprep.subr.bf16.mxu0 %v3506
    %5560 = vmatpush1.bf16.msra.mxu0 %v3505
    %5561 = vmatprep.subr.bf16.mxu0 %v3510
    %5562 = vmatpush1.bf16.msra.mxu0 %v3509
    %5563 = vmatprep.subr.bf16.mxu0 %v3514
    %5564 = vmatpush1.bf16.msra.mxu0 %v3513
    %5565 = vmatprep.mubr.bf16.mxu0 %v897
    %5566 = vmatmul.mubr.bf16.gmra.mrb[0].mxu0 %v895
    %v5567 = vpop.f32.mrb[0].mxu0
    %v5568 = vadd.f32 %v5527, %v5567
    %v5569 = vpop.f32.mrb[0].mxu0
    %v5570 = vadd.f32 %v5529, %v5569
    %v5571 = vpop.f32.mrb[0].mxu0
    %v5572 = vpop.f32.mrb[0].mxu0
    %5573 = vdwg.mxu0
    %5574 = vmatprep.subr.bf16.mxu0 %v3518
    %5575 = vmatpush1.bf16.msra.mxu0 %v3517
    %5576 = vmatprep.subr.bf16.mxu0 %v3522
    %5577 = vmatpush1.bf16.msra.mxu0 %v3521
    %5578 = vmatprep.subr.bf16.mxu0 %v3526
    %5579 = vmatpush1.bf16.msra.mxu0 %v3525
    %5580 = vmatprep.subr.bf16.mxu0 %v3530
    %5581 = vmatpush1.bf16.msra.mxu0 %v3529
    %5582 = vmatprep.subr.bf16.mxu0 %v3534
    %5583 = vmatpush1.bf16.msra.mxu0 %v3533
    %5584 = vmatprep.subr.bf16.mxu0 %v3538
    %5585 = vmatpush1.bf16.msra.mxu0 %v3537
    %5586 = vmatprep.subr.bf16.mxu0 %v3542
    %5587 = vmatpush1.bf16.msra.mxu0 %v3541
    %5588 = vmatprep.subr.bf16.mxu0 %v3546
    %5589 = vmatpush1.bf16.msra.mxu0 %v3545
    %5590 = vmatprep.subr.bf16.mxu0 %v3550
    %5591 = vmatpush1.bf16.msra.mxu0 %v3549
    %5592 = vmatprep.subr.bf16.mxu0 %v3554
    %5593 = vmatpush1.bf16.msra.mxu0 %v3553
    %5594 = vmatprep.subr.bf16.mxu0 %v3558
    %5595 = vmatpush1.bf16.msra.mxu0 %v3557
    %5596 = vmatprep.subr.bf16.mxu0 %v3562
    %5597 = vmatpush1.bf16.msra.mxu0 %v3561
    %5598 = vmatprep.subr.bf16.mxu0 %v3566
    %5599 = vmatpush1.bf16.msra.mxu0 %v3565
    %5600 = vmatprep.subr.bf16.mxu0 %v3570
    %5601 = vmatpush1.bf16.msra.mxu0 %v3569
    %5602 = vmatprep.subr.bf16.mxu0 %v3574
    %5603 = vmatpush1.bf16.msra.mxu0 %v3573
    %5604 = vmatprep.subr.bf16.mxu0 %v3578
    %5605 = vmatpush1.bf16.msra.mxu0 %v3577
    %5606 = vmatprep.mubr.bf16.mxu0 %v894
    %5607 = vmatmul.mubr.bf16.gmra.mrb[0].mxu0 %v880
    %v5608 = vpop.f32.mrb[0].mxu0
    %v5609 = vadd.f32 %v5568, %v5608
    %v5610 = vpop.f32.mrb[0].mxu0
    %v5611 = vadd.f32 %v5570, %v5610
    %v5612 = vpop.f32.mrb[0].mxu0
    %v5613 = vpop.f32.mrb[0].mxu0
    %5614 = vdwg.mxu0
    %5615 = vmatprep.subr.bf16.mxu0 %v3582
    %5616 = vmatpush1.bf16.msra.mxu0 %v3581
    %5617 = vmatprep.subr.bf16.mxu0 %v3586
    %5618 = vmatpush1.bf16.msra.mxu0 %v3585
    %5619 = vmatprep.subr.bf16.mxu0 %v3590
    %5620 = vmatpush1.bf16.msra.mxu0 %v3589
    %5621 = vmatprep.subr.bf16.mxu0 %v3594
    %5622 = vmatpush1.bf16.msra.mxu0 %v3593
    %5623 = vmatprep.subr.bf16.mxu0 %v3598
    %5624 = vmatpush1.bf16.msra.mxu0 %v3597
    %5625 = vmatprep.subr.bf16.mxu0 %v3602
    %5626 = vmatpush1.bf16.msra.mxu0 %v3601
    %5627 = vmatprep.subr.bf16.mxu0 %v3606
    %5628 = vmatpush1.bf16.msra.mxu0 %v3605
    %5629 = vmatprep.subr.bf16.mxu0 %v3610
    %5630 = vmatpush1.bf16.msra.mxu0 %v3609
    %5631 = vmatprep.subr.bf16.mxu0 %v3614
    %5632 = vmatpush1.bf16.msra.mxu0 %v3613
    %5633 = vmatprep.subr.bf16.mxu0 %v3618
    %5634 = vmatpush1.bf16.msra.mxu0 %v3617
    %5635 = vmatprep.subr.bf16.mxu0 %v3622
    %5636 = vmatpush1.bf16.msra.mxu0 %v3621
    %5637 = vmatprep.subr.bf16.mxu0 %v3626
    %5638 = vmatpush1.bf16.msra.mxu0 %v3625
    %5639 = vmatprep.subr.bf16.mxu0 %v3630
    %5640 = vmatpush1.bf16.msra.mxu0 %v3629
    %5641 = vmatprep.subr.bf16.mxu0 %v3634
    %5642 = vmatpush1.bf16.msra.mxu0 %v3633
    %5643 = vmatprep.subr.bf16.mxu0 %v3638
    %5644 = vmatpush1.bf16.msra.mxu0 %v3637
    %5645 = vmatprep.subr.bf16.mxu0 %v3642
    %5646 = vmatpush1.bf16.msra.mxu0 %v3641
    %5647 = vmatprep.mubr.bf16.mxu0 %v898
    %5648 = vmatmul.mubr.bf16.gmra.mrb[0].mxu0 %v896
    %v5649 = vpop.f32.mrb[0].mxu0
    %v5650 = vadd.f32 %v5609, %v5649
    %v5651 = vpop.f32.mrb[0].mxu0
    %v5652 = vadd.f32 %v5611, %v5651
    %v5653 = vpop.f32.mrb[0].mxu0
    %v5654 = vpop.f32.mrb[0].mxu0
    %5655 = vdwg.mxu0
    %5656 = vmatprep.subr.bf16.mxu0 %v3646
    %5657 = vmatpush1.bf16.msra.mxu0 %v3645
    %5658 = vmatprep.subr.bf16.mxu0 %v3650
    %5659 = vmatpush1.bf16.msra.mxu0 %v3649
    %5660 = vmatprep.subr.bf16.mxu0 %v3654
    %5661 = vmatpush1.bf16.msra.mxu0 %v3653
    %5662 = vmatprep.subr.bf16.mxu0 %v3658
    %5663 = vmatpush1.bf16.msra.mxu0 %v3657
    %5664 = vmatprep.subr.bf16.mxu0 %v3662
    %5665 = vmatpush1.bf16.msra.mxu0 %v3661
    %5666 = vmatprep.subr.bf16.mxu0 %v3666
    %5667 = vmatpush1.bf16.msra.mxu0 %v3665
    %5668 = vmatprep.subr.bf16.mxu0 %v3670
    %5669 = vmatpush1.bf16.msra.mxu0 %v3669
    %5670 = vmatprep.subr.bf16.mxu0 %v3674
    %5671 = vmatpush1.bf16.msra.mxu0 %v3673
    %5672 = vmatprep.subr.bf16.mxu0 %v3678
    %5673 = vmatpush1.bf16.msra.mxu0 %v3677
    %5674 = vmatprep.subr.bf16.mxu0 %v3682
    %5675 = vmatpush1.bf16.msra.mxu0 %v3681
    %5676 = vmatprep.subr.bf16.mxu0 %v3686
    %5677 = vmatpush1.bf16.msra.mxu0 %v3685
    %5678 = vmatprep.subr.bf16.mxu0 %v3690
    %5679 = vmatpush1.bf16.msra.mxu0 %v3689
    %5680 = vmatprep.subr.bf16.mxu0 %v3694
    %5681 = vmatpush1.bf16.msra.mxu0 %v3693
    %5682 = vmatprep.subr.bf16.mxu0 %v3698
    %5683 = vmatpush1.bf16.msra.mxu0 %v3697
    %5684 = vmatprep.subr.bf16.mxu0 %v3702
    %5685 = vmatpush1.bf16.msra.mxu0 %v3701
    %5686 = vmatprep.subr.bf16.mxu0 %v3706
    %5687 = vmatpush1.bf16.msra.mxu0 %v3705
    %5688 = vmatprep.mubr.bf16.mxu0 %v936
    %5689 = vmatmul.mubr.bf16.gmra.mrb[0].mxu0 %v922
    %v5690 = vpop.f32.mrb[0].mxu0
    %v5691 = vadd.f32 %v5650, %v5690
    %v5692 = vpop.f32.mrb[0].mxu0
    %v5693 = vadd.f32 %v5652, %v5692
    %v5694 = vpop.f32.mrb[0].mxu0
    %v5695 = vpop.f32.mrb[0].mxu0
    %5696 = vdwg.mxu0
    %5697 = vmatprep.subr.bf16.mxu0 %v3710
    %5698 = vmatpush1.bf16.msra.mxu0 %v3709
    %5699 = vmatprep.subr.bf16.mxu0 %v3714
    %5700 = vmatpush1.bf16.msra.mxu0 %v3713
    %5701 = vmatprep.subr.bf16.mxu0 %v3718
    %5702 = vmatpush1.bf16.msra.mxu0 %v3717
    %5703 = vmatprep.subr.bf16.mxu0 %v3722
    %5704 = vmatpush1.bf16.msra.mxu0 %v3721
    %5705 = vmatprep.subr.bf16.mxu0 %v3726
    %5706 = vmatpush1.bf16.msra.mxu0 %v3725
    %5707 = vmatprep.subr.bf16.mxu0 %v3730
    %5708 = vmatpush1.bf16.msra.mxu0 %v3729
    %5709 = vmatprep.subr.bf16.mxu0 %v3734
    %5710 = vmatpush1.bf16.msra.mxu0 %v3733
    %5711 = vmatprep.subr.bf16.mxu0 %v3738
    %5712 = vmatpush1.bf16.msra.mxu0 %v3737
    %5713 = vmatprep.subr.bf16.mxu0 %v3742
    %5714 = vmatpush1.bf16.msra.mxu0 %v3741
    %5715 = vmatprep.subr.bf16.mxu0 %v3746
    %5716 = vmatpush1.bf16.msra.mxu0 %v3745
    %5717 = vmatprep.subr.bf16.mxu0 %v3750
    %5718 = vmatpush1.bf16.msra.mxu0 %v3749
    %5719 = vmatprep.subr.bf16.mxu0 %v3754
    %5720 = vmatpush1.bf16.msra.mxu0 %v3753
    %5721 = vmatprep.subr.bf16.mxu0 %v3758
    %5722 = vmatpush1.bf16.msra.mxu0 %v3757
    %5723 = vmatprep.subr.bf16.mxu0 %v3762
    %5724 = vmatpush1.bf16.msra.mxu0 %v3761
    %5725 = vmatprep.subr.bf16.mxu0 %v3766
    %5726 = vmatpush1.bf16.msra.mxu0 %v3765
    %5727 = vmatprep.subr.bf16.mxu0 %v3770
    %5728 = vmatpush1.bf16.msra.mxu0 %v3769
    %5729 = vmatprep.mubr.bf16.mxu0 %v946
    %5730 = vmatmul.mubr.bf16.gmra.mrb[0].mxu0 %v944
    %v5731 = vpop.f32.mrb[0].mxu0
    %v5732 = vadd.f32 %v5691, %v5731
    %v5733 = vpop.f32.mrb[0].mxu0
    %v5734 = vadd.f32 %v5693, %v5733
    %v5735 = vpop.f32.mrb[0].mxu0
    %v5736 = vpop.f32.mrb[0].mxu0
    %5737 = vdwg.mxu0
    %5738 = vmatprep.subr.bf16.mxu0 %v3774
    %5739 = vmatpush1.bf16.msra.mxu0 %v3773
    %5740 = vmatprep.subr.bf16.mxu0 %v3778
    %5741 = vmatpush1.bf16.msra.mxu0 %v3777
    %5742 = vmatprep.subr.bf16.mxu0 %v3782
    %5743 = vmatpush1.bf16.msra.mxu0 %v3781
    %5744 = vmatprep.subr.bf16.mxu0 %v3786
    %5745 = vmatpush1.bf16.msra.mxu0 %v3785
    %5746 = vmatprep.subr.bf16.mxu0 %v3790
    %5747 = vmatpush1.bf16.msra.mxu0 %v3789
    %5748 = vmatprep.subr.bf16.mxu0 %v3794
    %5749 = vmatpush1.bf16.msra.mxu0 %v3793
    %5750 = vmatprep.subr.bf16.mxu0 %v3798
    %5751 = vmatpush1.bf16.msra.mxu0 %v3797
    %5752 = vmatprep.subr.bf16.mxu0 %v3802
    %5753 = vmatpush1.bf16.msra.mxu0 %v3801
    %5754 = vmatprep.subr.bf16.mxu0 %v3806
    %5755 = vmatpush1.bf16.msra.mxu0 %v3805
    %5756 = vmatprep.subr.bf16.mxu0 %v3810
    %5757 = vmatpush1.bf16.msra.mxu0 %v3809
    %5758 = vmatprep.subr.bf16.mxu0 %v3814
    %5759 = vmatpush1.bf16.msra.mxu0 %v3813
    %5760 = vmatprep.subr.bf16.mxu0 %v3818
    %5761 = vmatpush1.bf16.msra.mxu0 %v3817
    %5762 = vmatprep.subr.bf16.mxu0 %v3822
    %5763 = vmatpush1.bf16.msra.mxu0 %v3821
    %5764 = vmatprep.subr.bf16.mxu0 %v3826
    %5765 = vmatpush1.bf16.msra.mxu0 %v3825
    %5766 = vmatprep.subr.bf16.mxu0 %v3830
    %5767 = vmatpush1.bf16.msra.mxu0 %v3829
    %5768 = vmatprep.subr.bf16.mxu0 %v3834
    %5769 = vmatpush1.bf16.msra.mxu0 %v3833
    %5770 = vmatprep.mubr.bf16.mxu0 %v943
    %5771 = vmatmul.mubr.bf16.gmra.mrb[0].mxu0 %v929
    %v5772 = vpop.f32.mrb[0].mxu0
    %v5773 = vadd.f32 %v5732, %v5772
    %v5774 = vpop.f32.mrb[0].mxu0
    %v5775 = vadd.f32 %v5734, %v5774
    %v5776 = vpop.f32.mrb[0].mxu0
    %v5777 = vpop.f32.mrb[0].mxu0
    %5778 = vdwg.mxu0
    %5779 = vmatprep.subr.bf16.mxu0 %v3838
    %5780 = vmatpush1.bf16.msra.mxu0 %v3837
    %5781 = vmatprep.subr.bf16.mxu0 %v3842
    %5782 = vmatpush1.bf16.msra.mxu0 %v3841
    %5783 = vmatprep.subr.bf16.mxu0 %v3846
    %5784 = vmatpush1.bf16.msra.mxu0 %v3845
    %5785 = vmatprep.subr.bf16.mxu0 %v3850
    %5786 = vmatpush1.bf16.msra.mxu0 %v3849
    %5787 = vmatprep.subr.bf16.mxu0 %v3854
    %5788 = vmatpush1.bf16.msra.mxu0 %v3853
    %5789 = vmatprep.subr.bf16.mxu0 %v3858
    %5790 = vmatpush1.bf16.msra.mxu0 %v3857
    %5791 = vmatprep.subr.bf16.mxu0 %v3862
    %5792 = vmatpush1.bf16.msra.mxu0 %v3861
    %5793 = vmatprep.subr.bf16.mxu0 %v3866
    %5794 = vmatpush1.bf16.msra.mxu0 %v3865
    %5795 = vmatprep.subr.bf16.mxu0 %v3870
    %5796 = vmatpush1.bf16.msra.mxu0 %v3869
    %5797 = vmatprep.subr.bf16.mxu0 %v3874
    %5798 = vmatpush1.bf16.msra.mxu0 %v3873
    %5799 = vmatprep.subr.bf16.mxu0 %v3878
    %5800 = vmatpush1.bf16.msra.mxu0 %v3877
    %5801 = vmatprep.subr.bf16.mxu0 %v3882
    %5802 = vmatpush1.bf16.msra.mxu0 %v3881
    %5803 = vmatprep.subr.bf16.mxu0 %v3886
    %5804 = vmatpush1.bf16.msra.mxu0 %v3885
    %5805 = vmatprep.subr.bf16.mxu0 %v3890
    %5806 = vmatpush1.bf16.msra.mxu0 %v3889
    %5807 = vmatprep.subr.bf16.mxu0 %v3894
    %5808 = vmatpush1.bf16.msra.mxu0 %v3893
    %5809 = vmatprep.subr.bf16.mxu0 %v3898
    %5810 = vmatpush1.bf16.msra.mxu0 %v3897
    %5811 = vmatprep.mubr.bf16.mxu0 %v947
    %5812 = vmatmul.mubr.bf16.gmra.mrb[0].mxu0 %v945
    %v5813 = vpop.f32.mrb[0].mxu0
    %v5814 = vadd.f32 %v5773, %v5813
    %v5815 = vpop.f32.mrb[0].mxu0
    %v5816 = vadd.f32 %v5775, %v5815
    %v5817 = vpop.f32.mrb[0].mxu0
    %v5818 = vpop.f32.mrb[0].mxu0
    %5819 = vdwg.mxu0
    %5820 = vmatprep.subr.bf16.mxu0 %v3902
    %5821 = vmatpush1.bf16.msra.mxu0 %v3901
    %5822 = vmatprep.subr.bf16.mxu0 %v3906
    %5823 = vmatpush1.bf16.msra.mxu0 %v3905
    %5824 = vmatprep.subr.bf16.mxu0 %v3910
    %5825 = vmatpush1.bf16.msra.mxu0 %v3909
    %5826 = vmatprep.subr.bf16.mxu0 %v3914
    %5827 = vmatpush1.bf16.msra.mxu0 %v3913
    %5828 = vmatprep.subr.bf16.mxu0 %v3918
    %5829 = vmatpush1.bf16.msra.mxu0 %v3917
    %5830 = vmatprep.subr.bf16.mxu0 %v3922
    %5831 = vmatpush1.bf16.msra.mxu0 %v3921
    %5832 = vmatprep.subr.bf16.mxu0 %v3926
    %5833 = vmatpush1.bf16.msra.mxu0 %v3925
    %5834 = vmatprep.subr.bf16.mxu0 %v3930
    %5835 = vmatpush1.bf16.msra.mxu0 %v3929
    %5836 = vmatprep.subr.bf16.mxu0 %v3934
    %5837 = vmatpush1.bf16.msra.mxu0 %v3933
    %5838 = vmatprep.subr.bf16.mxu0 %v3938
    %5839 = vmatpush1.bf16.msra.mxu0 %v3937
    %5840 = vmatprep.subr.bf16.mxu0 %v3942
    %5841 = vmatpush1.bf16.msra.mxu0 %v3941
    %5842 = vmatprep.subr.bf16.mxu0 %v3946
    %5843 = vmatpush1.bf16.msra.mxu0 %v3945
    %5844 = vmatprep.subr.bf16.mxu0 %v3950
    %5845 = vmatpush1.bf16.msra.mxu0 %v3949
    %5846 = vmatprep.subr.bf16.mxu0 %v3954
    %5847 = vmatpush1.bf16.msra.mxu0 %v3953
    %5848 = vmatprep.subr.bf16.mxu0 %v3958
    %5849 = vmatpush1.bf16.msra.mxu0 %v3957
    %5850 = vmatprep.subr.bf16.mxu0 %v3962
    %5851 = vmatpush1.bf16.msra.mxu0 %v3961
    %5852 = vmatprep.mubr.bf16.mxu0 %v985
    %5853 = vmatmul.mubr.bf16.gmra.mrb[0].mxu0 %v971
    %v5854 = vpop.f32.mrb[0].mxu0
    %v5855 = vadd.f32 %v5814, %v5854
    %v5856 = vpop.f32.mrb[0].mxu0
    %v5857 = vadd.f32 %v5816, %v5856
    %v5858 = vpop.f32.mrb[0].mxu0
    %v5859 = vpop.f32.mrb[0].mxu0
    %5860 = vdwg.mxu0
    %5861 = vmatprep.subr.bf16.mxu0 %v3966
    %5862 = vmatpush1.bf16.msra.mxu0 %v3965
    %5863 = vmatprep.subr.bf16.mxu0 %v3970
    %5864 = vmatpush1.bf16.msra.mxu0 %v3969
    %5865 = vmatprep.subr.bf16.mxu0 %v3974
    %5866 = vmatpush1.bf16.msra.mxu0 %v3973
    %5867 = vmatprep.subr.bf16.mxu0 %v3978
    %5868 = vmatpush1.bf16.msra.mxu0 %v3977
    %5869 = vmatprep.subr.bf16.mxu0 %v3982
    %5870 = vmatpush1.bf16.msra.mxu0 %v3981
    %5871 = vmatprep.subr.bf16.mxu0 %v3986
    %5872 = vmatpush1.bf16.msra.mxu0 %v3985
    %5873 = vmatprep.subr.bf16.mxu0 %v3990
    %5874 = vmatpush1.bf16.msra.mxu0 %v3989
    %5875 = vmatprep.subr.bf16.mxu0 %v3994
    %5876 = vmatpush1.bf16.msra.mxu0 %v3993
    %5877 = vmatprep.subr.bf16.mxu0 %v3998
    %5878 = vmatpush1.bf16.msra.mxu0 %v3997
    %5879 = vmatprep.subr.bf16.mxu0 %v4002
    %5880 = vmatpush1.bf16.msra.mxu0 %v4001
    %5881 = vmatprep.subr.bf16.mxu0 %v4006
    %5882 = vmatpush1.bf16.msra.mxu0 %v4005
    %5883 = vmatprep.subr.bf16.mxu0 %v4010
    %5884 = vmatpush1.bf16.msra.mxu0 %v4009
    %5885 = vmatprep.subr.bf16.mxu0 %v4014
    %5886 = vmatpush1.bf16.msra.mxu0 %v4013
    %5887 = vmatprep.subr.bf16.mxu0 %v4018
    %5888 = vmatpush1.bf16.msra.mxu0 %v4017
    %5889 = vmatprep.subr.bf16.mxu0 %v4022
    %5890 = vmatpush1.bf16.msra.mxu0 %v4021
    %5891 = vmatprep.subr.bf16.mxu0 %v4026
    %5892 = vmatpush1.bf16.msra.mxu0 %v4025
    %5893 = vmatprep.mubr.bf16.mxu0 %v995
    %5894 = vmatmul.mubr.bf16.gmra.mrb[0].mxu0 %v993
    %v5895 = vpop.f32.mrb[0].mxu0
    %v5896 = vadd.f32 %v5855, %v5895
    %v5897 = vpop.f32.mrb[0].mxu0
    %v5898 = vadd.f32 %v5857, %v5897
    %v5899 = vpop.f32.mrb[0].mxu0
    %v5900 = vpop.f32.mrb[0].mxu0
    %5901 = vdwg.mxu0
    %5902 = vmatprep.subr.bf16.mxu0 %v4030
    %5903 = vmatpush1.bf16.msra.mxu0 %v4029
    %5904 = vmatprep.subr.bf16.mxu0 %v4034
    %5905 = vmatpush1.bf16.msra.mxu0 %v4033
    %5906 = vmatprep.subr.bf16.mxu0 %v4038
    %5907 = vmatpush1.bf16.msra.mxu0 %v4037
    %5908 = vmatprep.subr.bf16.mxu0 %v4042
    %5909 = vmatpush1.bf16.msra.mxu0 %v4041
    %5910 = vmatprep.subr.bf16.mxu0 %v4046
    %5911 = vmatpush1.bf16.msra.mxu0 %v4045
    %5912 = vmatprep.subr.bf16.mxu0 %v4050
    %5913 = vmatpush1.bf16.msra.mxu0 %v4049
    %5914 = vmatprep.subr.bf16.mxu0 %v4054
    %5915 = vmatpush1.bf16.msra.mxu0 %v4053
    %5916 = vmatprep.subr.bf16.mxu0 %v4058
    %5917 = vmatpush1.bf16.msra.mxu0 %v4057
    %5918 = vmatprep.subr.bf16.mxu0 %v4062
    %5919 = vmatpush1.bf16.msra.mxu0 %v4061
    %5920 = vmatprep.subr.bf16.mxu0 %v4066
    %5921 = vmatpush1.bf16.msra.mxu0 %v4065
    %5922 = vmatprep.subr.bf16.mxu0 %v4070
    %5923 = vmatpush1.bf16.msra.mxu0 %v4069
    %5924 = vmatprep.subr.bf16.mxu0 %v4074
    %5925 = vmatpush1.bf16.msra.mxu0 %v4073
    %5926 = vmatprep.subr.bf16.mxu0 %v4078
    %5927 = vmatpush1.bf16.msra.mxu0 %v4077
    %5928 = vmatprep.subr.bf16.mxu0 %v4082
    %5929 = vmatpush1.bf16.msra.mxu0 %v4081
    %5930 = vmatprep.subr.bf16.mxu0 %v4086
    %5931 = vmatpush1.bf16.msra.mxu0 %v4085
    %5932 = vmatprep.subr.bf16.mxu0 %v4090
    %5933 = vmatpush1.bf16.msra.mxu0 %v4089
    %5934 = vmatprep.mubr.bf16.mxu0 %v992
    %5935 = vmatmul.mubr.bf16.gmra.mrb[0].mxu0 %v978
    %v5936 = vpop.f32.mrb[0].mxu0
    %v5937 = vadd.f32 %v5896, %v5936
    %v5938 = vpop.f32.mrb[0].mxu0
    %v5939 = vadd.f32 %v5898, %v5938
    %v5940 = vpop.f32.mrb[0].mxu0
    %v5941 = vpop.f32.mrb[0].mxu0
    %5942 = vdwg.mxu0
    %5943 = vmatprep.subr.bf16.mxu0 %v4094
    %5944 = vmatpush1.bf16.msra.mxu0 %v4093
    %5945 = vmatprep.subr.bf16.mxu0 %v4098
    %5946 = vmatpush1.bf16.msra.mxu0 %v4097
    %5947 = vmatprep.subr.bf16.mxu0 %v4102
    %5948 = vmatpush1.bf16.msra.mxu0 %v4101
    %5949 = vmatprep.subr.bf16.mxu0 %v4106
    %5950 = vmatpush1.bf16.msra.mxu0 %v4105
    %5951 = vmatprep.subr.bf16.mxu0 %v4110
    %5952 = vmatpush1.bf16.msra.mxu0 %v4109
    %5953 = vmatprep.subr.bf16.mxu0 %v4114
    %5954 = vmatpush1.bf16.msra.mxu0 %v4113
    %5955 = vmatprep.subr.bf16.mxu0 %v4118
    %5956 = vmatpush1.bf16.msra.mxu0 %v4117
    %5957 = vmatprep.subr.bf16.mxu0 %v4122
    %5958 = vmatpush1.bf16.msra.mxu0 %v4121
    %5959 = vmatprep.subr.bf16.mxu0 %v4126
    %5960 = vmatpush1.bf16.msra.mxu0 %v4125
    %5961 = vmatprep.subr.bf16.mxu0 %v4130
    %5962 = vmatpush1.bf16.msra.mxu0 %v4129
    %5963 = vmatprep.subr.bf16.mxu0 %v4134
    %5964 = vmatpush1.bf16.msra.mxu0 %v4133
    %5965 = vmatprep.subr.bf16.mxu0 %v4138
    %5966 = vmatpush1.bf16.msra.mxu0 %v4137
    %5967 = vmatprep.subr.bf16.mxu0 %v4142
    %5968 = vmatpush1.bf16.msra.mxu0 %v4141
    %5969 = vmatprep.subr.bf16.mxu0 %v4146
    %5970 = vmatpush1.bf16.msra.mxu0 %v4145
    %5971 = vmatprep.subr.bf16.mxu0 %v4150
    %5972 = vmatpush1.bf16.msra.mxu0 %v4149
    %5973 = vmatprep.subr.bf16.mxu0 %v4154
    %5974 = vmatpush1.bf16.msra.mxu0 %v4153
    %5975 = vmatprep.mubr.bf16.mxu0 %v996
    %5976 = vmatmul.mubr.bf16.gmra.mrb[0].mxu0 %v994
    %v5977 = vpop.f32.mrb[0].mxu0
    %v5978 = vadd.f32 %v5937, %v5977
    %v5979 = vpop.f32.mrb[0].mxu0
    %v5980 = vadd.f32 %v5939, %v5979
    %v5981 = vpop.f32.mrb[0].mxu0
    %v5982 = vpop.f32.mrb[0].mxu0
    %5983 = vdwg.mxu0
    %5984 = vmatprep.subr.bf16.mxu0 %v4158
    %5985 = vmatpush1.bf16.msra.mxu0 %v4157
    %5986 = vmatprep.subr.bf16.mxu0 %v4162
    %5987 = vmatpush1.bf16.msra.mxu0 %v4161
    %5988 = vmatprep.subr.bf16.mxu0 %v4166
    %5989 = vmatpush1.bf16.msra.mxu0 %v4165
    %5990 = vmatprep.subr.bf16.mxu0 %v4170
    %5991 = vmatpush1.bf16.msra.mxu0 %v4169
    %5992 = vmatprep.subr.bf16.mxu0 0
    %5993 = vmatpush1.bf16.msra.mxu0 0
    %5994 = vmatprep.subr.bf16.mxu0 0
    %5995 = vmatpush1.bf16.msra.mxu0 0
    %5996 = vmatprep.subr.bf16.mxu0 0
    %5997 = vmatpush1.bf16.msra.mxu0 0
    %5998 = vmatprep.subr.bf16.mxu0 0
    %5999 = vmatpush1.bf16.msra.mxu0 0
    %6000 = vmatprep.subr.bf16.mxu0 0
    %6001 = vmatpush1.bf16.msra.mxu0 0
    %6002 = vmatprep.subr.bf16.mxu0 0
    %6003 = vmatpush1.bf16.msra.mxu0 0
    %6004 = vmatprep.subr.bf16.mxu0 0
    %6005 = vmatpush1.bf16.msra.mxu0 0
    %6006 = vmatprep.subr.bf16.mxu0 0
    %6007 = vmatpush1.bf16.msra.mxu0 0
    %6008 = vmatprep.subr.bf16.mxu0 0
    %6009 = vmatpush1.bf16.msra.mxu0 0
    %6010 = vmatprep.subr.bf16.mxu0 0
    %6011 = vmatpush1.bf16.msra.mxu0 0
    %6012 = vmatprep.subr.bf16.mxu0 0
    %6013 = vmatpush1.bf16.msra.mxu0 0
    %6014 = vmatprep.subr.bf16.mxu0 0
    %6015 = vmatpush1.bf16.msra.mxu0 0
    %6016 = vmatprep.mubr.bf16.mxu0 0
    %6017 = vmatmul.mubr.bf16.gmra.mrb[0].mxu0 %v4957
    %v6018 = vpop.f32.mrb[0].mxu0
    %v6019 = vadd.f32 %v5978, %v6018
    %v6020 = vpop.f32.mrb[0].mxu0
    %v6021 = vadd.f32 %v5980, %v6020
    %v6022 = vpop.f32.mrb[0].mxu0
    %v6023 = vpop.f32.mrb[0].mxu0
    %6024 = vdwg.mxu0
    %v6025 = vmax.f32 %v5486, 0.0
    %v6026 = vmax.f32 %v5488, 0.0
    %v6027 = vmax.f32 %v6019, 0.0
    %v6028 = vmax.f32 %v6021, 0.0
    %v6029 = vpack.c.bf16 %v6025, %v6025
    %v6030 = vpack.c.bf16 %v6026, %v6026
    %v6031 = vpack.c.bf16 %v6027, %v6027
    %v6032 = vpack.c.bf16 %v6028, %v6028
    %v6033 = vld [vmem:[%s3] sm:$0xff]
    %v6034 = vld [vmem:[%s3 + $0x8] sm:$0xff]
    %v6035 = vld [vmem:[%s3 + $0x10] sm:$0xff]
    %v6036 = vld [vmem:[%s3 + $0x18] sm:$0xff]
    %v6037 = vld [vmem:[%s3 + $0x20] sm:$0xff]
    %v6038 = vld [vmem:[%s3 + $0x28] sm:$0xff]
    %v6039 = vld [vmem:[%s3 + $0x30] sm:$0xff]
    %v6040 = vld [vmem:[%s3 + $0x38] sm:$0xff]
    %v6041 = vld [vmem:[%s3 + $0x40] sm:$0xff]
    %v6042 = vld [vmem:[%s3 + $0x48] sm:$0xff]
    %v6043 = vld [vmem:[%s3 + $0x50] sm:$0xff]
    %v6044 = vld [vmem:[%s3 + $0x58] sm:$0xff]
    %v6045 = vld [vmem:[%s3 + $0x60] sm:$0xff]
    %v6046 = vld [vmem:[%s3 + $0x68] sm:$0xff]
    %v6047 = vld [vmem:[%s3 + $0x70] sm:$0xff]
    %v6048 = vld [vmem:[%s3 + $0x78] sm:$0xff]
    %v6049 = vld [vmem:[%s3 + $0x80] sm:$0xff]
    %v6050 = vld [vmem:[%s3 + $0x88] sm:$0xff]
    %v6051 = vld [vmem:[%s3 + $0x90] sm:$0xff]
    %v6052 = vld [vmem:[%s3 + $0x98] sm:$0xff]
    %v6053 = vld [vmem:[%s3 + $0xa0] sm:$0xff]
    %v6054 = vld [vmem:[%s3 + $0xa8] sm:$0xff]
    %v6055 = vld [vmem:[%s3 + $0xb0] sm:$0xff]
    %v6056 = vld [vmem:[%s3 + $0xb8] sm:$0xff]
    %v6057 = vld [vmem:[%s3 + $0xc0] sm:$0xff]
    %v6058 = vld [vmem:[%s3 + $0xc8] sm:$0xff]
    %v6059 = vld [vmem:[%s3 + $0xd0] sm:$0xff]
    %v6060 = vld [vmem:[%s3 + $0xd8] sm:$0xff]
    %v6061 = vld [vmem:[%s3 + $0xe0] sm:$0xff]
    %v6062 = vld [vmem:[%s3 + $0xe8] sm:$0xff]
    %v6063 = vld [vmem:[%s3 + $0xf0] sm:$0xff]
    %v6064 = vld [vmem:[%s3 + $0xf8] sm:$0xff]
    %v6065 = vld [vmem:[%s3 + $0x100] sm:$0xff]
    %v6066 = vld [vmem:[%s3 + $0x108] sm:$0xff]
    %v6067 = vld [vmem:[%s3 + $0x110] sm:$0xff]
    %v6068 = vld [vmem:[%s3 + $0x118] sm:$0xff]
    %v6069 = vld [vmem:[%s3 + $0x120] sm:$0xff]
    %v6070 = vld [vmem:[%s3 + $0x128] sm:$0xff]
    %v6071 = vld [vmem:[%s3 + $0x130] sm:$0xff]
    %v6072 = vld [vmem:[%s3 + $0x138] sm:$0xff]
    %v6073 = vld [vmem:[%s3 + $0x140] sm:$0xff]
    %v6074 = vld [vmem:[%s3 + $0x148] sm:$0xff]
    %v6075 = vld [vmem:[%s3 + $0x150] sm:$0xff]
    %v6076 = vld [vmem:[%s3 + $0x158] sm:$0xff]
    %v6077 = vld [vmem:[%s3 + $0x160] sm:$0xff]
    %v6078 = vld [vmem:[%s3 + $0x168] sm:$0xff]
    %v6079 = vld [vmem:[%s3 + $0x170] sm:$0xff]
    %v6080 = vld [vmem:[%s3 + $0x178] sm:$0xff]
    %v6081 = vld [vmem:[%s3 + $0x180] sm:$0xff]
    %v6082 = vld [vmem:[%s3 + $0x188] sm:$0xff]
    %v6083 = vld [vmem:[%s3 + $0x190] sm:$0xff]
    %v6084 = vld [vmem:[%s3 + $0x198] sm:$0xff]
    %v6085 = vld [vmem:[%s3 + $0x1a0] sm:$0xff]
    %v6086 = vld [vmem:[%s3 + $0x1a8] sm:$0xff]
    %v6087 = vld [vmem:[%s3 + $0x1b0] sm:$0xff]
    %v6088 = vld [vmem:[%s3 + $0x1b8] sm:$0xff]
    %v6089 = vld [vmem:[%s3 + $0x1c0] sm:$0xff]
    %v6090 = vld [vmem:[%s3 + $0x1c8] sm:$0xff]
    %v6091 = vld [vmem:[%s3 + $0x1d0] sm:$0xff]
    %v6092 = vld [vmem:[%s3 + $0x1d8] sm:$0xff]
    %v6093 = vld [vmem:[%s3 + $0x1e0] sm:$0xff]
    %v6094 = vld [vmem:[%s3 + $0x1e8] sm:$0xff]
    %v6095 = vld [vmem:[%s3 + $0x1f0] sm:$0xff]
    %v6096 = vld [vmem:[%s3 + $0x1f8] sm:$0xff]
    %v6097 = vld [vmem:[%s3 + $0x200] sm:$0xff]
    %v6098 = vld [vmem:[%s3 + $0x208] sm:$0xff]
    %v6099 = vld [vmem:[%s3 + $0x210] sm:$0xff]
    %v6100 = vld [vmem:[%s3 + $0x218] sm:$0xff]
    %v6101 = vld [vmem:[%s3 + $0x220] sm:$0xff]
    %v6102 = vld [vmem:[%s3 + $0x228] sm:$0xff]
    %v6103 = vld [vmem:[%s3 + $0x230] sm:$0xff]
    %v6104 = vld [vmem:[%s3 + $0x238] sm:$0xff]
    %v6105 = vld [vmem:[%s3 + $0x240] sm:$0xff]
    %v6106 = vld [vmem:[%s3 + $0x248] sm:$0xff]
    %v6107 = vld [vmem:[%s3 + $0x250] sm:$0xff]
    %v6108 = vld [vmem:[%s3 + $0x258] sm:$0xff]
    %v6109 = vld [vmem:[%s3 + $0x260] sm:$0xff]
    %v6110 = vld [vmem:[%s3 + $0x268] sm:$0xff]
    %v6111 = vld [vmem:[%s3 + $0x270] sm:$0xff]
    %v6112 = vld [vmem:[%s3 + $0x278] sm:$0xff]
    %v6113 = vld [vmem:[%s3 + $0x280] sm:$0xff]
    %v6114 = vld [vmem:[%s3 + $0x288] sm:$0xff]
    %v6115 = vld [vmem:[%s3 + $0x290] sm:$0xff]
    %v6116 = vld [vmem:[%s3 + $0x298] sm:$0xff]
    %v6117 = vld [vmem:[%s3 + $0x2a0] sm:$0xff]
    %v6118 = vld [vmem:[%s3 + $0x2a8] sm:$0xff]
    %v6119 = vld [vmem:[%s3 + $0x2b0] sm:$0xff]
    %v6120 = vld [vmem:[%s3 + $0x2b8] sm:$0xff]
    %v6121 = vld [vmem:[%s3 + $0x2c0] sm:$0xff]
    %v6122 = vld [vmem:[%s3 + $0x2c8] sm:$0xff]
    %v6123 = vld [vmem:[%s3 + $0x2d0] sm:$0xff]
    %v6124 = vld [vmem:[%s3 + $0x2d8] sm:$0xff]
    %v6125 = vld [vmem:[%s3 + $0x2e0] sm:$0xff]
    %v6126 = vld [vmem:[%s3 + $0x2e8] sm:$0xff]
    %v6127 = vld [vmem:[%s3 + $0x2f0] sm:$0xff]
    %v6128 = vld [vmem:[%s3 + $0x2f8] sm:$0xff]
    %v6129 = vld [vmem:[%s3 + $0x300] sm:$0xff]
    %v6130 = vld [vmem:[%s3 + $0x308] sm:$0xff]
    %v6131 = vld [vmem:[%s3 + $0x310] sm:$0xff]
    %v6132 = vld [vmem:[%s3 + $0x318] sm:$0xff]
    %v6133 = vld [vmem:[%s3 + $0x320] sm:$0xff]
    %v6134 = vld [vmem:[%s3 + $0x328] sm:$0xff]
    %v6135 = vld [vmem:[%s3 + $0x330] sm:$0xff]
    %v6136 = vld [vmem:[%s3 + $0x338] sm:$0xff]
    %v6137 = vld [vmem:[%s3 + $0x340] sm:$0xff]
    %v6138 = vld [vmem:[%s3 + $0x348] sm:$0xff]
    %v6139 = vld [vmem:[%s3 + $0x350] sm:$0xff]
    %v6140 = vld [vmem:[%s3 + $0x358] sm:$0xff]
    %v6141 = vld [vmem:[%s3 + $0x360] sm:$0xff]
    %v6142 = vld [vmem:[%s3 + $0x368] sm:$0xff]
    %v6143 = vld [vmem:[%s3 + $0x370] sm:$0xff]
    %v6144 = vld [vmem:[%s3 + $0x378] sm:$0xff]
    %v6145 = vld [vmem:[%s3 + $0x380] sm:$0xff]
    %v6146 = vld [vmem:[%s3 + $0x388] sm:$0xff]
    %v6147 = vld [vmem:[%s3 + $0x390] sm:$0xff]
    %v6148 = vld [vmem:[%s3 + $0x398] sm:$0xff]
    %v6149 = vld [vmem:[%s3 + $0x3a0] sm:$0xff]
    %v6150 = vld [vmem:[%s3 + $0x3a8] sm:$0xff]
    %v6151 = vld [vmem:[%s3 + $0x3b0] sm:$0xff]
    %v6152 = vld [vmem:[%s3 + $0x3b8] sm:$0xff]
    %v6153 = vld [vmem:[%s3 + $0x3c0] sm:$0xff]
    %v6154 = vld [vmem:[%s3 + $0x3c8] sm:$0xff]
    %v6155 = vld [vmem:[%s3 + $0x3d0] sm:$0xff]
    %v6156 = vld [vmem:[%s3 + $0x3d8] sm:$0xff]
    %v6157 = vld [vmem:[%s3 + $0x3e0] sm:$0xff]
    %v6158 = vld [vmem:[%s3 + $0x3e8] sm:$0xff]
    %v6159 = vld [vmem:[%s3 + $0x3f0] sm:$0xff]
    %v6160 = vld [vmem:[%s3 + $0x3f8] sm:$0xff]
    %v6161 = vld [vmem:[%s3 + $0x400] sm:$0xff]
    %v6162 = vld [vmem:[%s3 + $0x408] sm:$0xff]
    %v6163 = vld [vmem:[%s3 + $0x410] sm:$0xff]
    %v6164 = vld [vmem:[%s3 + $0x418] sm:$0xff]
    %v6165 = vld [vmem:[%s3 + $0x420] sm:$0xff]
    %v6166 = vld [vmem:[%s3 + $0x428] sm:$0xff]
    %v6167 = vld [vmem:[%s3 + $0x430] sm:$0xff]
    %v6168 = vld [vmem:[%s3 + $0x438] sm:$0xff]
    %v6169 = vld [vmem:[%s3 + $0x440] sm:$0xff]
    %v6170 = vld [vmem:[%s3 + $0x448] sm:$0xff]
    %v6171 = vld [vmem:[%s3 + $0x450] sm:$0xff]
    %v6172 = vld [vmem:[%s3 + $0x458] sm:$0xff]
    %v6173 = vld [vmem:[%s3 + $0x460] sm:$0xff]
    %v6174 = vld [vmem:[%s3 + $0x468] sm:$0xff]
    %v6175 = vld [vmem:[%s3 + $0x470] sm:$0xff]
    %v6176 = vld [vmem:[%s3 + $0x478] sm:$0xff]
    %v6177 = vld [vmem:[%s3 + $0x480] sm:$0xff]
    %v6178 = vld [vmem:[%s3 + $0x488] sm:$0xff]
    %v6179 = vld [vmem:[%s3 + $0x490] sm:$0xff]
    %v6180 = vld [vmem:[%s3 + $0x498] sm:$0xff]
    %v6181 = vld [vmem:[%s3 + $0x4a0] sm:$0xff]
    %v6182 = vld [vmem:[%s3 + $0x4a8] sm:$0xff]
    %v6183 = vld [vmem:[%s3 + $0x4b0] sm:$0xff]
    %v6184 = vld [vmem:[%s3 + $0x4b8] sm:$0xff]
    %v6185 = vld [vmem:[%s3 + $0x4c0] sm:$0xff]
    %v6186 = vld [vmem:[%s3 + $0x4c8] sm:$0xff]
    %v6187 = vld [vmem:[%s3 + $0x4d0] sm:$0xff]
    %v6188 = vld [vmem:[%s3 + $0x4d8] sm:$0xff]
    %v6189 = vld [vmem:[%s3 + $0x4e0] sm:$0xff]
    %v6190 = vld [vmem:[%s3 + $0x4e8] sm:$0xff]
    %v6191 = vld [vmem:[%s3 + $0x4f0] sm:$0xff]
    %v6192 = vld [vmem:[%s3 + $0x4f8] sm:$0xff]
    %v6193 = vld [vmem:[%s3 + $0x500] sm:$0xff]
    %v6194 = vld [vmem:[%s3 + $0x508] sm:$0xff]
    %v6195 = vld [vmem:[%s3 + $0x510] sm:$0xff]
    %v6196 = vld [vmem:[%s3 + $0x518] sm:$0xff]
    %v6197 = vld [vmem:[%s3 + $0x520] sm:$0xff]
    %v6198 = vld [vmem:[%s3 + $0x528] sm:$0xff]
    %v6199 = vld [vmem:[%s3 + $0x530] sm:$0xff]
    %v6200 = vld [vmem:[%s3 + $0x538] sm:$0xff]
    %v6201 = vld [vmem:[%s3 + $0x540] sm:$0xff]
    %v6202 = vld [vmem:[%s3 + $0x548] sm:$0xff]
    %v6203 = vld [vmem:[%s3 + $0x550] sm:$0xff]
    %v6204 = vld [vmem:[%s3 + $0x558] sm:$0xff]
    %v6205 = vld [vmem:[%s3 + $0x560] sm:$0xff]
    %v6206 = vld [vmem:[%s3 + $0x568] sm:$0xff]
    %v6207 = vld [vmem:[%s3 + $0x570] sm:$0xff]
    %v6208 = vld [vmem:[%s3 + $0x578] sm:$0xff]
    %v6209 = vld [vmem:[%s3 + $0x580] sm:$0xff]
    %v6210 = vld [vmem:[%s3 + $0x588] sm:$0xff]
    %v6211 = vld [vmem:[%s3 + $0x590] sm:$0xff]
    %v6212 = vld [vmem:[%s3 + $0x598] sm:$0xff]
    %v6213 = vld [vmem:[%s3 + $0x5a0] sm:$0xff]
    %v6214 = vld [vmem:[%s3 + $0x5a8] sm:$0xff]
    %v6215 = vld [vmem:[%s3 + $0x5b0] sm:$0xff]
    %v6216 = vld [vmem:[%s3 + $0x5b8] sm:$0xff]
    %v6217 = vld [vmem:[%s3 + $0x5c0] sm:$0xff]
    %v6218 = vld [vmem:[%s3 + $0x5c8] sm:$0xff]
    %v6219 = vld [vmem:[%s3 + $0x5d0] sm:$0xff]
    %v6220 = vld [vmem:[%s3 + $0x5d8] sm:$0xff]
    %v6221 = vld [vmem:[%s3 + $0x5e0] sm:$0xff]
    %v6222 = vld [vmem:[%s3 + $0x5e8] sm:$0xff]
    %v6223 = vld [vmem:[%s3 + $0x5f0] sm:$0xff]
    %v6224 = vld [vmem:[%s3 + $0x5f8] sm:$0xff]
    %v6225 = vld [vmem:[%s3 + $0x600] sm:$0xff]
    %v6226 = vld [vmem:[%s3 + $0x608] sm:$0xff]
    %v6227 = vld [vmem:[%s3 + $0x610] sm:$0xff]
    %v6228 = vld [vmem:[%s3 + $0x618] sm:$0xff]
    %v6229 = vld [vmem:[%s3 + $0x620] sm:$0xff]
    %v6230 = vld [vmem:[%s3 + $0x628] sm:$0xff]
    %v6231 = vld [vmem:[%s3 + $0x630] sm:$0xff]
    %v6232 = vld [vmem:[%s3 + $0x638] sm:$0xff]
    %v6233 = vld [vmem:[%s3 + $0x640] sm:$0xff]
    %v6234 = vld [vmem:[%s3 + $0x648] sm:$0xff]
    %v6235 = vld [vmem:[%s3 + $0x650] sm:$0xff]
    %v6236 = vld [vmem:[%s3 + $0x658] sm:$0xff]
    %v6237 = vld [vmem:[%s3 + $0x660] sm:$0xff]
    %v6238 = vld [vmem:[%s3 + $0x668] sm:$0xff]
    %v6239 = vld [vmem:[%s3 + $0x670] sm:$0xff]
    %v6240 = vld [vmem:[%s3 + $0x678] sm:$0xff]
    %v6241 = vld [vmem:[%s3 + $0x680] sm:$0xff]
    %v6242 = vld [vmem:[%s3 + $0x688] sm:$0xff]
    %v6243 = vld [vmem:[%s3 + $0x690] sm:$0xff]
    %v6244 = vld [vmem:[%s3 + $0x698] sm:$0xff]
    %v6245 = vld [vmem:[%s3 + $0x6a0] sm:$0xff]
    %v6246 = vld [vmem:[%s3 + $0x6a8] sm:$0xff]
    %v6247 = vld [vmem:[%s3 + $0x6b0] sm:$0xff]
    %v6248 = vld [vmem:[%s3 + $0x6b8] sm:$0xff]
    %v6249 = vld [vmem:[%s3 + $0x6c0] sm:$0xff]
    %v6250 = vld [vmem:[%s3 + $0x6c8] sm:$0xff]
    %v6251 = vld [vmem:[%s3 + $0x6d0] sm:$0xff]
    %v6252 = vld [vmem:[%s3 + $0x6d8] sm:$0xff]
    %v6253 = vld [vmem:[%s3 + $0x6e0] sm:$0xff]
    %v6254 = vld [vmem:[%s3 + $0x6e8] sm:$0xff]
    %v6255 = vld [vmem:[%s3 + $0x6f0] sm:$0xff]
    %v6256 = vld [vmem:[%s3 + $0x6f8] sm:$0xff]
    %v6257 = vld [vmem:[%s3 + $0x700] sm:$0xff]
    %v6258 = vld [vmem:[%s3 + $0x708] sm:$0xff]
    %v6259 = vld [vmem:[%s3 + $0x710] sm:$0xff]
    %v6260 = vld [vmem:[%s3 + $0x718] sm:$0xff]
    %v6261 = vld [vmem:[%s3 + $0x720] sm:$0xff]
    %v6262 = vld [vmem:[%s3 + $0x728] sm:$0xff]
    %v6263 = vld [vmem:[%s3 + $0x730] sm:$0xff]
    %v6264 = vld [vmem:[%s3 + $0x738] sm:$0xff]
    %v6265 = vld [vmem:[%s3 + $0x740] sm:$0xff]
    %v6266 = vld [vmem:[%s3 + $0x748] sm:$0xff]
    %v6267 = vld [vmem:[%s3 + $0x750] sm:$0xff]
    %v6268 = vld [vmem:[%s3 + $0x758] sm:$0xff]
    %v6269 = vld [vmem:[%s3 + $0x760] sm:$0xff]
    %v6270 = vld [vmem:[%s3 + $0x768] sm:$0xff]
    %v6271 = vld [vmem:[%s3 + $0x770] sm:$0xff]
    %v6272 = vld [vmem:[%s3 + $0x778] sm:$0xff]
    %v6273 = vld [vmem:[%s3 + $0x780] sm:$0xff]
    %v6274 = vld [vmem:[%s3 + $0x788] sm:$0xff]
    %v6275 = vld [vmem:[%s3 + $0x790] sm:$0xff]
    %v6276 = vld [vmem:[%s3 + $0x798] sm:$0xff]
    %v6277 = vld [vmem:[%s3 + $0x7a0] sm:$0xff]
    %v6278 = vld [vmem:[%s3 + $0x7a8] sm:$0xff]
    %v6279 = vld [vmem:[%s3 + $0x7b0] sm:$0xff]
    %v6280 = vld [vmem:[%s3 + $0x7b8] sm:$0xff]
    %v6281 = vld [vmem:[%s3 + $0x7c0] sm:$0xff]
    %v6282 = vld [vmem:[%s3 + $0x7c8] sm:$0xff]
    %v6283 = vld [vmem:[%s3 + $0x7d0] sm:$0xff]
    %v6284 = vld [vmem:[%s3 + $0x7d8] sm:$0xff]
    %v6285 = vld [vmem:[%s3 + $0x7e0] sm:$0xff]
    %v6286 = vld [vmem:[%s3 + $0x7e8] sm:$0xff]
    %v6287 = vld [vmem:[%s3 + $0x7f0] sm:$0xff]
    %v6288 = vld [vmem:[%s3 + $0x7f8] sm:$0xff]
    %v6289 = vld [vmem:[%s4] sm:$0xff]
    %v6291 = vlaneseq
    %v6292 = vshrl.u32 %v6291, 7
    %v6293 = vsub.s32 0, %v6292
    %v6294 = vrot.slane %v6289, %v6293
    %v6295 = vlaneseq
    %v6296 = vshrl.u32 %v6295, 7
    %v6297 = vsub.s32 1, %v6296
    %v6298 = vrot.slane %v6289, %v6297
    %v6299 = vlaneseq
    %v6300 = vshrl.u32 %v6299, 7
    %v6301 = vsub.s32 2, %v6300
    %v6302 = vrot.slane %v6289, %v6301
    %v6303 = vlaneseq
    %v6304 = vshrl.u32 %v6303, 7
    %v6305 = vsub.s32 3, %v6304
    %v6306 = vrot.slane %v6289, %v6305
    %v6307 = vlaneseq
    %v6308 = vshrl.u32 %v6307, 7
    %v6309 = vsub.s32 4, %v6308
    %v6310 = vrot.slane %v6289, %v6309
    %v6311 = vlaneseq
    %v6312 = vshrl.u32 %v6311, 7
    %v6313 = vsub.s32 5, %v6312
    %v6314 = vrot.slane %v6289, %v6313
    %v6315 = vlaneseq
    %v6316 = vshrl.u32 %v6315, 7
    %v6317 = vsub.s32 6, %v6316
    %v6318 = vrot.slane %v6289, %v6317
    %v6319 = vlaneseq
    %v6320 = vshrl.u32 %v6319, 7
    %v6321 = vsub.s32 7, %v6320
    %v6322 = vrot.slane %v6289, %v6321
    %v6587 = vunpack.c.l.b16 %v6033
    %v6588 = vunpack.c.h.b16 %v6033
    %v6589 = vunpack.c.l.b16 %v6034
    %v6590 = vunpack.c.h.b16 %v6034
    %v6591 = vunpack.c.l.b16 %v6035
    %v6592 = vunpack.c.h.b16 %v6035
    %v6593 = vunpack.c.l.b16 %v6036
    %v6594 = vunpack.c.h.b16 %v6036
    %v6595 = vunpack.c.l.b16 %v6037
    %v6596 = vunpack.c.h.b16 %v6037
    %v6597 = vunpack.c.l.b16 %v6038
    %v6598 = vunpack.c.h.b16 %v6038
    %v6599 = vunpack.c.l.b16 %v6039
    %v6600 = vunpack.c.h.b16 %v6039
    %v6601 = vunpack.c.l.b16 %v6040
    %v6602 = vunpack.c.h.b16 %v6040
    %v6603 = vunpack.c.l.b16 %v6041
    %v6604 = vunpack.c.h.b16 %v6041
    %v6605 = vunpack.c.l.b16 %v6042
    %v6606 = vunpack.c.h.b16 %v6042
    %v6607 = vunpack.c.l.b16 %v6043
    %v6608 = vunpack.c.h.b16 %v6043
    %v6609 = vunpack.c.l.b16 %v6044
    %v6610 = vunpack.c.h.b16 %v6044
    %v6611 = vunpack.c.l.b16 %v6045
    %v6612 = vunpack.c.h.b16 %v6045
    %v6613 = vunpack.c.l.b16 %v6046
    %v6614 = vunpack.c.h.b16 %v6046
    %v6615 = vunpack.c.l.b16 %v6047
    %v6616 = vunpack.c.h.b16 %v6047
    %v6617 = vunpack.c.l.b16 %v6048
    %v6618 = vunpack.c.h.b16 %v6048
    %v6619 = vunpack.c.l.b16 %v6049
    %v6620 = vunpack.c.h.b16 %v6049
    %v6621 = vunpack.c.l.b16 %v6050
    %v6622 = vunpack.c.h.b16 %v6050
    %v6623 = vunpack.c.l.b16 %v6051
    %v6624 = vunpack.c.h.b16 %v6051
    %v6625 = vunpack.c.l.b16 %v6052
    %v6626 = vunpack.c.h.b16 %v6052
    %v6627 = vunpack.c.l.b16 %v6053
    %v6628 = vunpack.c.h.b16 %v6053
    %v6629 = vunpack.c.l.b16 %v6054
    %v6630 = vunpack.c.h.b16 %v6054
    %v6631 = vunpack.c.l.b16 %v6055
    %v6632 = vunpack.c.h.b16 %v6055
    %v6633 = vunpack.c.l.b16 %v6056
    %v6634 = vunpack.c.h.b16 %v6056
    %v6635 = vunpack.c.l.b16 %v6057
    %v6636 = vunpack.c.h.b16 %v6057
    %v6637 = vunpack.c.l.b16 %v6058
    %v6638 = vunpack.c.h.b16 %v6058
    %v6639 = vunpack.c.l.b16 %v6059
    %v6640 = vunpack.c.h.b16 %v6059
    %v6641 = vunpack.c.l.b16 %v6060
    %v6642 = vunpack.c.h.b16 %v6060
    %v6643 = vunpack.c.l.b16 %v6061
    %v6644 = vunpack.c.h.b16 %v6061
    %v6645 = vunpack.c.l.b16 %v6062
    %v6646 = vunpack.c.h.b16 %v6062
    %v6647 = vunpack.c.l.b16 %v6063
    %v6648 = vunpack.c.h.b16 %v6063
    %v6649 = vunpack.c.l.b16 %v6064
    %v6650 = vunpack.c.h.b16 %v6064
    %v6651 = vunpack.c.l.b16 %v6065
    %v6652 = vunpack.c.h.b16 %v6065
    %v6653 = vunpack.c.l.b16 %v6066
    %v6654 = vunpack.c.h.b16 %v6066
    %v6655 = vunpack.c.l.b16 %v6067
    %v6656 = vunpack.c.h.b16 %v6067
    %v6657 = vunpack.c.l.b16 %v6068
    %v6658 = vunpack.c.h.b16 %v6068
    %v6659 = vunpack.c.l.b16 %v6069
    %v6660 = vunpack.c.h.b16 %v6069
    %v6661 = vunpack.c.l.b16 %v6070
    %v6662 = vunpack.c.h.b16 %v6070
    %v6663 = vunpack.c.l.b16 %v6071
    %v6664 = vunpack.c.h.b16 %v6071
    %v6665 = vunpack.c.l.b16 %v6072
    %v6666 = vunpack.c.h.b16 %v6072
    %v6667 = vunpack.c.l.b16 %v6073
    %v6668 = vunpack.c.h.b16 %v6073
    %v6669 = vunpack.c.l.b16 %v6074
    %v6670 = vunpack.c.h.b16 %v6074
    %v6671 = vunpack.c.l.b16 %v6075
    %v6672 = vunpack.c.h.b16 %v6075
    %v6673 = vunpack.c.l.b16 %v6076
    %v6674 = vunpack.c.h.b16 %v6076
    %v6675 = vunpack.c.l.b16 %v6077
    %v6676 = vunpack.c.h.b16 %v6077
    %v6677 = vunpack.c.l.b16 %v6078
    %v6678 = vunpack.c.h.b16 %v6078
    %v6679 = vunpack.c.l.b16 %v6079
    %v6680 = vunpack.c.h.b16 %v6079
    %v6681 = vunpack.c.l.b16 %v6080
    %v6682 = vunpack.c.h.b16 %v6080
    %v6683 = vunpack.c.l.b16 %v6081
    %v6684 = vunpack.c.h.b16 %v6081
    %v6685 = vunpack.c.l.b16 %v6082
    %v6686 = vunpack.c.h.b16 %v6082
    %v6687 = vunpack.c.l.b16 %v6083
    %v6688 = vunpack.c.h.b16 %v6083
    %v6689 = vunpack.c.l.b16 %v6084
    %v6690 = vunpack.c.h.b16 %v6084
    %v6691 = vunpack.c.l.b16 %v6085
    %v6692 = vunpack.c.h.b16 %v6085
    %v6693 = vunpack.c.l.b16 %v6086
    %v6694 = vunpack.c.h.b16 %v6086
    %v6695 = vunpack.c.l.b16 %v6087
    %v6696 = vunpack.c.h.b16 %v6087
    %v6697 = vunpack.c.l.b16 %v6088
    %v6698 = vunpack.c.h.b16 %v6088
    %v6699 = vunpack.c.l.b16 %v6089
    %v6700 = vunpack.c.h.b16 %v6089
    %v6701 = vunpack.c.l.b16 %v6090
    %v6702 = vunpack.c.h.b16 %v6090
    %v6703 = vunpack.c.l.b16 %v6091
    %v6704 = vunpack.c.h.b16 %v6091
    %v6705 = vunpack.c.l.b16 %v6092
    %v6706 = vunpack.c.h.b16 %v6092
    %v6707 = vunpack.c.l.b16 %v6093
    %v6708 = vunpack.c.h.b16 %v6093
    %v6709 = vunpack.c.l.b16 %v6094
    %v6710 = vunpack.c.h.b16 %v6094
    %v6711 = vunpack.c.l.b16 %v6095
    %v6712 = vunpack.c.h.b16 %v6095
    %v6713 = vunpack.c.l.b16 %v6096
    %v6714 = vunpack.c.h.b16 %v6096
    %v6715 = vunpack.c.l.b16 %v6097
    %v6716 = vunpack.c.h.b16 %v6097
    %v6717 = vunpack.c.l.b16 %v6098
    %v6718 = vunpack.c.h.b16 %v6098
    %v6719 = vunpack.c.l.b16 %v6099
    %v6720 = vunpack.c.h.b16 %v6099
    %v6721 = vunpack.c.l.b16 %v6100
    %v6722 = vunpack.c.h.b16 %v6100
    %v6723 = vunpack.c.l.b16 %v6101
    %v6724 = vunpack.c.h.b16 %v6101
    %v6725 = vunpack.c.l.b16 %v6102
    %v6726 = vunpack.c.h.b16 %v6102
    %v6727 = vunpack.c.l.b16 %v6103
    %v6728 = vunpack.c.h.b16 %v6103
    %v6729 = vunpack.c.l.b16 %v6104
    %v6730 = vunpack.c.h.b16 %v6104
    %v6731 = vunpack.c.l.b16 %v6105
    %v6732 = vunpack.c.h.b16 %v6105
    %v6733 = vunpack.c.l.b16 %v6106
    %v6734 = vunpack.c.h.b16 %v6106
    %v6735 = vunpack.c.l.b16 %v6107
    %v6736 = vunpack.c.h.b16 %v6107
    %v6737 = vunpack.c.l.b16 %v6108
    %v6738 = vunpack.c.h.b16 %v6108
    %v6739 = vunpack.c.l.b16 %v6109
    %v6740 = vunpack.c.h.b16 %v6109
    %v6741 = vunpack.c.l.b16 %v6110
    %v6742 = vunpack.c.h.b16 %v6110
    %v6743 = vunpack.c.l.b16 %v6111
    %v6744 = vunpack.c.h.b16 %v6111
    %v6745 = vunpack.c.l.b16 %v6112
    %v6746 = vunpack.c.h.b16 %v6112
    %v6747 = vunpack.c.l.b16 %v6113
    %v6748 = vunpack.c.h.b16 %v6113
    %v6749 = vunpack.c.l.b16 %v6114
    %v6750 = vunpack.c.h.b16 %v6114
    %v6751 = vunpack.c.l.b16 %v6115
    %v6752 = vunpack.c.h.b16 %v6115
    %v6753 = vunpack.c.l.b16 %v6116
    %v6754 = vunpack.c.h.b16 %v6116
    %v6755 = vunpack.c.l.b16 %v6117
    %v6756 = vunpack.c.h.b16 %v6117
    %v6757 = vunpack.c.l.b16 %v6118
    %v6758 = vunpack.c.h.b16 %v6118
    %v6759 = vunpack.c.l.b16 %v6119
    %v6760 = vunpack.c.h.b16 %v6119
    %v6761 = vunpack.c.l.b16 %v6120
    %v6762 = vunpack.c.h.b16 %v6120
    %v6763 = vunpack.c.l.b16 %v6121
    %v6764 = vunpack.c.h.b16 %v6121
    %v6765 = vunpack.c.l.b16 %v6122
    %v6766 = vunpack.c.h.b16 %v6122
    %v6767 = vunpack.c.l.b16 %v6123
    %v6768 = vunpack.c.h.b16 %v6123
    %v6769 = vunpack.c.l.b16 %v6124
    %v6770 = vunpack.c.h.b16 %v6124
    %v6771 = vunpack.c.l.b16 %v6125
    %v6772 = vunpack.c.h.b16 %v6125
    %v6773 = vunpack.c.l.b16 %v6126
    %v6774 = vunpack.c.h.b16 %v6126
    %v6775 = vunpack.c.l.b16 %v6127
    %v6776 = vunpack.c.h.b16 %v6127
    %v6777 = vunpack.c.l.b16 %v6128
    %v6778 = vunpack.c.h.b16 %v6128
    %v6779 = vunpack.c.l.b16 %v6129
    %v6780 = vunpack.c.h.b16 %v6129
    %v6781 = vunpack.c.l.b16 %v6130
    %v6782 = vunpack.c.h.b16 %v6130
    %v6783 = vunpack.c.l.b16 %v6131
    %v6784 = vunpack.c.h.b16 %v6131
    %v6785 = vunpack.c.l.b16 %v6132
    %v6786 = vunpack.c.h.b16 %v6132
    %v6787 = vunpack.c.l.b16 %v6133
    %v6788 = vunpack.c.h.b16 %v6133
    %v6789 = vunpack.c.l.b16 %v6134
    %v6790 = vunpack.c.h.b16 %v6134
    %v6791 = vunpack.c.l.b16 %v6135
    %v6792 = vunpack.c.h.b16 %v6135
    %v6793 = vunpack.c.l.b16 %v6136
    %v6794 = vunpack.c.h.b16 %v6136
    %v6795 = vunpack.c.l.b16 %v6137
    %v6796 = vunpack.c.h.b16 %v6137
    %v6797 = vunpack.c.l.b16 %v6138
    %v6798 = vunpack.c.h.b16 %v6138
    %v6799 = vunpack.c.l.b16 %v6139
    %v6800 = vunpack.c.h.b16 %v6139
    %v6801 = vunpack.c.l.b16 %v6140
    %v6802 = vunpack.c.h.b16 %v6140
    %v6803 = vunpack.c.l.b16 %v6141
    %v6804 = vunpack.c.h.b16 %v6141
    %v6805 = vunpack.c.l.b16 %v6142
    %v6806 = vunpack.c.h.b16 %v6142
    %v6807 = vunpack.c.l.b16 %v6143
    %v6808 = vunpack.c.h.b16 %v6143
    %v6809 = vunpack.c.l.b16 %v6144
    %v6810 = vunpack.c.h.b16 %v6144
    %v6811 = vunpack.c.l.b16 %v6145
    %v6812 = vunpack.c.h.b16 %v6145
    %v6813 = vunpack.c.l.b16 %v6146
    %v6814 = vunpack.c.h.b16 %v6146
    %v6815 = vunpack.c.l.b16 %v6147
    %v6816 = vunpack.c.h.b16 %v6147
    %v6817 = vunpack.c.l.b16 %v6148
    %v6818 = vunpack.c.h.b16 %v6148
    %v6819 = vunpack.c.l.b16 %v6149
    %v6820 = vunpack.c.h.b16 %v6149
    %v6821 = vunpack.c.l.b16 %v6150
    %v6822 = vunpack.c.h.b16 %v6150
    %v6823 = vunpack.c.l.b16 %v6151
    %v6824 = vunpack.c.h.b16 %v6151
    %v6825 = vunpack.c.l.b16 %v6152
    %v6826 = vunpack.c.h.b16 %v6152
    %v6827 = vunpack.c.l.b16 %v6153
    %v6828 = vunpack.c.h.b16 %v6153
    %v6829 = vunpack.c.l.b16 %v6154
    %v6830 = vunpack.c.h.b16 %v6154
    %v6831 = vunpack.c.l.b16 %v6155
    %v6832 = vunpack.c.h.b16 %v6155
    %v6833 = vunpack.c.l.b16 %v6156
    %v6834 = vunpack.c.h.b16 %v6156
    %v6835 = vunpack.c.l.b16 %v6157
    %v6836 = vunpack.c.h.b16 %v6157
    %v6837 = vunpack.c.l.b16 %v6158
    %v6838 = vunpack.c.h.b16 %v6158
    %v6839 = vunpack.c.l.b16 %v6159
    %v6840 = vunpack.c.h.b16 %v6159
    %v6841 = vunpack.c.l.b16 %v6160
    %v6842 = vunpack.c.h.b16 %v6160
    %v6843 = vunpack.c.l.b16 %v6161
    %v6844 = vunpack.c.h.b16 %v6161
    %v6845 = vunpack.c.l.b16 %v6162
    %v6846 = vunpack.c.h.b16 %v6162
    %v6847 = vunpack.c.l.b16 %v6163
    %v6848 = vunpack.c.h.b16 %v6163
    %v6849 = vunpack.c.l.b16 %v6164
    %v6850 = vunpack.c.h.b16 %v6164
    %v6851 = vunpack.c.l.b16 %v6165
    %v6852 = vunpack.c.h.b16 %v6165
    %v6853 = vunpack.c.l.b16 %v6166
    %v6854 = vunpack.c.h.b16 %v6166
    %v6855 = vunpack.c.l.b16 %v6167
    %v6856 = vunpack.c.h.b16 %v6167
    %v6857 = vunpack.c.l.b16 %v6168
    %v6858 = vunpack.c.h.b16 %v6168
    %v6859 = vunpack.c.l.b16 %v6169
    %v6860 = vunpack.c.h.b16 %v6169
    %v6861 = vunpack.c.l.b16 %v6170
    %v6862 = vunpack.c.h.b16 %v6170
    %v6863 = vunpack.c.l.b16 %v6171
    %v6864 = vunpack.c.h.b16 %v6171
    %v6865 = vunpack.c.l.b16 %v6172
    %v6866 = vunpack.c.h.b16 %v6172
    %v6867 = vunpack.c.l.b16 %v6173
    %v6868 = vunpack.c.h.b16 %v6173
    %v6869 = vunpack.c.l.b16 %v6174
    %v6870 = vunpack.c.h.b16 %v6174
    %v6871 = vunpack.c.l.b16 %v6175
    %v6872 = vunpack.c.h.b16 %v6175
    %v6873 = vunpack.c.l.b16 %v6176
    %v6874 = vunpack.c.h.b16 %v6176
    %v6875 = vunpack.c.l.b16 %v6177
    %v6876 = vunpack.c.h.b16 %v6177
    %v6877 = vunpack.c.l.b16 %v6178
    %v6878 = vunpack.c.h.b16 %v6178
    %v6879 = vunpack.c.l.b16 %v6179
    %v6880 = vunpack.c.h.b16 %v6179
    %v6881 = vunpack.c.l.b16 %v6180
    %v6882 = vunpack.c.h.b16 %v6180
    %v6883 = vunpack.c.l.b16 %v6181
    %v6884 = vunpack.c.h.b16 %v6181
    %v6885 = vunpack.c.l.b16 %v6182
    %v6886 = vunpack.c.h.b16 %v6182
    %v6887 = vunpack.c.l.b16 %v6183
    %v6888 = vunpack.c.h.b16 %v6183
    %v6889 = vunpack.c.l.b16 %v6184
    %v6890 = vunpack.c.h.b16 %v6184
    %v6891 = vunpack.c.l.b16 %v6185
    %v6892 = vunpack.c.h.b16 %v6185
    %v6893 = vunpack.c.l.b16 %v6186
    %v6894 = vunpack.c.h.b16 %v6186
    %v6895 = vunpack.c.l.b16 %v6187
    %v6896 = vunpack.c.h.b16 %v6187
    %v6897 = vunpack.c.l.b16 %v6188
    %v6898 = vunpack.c.h.b16 %v6188
    %v6899 = vunpack.c.l.b16 %v6189
    %v6900 = vunpack.c.h.b16 %v6189
    %v6901 = vunpack.c.l.b16 %v6190
    %v6902 = vunpack.c.h.b16 %v6190
    %v6903 = vunpack.c.l.b16 %v6191
    %v6904 = vunpack.c.h.b16 %v6191
    %v6905 = vunpack.c.l.b16 %v6192
    %v6906 = vunpack.c.h.b16 %v6192
    %v6907 = vunpack.c.l.b16 %v6193
    %v6908 = vunpack.c.h.b16 %v6193
    %v6909 = vunpack.c.l.b16 %v6194
    %v6910 = vunpack.c.h.b16 %v6194
    %v6911 = vunpack.c.l.b16 %v6195
    %v6912 = vunpack.c.h.b16 %v6195
    %v6913 = vunpack.c.l.b16 %v6196
    %v6914 = vunpack.c.h.b16 %v6196
    %v6915 = vunpack.c.l.b16 %v6197
    %v6916 = vunpack.c.h.b16 %v6197
    %v6917 = vunpack.c.l.b16 %v6198
    %v6918 = vunpack.c.h.b16 %v6198
    %v6919 = vunpack.c.l.b16 %v6199
    %v6920 = vunpack.c.h.b16 %v6199
    %v6921 = vunpack.c.l.b16 %v6200
    %v6922 = vunpack.c.h.b16 %v6200
    %v6923 = vunpack.c.l.b16 %v6201
    %v6924 = vunpack.c.h.b16 %v6201
    %v6925 = vunpack.c.l.b16 %v6202
    %v6926 = vunpack.c.h.b16 %v6202
    %v6927 = vunpack.c.l.b16 %v6203
    %v6928 = vunpack.c.h.b16 %v6203
    %v6929 = vunpack.c.l.b16 %v6204
    %v6930 = vunpack.c.h.b16 %v6204
    %v6931 = vunpack.c.l.b16 %v6205
    %v6932 = vunpack.c.h.b16 %v6205
    %v6933 = vunpack.c.l.b16 %v6206
    %v6934 = vunpack.c.h.b16 %v6206
    %v6935 = vunpack.c.l.b16 %v6207
    %v6936 = vunpack.c.h.b16 %v6207
    %v6937 = vunpack.c.l.b16 %v6208
    %v6938 = vunpack.c.h.b16 %v6208
    %v6939 = vunpack.c.l.b16 %v6209
    %v6940 = vunpack.c.h.b16 %v6209
    %v6941 = vunpack.c.l.b16 %v6210
    %v6942 = vunpack.c.h.b16 %v6210
    %v6943 = vunpack.c.l.b16 %v6211
    %v6944 = vunpack.c.h.b16 %v6211
    %v6945 = vunpack.c.l.b16 %v6212
    %v6946 = vunpack.c.h.b16 %v6212
    %v6947 = vunpack.c.l.b16 %v6213
    %v6948 = vunpack.c.h.b16 %v6213
    %v6949 = vunpack.c.l.b16 %v6214
    %v6950 = vunpack.c.h.b16 %v6214
    %v6951 = vunpack.c.l.b16 %v6215
    %v6952 = vunpack.c.h.b16 %v6215
    %v6953 = vunpack.c.l.b16 %v6216
    %v6954 = vunpack.c.h.b16 %v6216
    %v6955 = vunpack.c.l.b16 %v6217
    %v6956 = vunpack.c.h.b16 %v6217
    %v6957 = vunpack.c.l.b16 %v6218
    %v6958 = vunpack.c.h.b16 %v6218
    %v6959 = vunpack.c.l.b16 %v6219
    %v6960 = vunpack.c.h.b16 %v6219
    %v6961 = vunpack.c.l.b16 %v6220
    %v6962 = vunpack.c.h.b16 %v6220
    %v6963 = vunpack.c.l.b16 %v6221
    %v6964 = vunpack.c.h.b16 %v6221
    %v6965 = vunpack.c.l.b16 %v6222
    %v6966 = vunpack.c.h.b16 %v6222
    %v6967 = vunpack.c.l.b16 %v6223
    %v6968 = vunpack.c.h.b16 %v6223
    %v6969 = vunpack.c.l.b16 %v6224
    %v6970 = vunpack.c.h.b16 %v6224
    %v6971 = vunpack.c.l.b16 %v6225
    %v6972 = vunpack.c.h.b16 %v6225
    %v6973 = vunpack.c.l.b16 %v6226
    %v6974 = vunpack.c.h.b16 %v6226
    %v6975 = vunpack.c.l.b16 %v6227
    %v6976 = vunpack.c.h.b16 %v6227
    %v6977 = vunpack.c.l.b16 %v6228
    %v6978 = vunpack.c.h.b16 %v6228
    %v6979 = vunpack.c.l.b16 %v6229
    %v6980 = vunpack.c.h.b16 %v6229
    %v6981 = vunpack.c.l.b16 %v6230
    %v6982 = vunpack.c.h.b16 %v6230
    %v6983 = vunpack.c.l.b16 %v6231
    %v6984 = vunpack.c.h.b16 %v6231
    %v6985 = vunpack.c.l.b16 %v6232
    %v6986 = vunpack.c.h.b16 %v6232
    %v6987 = vunpack.c.l.b16 %v6233
    %v6988 = vunpack.c.h.b16 %v6233
    %v6989 = vunpack.c.l.b16 %v6234
    %v6990 = vunpack.c.h.b16 %v6234
    %v6991 = vunpack.c.l.b16 %v6235
    %v6992 = vunpack.c.h.b16 %v6235
    %v6993 = vunpack.c.l.b16 %v6236
    %v6994 = vunpack.c.h.b16 %v6236
    %v6995 = vunpack.c.l.b16 %v6237
    %v6996 = vunpack.c.h.b16 %v6237
    %v6997 = vunpack.c.l.b16 %v6238
    %v6998 = vunpack.c.h.b16 %v6238
    %v6999 = vunpack.c.l.b16 %v6239
    %v7000 = vunpack.c.h.b16 %v6239
    %v7001 = vunpack.c.l.b16 %v6240
    %v7002 = vunpack.c.h.b16 %v6240
    %v7003 = vunpack.c.l.b16 %v6241
    %v7004 = vunpack.c.h.b16 %v6241
    %v7005 = vunpack.c.l.b16 %v6242
    %v7006 = vunpack.c.h.b16 %v6242
    %v7007 = vunpack.c.l.b16 %v6243
    %v7008 = vunpack.c.h.b16 %v6243
    %v7009 = vunpack.c.l.b16 %v6244
    %v7010 = vunpack.c.h.b16 %v6244
    %v7011 = vunpack.c.l.b16 %v6245
    %v7012 = vunpack.c.h.b16 %v6245
    %v7013 = vunpack.c.l.b16 %v6246
    %v7014 = vunpack.c.h.b16 %v6246
    %v7015 = vunpack.c.l.b16 %v6247
    %v7016 = vunpack.c.h.b16 %v6247
    %v7017 = vunpack.c.l.b16 %v6248
    %v7018 = vunpack.c.h.b16 %v6248
    %v7019 = vunpack.c.l.b16 %v6249
    %v7020 = vunpack.c.h.b16 %v6249
    %v7021 = vunpack.c.l.b16 %v6250
    %v7022 = vunpack.c.h.b16 %v6250
    %v7023 = vunpack.c.l.b16 %v6251
    %v7024 = vunpack.c.h.b16 %v6251
    %v7025 = vunpack.c.l.b16 %v6252
    %v7026 = vunpack.c.h.b16 %v6252
    %v7027 = vunpack.c.l.b16 %v6253
    %v7028 = vunpack.c.h.b16 %v6253
    %v7029 = vunpack.c.l.b16 %v6254
    %v7030 = vunpack.c.h.b16 %v6254
    %v7031 = vunpack.c.l.b16 %v6255
    %v7032 = vunpack.c.h.b16 %v6255
    %v7033 = vunpack.c.l.b16 %v6256
    %v7034 = vunpack.c.h.b16 %v6256
    %v7035 = vunpack.c.l.b16 %v6257
    %v7036 = vunpack.c.h.b16 %v6257
    %v7037 = vunpack.c.l.b16 %v6258
    %v7038 = vunpack.c.h.b16 %v6258
    %v7039 = vunpack.c.l.b16 %v6259
    %v7040 = vunpack.c.h.b16 %v6259
    %v7041 = vunpack.c.l.b16 %v6260
    %v7042 = vunpack.c.h.b16 %v6260
    %v7043 = vunpack.c.l.b16 %v6261
    %v7044 = vunpack.c.h.b16 %v6261
    %v7045 = vunpack.c.l.b16 %v6262
    %v7046 = vunpack.c.h.b16 %v6262
    %v7047 = vunpack.c.l.b16 %v6263
    %v7048 = vunpack.c.h.b16 %v6263
    %v7049 = vunpack.c.l.b16 %v6264
    %v7050 = vunpack.c.h.b16 %v6264
    %v7051 = vunpack.c.l.b16 %v6265
    %v7052 = vunpack.c.h.b16 %v6265
    %v7053 = vunpack.c.l.b16 %v6266
    %v7054 = vunpack.c.h.b16 %v6266
    %v7055 = vunpack.c.l.b16 %v6267
    %v7056 = vunpack.c.h.b16 %v6267
    %v7057 = vunpack.c.l.b16 %v6268
    %v7058 = vunpack.c.h.b16 %v6268
    %v7059 = vunpack.c.l.b16 %v6269
    %v7060 = vunpack.c.h.b16 %v6269
    %v7061 = vunpack.c.l.b16 %v6270
    %v7062 = vunpack.c.h.b16 %v6270
    %v7063 = vunpack.c.l.b16 %v6271
    %v7064 = vunpack.c.h.b16 %v6271
    %v7065 = vunpack.c.l.b16 %v6272
    %v7066 = vunpack.c.h.b16 %v6272
    %v7067 = vunpack.c.l.b16 %v6273
    %v7068 = vunpack.c.h.b16 %v6273
    %v7069 = vunpack.c.l.b16 %v6274
    %v7070 = vunpack.c.h.b16 %v6274
    %v7071 = vunpack.c.l.b16 %v6275
    %v7072 = vunpack.c.h.b16 %v6275
    %v7073 = vunpack.c.l.b16 %v6276
    %v7074 = vunpack.c.h.b16 %v6276
    %v7075 = vunpack.c.l.b16 %v6277
    %v7076 = vunpack.c.h.b16 %v6277
    %v7077 = vunpack.c.l.b16 %v6278
    %v7078 = vunpack.c.h.b16 %v6278
    %v7079 = vunpack.c.l.b16 %v6279
    %v7080 = vunpack.c.h.b16 %v6279
    %v7081 = vunpack.c.l.b16 %v6280
    %v7082 = vunpack.c.h.b16 %v6280
    %v7083 = vunpack.c.l.b16 %v6281
    %v7084 = vunpack.c.h.b16 %v6281
    %v7085 = vunpack.c.l.b16 %v6282
    %v7086 = vunpack.c.h.b16 %v6282
    %v7087 = vunpack.c.l.b16 %v6283
    %v7088 = vunpack.c.h.b16 %v6283
    %v7089 = vunpack.c.l.b16 %v6284
    %v7090 = vunpack.c.h.b16 %v6284
    %v7091 = vunpack.c.l.b16 %v6285
    %v7092 = vunpack.c.h.b16 %v6285
    %v7093 = vunpack.c.l.b16 %v6286
    %v7094 = vunpack.c.h.b16 %v6286
    %v7095 = vunpack.c.l.b16 %v6287
    %v7096 = vunpack.c.h.b16 %v6287
    %v7097 = vunpack.c.l.b16 %v6288
    %v7098 = vunpack.c.h.b16 %v6288
    %v7099 = vpack.c.b16 %v6595, %v6587
    %v7100 = vpack.c.b16 %v6596, %v6588
    %v7101 = vpack.c.b16 %v6597, %v6589
    %v7102 = vpack.c.b16 %v6598, %v6590
    %v7103 = vpack.c.b16 %v6599, %v6591
    %v7104 = vpack.c.b16 %v6600, %v6592
    %v7105 = vpack.c.b16 %v6601, %v6593
    %v7106 = vpack.c.b16 %v6602, %v6594
    %v7107 = vpack.c.b16 %v6611, %v6603
    %v7108 = vpack.c.b16 %v6612, %v6604
    %v7109 = vpack.c.b16 %v6613, %v6605
    %v7110 = vpack.c.b16 %v6614, %v6606
    %v7111 = vpack.c.b16 %v6615, %v6607
    %v7112 = vpack.c.b16 %v6616, %v6608
    %v7113 = vpack.c.b16 %v6617, %v6609
    %v7114 = vpack.c.b16 %v6618, %v6610
    %v7115 = vpack.c.b16 %v6627, %v6619
    %v7116 = vpack.c.b16 %v6628, %v6620
    %v7117 = vpack.c.b16 %v6629, %v6621
    %v7118 = vpack.c.b16 %v6630, %v6622
    %v7119 = vpack.c.b16 %v6631, %v6623
    %v7120 = vpack.c.b16 %v6632, %v6624
    %v7121 = vpack.c.b16 %v6633, %v6625
    %v7122 = vpack.c.b16 %v6634, %v6626
    %v7123 = vpack.c.b16 %v6643, %v6635
    %v7124 = vpack.c.b16 %v6644, %v6636
    %v7125 = vpack.c.b16 %v6645, %v6637
    %v7126 = vpack.c.b16 %v6646, %v6638
    %v7127 = vpack.c.b16 %v6647, %v6639
    %v7128 = vpack.c.b16 %v6648, %v6640
    %v7129 = vpack.c.b16 %v6649, %v6641
    %v7130 = vpack.c.b16 %v6650, %v6642
    %v7131 = vpack.c.b16 %v6659, %v6651
    %v7132 = vpack.c.b16 %v6660, %v6652
    %v7133 = vpack.c.b16 %v6661, %v6653
    %v7134 = vpack.c.b16 %v6662, %v6654
    %v7135 = vpack.c.b16 %v6663, %v6655
    %v7136 = vpack.c.b16 %v6664, %v6656
    %v7137 = vpack.c.b16 %v6665, %v6657
    %v7138 = vpack.c.b16 %v6666, %v6658
    %v7139 = vpack.c.b16 %v6675, %v6667
    %v7140 = vpack.c.b16 %v6676, %v6668
    %v7141 = vpack.c.b16 %v6677, %v6669
    %v7142 = vpack.c.b16 %v6678, %v6670
    %v7143 = vpack.c.b16 %v6679, %v6671
    %v7144 = vpack.c.b16 %v6680, %v6672
    %v7145 = vpack.c.b16 %v6681, %v6673
    %v7146 = vpack.c.b16 %v6682, %v6674
    %v7147 = vpack.c.b16 %v6691, %v6683
    %v7148 = vpack.c.b16 %v6692, %v6684
    %v7149 = vpack.c.b16 %v6693, %v6685
    %v7150 = vpack.c.b16 %v6694, %v6686
    %v7151 = vpack.c.b16 %v6695, %v6687
    %v7152 = vpack.c.b16 %v6696, %v6688
    %v7153 = vpack.c.b16 %v6697, %v6689
    %v7154 = vpack.c.b16 %v6698, %v6690
    %v7155 = vpack.c.b16 %v6707, %v6699
    %v7156 = vpack.c.b16 %v6708, %v6700
    %v7157 = vpack.c.b16 %v6709, %v6701
    %v7158 = vpack.c.b16 %v6710, %v6702
    %v7159 = vpack.c.b16 %v6711, %v6703
    %v7160 = vpack.c.b16 %v6712, %v6704
    %v7161 = vpack.c.b16 %v6713, %v6705
    %v7162 = vpack.c.b16 %v6714, %v6706
    %v7163 = vpack.c.b16 %v6723, %v6715
    %v7164 = vpack.c.b16 %v6724, %v6716
    %v7165 = vpack.c.b16 %v6725, %v6717
    %v7166 = vpack.c.b16 %v6726, %v6718
    %v7167 = vpack.c.b16 %v6727, %v6719
    %v7168 = vpack.c.b16 %v6728, %v6720
    %v7169 = vpack.c.b16 %v6729, %v6721
    %v7170 = vpack.c.b16 %v6730, %v6722
    %v7171 = vpack.c.b16 %v6739, %v6731
    %v7172 = vpack.c.b16 %v6740, %v6732
    %v7173 = vpack.c.b16 %v6741, %v6733
    %v7174 = vpack.c.b16 %v6742, %v6734
    %v7175 = vpack.c.b16 %v6743, %v6735
    %v7176 = vpack.c.b16 %v6744, %v6736
    %v7177 = vpack.c.b16 %v6745, %v6737
    %v7178 = vpack.c.b16 %v6746, %v6738
    %v7179 = vpack.c.b16 %v6755, %v6747
    %v7180 = vpack.c.b16 %v6756, %v6748
    %v7181 = vpack.c.b16 %v6757, %v6749
    %v7182 = vpack.c.b16 %v6758, %v6750
    %v7183 = vpack.c.b16 %v6759, %v6751
    %v7184 = vpack.c.b16 %v6760, %v6752
    %v7185 = vpack.c.b16 %v6761, %v6753
    %v7186 = vpack.c.b16 %v6762, %v6754
    %v7187 = vpack.c.b16 %v6771, %v6763
    %v7188 = vpack.c.b16 %v6772, %v6764
    %v7189 = vpack.c.b16 %v6773, %v6765
    %v7190 = vpack.c.b16 %v6774, %v6766
    %v7191 = vpack.c.b16 %v6775, %v6767
    %v7192 = vpack.c.b16 %v6776, %v6768
    %v7193 = vpack.c.b16 %v6777, %v6769
    %v7194 = vpack.c.b16 %v6778, %v6770
    %v7195 = vpack.c.b16 %v6787, %v6779
    %v7196 = vpack.c.b16 %v6788, %v6780
    %v7197 = vpack.c.b16 %v6789, %v6781
    %v7198 = vpack.c.b16 %v6790, %v6782
    %v7199 = vpack.c.b16 %v6791, %v6783
    %v7200 = vpack.c.b16 %v6792, %v6784
    %v7201 = vpack.c.b16 %v6793, %v6785
    %v7202 = vpack.c.b16 %v6794, %v6786
    %v7203 = vpack.c.b16 %v6803, %v6795
    %v7204 = vpack.c.b16 %v6804, %v6796
    %v7205 = vpack.c.b16 %v6805, %v6797
    %v7206 = vpack.c.b16 %v6806, %v6798
    %v7207 = vpack.c.b16 %v6807, %v6799
    %v7208 = vpack.c.b16 %v6808, %v6800
    %v7209 = vpack.c.b16 %v6809, %v6801
    %v7210 = vpack.c.b16 %v6810, %v6802
    %v7211 = vpack.c.b16 %v6819, %v6811
    %v7212 = vpack.c.b16 %v6820, %v6812
    %v7213 = vpack.c.b16 %v6821, %v6813
    %v7214 = vpack.c.b16 %v6822, %v6814
    %v7215 = vpack.c.b16 %v6823, %v6815
    %v7216 = vpack.c.b16 %v6824, %v6816
    %v7217 = vpack.c.b16 %v6825, %v6817
    %v7218 = vpack.c.b16 %v6826, %v6818
    %v7219 = vpack.c.b16 %v6835, %v6827
    %v7220 = vpack.c.b16 %v6836, %v6828
    %v7221 = vpack.c.b16 %v6837, %v6829
    %v7222 = vpack.c.b16 %v6838, %v6830
    %v7223 = vpack.c.b16 %v6839, %v6831
    %v7224 = vpack.c.b16 %v6840, %v6832
    %v7225 = vpack.c.b16 %v6841, %v6833
    %v7226 = vpack.c.b16 %v6842, %v6834
    %v7227 = vpack.c.b16 %v6851, %v6843
    %v7228 = vpack.c.b16 %v6852, %v6844
    %v7229 = vpack.c.b16 %v6853, %v6845
    %v7230 = vpack.c.b16 %v6854, %v6846
    %v7231 = vpack.c.b16 %v6855, %v6847
    %v7232 = vpack.c.b16 %v6856, %v6848
    %v7233 = vpack.c.b16 %v6857, %v6849
    %v7234 = vpack.c.b16 %v6858, %v6850
    %v7235 = vpack.c.b16 %v6867, %v6859
    %v7236 = vpack.c.b16 %v6868, %v6860
    %v7237 = vpack.c.b16 %v6869, %v6861
    %v7238 = vpack.c.b16 %v6870, %v6862
    %v7239 = vpack.c.b16 %v6871, %v6863
    %v7240 = vpack.c.b16 %v6872, %v6864
    %v7241 = vpack.c.b16 %v6873, %v6865
    %v7242 = vpack.c.b16 %v6874, %v6866
    %v7243 = vpack.c.b16 %v6883, %v6875
    %v7244 = vpack.c.b16 %v6884, %v6876
    %v7245 = vpack.c.b16 %v6885, %v6877
    %v7246 = vpack.c.b16 %v6886, %v6878
    %v7247 = vpack.c.b16 %v6887, %v6879
    %v7248 = vpack.c.b16 %v6888, %v6880
    %v7249 = vpack.c.b16 %v6889, %v6881
    %v7250 = vpack.c.b16 %v6890, %v6882
    %v7251 = vpack.c.b16 %v6899, %v6891
    %v7252 = vpack.c.b16 %v6900, %v6892
    %v7253 = vpack.c.b16 %v6901, %v6893
    %v7254 = vpack.c.b16 %v6902, %v6894
    %v7255 = vpack.c.b16 %v6903, %v6895
    %v7256 = vpack.c.b16 %v6904, %v6896
    %v7257 = vpack.c.b16 %v6905, %v6897
    %v7258 = vpack.c.b16 %v6906, %v6898
    %v7259 = vpack.c.b16 %v6915, %v6907
    %v7260 = vpack.c.b16 %v6916, %v6908
    %v7261 = vpack.c.b16 %v6917, %v6909
    %v7262 = vpack.c.b16 %v6918, %v6910
    %v7263 = vpack.c.b16 %v6919, %v6911
    %v7264 = vpack.c.b16 %v6920, %v6912
    %v7265 = vpack.c.b16 %v6921, %v6913
    %v7266 = vpack.c.b16 %v6922, %v6914
    %v7267 = vpack.c.b16 %v6931, %v6923
    %v7268 = vpack.c.b16 %v6932, %v6924
    %v7269 = vpack.c.b16 %v6933, %v6925
    %v7270 = vpack.c.b16 %v6934, %v6926
    %v7271 = vpack.c.b16 %v6935, %v6927
    %v7272 = vpack.c.b16 %v6936, %v6928
    %v7273 = vpack.c.b16 %v6937, %v6929
    %v7274 = vpack.c.b16 %v6938, %v6930
    %v7275 = vpack.c.b16 %v6947, %v6939
    %v7276 = vpack.c.b16 %v6948, %v6940
    %v7277 = vpack.c.b16 %v6949, %v6941
    %v7278 = vpack.c.b16 %v6950, %v6942
    %v7279 = vpack.c.b16 %v6951, %v6943
    %v7280 = vpack.c.b16 %v6952, %v6944
    %v7281 = vpack.c.b16 %v6953, %v6945
    %v7282 = vpack.c.b16 %v6954, %v6946
    %v7283 = vpack.c.b16 %v6963, %v6955
    %v7284 = vpack.c.b16 %v6964, %v6956
    %v7285 = vpack.c.b16 %v6965, %v6957
    %v7286 = vpack.c.b16 %v6966, %v6958
    %v7287 = vpack.c.b16 %v6967, %v6959
    %v7288 = vpack.c.b16 %v6968, %v6960
    %v7289 = vpack.c.b16 %v6969, %v6961
    %v7290 = vpack.c.b16 %v6970, %v6962
    %v7291 = vpack.c.b16 %v6979, %v6971
    %v7292 = vpack.c.b16 %v6980, %v6972
    %v7293 = vpack.c.b16 %v6981, %v6973
    %v7294 = vpack.c.b16 %v6982, %v6974
    %v7295 = vpack.c.b16 %v6983, %v6975
    %v7296 = vpack.c.b16 %v6984, %v6976
    %v7297 = vpack.c.b16 %v6985, %v6977
    %v7298 = vpack.c.b16 %v6986, %v6978
    %v7299 = vpack.c.b16 %v6995, %v6987
    %v7300 = vpack.c.b16 %v6996, %v6988
    %v7301 = vpack.c.b16 %v6997, %v6989
    %v7302 = vpack.c.b16 %v6998, %v6990
    %v7303 = vpack.c.b16 %v6999, %v6991
    %v7304 = vpack.c.b16 %v7000, %v6992
    %v7305 = vpack.c.b16 %v7001, %v6993
    %v7306 = vpack.c.b16 %v7002, %v6994
    %v7307 = vpack.c.b16 %v7011, %v7003
    %v7308 = vpack.c.b16 %v7012, %v7004
    %v7309 = vpack.c.b16 %v7013, %v7005
    %v7310 = vpack.c.b16 %v7014, %v7006
    %v7311 = vpack.c.b16 %v7015, %v7007
    %v7312 = vpack.c.b16 %v7016, %v7008
    %v7313 = vpack.c.b16 %v7017, %v7009
    %v7314 = vpack.c.b16 %v7018, %v7010
    %v7315 = vpack.c.b16 %v7027, %v7019
    %v7316 = vpack.c.b16 %v7028, %v7020
    %v7317 = vpack.c.b16 %v7029, %v7021
    %v7318 = vpack.c.b16 %v7030, %v7022
    %v7319 = vpack.c.b16 %v7031, %v7023
    %v7320 = vpack.c.b16 %v7032, %v7024
    %v7321 = vpack.c.b16 %v7033, %v7025
    %v7322 = vpack.c.b16 %v7034, %v7026
    %v7323 = vpack.c.b16 %v7043, %v7035
    %v7324 = vpack.c.b16 %v7044, %v7036
    %v7325 = vpack.c.b16 %v7045, %v7037
    %v7326 = vpack.c.b16 %v7046, %v7038
    %v7327 = vpack.c.b16 %v7047, %v7039
    %v7328 = vpack.c.b16 %v7048, %v7040
    %v7329 = vpack.c.b16 %v7049, %v7041
    %v7330 = vpack.c.b16 %v7050, %v7042
    %v7331 = vpack.c.b16 %v7059, %v7051
    %v7332 = vpack.c.b16 %v7060, %v7052
    %v7333 = vpack.c.b16 %v7061, %v7053
    %v7334 = vpack.c.b16 %v7062, %v7054
    %v7335 = vpack.c.b16 %v7063, %v7055
    %v7336 = vpack.c.b16 %v7064, %v7056
    %v7337 = vpack.c.b16 %v7065, %v7057
    %v7338 = vpack.c.b16 %v7066, %v7058
    %v7339 = vpack.c.b16 %v7075, %v7067
    %v7340 = vpack.c.b16 %v7076, %v7068
    %v7341 = vpack.c.b16 %v7077, %v7069
    %v7342 = vpack.c.b16 %v7078, %v7070
    %v7343 = vpack.c.b16 %v7079, %v7071
    %v7344 = vpack.c.b16 %v7080, %v7072
    %v7345 = vpack.c.b16 %v7081, %v7073
    %v7346 = vpack.c.b16 %v7082, %v7074
    %v7347 = vpack.c.b16 %v7091, %v7083
    %v7348 = vpack.c.b16 %v7092, %v7084
    %v7349 = vpack.c.b16 %v7093, %v7085
    %v7350 = vpack.c.b16 %v7094, %v7086
    %v7351 = vpack.c.b16 %v7095, %v7087
    %v7352 = vpack.c.b16 %v7096, %v7088
    %v7353 = vpack.c.b16 %v7097, %v7089
    %v7354 = vpack.c.b16 %v7098, %v7090
    %7611 = vmatprep.subr.bf16.mxu0 %v7100
    %7612 = vmatpush1.bf16.msra.mxu0 %v7099
    %7613 = vmatprep.subr.bf16.mxu0 %v7108
    %7614 = vmatpush1.bf16.msra.mxu0 %v7107
    %7615 = vmatprep.subr.bf16.mxu0 %v7116
    %7616 = vmatpush1.bf16.msra.mxu0 %v7115
    %7617 = vmatprep.subr.bf16.mxu0 %v7124
    %7618 = vmatpush1.bf16.msra.mxu0 %v7123
    %7619 = vmatprep.subr.bf16.mxu0 %v7132
    %7620 = vmatpush1.bf16.msra.mxu0 %v7131
    %7621 = vmatprep.subr.bf16.mxu0 %v7140
    %7622 = vmatpush1.bf16.msra.mxu0 %v7139
    %7623 = vmatprep.subr.bf16.mxu0 %v7148
    %7624 = vmatpush1.bf16.msra.mxu0 %v7147
    %7625 = vmatprep.subr.bf16.mxu0 %v7156
    %7626 = vmatpush1.bf16.msra.mxu0 %v7155
    %7627 = vmatprep.subr.bf16.mxu0 %v7164
    %7628 = vmatpush1.bf16.msra.mxu0 %v7163
    %7629 = vmatprep.subr.bf16.mxu0 %v7172
    %7630 = vmatpush1.bf16.msra.mxu0 %v7171
    %7631 = vmatprep.subr.bf16.mxu0 %v7180
    %7632 = vmatpush1.bf16.msra.mxu0 %v7179
    %7633 = vmatprep.subr.bf16.mxu0 %v7188
    %7634 = vmatpush1.bf16.msra.mxu0 %v7187
    %7635 = vmatprep.subr.bf16.mxu0 %v7196
    %7636 = vmatpush1.bf16.msra.mxu0 %v7195
    %7637 = vmatprep.subr.bf16.mxu0 %v7204
    %7638 = vmatpush1.bf16.msra.mxu0 %v7203
    %7639 = vmatprep.subr.bf16.mxu0 %v7212
    %7640 = vmatpush1.bf16.msra.mxu0 %v7211
    %7641 = vmatprep.subr.bf16.mxu0 %v7220
    %7642 = vmatpush1.bf16.msra.mxu0 %v7219
    %7643 = vmatprep.mubr.bf16.mxu0 %v6030
    %7644 = vmatmul.mubr.bf16.gmra.mrb[0].mxu0 %v6029
    %v7645 = vpop.f32.mrb[0].mxu0
    %v7646 = vadd.f32 %v6294, %v7645
    %v7647 = vpop.f32.mrb[0].mxu0
    %v7648 = vadd.f32 %v6298, %v7647
    %v7649 = vpop.f32.mrb[0].mxu0
    %v7650 = vpop.f32.mrb[0].mxu0
    %7651 = vdwg.mxu0
    %7652 = vmatprep.subr.bf16.mxu0 %v7228
    %7653 = vmatpush1.bf16.msra.mxu0 %v7227
    %7654 = vmatprep.subr.bf16.mxu0 %v7236
    %7655 = vmatpush1.bf16.msra.mxu0 %v7235
    %7656 = vmatprep.subr.bf16.mxu0 %v7244
    %7657 = vmatpush1.bf16.msra.mxu0 %v7243
    %7658 = vmatprep.subr.bf16.mxu0 %v7252
    %7659 = vmatpush1.bf16.msra.mxu0 %v7251
    %7660 = vmatprep.subr.bf16.mxu0 %v7260
    %7661 = vmatpush1.bf16.msra.mxu0 %v7259
    %7662 = vmatprep.subr.bf16.mxu0 %v7268
    %7663 = vmatpush1.bf16.msra.mxu0 %v7267
    %7664 = vmatprep.subr.bf16.mxu0 %v7276
    %7665 = vmatpush1.bf16.msra.mxu0 %v7275
    %7666 = vmatprep.subr.bf16.mxu0 %v7284
    %7667 = vmatpush1.bf16.msra.mxu0 %v7283
    %7668 = vmatprep.subr.bf16.mxu0 %v7292
    %7669 = vmatpush1.bf16.msra.mxu0 %v7291
    %7670 = vmatprep.subr.bf16.mxu0 %v7300
    %7671 = vmatpush1.bf16.msra.mxu0 %v7299
    %7672 = vmatprep.subr.bf16.mxu0 %v7308
    %7673 = vmatpush1.bf16.msra.mxu0 %v7307
    %7674 = vmatprep.subr.bf16.mxu0 %v7316
    %7675 = vmatpush1.bf16.msra.mxu0 %v7315
    %7676 = vmatprep.subr.bf16.mxu0 %v7324
    %7677 = vmatpush1.bf16.msra.mxu0 %v7323
    %7678 = vmatprep.subr.bf16.mxu0 %v7332
    %7679 = vmatpush1.bf16.msra.mxu0 %v7331
    %7680 = vmatprep.subr.bf16.mxu0 %v7340
    %7681 = vmatpush1.bf16.msra.mxu0 %v7339
    %7682 = vmatprep.subr.bf16.mxu0 %v7348
    %7683 = vmatpush1.bf16.msra.mxu0 %v7347
    %7684 = vmatprep.mubr.bf16.mxu0 %v6032
    %7685 = vmatmul.mubr.bf16.gmra.mrb[0].mxu0 %v6031
    %v7686 = vpop.f32.mrb[0].mxu0
    %v7687 = vadd.f32 %v7646, %v7686
    %v7688 = vpop.f32.mrb[0].mxu0
    %v7689 = vadd.f32 %v7648, %v7688
    %v7690 = vpop.f32.mrb[0].mxu0
    %v7691 = vpop.f32.mrb[0].mxu0
    %7692 = vdwg.mxu0
    %7693 = vmatprep.subr.bf16.mxu0 %v7102
    %7694 = vmatpush1.bf16.msra.mxu0 %v7101
    %7695 = vmatprep.subr.bf16.mxu0 %v7110
    %7696 = vmatpush1.bf16.msra.mxu0 %v7109
    %7697 = vmatprep.subr.bf16.mxu0 %v7118
    %7698 = vmatpush1.bf16.msra.mxu0 %v7117
    %7699 = vmatprep.subr.bf16.mxu0 %v7126
    %7700 = vmatpush1.bf16.msra.mxu0 %v7125
    %7701 = vmatprep.subr.bf16.mxu0 %v7134
    %7702 = vmatpush1.bf16.msra.mxu0 %v7133
    %7703 = vmatprep.subr.bf16.mxu0 %v7142
    %7704 = vmatpush1.bf16.msra.mxu0 %v7141
    %7705 = vmatprep.subr.bf16.mxu0 %v7150
    %7706 = vmatpush1.bf16.msra.mxu0 %v7149
    %7707 = vmatprep.subr.bf16.mxu0 %v7158
    %7708 = vmatpush1.bf16.msra.mxu0 %v7157
    %7709 = vmatprep.subr.bf16.mxu0 %v7166
    %7710 = vmatpush1.bf16.msra.mxu0 %v7165
    %7711 = vmatprep.subr.bf16.mxu0 %v7174
    %7712 = vmatpush1.bf16.msra.mxu0 %v7173
    %7713 = vmatprep.subr.bf16.mxu0 %v7182
    %7714 = vmatpush1.bf16.msra.mxu0 %v7181
    %7715 = vmatprep.subr.bf16.mxu0 %v7190
    %7716 = vmatpush1.bf16.msra.mxu0 %v7189
    %7717 = vmatprep.subr.bf16.mxu0 %v7198
    %7718 = vmatpush1.bf16.msra.mxu0 %v7197
    %7719 = vmatprep.subr.bf16.mxu0 %v7206
    %7720 = vmatpush1.bf16.msra.mxu0 %v7205
    %7721 = vmatprep.subr.bf16.mxu0 %v7214
    %7722 = vmatpush1.bf16.msra.mxu0 %v7213
    %7723 = vmatprep.subr.bf16.mxu0 %v7222
    %7724 = vmatpush1.bf16.msra.mxu0 %v7221
    %7725 = vmatprep.mubr.bf16.mxu0 %v6030
    %7726 = vmatmul.mubr.bf16.gmra.mrb[0].mxu0 %v6029
    %v7727 = vpop.f32.mrb[0].mxu0
    %v7728 = vadd.f32 %v6302, %v7727
    %v7729 = vpop.f32.mrb[0].mxu0
    %v7730 = vadd.f32 %v6306, %v7729
    %v7731 = vpop.f32.mrb[0].mxu0
    %v7732 = vpop.f32.mrb[0].mxu0
    %7733 = vdwg.mxu0
    %7734 = vmatprep.subr.bf16.mxu0 %v7230
    %7735 = vmatpush1.bf16.msra.mxu0 %v7229
    %7736 = vmatprep.subr.bf16.mxu0 %v7238
    %7737 = vmatpush1.bf16.msra.mxu0 %v7237
    %7738 = vmatprep.subr.bf16.mxu0 %v7246
    %7739 = vmatpush1.bf16.msra.mxu0 %v7245
    %7740 = vmatprep.subr.bf16.mxu0 %v7254
    %7741 = vmatpush1.bf16.msra.mxu0 %v7253
    %7742 = vmatprep.subr.bf16.mxu0 %v7262
    %7743 = vmatpush1.bf16.msra.mxu0 %v7261
    %7744 = vmatprep.subr.bf16.mxu0 %v7270
    %7745 = vmatpush1.bf16.msra.mxu0 %v7269
    %7746 = vmatprep.subr.bf16.mxu0 %v7278
    %7747 = vmatpush1.bf16.msra.mxu0 %v7277
    %7748 = vmatprep.subr.bf16.mxu0 %v7286
    %7749 = vmatpush1.bf16.msra.mxu0 %v7285
    %7750 = vmatprep.subr.bf16.mxu0 %v7294
    %7751 = vmatpush1.bf16.msra.mxu0 %v7293
    %7752 = vmatprep.subr.bf16.mxu0 %v7302
    %7753 = vmatpush1.bf16.msra.mxu0 %v7301
    %7754 = vmatprep.subr.bf16.mxu0 %v7310
    %7755 = vmatpush1.bf16.msra.mxu0 %v7309
    %7756 = vmatprep.subr.bf16.mxu0 %v7318
    %7757 = vmatpush1.bf16.msra.mxu0 %v7317
    %7758 = vmatprep.subr.bf16.mxu0 %v7326
    %7759 = vmatpush1.bf16.msra.mxu0 %v7325
    %7760 = vmatprep.subr.bf16.mxu0 %v7334
    %7761 = vmatpush1.bf16.msra.mxu0 %v7333
    %7762 = vmatprep.subr.bf16.mxu0 %v7342
    %7763 = vmatpush1.bf16.msra.mxu0 %v7341
    %7764 = vmatprep.subr.bf16.mxu0 %v7350
    %7765 = vmatpush1.bf16.msra.mxu0 %v7349
    %7766 = vmatprep.mubr.bf16.mxu0 %v6032
    %7767 = vmatmul.mubr.bf16.gmra.mrb[0].mxu0 %v6031
    %v7768 = vpop.f32.mrb[0].mxu0
    %v7769 = vadd.f32 %v7728, %v7768
    %v7770 = vpop.f32.mrb[0].mxu0
    %v7771 = vadd.f32 %v7730, %v7770
    %v7772 = vpop.f32.mrb[0].mxu0
    %v7773 = vpop.f32.mrb[0].mxu0
    %7774 = vdwg.mxu0
    %7775 = vmatprep.subr.bf16.mxu0 %v7104
    %7776 = vmatpush1.bf16.msra.mxu0 %v7103
    %7777 = vmatprep.subr.bf16.mxu0 %v7112
    %7778 = vmatpush1.bf16.msra.mxu0 %v7111
    %7779 = vmatprep.subr.bf16.mxu0 %v7120
    %7780 = vmatpush1.bf16.msra.mxu0 %v7119
    %7781 = vmatprep.subr.bf16.mxu0 %v7128
    %7782 = vmatpush1.bf16.msra.mxu0 %v7127
    %7783 = vmatprep.subr.bf16.mxu0 %v7136
    %7784 = vmatpush1.bf16.msra.mxu0 %v7135
    %7785 = vmatprep.subr.bf16.mxu0 %v7144
    %7786 = vmatpush1.bf16.msra.mxu0 %v7143
    %7787 = vmatprep.subr.bf16.mxu0 %v7152
    %7788 = vmatpush1.bf16.msra.mxu0 %v7151
    %7789 = vmatprep.subr.bf16.mxu0 %v7160
    %7790 = vmatpush1.bf16.msra.mxu0 %v7159
    %7791 = vmatprep.subr.bf16.mxu0 %v7168
    %7792 = vmatpush1.bf16.msra.mxu0 %v7167
    %7793 = vmatprep.subr.bf16.mxu0 %v7176
    %7794 = vmatpush1.bf16.msra.mxu0 %v7175
    %7795 = vmatprep.subr.bf16.mxu0 %v7184
    %7796 = vmatpush1.bf16.msra.mxu0 %v7183
    %7797 = vmatprep.subr.bf16.mxu0 %v7192
    %7798 = vmatpush1.bf16.msra.mxu0 %v7191
    %7799 = vmatprep.subr.bf16.mxu0 %v7200
    %7800 = vmatpush1.bf16.msra.mxu0 %v7199
    %7801 = vmatprep.subr.bf16.mxu0 %v7208
    %7802 = vmatpush1.bf16.msra.mxu0 %v7207
    %7803 = vmatprep.subr.bf16.mxu0 %v7216
    %7804 = vmatpush1.bf16.msra.mxu0 %v7215
    %7805 = vmatprep.subr.bf16.mxu0 %v7224
    %7806 = vmatpush1.bf16.msra.mxu0 %v7223
    %7807 = vmatprep.mubr.bf16.mxu0 %v6030
    %7808 = vmatmul.mubr.bf16.gmra.mrb[0].mxu0 %v6029
    %v7809 = vpop.f32.mrb[0].mxu0
    %v7810 = vadd.f32 %v6310, %v7809
    %v7811 = vpop.f32.mrb[0].mxu0
    %v7812 = vadd.f32 %v6314, %v7811
    %v7813 = vpop.f32.mrb[0].mxu0
    %v7814 = vpop.f32.mrb[0].mxu0
    %7815 = vdwg.mxu0
    %7816 = vmatprep.subr.bf16.mxu0 %v7232
    %7817 = vmatpush1.bf16.msra.mxu0 %v7231
    %7818 = vmatprep.subr.bf16.mxu0 %v7240
    %7819 = vmatpush1.bf16.msra.mxu0 %v7239
    %7820 = vmatprep.subr.bf16.mxu0 %v7248
    %7821 = vmatpush1.bf16.msra.mxu0 %v7247
    %7822 = vmatprep.subr.bf16.mxu0 %v7256
    %7823 = vmatpush1.bf16.msra.mxu0 %v7255
    %7824 = vmatprep.subr.bf16.mxu0 %v7264
    %7825 = vmatpush1.bf16.msra.mxu0 %v7263
    %7826 = vmatprep.subr.bf16.mxu0 %v7272
    %7827 = vmatpush1.bf16.msra.mxu0 %v7271
    %7828 = vmatprep.subr.bf16.mxu0 %v7280
    %7829 = vmatpush1.bf16.msra.mxu0 %v7279
    %7830 = vmatprep.subr.bf16.mxu0 %v7288
    %7831 = vmatpush1.bf16.msra.mxu0 %v7287
    %7832 = vmatprep.subr.bf16.mxu0 %v7296
    %7833 = vmatpush1.bf16.msra.mxu0 %v7295
    %7834 = vmatprep.subr.bf16.mxu0 %v7304
    %7835 = vmatpush1.bf16.msra.mxu0 %v7303
    %7836 = vmatprep.subr.bf16.mxu0 %v7312
    %7837 = vmatpush1.bf16.msra.mxu0 %v7311
    %7838 = vmatprep.subr.bf16.mxu0 %v7320
    %7839 = vmatpush1.bf16.msra.mxu0 %v7319
    %7840 = vmatprep.subr.bf16.mxu0 %v7328
    %7841 = vmatpush1.bf16.msra.mxu0 %v7327
    %7842 = vmatprep.subr.bf16.mxu0 %v7336
    %7843 = vmatpush1.bf16.msra.mxu0 %v7335
    %7844 = vmatprep.subr.bf16.mxu0 %v7344
    %7845 = vmatpush1.bf16.msra.mxu0 %v7343
    %7846 = vmatprep.subr.bf16.mxu0 %v7352
    %7847 = vmatpush1.bf16.msra.mxu0 %v7351
    %7848 = vmatprep.mubr.bf16.mxu0 %v6032
    %7849 = vmatmul.mubr.bf16.gmra.mrb[0].mxu0 %v6031
    %v7850 = vpop.f32.mrb[0].mxu0
    %v7851 = vadd.f32 %v7810, %v7850
    %v7852 = vpop.f32.mrb[0].mxu0
    %v7853 = vadd.f32 %v7812, %v7852
    %v7854 = vpop.f32.mrb[0].mxu0
    %v7855 = vpop.f32.mrb[0].mxu0
    %7856 = vdwg.mxu0
    %7857 = vmatprep.subr.bf16.mxu0 %v7106
    %7858 = vmatpush1.bf16.msra.mxu0 %v7105
    %7859 = vmatprep.subr.bf16.mxu0 %v7114
    %7860 = vmatpush1.bf16.msra.mxu0 %v7113
    %7861 = vmatprep.subr.bf16.mxu0 %v7122
    %7862 = vmatpush1.bf16.msra.mxu0 %v7121
    %7863 = vmatprep.subr.bf16.mxu0 %v7130
    %7864 = vmatpush1.bf16.msra.mxu0 %v7129
    %7865 = vmatprep.subr.bf16.mxu0 %v7138
    %7866 = vmatpush1.bf16.msra.mxu0 %v7137
    %7867 = vmatprep.subr.bf16.mxu0 %v7146
    %7868 = vmatpush1.bf16.msra.mxu0 %v7145
    %7869 = vmatprep.subr.bf16.mxu0 %v7154
    %7870 = vmatpush1.bf16.msra.mxu0 %v7153
    %7871 = vmatprep.subr.bf16.mxu0 %v7162
    %7872 = vmatpush1.bf16.msra.mxu0 %v7161
    %7873 = vmatprep.subr.bf16.mxu0 %v7170
    %7874 = vmatpush1.bf16.msra.mxu0 %v7169
    %7875 = vmatprep.subr.bf16.mxu0 %v7178
    %7876 = vmatpush1.bf16.msra.mxu0 %v7177
    %7877 = vmatprep.subr.bf16.mxu0 %v7186
    %7878 = vmatpush1.bf16.msra.mxu0 %v7185
    %7879 = vmatprep.subr.bf16.mxu0 %v7194
    %7880 = vmatpush1.bf16.msra.mxu0 %v7193
    %7881 = vmatprep.subr.bf16.mxu0 %v7202
    %7882 = vmatpush1.bf16.msra.mxu0 %v7201
    %7883 = vmatprep.subr.bf16.mxu0 %v7210
    %7884 = vmatpush1.bf16.msra.mxu0 %v7209
    %7885 = vmatprep.subr.bf16.mxu0 %v7218
    %7886 = vmatpush1.bf16.msra.mxu0 %v7217
    %7887 = vmatprep.subr.bf16.mxu0 %v7226
    %7888 = vmatpush1.bf16.msra.mxu0 %v7225
    %7889 = vmatprep.mubr.bf16.mxu0 %v6030
    %7890 = vmatmul.mubr.bf16.gmra.mrb[0].mxu0 %v6029
    %v7891 = vpop.f32.mrb[0].mxu0
    %v7892 = vadd.f32 %v6318, %v7891
    %v7893 = vpop.f32.mrb[0].mxu0
    %v7894 = vadd.f32 %v6322, %v7893
    %v7895 = vpop.f32.mrb[0].mxu0
    %v7896 = vpop.f32.mrb[0].mxu0
    %7897 = vdwg.mxu0
    %7898 = vmatprep.subr.bf16.mxu0 %v7234
    %7899 = vmatpush1.bf16.msra.mxu0 %v7233
    %7900 = vmatprep.subr.bf16.mxu0 %v7242
    %7901 = vmatpush1.bf16.msra.mxu0 %v7241
    %7902 = vmatprep.subr.bf16.mxu0 %v7250
    %7903 = vmatpush1.bf16.msra.mxu0 %v7249
    %7904 = vmatprep.subr.bf16.mxu0 %v7258
    %7905 = vmatpush1.bf16.msra.mxu0 %v7257
    %7906 = vmatprep.subr.bf16.mxu0 %v7266
    %7907 = vmatpush1.bf16.msra.mxu0 %v7265
    %7908 = vmatprep.subr.bf16.mxu0 %v7274
    %7909 = vmatpush1.bf16.msra.mxu0 %v7273
    %7910 = vmatprep.subr.bf16.mxu0 %v7282
    %7911 = vmatpush1.bf16.msra.mxu0 %v7281
    %7912 = vmatprep.subr.bf16.mxu0 %v7290
    %7913 = vmatpush1.bf16.msra.mxu0 %v7289
    %7914 = vmatprep.subr.bf16.mxu0 %v7298
    %7915 = vmatpush1.bf16.msra.mxu0 %v7297
    %7916 = vmatprep.subr.bf16.mxu0 %v7306
    %7917 = vmatpush1.bf16.msra.mxu0 %v7305
    %7918 = vmatprep.subr.bf16.mxu0 %v7314
    %7919 = vmatpush1.bf16.msra.mxu0 %v7313
    %7920 = vmatprep.subr.bf16.mxu0 %v7322
    %7921 = vmatpush1.bf16.msra.mxu0 %v7321
    %7922 = vmatprep.subr.bf16.mxu0 %v7330
    %7923 = vmatpush1.bf16.msra.mxu0 %v7329
    %7924 = vmatprep.subr.bf16.mxu0 %v7338
    %7925 = vmatpush1.bf16.msra.mxu0 %v7337
    %7926 = vmatprep.subr.bf16.mxu0 %v7346
    %7927 = vmatpush1.bf16.msra.mxu0 %v7345
    %7928 = vmatprep.subr.bf16.mxu0 %v7354
    %7929 = vmatpush1.bf16.msra.mxu0 %v7353
    %7930 = vmatprep.mubr.bf16.mxu0 %v6032
    %7931 = vmatmul.mubr.bf16.gmra.mrb[0].mxu0 %v6031
    %v7932 = vpop.f32.mrb[0].mxu0
    %v7933 = vadd.f32 %v7892, %v7932
    %v7934 = vpop.f32.mrb[0].mxu0
    %v7935 = vadd.f32 %v7894, %v7934
    %v7936 = vpop.f32.mrb[0].mxu0
    %v7937 = vpop.f32.mrb[0].mxu0
    %7938 = vdwg.mxu0
    %v7939 = vmax.f32 %v7687, 0.0
    %v7940 = vmax.f32 %v7689, 0.0
    %v7941 = vmax.f32 %v7769, 0.0
    %v7942 = vmax.f32 %v7771, 0.0
    %v7943 = vmax.f32 %v7851, 0.0
    %v7944 = vmax.f32 %v7853, 0.0
    %v7945 = vmax.f32 %v7933, 0.0
    %v7946 = vmax.f32 %v7935, 0.0
    %v7947 = vpack.c.bf16 %v7939, %v7939
    %v7948 = vpack.c.bf16 %v7940, %v7940
    %v7949 = vpack.c.bf16 %v7941, %v7941
    %v7950 = vpack.c.bf16 %v7942, %v7942
    %v7951 = vpack.c.bf16 %v7943, %v7943
    %v7952 = vpack.c.bf16 %v7944, %v7944
    %v7953 = vpack.c.bf16 %v7945, %v7945
    %v7954 = vpack.c.bf16 %v7946, %v7946
    %v7955 = vld [vmem:[%s5] sm:$0xf]
    %v7956 = vld [vmem:[%s5 + $0x4] sm:$0xf]
    %v7957 = vld [vmem:[%s5 + $0x8] sm:$0xf]
    %v7958 = vld [vmem:[%s5 + $0xc] sm:$0xf]
    %v7959 = vld [vmem:[%s5 + $0x10] sm:$0xf]
    %v7960 = vld [vmem:[%s5 + $0x14] sm:$0xf]
    %v7961 = vld [vmem:[%s5 + $0x18] sm:$0xf]
    %v7962 = vld [vmem:[%s5 + $0x1c] sm:$0xf]
    %v7963 = vld [vmem:[%s5 + $0x20] sm:$0xf]
    %v7964 = vld [vmem:[%s5 + $0x24] sm:$0xf]
    %v7965 = vld [vmem:[%s5 + $0x28] sm:$0xf]
    %v7966 = vld [vmem:[%s5 + $0x2c] sm:$0xf]
    %v7967 = vld [vmem:[%s5 + $0x30] sm:$0xf]
    %v7968 = vld [vmem:[%s5 + $0x34] sm:$0xf]
    %v7969 = vld [vmem:[%s5 + $0x38] sm:$0xf]
    %v7970 = vld [vmem:[%s5 + $0x3c] sm:$0xf]
    %v7971 = vld [vmem:[%s5 + $0x40] sm:$0xf]
    %v7972 = vld [vmem:[%s5 + $0x44] sm:$0xf]
    %v7973 = vld [vmem:[%s5 + $0x48] sm:$0xf]
    %v7974 = vld [vmem:[%s5 + $0x4c] sm:$0xf]
    %v7975 = vld [vmem:[%s5 + $0x50] sm:$0xf]
    %v7976 = vld [vmem:[%s5 + $0x54] sm:$0xf]
    %v7977 = vld [vmem:[%s5 + $0x58] sm:$0xf]
    %v7978 = vld [vmem:[%s5 + $0x5c] sm:$0xf]
    %v7979 = vld [vmem:[%s5 + $0x60] sm:$0xf]
    %v7980 = vld [vmem:[%s5 + $0x64] sm:$0xf]
    %v7981 = vld [vmem:[%s5 + $0x68] sm:$0xf]
    %v7982 = vld [vmem:[%s5 + $0x6c] sm:$0xf]
    %v7983 = vld [vmem:[%s5 + $0x70] sm:$0xf]
    %v7984 = vld [vmem:[%s5 + $0x74] sm:$0xf]
    %v7985 = vld [vmem:[%s5 + $0x78] sm:$0xf]
    %v7986 = vld [vmem:[%s5 + $0x7c] sm:$0xf]
    %v7987 = vld [vmem:[%s5 + $0x80] sm:$0xf]
    %v7988 = vld [vmem:[%s5 + $0x84] sm:$0xf]
    %v7989 = vld [vmem:[%s5 + $0x88] sm:$0xf]
    %v7990 = vld [vmem:[%s5 + $0x8c] sm:$0xf]
    %v7991 = vld [vmem:[%s5 + $0x90] sm:$0xf]
    %v7992 = vld [vmem:[%s5 + $0x94] sm:$0xf]
    %v7993 = vld [vmem:[%s5 + $0x98] sm:$0xf]
    %v7994 = vld [vmem:[%s5 + $0x9c] sm:$0xf]
    %v7995 = vld [vmem:[%s5 + $0xa0] sm:$0xf]
    %v7996 = vld [vmem:[%s5 + $0xa4] sm:$0xf]
    %v7997 = vld [vmem:[%s5 + $0xa8] sm:$0xf]
    %v7998 = vld [vmem:[%s5 + $0xac] sm:$0xf]
    %v7999 = vld [vmem:[%s5 + $0xb0] sm:$0xf]
    %v8000 = vld [vmem:[%s5 + $0xb4] sm:$0xf]
    %v8001 = vld [vmem:[%s5 + $0xb8] sm:$0xf]
    %v8002 = vld [vmem:[%s5 + $0xbc] sm:$0xf]
    %v8003 = vld [vmem:[%s5 + $0xc0] sm:$0xf]
    %v8004 = vld [vmem:[%s5 + $0xc4] sm:$0xf]
    %v8005 = vld [vmem:[%s5 + $0xc8] sm:$0xf]
    %v8006 = vld [vmem:[%s5 + $0xcc] sm:$0xf]
    %v8007 = vld [vmem:[%s5 + $0xd0] sm:$0xf]
    %v8008 = vld [vmem:[%s5 + $0xd4] sm:$0xf]
    %v8009 = vld [vmem:[%s5 + $0xd8] sm:$0xf]
    %v8010 = vld [vmem:[%s5 + $0xdc] sm:$0xf]
    %v8011 = vld [vmem:[%s5 + $0xe0] sm:$0xf]
    %v8012 = vld [vmem:[%s5 + $0xe4] sm:$0xf]
    %v8013 = vld [vmem:[%s5 + $0xe8] sm:$0xf]
    %v8014 = vld [vmem:[%s5 + $0xec] sm:$0xf]
    %v8015 = vld [vmem:[%s5 + $0xf0] sm:$0xf]
    %v8016 = vld [vmem:[%s5 + $0xf4] sm:$0xf]
    %v8017 = vld [vmem:[%s5 + $0xf8] sm:$0xf]
    %v8018 = vld [vmem:[%s5 + $0xfc] sm:$0xf]
    %v8019 = vld [vmem:[#allocation2] sm:$0x1]
    %v8021 = vlaneseq
    %v8022 = vshrl.u32 %v8021, 7
    %v8023 = vsub.s32 0, %v8022
    %v8024 = vrot.slane %v8019, %v8023
    %v8090 = vunpack.c.l.b16 %v7955
    %v8091 = vunpack.c.l.b16 %v7956
    %v8092 = vunpack.c.l.b16 %v7957
    %v8093 = vunpack.c.l.b16 %v7958
    %v8094 = vunpack.c.l.b16 %v7959
    %v8095 = vunpack.c.l.b16 %v7960
    %v8096 = vunpack.c.l.b16 %v7961
    %v8097 = vunpack.c.l.b16 %v7962
    %v8098 = vunpack.c.l.b16 %v7963
    %v8099 = vunpack.c.l.b16 %v7964
    %v8100 = vunpack.c.l.b16 %v7965
    %v8101 = vunpack.c.l.b16 %v7966
    %v8102 = vunpack.c.l.b16 %v7967
    %v8103 = vunpack.c.l.b16 %v7968
    %v8104 = vunpack.c.l.b16 %v7969
    %v8105 = vunpack.c.l.b16 %v7970
    %v8106 = vunpack.c.l.b16 %v7971
    %v8107 = vunpack.c.l.b16 %v7972
    %v8108 = vunpack.c.l.b16 %v7973
    %v8109 = vunpack.c.l.b16 %v7974
    %v8110 = vunpack.c.l.b16 %v7975
    %v8111 = vunpack.c.l.b16 %v7976
    %v8112 = vunpack.c.l.b16 %v7977
    %v8113 = vunpack.c.l.b16 %v7978
    %v8114 = vunpack.c.l.b16 %v7979
    %v8115 = vunpack.c.l.b16 %v7980
    %v8116 = vunpack.c.l.b16 %v7981
    %v8117 = vunpack.c.l.b16 %v7982
    %v8118 = vunpack.c.l.b16 %v7983
    %v8119 = vunpack.c.l.b16 %v7984
    %v8120 = vunpack.c.l.b16 %v7985
    %v8121 = vunpack.c.l.b16 %v7986
    %v8122 = vunpack.c.l.b16 %v7987
    %v8123 = vunpack.c.l.b16 %v7988
    %v8124 = vunpack.c.l.b16 %v7989
    %v8125 = vunpack.c.l.b16 %v7990
    %v8126 = vunpack.c.l.b16 %v7991
    %v8127 = vunpack.c.l.b16 %v7992
    %v8128 = vunpack.c.l.b16 %v7993
    %v8129 = vunpack.c.l.b16 %v7994
    %v8130 = vunpack.c.l.b16 %v7995
    %v8131 = vunpack.c.l.b16 %v7996
    %v8132 = vunpack.c.l.b16 %v7997
    %v8133 = vunpack.c.l.b16 %v7998
    %v8134 = vunpack.c.l.b16 %v7999
    %v8135 = vunpack.c.l.b16 %v8000
    %v8136 = vunpack.c.l.b16 %v8001
    %v8137 = vunpack.c.l.b16 %v8002
    %v8138 = vunpack.c.l.b16 %v8003
    %v8139 = vunpack.c.l.b16 %v8004
    %v8140 = vunpack.c.l.b16 %v8005
    %v8141 = vunpack.c.l.b16 %v8006
    %v8142 = vunpack.c.l.b16 %v8007
    %v8143 = vunpack.c.l.b16 %v8008
    %v8144 = vunpack.c.l.b16 %v8009
    %v8145 = vunpack.c.l.b16 %v8010
    %v8146 = vunpack.c.l.b16 %v8011
    %v8147 = vunpack.c.l.b16 %v8012
    %v8148 = vunpack.c.l.b16 %v8013
    %v8149 = vunpack.c.l.b16 %v8014
    %v8150 = vunpack.c.l.b16 %v8015
    %v8151 = vunpack.c.l.b16 %v8016
    %v8152 = vunpack.c.l.b16 %v8017
    %v8153 = vunpack.c.l.b16 %v8018
    %v8154 = vpack.c.b16 %v8091, %v8090
    %v8155 = vpack.c.b16 %v8093, %v8092
    %v8156 = vpack.c.b16 %v8095, %v8094
    %v8157 = vpack.c.b16 %v8097, %v8096
    %v8158 = vpack.c.b16 %v8099, %v8098
    %v8159 = vpack.c.b16 %v8101, %v8100
    %v8160 = vpack.c.b16 %v8103, %v8102
    %v8161 = vpack.c.b16 %v8105, %v8104
    %v8162 = vpack.c.b16 %v8107, %v8106
    %v8163 = vpack.c.b16 %v8109, %v8108
    %v8164 = vpack.c.b16 %v8111, %v8110
    %v8165 = vpack.c.b16 %v8113, %v8112
    %v8166 = vpack.c.b16 %v8115, %v8114
    %v8167 = vpack.c.b16 %v8117, %v8116
    %v8168 = vpack.c.b16 %v8119, %v8118
    %v8169 = vpack.c.b16 %v8121, %v8120
    %v8170 = vpack.c.b16 %v8123, %v8122
    %v8171 = vpack.c.b16 %v8125, %v8124
    %v8172 = vpack.c.b16 %v8127, %v8126
    %v8173 = vpack.c.b16 %v8129, %v8128
    %v8174 = vpack.c.b16 %v8131, %v8130
    %v8175 = vpack.c.b16 %v8133, %v8132
    %v8176 = vpack.c.b16 %v8135, %v8134
    %v8177 = vpack.c.b16 %v8137, %v8136
    %v8178 = vpack.c.b16 %v8139, %v8138
    %v8179 = vpack.c.b16 %v8141, %v8140
    %v8180 = vpack.c.b16 %v8143, %v8142
    %v8181 = vpack.c.b16 %v8145, %v8144
    %v8182 = vpack.c.b16 %v8147, %v8146
    %v8183 = vpack.c.b16 %v8149, %v8148
    %v8184 = vpack.c.b16 %v8151, %v8150
    %v8185 = vpack.c.b16 %v8153, %v8152
    %8218 = vmatprep.subr.bf16.mxu0 0
    %8219 = vmatpush1.bf16.msra.mxu0 %v8154
    %8220 = vmatprep.subr.bf16.mxu0 0
    %8221 = vmatpush1.bf16.msra.mxu0 %v8155
    %8222 = vmatprep.subr.bf16.mxu0 0
    %8223 = vmatpush1.bf16.msra.mxu0 %v8156
    %8224 = vmatprep.subr.bf16.mxu0 0
    %8225 = vmatpush1.bf16.msra.mxu0 %v8157
    %8226 = vmatprep.subr.bf16.mxu0 0
    %8227 = vmatpush1.bf16.msra.mxu0 %v8158
    %8228 = vmatprep.subr.bf16.mxu0 0
    %8229 = vmatpush1.bf16.msra.mxu0 %v8159
    %8230 = vmatprep.subr.bf16.mxu0 0
    %8231 = vmatpush1.bf16.msra.mxu0 %v8160
    %8232 = vmatprep.subr.bf16.mxu0 0
    %8233 = vmatpush1.bf16.msra.mxu0 %v8161
    %8234 = vmatprep.subr.bf16.mxu0 0
    %8235 = vmatpush1.bf16.msra.mxu0 %v8162
    %8236 = vmatprep.subr.bf16.mxu0 0
    %8237 = vmatpush1.bf16.msra.mxu0 %v8163
    %8238 = vmatprep.subr.bf16.mxu0 0
    %8239 = vmatpush1.bf16.msra.mxu0 %v8164
    %8240 = vmatprep.subr.bf16.mxu0 0
    %8241 = vmatpush1.bf16.msra.mxu0 %v8165
    %8242 = vmatprep.subr.bf16.mxu0 0
    %8243 = vmatpush1.bf16.msra.mxu0 %v8166
    %8244 = vmatprep.subr.bf16.mxu0 0
    %8245 = vmatpush1.bf16.msra.mxu0 %v8167
    %8246 = vmatprep.subr.bf16.mxu0 0
    %8247 = vmatpush1.bf16.msra.mxu0 %v8168
    %8248 = vmatprep.subr.bf16.mxu0 0
    %8249 = vmatpush1.bf16.msra.mxu0 %v8169
    %8250 = vmatprep.mubr.bf16.mxu0 %v7948
    %8251 = vmatmul.mubr.bf16.gmra.mrb[0].mxu0 %v7947
    %v8252 = vpop.f32.mrb[0].mxu0
    %v8253 = vadd.f32 %v8024, %v8252
    %v8254 = vpop.f32.mrb[0].mxu0
    %v8255 = vpop.f32.mrb[0].mxu0
    %v8256 = vpop.f32.mrb[0].mxu0
    %8257 = vdwg.mxu0
    %8258 = vmatprep.subr.bf16.mxu0 0
    %8259 = vmatpush1.bf16.msra.mxu0 %v8170
    %8260 = vmatprep.subr.bf16.mxu0 0
    %8261 = vmatpush1.bf16.msra.mxu0 %v8171
    %8262 = vmatprep.subr.bf16.mxu0 0
    %8263 = vmatpush1.bf16.msra.mxu0 %v8172
    %8264 = vmatprep.subr.bf16.mxu0 0
    %8265 = vmatpush1.bf16.msra.mxu0 %v8173
    %8266 = vmatprep.subr.bf16.mxu0 0
    %8267 = vmatpush1.bf16.msra.mxu0 %v8174
    %8268 = vmatprep.subr.bf16.mxu0 0
    %8269 = vmatpush1.bf16.msra.mxu0 %v8175
    %8270 = vmatprep.subr.bf16.mxu0 0
    %8271 = vmatpush1.bf16.msra.mxu0 %v8176
    %8272 = vmatprep.subr.bf16.mxu0 0
    %8273 = vmatpush1.bf16.msra.mxu0 %v8177
    %8274 = vmatprep.subr.bf16.mxu0 0
    %8275 = vmatpush1.bf16.msra.mxu0 %v8178
    %8276 = vmatprep.subr.bf16.mxu0 0
    %8277 = vmatpush1.bf16.msra.mxu0 %v8179
    %8278 = vmatprep.subr.bf16.mxu0 0
    %8279 = vmatpush1.bf16.msra.mxu0 %v8180
    %8280 = vmatprep.subr.bf16.mxu0 0
    %8281 = vmatpush1.bf16.msra.mxu0 %v8181
    %8282 = vmatprep.subr.bf16.mxu0 0
    %8283 = vmatpush1.bf16.msra.mxu0 %v8182
    %8284 = vmatprep.subr.bf16.mxu0 0
    %8285 = vmatpush1.bf16.msra.mxu0 %v8183
    %8286 = vmatprep.subr.bf16.mxu0 0
    %8287 = vmatpush1.bf16.msra.mxu0 %v8184
    %8288 = vmatprep.subr.bf16.mxu0 0
    %8289 = vmatpush1.bf16.msra.mxu0 %v8185
    %8290 = vmatprep.mubr.bf16.mxu0 %v7950
    %8291 = vmatmul.mubr.bf16.gmra.mrb[0].mxu0 %v7949
    %v8292 = vpop.f32.mrb[0].mxu0
    %v8293 = vadd.f32 %v8253, %v8292
    %v8294 = vpop.f32.mrb[0].mxu0
    %v8295 = vpop.f32.mrb[0].mxu0
    %v8296 = vpop.f32.mrb[0].mxu0
    %8297 = vdwg.mxu0
    %v8298 = vld [vmem:[%s7] sm:$0xf]
    %v8299 = vld [vmem:[%s7 + $0x4] sm:$0xf]
    %v8300 = vld [vmem:[%s7 + $0x8] sm:$0xf]
    %v8301 = vld [vmem:[%s7 + $0xc] sm:$0xf]
    %v8302 = vld [vmem:[%s7 + $0x10] sm:$0xf]
    %v8303 = vld [vmem:[%s7 + $0x14] sm:$0xf]
    %v8304 = vld [vmem:[%s7 + $0x18] sm:$0xf]
    %v8305 = vld [vmem:[%s7 + $0x1c] sm:$0xf]
    %v8306 = vld [vmem:[%s7 + $0x20] sm:$0xf]
    %v8307 = vld [vmem:[%s7 + $0x24] sm:$0xf]
    %v8308 = vld [vmem:[%s7 + $0x28] sm:$0xf]
    %v8309 = vld [vmem:[%s7 + $0x2c] sm:$0xf]
    %v8310 = vld [vmem:[%s7 + $0x30] sm:$0xf]
    %v8311 = vld [vmem:[%s7 + $0x34] sm:$0xf]
    %v8312 = vld [vmem:[%s7 + $0x38] sm:$0xf]
    %v8313 = vld [vmem:[%s7 + $0x3c] sm:$0xf]
    %v8314 = vld [vmem:[%s7 + $0x40] sm:$0xf]
    %v8315 = vld [vmem:[%s7 + $0x44] sm:$0xf]
    %v8316 = vld [vmem:[%s7 + $0x48] sm:$0xf]
    %v8317 = vld [vmem:[%s7 + $0x4c] sm:$0xf]
    %v8318 = vld [vmem:[%s7 + $0x50] sm:$0xf]
    %v8319 = vld [vmem:[%s7 + $0x54] sm:$0xf]
    %v8320 = vld [vmem:[%s7 + $0x58] sm:$0xf]
    %v8321 = vld [vmem:[%s7 + $0x5c] sm:$0xf]
    %v8322 = vld [vmem:[%s7 + $0x60] sm:$0xf]
    %v8323 = vld [vmem:[%s7 + $0x64] sm:$0xf]
    %v8324 = vld [vmem:[%s7 + $0x68] sm:$0xf]
    %v8325 = vld [vmem:[%s7 + $0x6c] sm:$0xf]
    %v8326 = vld [vmem:[%s7 + $0x70] sm:$0xf]
    %v8327 = vld [vmem:[%s7 + $0x74] sm:$0xf]
    %v8328 = vld [vmem:[%s7 + $0x78] sm:$0xf]
    %v8329 = vld [vmem:[%s7 + $0x7c] sm:$0xf]
    %v8330 = vld [vmem:[%s7 + $0x80] sm:$0xf]
    %v8331 = vld [vmem:[%s7 + $0x84] sm:$0xf]
    %v8332 = vld [vmem:[%s7 + $0x88] sm:$0xf]
    %v8333 = vld [vmem:[%s7 + $0x8c] sm:$0xf]
    %v8334 = vld [vmem:[%s7 + $0x90] sm:$0xf]
    %v8335 = vld [vmem:[%s7 + $0x94] sm:$0xf]
    %v8336 = vld [vmem:[%s7 + $0x98] sm:$0xf]
    %v8337 = vld [vmem:[%s7 + $0x9c] sm:$0xf]
    %v8338 = vld [vmem:[%s7 + $0xa0] sm:$0xf]
    %v8339 = vld [vmem:[%s7 + $0xa4] sm:$0xf]
    %v8340 = vld [vmem:[%s7 + $0xa8] sm:$0xf]
    %v8341 = vld [vmem:[%s7 + $0xac] sm:$0xf]
    %v8342 = vld [vmem:[%s7 + $0xb0] sm:$0xf]
    %v8343 = vld [vmem:[%s7 + $0xb4] sm:$0xf]
    %v8344 = vld [vmem:[%s7 + $0xb8] sm:$0xf]
    %v8345 = vld [vmem:[%s7 + $0xbc] sm:$0xf]
    %v8346 = vld [vmem:[%s7 + $0xc0] sm:$0xf]
    %v8347 = vld [vmem:[%s7 + $0xc4] sm:$0xf]
    %v8348 = vld [vmem:[%s7 + $0xc8] sm:$0xf]
    %v8349 = vld [vmem:[%s7 + $0xcc] sm:$0xf]
    %v8350 = vld [vmem:[%s7 + $0xd0] sm:$0xf]
    %v8351 = vld [vmem:[%s7 + $0xd4] sm:$0xf]
    %v8352 = vld [vmem:[%s7 + $0xd8] sm:$0xf]
    %v8353 = vld [vmem:[%s7 + $0xdc] sm:$0xf]
    %v8354 = vld [vmem:[%s7 + $0xe0] sm:$0xf]
    %v8355 = vld [vmem:[%s7 + $0xe4] sm:$0xf]
    %v8356 = vld [vmem:[%s7 + $0xe8] sm:$0xf]
    %v8357 = vld [vmem:[%s7 + $0xec] sm:$0xf]
    %v8358 = vld [vmem:[%s7 + $0xf0] sm:$0xf]
    %v8359 = vld [vmem:[%s7 + $0xf4] sm:$0xf]
    %v8360 = vld [vmem:[%s7 + $0xf8] sm:$0xf]
    %v8361 = vld [vmem:[%s7 + $0xfc] sm:$0xf]
    %v8362 = vld [vmem:[%s8] sm:$0x1]
    %v8364 = vlaneseq
    %v8365 = vshrl.u32 %v8364, 7
    %v8366 = vsub.s32 0, %v8365
    %v8367 = vrot.slane %v8362, %v8366
    %v8433 = vunpack.c.l.b16 %v8298
    %v8434 = vunpack.c.l.b16 %v8299
    %v8435 = vunpack.c.l.b16 %v8300
    %v8436 = vunpack.c.l.b16 %v8301
    %v8437 = vunpack.c.l.b16 %v8302
    %v8438 = vunpack.c.l.b16 %v8303
    %v8439 = vunpack.c.l.b16 %v8304
    %v8440 = vunpack.c.l.b16 %v8305
    %v8441 = vunpack.c.l.b16 %v8306
    %v8442 = vunpack.c.l.b16 %v8307
    %v8443 = vunpack.c.l.b16 %v8308
    %v8444 = vunpack.c.l.b16 %v8309
    %v8445 = vunpack.c.l.b16 %v8310
    %v8446 = vunpack.c.l.b16 %v8311
    %v8447 = vunpack.c.l.b16 %v8312
    %v8448 = vunpack.c.l.b16 %v8313
    %v8449 = vunpack.c.l.b16 %v8314
    %v8450 = vunpack.c.l.b16 %v8315
    %v8451 = vunpack.c.l.b16 %v8316
    %v8452 = vunpack.c.l.b16 %v8317
    %v8453 = vunpack.c.l.b16 %v8318
    %v8454 = vunpack.c.l.b16 %v8319
    %v8455 = vunpack.c.l.b16 %v8320
    %v8456 = vunpack.c.l.b16 %v8321
    %v8457 = vunpack.c.l.b16 %v8322
    %v8458 = vunpack.c.l.b16 %v8323
    %v8459 = vunpack.c.l.b16 %v8324
    %v8460 = vunpack.c.l.b16 %v8325
    %v8461 = vunpack.c.l.b16 %v8326
    %v8462 = vunpack.c.l.b16 %v8327
    %v8463 = vunpack.c.l.b16 %v8328
    %v8464 = vunpack.c.l.b16 %v8329
    %v8465 = vunpack.c.l.b16 %v8330
    %v8466 = vunpack.c.l.b16 %v8331
    %v8467 = vunpack.c.l.b16 %v8332
    %v8468 = vunpack.c.l.b16 %v8333
    %v8469 = vunpack.c.l.b16 %v8334
    %v8470 = vunpack.c.l.b16 %v8335
    %v8471 = vunpack.c.l.b16 %v8336
    %v8472 = vunpack.c.l.b16 %v8337
    %v8473 = vunpack.c.l.b16 %v8338
    %v8474 = vunpack.c.l.b16 %v8339
    %v8475 = vunpack.c.l.b16 %v8340
    %v8476 = vunpack.c.l.b16 %v8341
    %v8477 = vunpack.c.l.b16 %v8342
    %v8478 = vunpack.c.l.b16 %v8343
    %v8479 = vunpack.c.l.b16 %v8344
    %v8480 = vunpack.c.l.b16 %v8345
    %v8481 = vunpack.c.l.b16 %v8346
    %v8482 = vunpack.c.l.b16 %v8347
    %v8483 = vunpack.c.l.b16 %v8348
    %v8484 = vunpack.c.l.b16 %v8349
    %v8485 = vunpack.c.l.b16 %v8350
    %v8486 = vunpack.c.l.b16 %v8351
    %v8487 = vunpack.c.l.b16 %v8352
    %v8488 = vunpack.c.l.b16 %v8353
    %v8489 = vunpack.c.l.b16 %v8354
    %v8490 = vunpack.c.l.b16 %v8355
    %v8491 = vunpack.c.l.b16 %v8356
    %v8492 = vunpack.c.l.b16 %v8357
    %v8493 = vunpack.c.l.b16 %v8358
    %v8494 = vunpack.c.l.b16 %v8359
    %v8495 = vunpack.c.l.b16 %v8360
    %v8496 = vunpack.c.l.b16 %v8361
    %v8497 = vpack.c.b16 %v8434, %v8433
    %v8498 = vpack.c.b16 %v8436, %v8435
    %v8499 = vpack.c.b16 %v8438, %v8437
    %v8500 = vpack.c.b16 %v8440, %v8439
    %v8501 = vpack.c.b16 %v8442, %v8441
    %v8502 = vpack.c.b16 %v8444, %v8443
    %v8503 = vpack.c.b16 %v8446, %v8445
    %v8504 = vpack.c.b16 %v8448, %v8447
    %v8505 = vpack.c.b16 %v8450, %v8449
    %v8506 = vpack.c.b16 %v8452, %v8451
    %v8507 = vpack.c.b16 %v8454, %v8453
    %v8508 = vpack.c.b16 %v8456, %v8455
    %v8509 = vpack.c.b16 %v8458, %v8457
    %v8510 = vpack.c.b16 %v8460, %v8459
    %v8511 = vpack.c.b16 %v8462, %v8461
    %v8512 = vpack.c.b16 %v8464, %v8463
    %v8513 = vpack.c.b16 %v8466, %v8465
    %v8514 = vpack.c.b16 %v8468, %v8467
    %v8515 = vpack.c.b16 %v8470, %v8469
    %v8516 = vpack.c.b16 %v8472, %v8471
    %v8517 = vpack.c.b16 %v8474, %v8473
    %v8518 = vpack.c.b16 %v8476, %v8475
    %v8519 = vpack.c.b16 %v8478, %v8477
    %v8520 = vpack.c.b16 %v8480, %v8479
    %v8521 = vpack.c.b16 %v8482, %v8481
    %v8522 = vpack.c.b16 %v8484, %v8483
    %v8523 = vpack.c.b16 %v8486, %v8485
    %v8524 = vpack.c.b16 %v8488, %v8487
    %v8525 = vpack.c.b16 %v8490, %v8489
    %v8526 = vpack.c.b16 %v8492, %v8491
    %v8527 = vpack.c.b16 %v8494, %v8493
    %v8528 = vpack.c.b16 %v8496, %v8495
    %8561 = vmatprep.subr.bf16.mxu0 0
    %8562 = vmatpush1.bf16.msra.mxu0 %v8497
    %8563 = vmatprep.subr.bf16.mxu0 0
    %8564 = vmatpush1.bf16.msra.mxu0 %v8498
    %8565 = vmatprep.subr.bf16.mxu0 0
    %8566 = vmatpush1.bf16.msra.mxu0 %v8499
    %8567 = vmatprep.subr.bf16.mxu0 0
    %8568 = vmatpush1.bf16.msra.mxu0 %v8500
    %8569 = vmatprep.subr.bf16.mxu0 0
    %8570 = vmatpush1.bf16.msra.mxu0 %v8501
    %8571 = vmatprep.subr.bf16.mxu0 0
    %8572 = vmatpush1.bf16.msra.mxu0 %v8502
    %8573 = vmatprep.subr.bf16.mxu0 0
    %8574 = vmatpush1.bf16.msra.mxu0 %v8503
    %8575 = vmatprep.subr.bf16.mxu0 0
    %8576 = vmatpush1.bf16.msra.mxu0 %v8504
    %8577 = vmatprep.subr.bf16.mxu0 0
    %8578 = vmatpush1.bf16.msra.mxu0 %v8505
    %8579 = vmatprep.subr.bf16.mxu0 0
    %8580 = vmatpush1.bf16.msra.mxu0 %v8506
    %8581 = vmatprep.subr.bf16.mxu0 0
    %8582 = vmatpush1.bf16.msra.mxu0 %v8507
    %8583 = vmatprep.subr.bf16.mxu0 0
    %8584 = vmatpush1.bf16.msra.mxu0 %v8508
    %8585 = vmatprep.subr.bf16.mxu0 0
    %8586 = vmatpush1.bf16.msra.mxu0 %v8509
    %8587 = vmatprep.subr.bf16.mxu0 0
    %8588 = vmatpush1.bf16.msra.mxu0 %v8510
    %8589 = vmatprep.subr.bf16.mxu0 0
    %8590 = vmatpush1.bf16.msra.mxu0 %v8511
    %8591 = vmatprep.subr.bf16.mxu0 0
    %8592 = vmatpush1.bf16.msra.mxu0 %v8512
    %8593 = vmatprep.mubr.bf16.mxu0 %v7952
    %8594 = vmatmul.mubr.bf16.gmra.mrb[0].mxu0 %v7951
    %v8595 = vpop.f32.mrb[0].mxu0
    %v8596 = vadd.f32 %v8367, %v8595
    %v8597 = vpop.f32.mrb[0].mxu0
    %v8598 = vpop.f32.mrb[0].mxu0
    %v8599 = vpop.f32.mrb[0].mxu0
    %8600 = vdwg.mxu0
    %8601 = vmatprep.subr.bf16.mxu0 0
    %8602 = vmatpush1.bf16.msra.mxu0 %v8513
    %8603 = vmatprep.subr.bf16.mxu0 0
    %8604 = vmatpush1.bf16.msra.mxu0 %v8514
    %8605 = vmatprep.subr.bf16.mxu0 0
    %8606 = vmatpush1.bf16.msra.mxu0 %v8515
    %8607 = vmatprep.subr.bf16.mxu0 0
    %8608 = vmatpush1.bf16.msra.mxu0 %v8516
    %8609 = vmatprep.subr.bf16.mxu0 0
    %8610 = vmatpush1.bf16.msra.mxu0 %v8517
    %8611 = vmatprep.subr.bf16.mxu0 0
    %8612 = vmatpush1.bf16.msra.mxu0 %v8518
    %8613 = vmatprep.subr.bf16.mxu0 0
    %8614 = vmatpush1.bf16.msra.mxu0 %v8519
    %8615 = vmatprep.subr.bf16.mxu0 0
    %8616 = vmatpush1.bf16.msra.mxu0 %v8520
    %8617 = vmatprep.subr.bf16.mxu0 0
    %8618 = vmatpush1.bf16.msra.mxu0 %v8521
    %8619 = vmatprep.subr.bf16.mxu0 0
    %8620 = vmatpush1.bf16.msra.mxu0 %v8522
    %8621 = vmatprep.subr.bf16.mxu0 0
    %8622 = vmatpush1.bf16.msra.mxu0 %v8523
    %8623 = vmatprep.subr.bf16.mxu0 0
    %8624 = vmatpush1.bf16.msra.mxu0 %v8524
    %8625 = vmatprep.subr.bf16.mxu0 0
    %8626 = vmatpush1.bf16.msra.mxu0 %v8525
    %8627 = vmatprep.subr.bf16.mxu0 0
    %8628 = vmatpush1.bf16.msra.mxu0 %v8526
    %8629 = vmatprep.subr.bf16.mxu0 0
    %8630 = vmatpush1.bf16.msra.mxu0 %v8527
    %8631 = vmatprep.subr.bf16.mxu0 0
    %8632 = vmatpush1.bf16.msra.mxu0 %v8528
    %8633 = vmatprep.mubr.bf16.mxu0 %v7954
    %8634 = vmatmul.mubr.bf16.gmra.mrb[0].mxu0 %v7953
    %v8635 = vpop.f32.mrb[0].mxu0
    %v8636 = vadd.f32 %v8596, %v8635
    %v8637 = vpop.f32.mrb[0].mxu0
    %v8638 = vpop.f32.mrb[0].mxu0
    %v8639 = vpop.f32.mrb[0].mxu0
    %8640 = vdwg.mxu0
    %8642 = vset.pattern.permute.xlu0 0
    %8643 = vperm.xlu0 %8642, %v8293
    %v8644 = vpop.permute.xlu0 %8643
    %v8646 = vadd.f32 %v8644, %v8636
    %vm8647 = vcmask 107520
    %v8648 = vsel %vm8647, %v8636, 0.0
    %8649 = vadd.xlane.f32.xlu0 %v8648
    %v8650 = vpop.xlane.xlu0 %8649
    %v8651 = vrcp.pop 14.0
    %v8652 = vmul.f32 %v8650, %v8651
    %v8653 = vsub.f32 %v8646, %v8652
    %8654 = vst.msk [vmem:[#allocation3] sm:$0x3] %vm8647, %v8653
    // Predicated region
    $region38: #{dueling_forward.7} parent=1 // pred_check
      _
    $region39: #{dueling_forward.7} parent=1 // pred_check_branch
      %8656 = sbr.rel (0) target = $region41
    $region40: #{dueling_forward.7} parent=1 // pred_region
      %s8658 = ssub.s32 32, 32
      %8659 = vsyncadd [#allocation4], %s8658
      %s8661 = sshll.u32 [#allocation3], 4
      %s8662 = int_to_ptr.vmem [resolvable:$true] %s8661
      %8664 = dma.vmem_to_hbm [thread:$0]  %s8662, 32, %s9, [#allocation4]
    $region41: #{dueling_forward.7} parent=1 // pred_fallthru
      _
    // Predicated region
    $region42: #{dueling_forward.7} parent=1 // pred_check
      _
    $region43: #{dueling_forward.7} parent=1 // pred_check_branch
      %8666 = sbr.rel (0) target = $region45
    $region44: #{dueling_forward.7} parent=1 // pred_region
      %8667 = dma.done [#allocation4], 32
    $region45: #{dueling_forward.7} parent=1 // pred_fallthru
      _
    %8668 = vsyncpa [#allocation4], 1

</llo_original>
